<compile_context>
chip_gen: v5e
topology: v5e:2x2
jax: 0.10.0
libtpu: 0.0.40
codegen_flags: <defaults>
</compile_context>

<pallas_src>
import jax
import jax.numpy as jnp
from jax import lax
from jax.experimental import pallas as pl
from jax.experimental.pallas import tpu as pltpu


_VMEM_LIMIT = 32 * 1024 * 1024   # explicit scoped-VMEM budget, safe on v5e/v6e/v7x


def _round_up(x: int, m: int) -> int:
    return (x + m - 1) // m * m


def _pick_batch_tiling(batch: int):
    """Pad batch to a multiple of 16 and pick a batch tile (<=64).  The tile is
    grown only while the grid keeps >=2 steps so both v7x TensorCores get work."""
    bp = _round_up(max(batch, 1), 16)
    tb = 16
    while tb < 64 and bp % (tb * 2) == 0 and bp // (tb * 2) >= 2:
        tb *= 2
    return bp, tb


def _shift_up(m, o: int):
    """result[r] = m[r + o] (static o; the last o rows wrap and are never used)."""
    if o == 0:
        return m
    return jnp.concatenate([m[o:, :], m[:o, :]], axis=0)


# --------------------------------------------------------------------------
# Pallas kernel: the entire LeNet forward for one batch tile
# --------------------------------------------------------------------------
def _lenet_kernel(x_ref, g1w_ref, g2_ref, w3p_ref, b3_ref, w4_ref, o_ref):
    f32 = jnp.float32
    bf16 = jnp.bfloat16

    # Input rows are (image, t) with t in [0,7); columns (c, j) = image row 4t+c, col j.
    x0 = x_ref[...]                                    # (tb*7, 112) bf16
    x1 = _shift_up(x0, 1)                              # image rows 4t+4+c

    # conv1 + ReLU + 2x2 maxpool.  Both 5x5 kernel dims, the pooling-column tap
    # and the (output-row parity, pooling-row tap) are folded into the banded
    # constants g1w[0]/g1w[1]; pooling is then a max of 128-aligned lane slabs.
    acc = (jnp.dot(x0, g1w_ref[0], preferred_element_type=f32) +
           jnp.dot(x1, g1w_ref[1], preferred_element_type=f32))          # (tb*7, 2048)
    y1 = []
    for e in range(2):                                 # parity of pooled row p = 2t + e
        blk = acc[:, e * 1024:(e + 1) * 1024]
        m = jnp.maximum(blk[:, :512], blk[:, 512:])    # max over pooling-row tap
        m = jnp.maximum(m[:, :256], m[:, 256:])        # max over pooling-col tap
        y1.append(jnp.maximum(m, 0.0).astype(bf16))    # (tb*7, 256): (q, ci), valid t<=5

    # conv2 + ReLU + 2x2 maxpool.  Kernel-column dim + pooling-col tap folded
    # into g2; kernel-row dim = 5 accumulated dots on row-shifted y1 views.
    shifted = [_shift_up(y1[v % 2], v // 2) for v in range(6)]  # y1 spatial row 2*p2 + v
    rmax = None
    for ph in range(2):                                # pooling-row tap
        a2 = None
        for kk in range(5):                            # conv kernel row
            part = jnp.dot(shifted[ph + kk], g2_ref[kk], preferred_element_type=f32)
            a2 = part if a2 is None else a2 + part
        cp = jnp.maximum(a2[:, :256], a2[:, 256:])     # max over pooling-col tap
        rmax = cp if rmax is None else jnp.maximum(rmax, cp)
    y2 = jnp.maximum(rmax, 0.0).astype(bf16)           # (tb*7, 256): (q2, co2), valid p2<=3

    # flatten + fc3 (+bias, ReLU): torch's (C,H,W) flatten order is pre-permuted
    # into w3p; the H (p2) dim = 4 accumulated dots on row-shifted y2 views.
    h = None
    for p2 in range(4):
        part = jnp.dot(_shift_up(y2, p2), w3p_ref[p2], preferred_element_type=f32)
        h = part if h is None else h + part
    h = jnp.maximum(h + b3_ref[...], 0.0).astype(bf16)                   # (tb*7, 500)

    # fc4 (no bias)
    logits_all = jnp.dot(h, w4_ref[...], preferred_element_type=f32)     # (tb*7, 10)

    # Compact rows 7*b -> b with a tiny 0/1 selection matmul (stays in VMEM),
    # so the HBM output is exactly (tb, 10) with no padded slab to slice later.
    tb = o_ref.shape[0]
    rows = lax.broadcasted_iota(jnp.int32, (tb, tb * 7), 0)
    cols = lax.broadcasted_iota(jnp.int32, (tb, tb * 7), 1)
    sel = (cols == rows * 7).astype(f32)
    o_ref[...] = jnp.dot(sel, logits_all, preferred_element_type=f32)


# --------------------------------------------------------------------------
# One-time parameter preparation (hoisted out of the per-call forward)
# --------------------------------------------------------------------------
def prepare_params(p):
    """Fold conv kernels, 2x2 pooling-tap layout and torch's flatten order into
    banded bf16 constant matrices, all kept resident in VMEM at run time."""
    f32, bf16 = jnp.float32, jnp.bfloat16
    w1 = p["w1"].astype(f32)            # (20, 1, 5, 5)
    w2 = p["w2"].astype(f32)            # (50, 20, 5, 5)
    w3 = p["w3"].astype(f32)            # (500, 800)
    b3 = p["b3"].astype(f32)            # (500,)
    w4 = p["w4"].astype(f32)            # (10, 500)

    ki = jnp.arange(5)
    kj = jnp.arange(5)
    pw = jnp.arange(2)

    # conv1:  acc[(b,t), s*512 + pw*256 + q*20 + co] = conv1[b, 4t+s, 2q+pw, co]
    s = jnp.arange(4)
    c = jnp.arange(4)
    row0 = (c[None, None, :] - s[None, :, None] == ki[:, None, None]).astype(f32)
    row1 = (c[None, None, :] + 4 - s[None, :, None] == ki[:, None, None]).astype(f32)
    j = jnp.arange(28)
    q = jnp.arange(12)
    col1 = (j[None, :, None, None]
            - (2 * q[None, None, None, :] + pw[None, None, :, None])
            == kj[:, None, None, None]).astype(f32)                      # (kj, j, pw, q)
    w1r = w1[:, 0]                                                        # (co, ki, kj)

    def g1_half(rowind):
        g = jnp.einsum("oab,asc,bjpq->cjspqo", w1r, rowind, col1)        # (c,j,s,pw,q,co)
        g = g.reshape(112, 4, 2, 240)
        g = jnp.pad(g, ((0, 0), (0, 0), (0, 0), (0, 16)))                # lane-align slabs
        return g.reshape(112, 2048)

    g1w = jnp.stack([g1_half(row0), g1_half(row1)], axis=0).astype(bf16)  # (2, 112, 2048)

    # conv2:  per kernel row ki, g2[ki][(q_in, ci), pw2*256 + q2*50 + co2]
    q_in = jnp.arange(12)
    q2 = jnp.arange(4)
    col2 = (q_in[None, :, None, None]
            - (2 * q2[None, None, None, :] + pw[None, None, :, None])
            == kj[:, None, None, None]).astype(f32)                      # (kj, q_in, pw2, q2)
    g2 = jnp.einsum("onab,bjpq->ajnpqo", w2, col2)                        # (ki,q_in,ci,pw2,q2,co2)
    g2 = g2.reshape(5, 240, 2, 200)
    g2 = jnp.pad(g2, ((0, 0), (0, 16), (0, 0), (0, 56)))
    g2 = g2.reshape(5, 256, 512).astype(bf16)

    # fc3: rows reordered from torch's (co2, p2, q2) flatten to our (p2 | q2, co2)
    w3p = w3.reshape(500, 50, 4, 4).transpose(2, 3, 1, 0).reshape(4, 200, 500)
    w3p = jnp.pad(w3p, ((0, 0), (0, 56), (0, 0))).astype(bf16)            # (4, 256, 500)

    return {
        "g1w": g1w,
        "g2": g2,
        "w3p": w3p,
        "b3": b3.reshape(1, 500),
        "w4t": w4.T.astype(bf16),                                         # (500, 10)
    }


# --------------------------------------------------------------------------
# Forward
# --------------------------------------------------------------------------
def lenet_manessi_forward(x, w):
    """x: (B, 1, 28, 28) float32 -> logits (B, 10) float32 (MNIST flavor)."""
    batch = x.shape[0]
    assert x.shape[1:] == (1, 28, 28), "MNIST flavor expects (B, 1, 28, 28) inputs"
    bp, tb = _pick_batch_tiling(batch)

    xb = x[:, 0].astype(jnp.bfloat16)                    # (B, 28, 28)
    if bp != batch:
        xb = jnp.pad(xb, ((0, bp - batch), (0, 0), (0, 0)))
    # rows (b, t), columns (c, j): value = image row 4t+c, col j.  Pure reshape,
    # no im2col expansion; all patch building happens inside the kernel in VMEM.
    xrows = xb.reshape(bp, 7, 4, 28).reshape(bp * 7, 112)

    out = pl.pallas_call(
        _lenet_kernel,
        out_shape=jax.ShapeDtypeStruct((bp, 10), jnp.float32),
        grid=(bp // tb,),
        in_specs=[
            pl.BlockSpec((tb * 7, 112), lambda i: (i, 0)),       # input rows (batch tile)
            pl.BlockSpec((2, 112, 2048), lambda i: (0, 0, 0)),   # conv1 banded weights
            pl.BlockSpec((5, 256, 512), lambda i: (0, 0, 0)),    # conv2 banded weights
            pl.BlockSpec((4, 256, 500), lambda i: (0, 0, 0)),    # fc3 (flatten-permuted)
            pl.BlockSpec((1, 500), lambda i: (0, 0)),            # fc3 bias
            pl.BlockSpec((500, 10), lambda i: (0, 0)),           # fc4
        ],
        out_specs=pl.BlockSpec((tb, 10), lambda i: (i, 0)),
        compiler_params=pltpu.CompilerParams(
            dimension_semantics=("parallel",),
            vmem_limit_bytes=_VMEM_LIMIT,
        ),
    )(xrows, w["g1w"], w["g2"], w["w3p"], w["b3"], w["w4t"])
    return out[:batch]


# --------------------------------------------------------------------------
# Parameters + pure-JAX f32 reference (for a numerical sanity check)
# --------------------------------------------------------------------------
def init_params(key):
    k1, k2, k3, k4, k5 = jax.random.split(key, 5)
    return {
        "w1": jax.random.normal(k1, (20, 1, 5, 5), jnp.float32) * 0.1,   # Conv2d(1,20,5,bias=False)
        "w2": jax.random.normal(k2, (50, 20, 5, 5), jnp.float32) * 0.05,  # Conv2d(20,50,5,bias=False)
        "w3": jax.random.normal(k3, (500, 800), jnp.float32) * 0.02,      # Linear(800,500)
        "b3": jax.random.normal(k4, (500,), jnp.float32) * 0.01,
        "w4": jax.random.normal(k5, (10, 500), jnp.float32) * 0.05,       # Linear(500,10,bias=False)
    }


def _reference_forward(x, p):
    hi = lax.Precision.HIGHEST
    dn = ("NCHW", "OIHW", "NCHW")
    y = lax.conv_general_dilated(x, p["w1"], (1, 1), "VALID", dimension_numbers=dn, precision=hi)
    y = jnp.maximum(y, 0.0)
    y = lax.reduce_window(y, -jnp.inf, lax.max, (1, 1, 2, 2), (1, 1, 2, 2), "VALID")
    y = lax.conv_general_dilated(y, p["w2"], (1, 1), "VALID", dimension_numbers=dn, precision=hi)
    y = jnp.maximum(y, 0.0)
    y = lax.reduce_window(y, -jnp.inf, lax.max, (1, 1, 2, 2), (1, 1, 2, 2), "VALID")
    flat = y.reshape(y.shape[0], -1)                       # torch (C,H,W) flatten order
    h = jnp.maximum(jnp.dot(flat, p["w3"].T, precision=hi) + p["b3"], 0.0)
    return jnp.dot(h, p["w4"].T, precision=hi)


# --------------------------------------------------------------------------
if __name__ == "__main__":
    key = jax.random.PRNGKey(0)
    pkey, xkey = jax.random.split(key)
    params = init_params(pkey)
    prepped = prepare_params(params)          # one-time weight prep (hoisted out of forward)

    # MNIST flavor: (B, 1, 28, 28) so the flattened features equal 4*4*50 = 800.
    x = jax.random.normal(xkey, (2, 1, 28, 28), jnp.float32)

    fwd = jax.jit(lenet_manessi_forward)
    logits = fwd(x, prepped)
    jax.block_until_ready(logits)

    assert logits.shape == (2, 10)
    assert bool(jnp.all(jnp.isfinite(logits)))

    # numerical sanity check vs an f32 XLA reference (kernel uses bf16 MXU operands)
    ref = _reference_forward(x, params)
    err = float(jnp.max(jnp.abs(logits - ref)))
    assert err < 6e-2, f"kernel deviates from reference: max|diff|={err}"

    print("KERNEL_OK")
</pallas_src>

<mosaic_0001>
module attributes {stable_mosaic.version = 11 : i64} {
  func.func @_lenet_kernel(%arg0: i32, %arg1: memref<112x112xbf16, #tpu.memory_space<vmem>>, %arg2: memref<2x112x2048xbf16, #tpu.memory_space<vmem>>, %arg3: memref<5x256x512xbf16, #tpu.memory_space<vmem>>, %arg4: memref<4x256x500xbf16, #tpu.memory_space<vmem>>, %arg5: memref<1x500xf32, #tpu.memory_space<vmem>>, %arg6: memref<500x10xbf16, #tpu.memory_space<vmem>>, %arg7: memref<16x10xf32, #tpu.memory_space<vmem>>) attributes {dimension_semantics = [#tpu.dimension_semantics<parallel>], iteration_bounds = array<i64: 1>, scalar_prefetch = 0 : i64, scratch_operands = 0 : i64, tpu.core_type = #tpu.core_type<tc>, window_params = [{transform_indices = @transform_0, window_bounds = array<i64: 112, 112>}, {pipeline_mode = #tpu.pipeline_mode<synchronous>, transform_indices = @transform_1, window_bounds = array<i64: 2, 112, 2048>}, {pipeline_mode = #tpu.pipeline_mode<synchronous>, transform_indices = @transform_2, window_bounds = array<i64: 5, 256, 512>}, {pipeline_mode = #tpu.pipeline_mode<synchronous>, transform_indices = @transform_3, window_bounds = array<i64: 4, 256, 500>}, {pipeline_mode = #tpu.pipeline_mode<synchronous>, transform_indices = @transform_4, window_bounds = array<i64: 1, 500>}, {pipeline_mode = #tpu.pipeline_mode<synchronous>, transform_indices = @transform_5, window_bounds = array<i64: 500, 10>}, {transform_indices = @transform_6, window_bounds = array<i64: 16, 10>}]} {
    %c0 = arith.constant 0 : index
    %c0_0 = arith.constant 0 : index
    %0 = vector.load %arg1[%c0, %c0_0] : memref<112x112xbf16, #tpu.memory_space<vmem>>, vector<112x112xbf16>
    %1 = vector.extract_strided_slice %0 {offsets = [1, 0], sizes = [111, 112], strides = [1, 1]} : vector<112x112xbf16> to vector<111x112xbf16>
    %2 = vector.extract_strided_slice %0 {offsets = [0, 0], sizes = [1, 112], strides = [1, 1]} : vector<112x112xbf16> to vector<1x112xbf16>
    %3 = tpu.concatenate %1, %2 in 0 : vector<111x112xbf16>, vector<1x112xbf16> -> vector<112x112xbf16>
    %c0_1 = arith.constant 0 : index
    %c0_2 = arith.constant 0 : index
    %c0_3 = arith.constant 0 : index
    %4 = vector.load %arg2[%c0_1, %c0_2, %c0_3] : memref<2x112x2048xbf16, #tpu.memory_space<vmem>>, vector<1x112x2048xbf16>
    %5 = vector.shape_cast %4 : vector<1x112x2048xbf16> to vector<112x2048xbf16>
    %cst = arith.constant dense<0.000000e+00> : vector<112x2048xf32>
    %6 = tpu.matmul %0, %5, %cst {dimension_numbers = #tpu.dot_dimension_numbers<[1], [0], [0], [1], [0, 0, 1, 1], [], []>} : vector<112x112xbf16>, vector<112x2048xbf16>, vector<112x2048xf32> -> vector<112x2048xf32>
    %c1 = arith.constant 1 : index
    %c0_4 = arith.constant 0 : index
    %c0_5 = arith.constant 0 : index
    %7 = vector.load %arg2[%c1, %c0_4, %c0_5] : memref<2x112x2048xbf16, #tpu.memory_space<vmem>>, vector<1x112x2048xbf16>
    %8 = vector.shape_cast %7 : vector<1x112x2048xbf16> to vector<112x2048xbf16>
    %cst_6 = arith.constant dense<0.000000e+00> : vector<112x2048xf32>
    %9 = tpu.matmul %3, %8, %cst_6 {dimension_numbers = #tpu.dot_dimension_numbers<[1], [0], [0], [1], [0, 0, 1, 1], [], []>} : vector<112x112xbf16>, vector<112x2048xbf16>, vector<112x2048xf32> -> vector<112x2048xf32>
    %10 = arith.addf %6, %9 : vector<112x2048xf32>
    %11 = vector.extract_strided_slice %10 {offsets = [0, 0], sizes = [112, 1024], strides = [1, 1]} : vector<112x2048xf32> to vector<112x1024xf32>
    %12 = vector.extract_strided_slice %11 {offsets = [0, 0], sizes = [112, 512], strides = [1, 1]} : vector<112x1024xf32> to vector<112x512xf32>
    %13 = vector.extract_strided_slice %11 {offsets = [0, 512], sizes = [112, 512], strides = [1, 1]} : vector<112x1024xf32> to vector<112x512xf32>
    %14 = arith.maximumf %12, %13 : vector<112x512xf32>
    %15 = vector.extract_strided_slice %14 {offsets = [0, 0], sizes = [112, 256], strides = [1, 1]} : vector<112x512xf32> to vector<112x256xf32>
    %16 = vector.extract_strided_slice %14 {offsets = [0, 256], sizes = [112, 256], strides = [1, 1]} : vector<112x512xf32> to vector<112x256xf32>
    %17 = arith.maximumf %15, %16 : vector<112x256xf32>
    %cst_7 = arith.constant 0.000000e+00 : f32
    %18 = vector.broadcast %cst_7 : f32 to vector<112x256xf32>
    %19 = arith.maximumf %17, %18 : vector<112x256xf32>
    %20 = arith.truncf %19 : vector<112x256xf32> to vector<112x256xbf16>
    %21 = vector.extract_strided_slice %10 {offsets = [0, 1024], sizes = [112, 1024], strides = [1, 1]} : vector<112x2048xf32> to vector<112x1024xf32>
    %22 = vector.extract_strided_slice %21 {offsets = [0, 0], sizes = [112, 512], strides = [1, 1]} : vector<112x1024xf32> to vector<112x512xf32>
    %23 = vector.extract_strided_slice %21 {offsets = [0, 512], sizes = [112, 512], strides = [1, 1]} : vector<112x1024xf32> to vector<112x512xf32>
    %24 = arith.maximumf %22, %23 : vector<112x512xf32>
    %25 = vector.extract_strided_slice %24 {offsets = [0, 0], sizes = [112, 256], strides = [1, 1]} : vector<112x512xf32> to vector<112x256xf32>
    %26 = vector.extract_strided_slice %24 {offsets = [0, 256], sizes = [112, 256], strides = [1, 1]} : vector<112x512xf32> to vector<112x256xf32>
    %27 = arith.maximumf %25, %26 : vector<112x256xf32>
    %cst_8 = arith.constant 0.000000e+00 : f32
    %28 = vector.broadcast %cst_8 : f32 to vector<112x256xf32>
    %29 = arith.maximumf %27, %28 : vector<112x256xf32>
    %30 = arith.truncf %29 : vector<112x256xf32> to vector<112x256xbf16>
    %31 = vector.extract_strided_slice %20 {offsets = [1, 0], sizes = [111, 256], strides = [1, 1]} : vector<112x256xbf16> to vector<111x256xbf16>
    %32 = vector.extract_strided_slice %20 {offsets = [0, 0], sizes = [1, 256], strides = [1, 1]} : vector<112x256xbf16> to vector<1x256xbf16>
    %33 = tpu.concatenate %31, %32 in 0 : vector<111x256xbf16>, vector<1x256xbf16> -> vector<112x256xbf16>
    %34 = vector.extract_strided_slice %30 {offsets = [1, 0], sizes = [111, 256], strides = [1, 1]} : vector<112x256xbf16> to vector<111x256xbf16>
    %35 = vector.extract_strided_slice %30 {offsets = [0, 0], sizes = [1, 256], strides = [1, 1]} : vector<112x256xbf16> to vector<1x256xbf16>
    %36 = tpu.concatenate %34, %35 in 0 : vector<111x256xbf16>, vector<1x256xbf16> -> vector<112x256xbf16>
    %37 = vector.extract_strided_slice %20 {offsets = [2, 0], sizes = [110, 256], strides = [1, 1]} : vector<112x256xbf16> to vector<110x256xbf16>
    %38 = vector.extract_strided_slice %20 {offsets = [0, 0], sizes = [2, 256], strides = [1, 1]} : vector<112x256xbf16> to vector<2x256xbf16>
    %39 = tpu.concatenate %37, %38 in 0 : vector<110x256xbf16>, vector<2x256xbf16> -> vector<112x256xbf16>
    %40 = vector.extract_strided_slice %30 {offsets = [2, 0], sizes = [110, 256], strides = [1, 1]} : vector<112x256xbf16> to vector<110x256xbf16>
    %41 = vector.extract_strided_slice %30 {offsets = [0, 0], sizes = [2, 256], strides = [1, 1]} : vector<112x256xbf16> to vector<2x256xbf16>
    %42 = tpu.concatenate %40, %41 in 0 : vector<110x256xbf16>, vector<2x256xbf16> -> vector<112x256xbf16>
    %c0_9 = arith.constant 0 : index
    %c0_10 = arith.constant 0 : index
    %c0_11 = arith.constant 0 : index
    %43 = vector.load %arg3[%c0_9, %c0_10, %c0_11] : memref<5x256x512xbf16, #tpu.memory_space<vmem>>, vector<1x256x512xbf16>
    %44 = vector.shape_cast %43 : vector<1x256x512xbf16> to vector<256x512xbf16>
    %cst_12 = arith.constant dense<0.000000e+00> : vector<112x512xf32>
    %45 = tpu.matmul %20, %44, %cst_12 {dimension_numbers = #tpu.dot_dimension_numbers<[1], [0], [0], [1], [0, 0, 1, 1], [], []>} : vector<112x256xbf16>, vector<256x512xbf16>, vector<112x512xf32> -> vector<112x512xf32>
    %c1_13 = arith.constant 1 : index
    %c0_14 = arith.constant 0 : index
    %c0_15 = arith.constant 0 : index
    %46 = vector.load %arg3[%c1_13, %c0_14, %c0_15] : memref<5x256x512xbf16, #tpu.memory_space<vmem>>, vector<1x256x512xbf16>
    %47 = vector.shape_cast %46 : vector<1x256x512xbf16> to vector<256x512xbf16>
    %cst_16 = arith.constant dense<0.000000e+00> : vector<112x512xf32>
    %48 = tpu.matmul %30, %47, %cst_16 {dimension_numbers = #tpu.dot_dimension_numbers<[1], [0], [0], [1], [0, 0, 1, 1], [], []>} : vector<112x256xbf16>, vector<256x512xbf16>, vector<112x512xf32> -> vector<112x512xf32>
    %49 = arith.addf %45, %48 : vector<112x512xf32>
    %c2 = arith.constant 2 : index
    %c0_17 = arith.constant 0 : index
    %c0_18 = arith.constant 0 : index
    %50 = vector.load %arg3[%c2, %c0_17, %c0_18] : memref<5x256x512xbf16, #tpu.memory_space<vmem>>, vector<1x256x512xbf16>
    %51 = vector.shape_cast %50 : vector<1x256x512xbf16> to vector<256x512xbf16>
    %cst_19 = arith.constant dense<0.000000e+00> : vector<112x512xf32>
    %52 = tpu.matmul %33, %51, %cst_19 {dimension_numbers = #tpu.dot_dimension_numbers<[1], [0], [0], [1], [0, 0, 1, 1], [], []>} : vector<112x256xbf16>, vector<256x512xbf16>, vector<112x512xf32> -> vector<112x512xf32>
    %53 = arith.addf %49, %52 : vector<112x512xf32>
    %c3 = arith.constant 3 : index
    %c0_20 = arith.constant 0 : index
    %c0_21 = arith.constant 0 : index
    %54 = vector.load %arg3[%c3, %c0_20, %c0_21] : memref<5x256x512xbf16, #tpu.memory_space<vmem>>, vector<1x256x512xbf16>
    %55 = vector.shape_cast %54 : vector<1x256x512xbf16> to vector<256x512xbf16>
    %cst_22 = arith.constant dense<0.000000e+00> : vector<112x512xf32>
    %56 = tpu.matmul %36, %55, %cst_22 {dimension_numbers = #tpu.dot_dimension_numbers<[1], [0], [0], [1], [0, 0, 1, 1], [], []>} : vector<112x256xbf16>, vector<256x512xbf16>, vector<112x512xf32> -> vector<112x512xf32>
    %57 = arith.addf %53, %56 : vector<112x512xf32>
    %c4 = arith.constant 4 : index
    %c0_23 = arith.constant 0 : index
    %c0_24 = arith.constant 0 : index
    %58 = vector.load %arg3[%c4, %c0_23, %c0_24] : memref<5x256x512xbf16, #tpu.memory_space<vmem>>, vector<1x256x512xbf16>
    %59 = vector.shape_cast %58 : vector<1x256x512xbf16> to vector<256x512xbf16>
    %cst_25 = arith.constant dense<0.000000e+00> : vector<112x512xf32>
    %60 = tpu.matmul %39, %59, %cst_25 {dimension_numbers = #tpu.dot_dimension_numbers<[1], [0], [0], [1], [0, 0, 1, 1], [], []>} : vector<112x256xbf16>, vector<256x512xbf16>, vector<112x512xf32> -> vector<112x512xf32>
    %61 = arith.addf %57, %60 : vector<112x512xf32>
    %62 = vector.extract_strided_slice %61 {offsets = [0, 0], sizes = [112, 256], strides = [1, 1]} : vector<112x512xf32> to vector<112x256xf32>
    %63 = vector.extract_strided_slice %61 {offsets = [0, 256], sizes = [112, 256], strides = [1, 1]} : vector<112x512xf32> to vector<112x256xf32>
    %64 = arith.maximumf %62, %63 : vector<112x256xf32>
    %c0_26 = arith.constant 0 : index
    %c0_27 = arith.constant 0 : index
    %c0_28 = arith.constant 0 : index
    %65 = vector.load %arg3[%c0_26, %c0_27, %c0_28] : memref<5x256x512xbf16, #tpu.memory_space<vmem>>, vector<1x256x512xbf16>
    %66 = vector.shape_cast %65 : vector<1x256x512xbf16> to vector<256x512xbf16>
    %cst_29 = arith.constant dense<0.000000e+00> : vector<112x512xf32>
    %67 = tpu.matmul %30, %66, %cst_29 {dimension_numbers = #tpu.dot_dimension_numbers<[1], [0], [0], [1], [0, 0, 1, 1], [], []>} : vector<112x256xbf16>, vector<256x512xbf16>, vector<112x512xf32> -> vector<112x512xf32>
    %c1_30 = arith.constant 1 : index
    %c0_31 = arith.constant 0 : index
    %c0_32 = arith.constant 0 : index
    %68 = vector.load %arg3[%c1_30, %c0_31, %c0_32] : memref<5x256x512xbf16, #tpu.memory_space<vmem>>, vector<1x256x512xbf16>
    %69 = vector.shape_cast %68 : vector<1x256x512xbf16> to vector<256x512xbf16>
    %cst_33 = arith.constant dense<0.000000e+00> : vector<112x512xf32>
    %70 = tpu.matmul %33, %69, %cst_33 {dimension_numbers = #tpu.dot_dimension_numbers<[1], [0], [0], [1], [0, 0, 1, 1], [], []>} : vector<112x256xbf16>, vector<256x512xbf16>, vector<112x512xf32> -> vector<112x512xf32>
    %71 = arith.addf %67, %70 : vector<112x512xf32>
    %c2_34 = arith.constant 2 : index
    %c0_35 = arith.constant 0 : index
    %c0_36 = arith.constant 0 : index
    %72 = vector.load %arg3[%c2_34, %c0_35, %c0_36] : memref<5x256x512xbf16, #tpu.memory_space<vmem>>, vector<1x256x512xbf16>
    %73 = vector.shape_cast %72 : vector<1x256x512xbf16> to vector<256x512xbf16>
    %cst_37 = arith.constant dense<0.000000e+00> : vector<112x512xf32>
    %74 = tpu.matmul %36, %73, %cst_37 {dimension_numbers = #tpu.dot_dimension_numbers<[1], [0], [0], [1], [0, 0, 1, 1], [], []>} : vector<112x256xbf16>, vector<256x512xbf16>, vector<112x512xf32> -> vector<112x512xf32>
    %75 = arith.addf %71, %74 : vector<112x512xf32>
    %c3_38 = arith.constant 3 : index
    %c0_39 = arith.constant 0 : index
    %c0_40 = arith.constant 0 : index
    %76 = vector.load %arg3[%c3_38, %c0_39, %c0_40] : memref<5x256x512xbf16, #tpu.memory_space<vmem>>, vector<1x256x512xbf16>
    %77 = vector.shape_cast %76 : vector<1x256x512xbf16> to vector<256x512xbf16>
    %cst_41 = arith.constant dense<0.000000e+00> : vector<112x512xf32>
    %78 = tpu.matmul %39, %77, %cst_41 {dimension_numbers = #tpu.dot_dimension_numbers<[1], [0], [0], [1], [0, 0, 1, 1], [], []>} : vector<112x256xbf16>, vector<256x512xbf16>, vector<112x512xf32> -> vector<112x512xf32>
    %79 = arith.addf %75, %78 : vector<112x512xf32>
    %c4_42 = arith.constant 4 : index
    %c0_43 = arith.constant 0 : index
    %c0_44 = arith.constant 0 : index
    %80 = vector.load %arg3[%c4_42, %c0_43, %c0_44] : memref<5x256x512xbf16, #tpu.memory_space<vmem>>, vector<1x256x512xbf16>
    %81 = vector.shape_cast %80 : vector<1x256x512xbf16> to vector<256x512xbf16>
    %cst_45 = arith.constant dense<0.000000e+00> : vector<112x512xf32>
    %82 = tpu.matmul %42, %81, %cst_45 {dimension_numbers = #tpu.dot_dimension_numbers<[1], [0], [0], [1], [0, 0, 1, 1], [], []>} : vector<112x256xbf16>, vector<256x512xbf16>, vector<112x512xf32> -> vector<112x512xf32>
    %83 = arith.addf %79, %82 : vector<112x512xf32>
    %84 = vector.extract_strided_slice %83 {offsets = [0, 0], sizes = [112, 256], strides = [1, 1]} : vector<112x512xf32> to vector<112x256xf32>
    %85 = vector.extract_strided_slice %83 {offsets = [0, 256], sizes = [112, 256], strides = [1, 1]} : vector<112x512xf32> to vector<112x256xf32>
    %86 = arith.maximumf %84, %85 : vector<112x256xf32>
    %87 = arith.maximumf %64, %86 : vector<112x256xf32>
    %cst_46 = arith.constant 0.000000e+00 : f32
    %88 = vector.broadcast %cst_46 : f32 to vector<112x256xf32>
    %89 = arith.maximumf %87, %88 : vector<112x256xf32>
    %90 = arith.truncf %89 : vector<112x256xf32> to vector<112x256xbf16>
    %c0_47 = arith.constant 0 : index
    %c0_48 = arith.constant 0 : index
    %c0_49 = arith.constant 0 : index
    %91 = vector.load %arg4[%c0_47, %c0_48, %c0_49] : memref<4x256x500xbf16, #tpu.memory_space<vmem>>, vector<1x256x500xbf16>
    %92 = vector.shape_cast %91 : vector<1x256x500xbf16> to vector<256x500xbf16>
    %cst_50 = arith.constant dense<0.000000e+00> : vector<112x500xf32>
    %93 = tpu.matmul %90, %92, %cst_50 {dimension_numbers = #tpu.dot_dimension_numbers<[1], [0], [0], [1], [0, 0, 1, 1], [], []>} : vector<112x256xbf16>, vector<256x500xbf16>, vector<112x500xf32> -> vector<112x500xf32>
    %94 = vector.extract_strided_slice %90 {offsets = [1, 0], sizes = [111, 256], strides = [1, 1]} : vector<112x256xbf16> to vector<111x256xbf16>
    %95 = vector.extract_strided_slice %90 {offsets = [0, 0], sizes = [1, 256], strides = [1, 1]} : vector<112x256xbf16> to vector<1x256xbf16>
    %96 = tpu.concatenate %94, %95 in 0 : vector<111x256xbf16>, vector<1x256xbf16> -> vector<112x256xbf16>
    %c1_51 = arith.constant 1 : index
    %c0_52 = arith.constant 0 : index
    %c0_53 = arith.constant 0 : index
    %97 = vector.load %arg4[%c1_51, %c0_52, %c0_53] : memref<4x256x500xbf16, #tpu.memory_space<vmem>>, vector<1x256x500xbf16>
    %98 = vector.shape_cast %97 : vector<1x256x500xbf16> to vector<256x500xbf16>
    %cst_54 = arith.constant dense<0.000000e+00> : vector<112x500xf32>
    %99 = tpu.matmul %96, %98, %cst_54 {dimension_numbers = #tpu.dot_dimension_numbers<[1], [0], [0], [1], [0, 0, 1, 1], [], []>} : vector<112x256xbf16>, vector<256x500xbf16>, vector<112x500xf32> -> vector<112x500xf32>
    %100 = arith.addf %93, %99 : vector<112x500xf32>
    %101 = vector.extract_strided_slice %90 {offsets = [2, 0], sizes = [110, 256], strides = [1, 1]} : vector<112x256xbf16> to vector<110x256xbf16>
    %102 = vector.extract_strided_slice %90 {offsets = [0, 0], sizes = [2, 256], strides = [1, 1]} : vector<112x256xbf16> to vector<2x256xbf16>
    %103 = tpu.concatenate %101, %102 in 0 : vector<110x256xbf16>, vector<2x256xbf16> -> vector<112x256xbf16>
    %c2_55 = arith.constant 2 : index
    %c0_56 = arith.constant 0 : index
    %c0_57 = arith.constant 0 : index
    %104 = vector.load %arg4[%c2_55, %c0_56, %c0_57] : memref<4x256x500xbf16, #tpu.memory_space<vmem>>, vector<1x256x500xbf16>
    %105 = vector.shape_cast %104 : vector<1x256x500xbf16> to vector<256x500xbf16>
    %cst_58 = arith.constant dense<0.000000e+00> : vector<112x500xf32>
    %106 = tpu.matmul %103, %105, %cst_58 {dimension_numbers = #tpu.dot_dimension_numbers<[1], [0], [0], [1], [0, 0, 1, 1], [], []>} : vector<112x256xbf16>, vector<256x500xbf16>, vector<112x500xf32> -> vector<112x500xf32>
    %107 = arith.addf %100, %106 : vector<112x500xf32>
    %108 = vector.extract_strided_slice %90 {offsets = [3, 0], sizes = [109, 256], strides = [1, 1]} : vector<112x256xbf16> to vector<109x256xbf16>
    %109 = vector.extract_strided_slice %90 {offsets = [0, 0], sizes = [3, 256], strides = [1, 1]} : vector<112x256xbf16> to vector<3x256xbf16>
    %110 = tpu.concatenate %108, %109 in 0 : vector<109x256xbf16>, vector<3x256xbf16> -> vector<112x256xbf16>
    %c3_59 = arith.constant 3 : index
    %c0_60 = arith.constant 0 : index
    %c0_61 = arith.constant 0 : index
    %111 = vector.load %arg4[%c3_59, %c0_60, %c0_61] : memref<4x256x500xbf16, #tpu.memory_space<vmem>>, vector<1x256x500xbf16>
    %112 = vector.shape_cast %111 : vector<1x256x500xbf16> to vector<256x500xbf16>
    %cst_62 = arith.constant dense<0.000000e+00> : vector<112x500xf32>
    %113 = tpu.matmul %110, %112, %cst_62 {dimension_numbers = #tpu.dot_dimension_numbers<[1], [0], [0], [1], [0, 0, 1, 1], [], []>} : vector<112x256xbf16>, vector<256x500xbf16>, vector<112x500xf32> -> vector<112x500xf32>
    %114 = arith.addf %107, %113 : vector<112x500xf32>
    %c0_63 = arith.constant 0 : index
    %c0_64 = arith.constant 0 : index
    %115 = vector.load %arg5[%c0_63, %c0_64] : memref<1x500xf32, #tpu.memory_space<vmem>>, vector<1x500xf32>
    %116 = vector.broadcast %115 : vector<1x500xf32> to vector<112x500xf32>
    %117 = arith.addf %114, %116 : vector<112x500xf32>
    %cst_65 = arith.constant 0.000000e+00 : f32
    %118 = vector.broadcast %cst_65 : f32 to vector<112x500xf32>
    %119 = arith.maximumf %117, %118 : vector<112x500xf32>
    %120 = arith.truncf %119 : vector<112x500xf32> to vector<112x500xbf16>
    %c0_66 = arith.constant 0 : index
    %c0_67 = arith.constant 0 : index
    %121 = vector.load %arg6[%c0_66, %c0_67] : memref<500x10xbf16, #tpu.memory_space<vmem>>, vector<500x10xbf16>
    %cst_68 = arith.constant dense<0.000000e+00> : vector<112x10xf32>
    %122 = tpu.matmul %120, %121, %cst_68 {dimension_numbers = #tpu.dot_dimension_numbers<[1], [0], [0], [1], [0, 0, 1, 1], [], []>} : vector<112x500xbf16>, vector<500x10xbf16>, vector<112x10xf32> -> vector<112x10xf32>
    %123 = tpu.iota {dimensions = array<i32: 0>} : vector<16x112xi32>
    %124 = tpu.iota {dimensions = array<i32: 1>} : vector<16x112xi32>
    %c7_i32 = arith.constant 7 : i32
    %125 = vector.broadcast %c7_i32 : i32 to vector<16x112xi32>
    %126 = arith.muli %123, %125 : vector<16x112xi32>
    %127 = arith.cmpi eq, %124, %126 : vector<16x112xi32>
    %128 = arith.extui %127 : vector<16x112xi1> to vector<16x112xi32>
    %129 = arith.sitofp %128 : vector<16x112xi32> to vector<16x112xf32>
    %cst_69 = arith.constant dense<0.000000e+00> : vector<16x10xf32>
    %130 = tpu.matmul %129, %122, %cst_69 {dimension_numbers = #tpu.dot_dimension_numbers<[1], [0], [0], [1], [0, 0, 1, 1], [], []>} : vector<16x112xf32>, vector<112x10xf32>, vector<16x10xf32> -> vector<16x10xf32>
    %c0_70 = arith.constant 0 : index
    %c0_71 = arith.constant 0 : index
    %131 = vector.load %arg7[%c0_70, %c0_71] : memref<16x10xf32, #tpu.memory_space<vmem>>, vector<16x10xf32>
    tpu.vector_store %arg7[%c0_70, %c0_71], %130 {strides = array<i32>} : memref<16x10xf32, #tpu.memory_space<vmem>>, vector<16x10xf32>,
    return
  }
  func.func @transform_0(%arg0: i32) -> (i32, i32) {
    %c0_i32 = arith.constant 0 : i32
    %c0_i32_0 = arith.constant 0 : i32
    return %arg0, %c0_i32 : i32, i32
  }
  func.func @transform_1(%arg0: i32) -> (i32, i32, i32) {
    %c0_i32 = arith.constant 0 : i32
    %c0_i32_0 = arith.constant 0 : i32
    %c0_i32_1 = arith.constant 0 : i32
    %c0_i32_2 = arith.constant 0 : i32
    return %c0_i32, %c0_i32_0, %c0_i32_1 : i32, i32, i32
  }
  func.func @transform_2(%arg0: i32) -> (i32, i32, i32) {
    %c0_i32 = arith.constant 0 : i32
    %c0_i32_0 = arith.constant 0 : i32
    %c0_i32_1 = arith.constant 0 : i32
    %c0_i32_2 = arith.constant 0 : i32
    return %c0_i32, %c0_i32_0, %c0_i32_1 : i32, i32, i32
  }
  func.func @transform_3(%arg0: i32) -> (i32, i32, i32) {
    %c0_i32 = arith.constant 0 : i32
    %c0_i32_0 = arith.constant 0 : i32
    %c0_i32_1 = arith.constant 0 : i32
    %c0_i32_2 = arith.constant 0 : i32
    return %c0_i32, %c0_i32_0, %c0_i32_1 : i32, i32, i32
  }
  func.func @transform_4(%arg0: i32) -> (i32, i32) {
    %c0_i32 = arith.constant 0 : i32
    %c0_i32_0 = arith.constant 0 : i32
    %c0_i32_1 = arith.constant 0 : i32
    return %c0_i32, %c0_i32_0 : i32, i32
  }
  func.func @transform_5(%arg0: i32) -> (i32, i32) {
    %c0_i32 = arith.constant 0 : i32
    %c0_i32_0 = arith.constant 0 : i32
    %c0_i32_1 = arith.constant 0 : i32
    return %c0_i32, %c0_i32_0 : i32, i32
  }
  func.func @transform_6(%arg0: i32) -> (i32, i32) {
    %c0_i32 = arith.constant 0 : i32
    %c0_i32_0 = arith.constant 0 : i32
    return %arg0, %c0_i32 : i32, i32
  }
}

</mosaic_0001>

<llo_original>
// kernel: lenet_manessi_forward.1
$region0: #{lenet_manessi_forward.1}
  #allocation0 [shape = 'u32[]', space=smem, size = 0x4, offset = 0x4, fixed_abs, tag = 'smem constant byte address 0x4 - core index']
  #allocation1 [shape = 'u32[72,128]{1,0:T(1,128)}', space=vmem, size = 0x9000, scoped, tag = 'internal scratch']
  %s0 = inlined_call_operand.vmem [shape: bf16[112,112], index: 0, kind: input, shape index: {}]
  %s1 = inlined_call_operand.vmem [shape: bf16[2,112,2048], index: 1, kind: input, shape index: {}]
  %s2 = inlined_call_operand.vmem [shape: bf16[5,256,512], index: 2, kind: input, shape index: {}]
  %s3 = inlined_call_operand.vmem [shape: bf16[4,256,500], index: 3, kind: input, shape index: {}]
  %s4 = inlined_call_operand.vmem [shape: f32[1,500], index: 4, kind: input, shape index: {}]
  %s5 = inlined_call_operand.vmem [shape: bf16[500,10], index: 5, kind: input, shape index: {}]
  %s6 = inlined_call_operand.vmem [shape: f32[16,10], index: 6, kind: output, shape index: {}]
  %s7 = sld [smem:[#allocation0]]
  $region34: #{lenet_manessi_forward.1} parent=0
    _
  %s9 = ssub.s32 1, %s7
  %s10 = scalar_select 0, %s9, %s7
  // Predicated region
  $region2: #{lenet_manessi_forward.1} parent=0 // pred_check
    _
  $region3: #{lenet_manessi_forward.1} parent=0 // pred_check_branch
    %12 = sbr.rel (0) target = $region5
  $region4: #{lenet_manessi_forward.1} parent=0 // pred_region
    _
  $region5: #{lenet_manessi_forward.1} parent=0 // pred_fallthru
    _
  // Predicated region
  $region6: #{lenet_manessi_forward.1} parent=0 // pred_check
    _
  $region7: #{lenet_manessi_forward.1} parent=0 // pred_check_branch
    %14 = sbr.rel (0) target = $region9
  $region8: #{lenet_manessi_forward.1} parent=0 // pred_region
    _
  $region9: #{lenet_manessi_forward.1} parent=0 // pred_fallthru
    _
  // Predicated region
  $region10: #{lenet_manessi_forward.1} parent=0 // pred_check
    _
  $region11: #{lenet_manessi_forward.1} parent=0 // pred_check_branch
    %16 = sbr.rel (0) target = $region13
  $region12: #{lenet_manessi_forward.1} parent=0 // pred_region
    _
  $region13: #{lenet_manessi_forward.1} parent=0 // pred_fallthru
    _
  // Predicated region
  $region14: #{lenet_manessi_forward.1} parent=0 // pred_check
    _
  $region15: #{lenet_manessi_forward.1} parent=0 // pred_check_branch
    %18 = sbr.rel (0) target = $region17
  $region16: #{lenet_manessi_forward.1} parent=0 // pred_region
    _
  $region17: #{lenet_manessi_forward.1} parent=0 // pred_fallthru
    _
  // Predicated region
  $region18: #{lenet_manessi_forward.1} parent=0 // pred_check
    _
  $region19: #{lenet_manessi_forward.1} parent=0 // pred_check_branch
    %20 = sbr.rel (0) target = $region21
  $region20: #{lenet_manessi_forward.1} parent=0 // pred_region
    _
  $region21: #{lenet_manessi_forward.1} parent=0 // pred_fallthru
    _
  // Predicated region
  $region22: #{lenet_manessi_forward.1} parent=0 // pred_check
    _
  $region23: #{lenet_manessi_forward.1} parent=0 // pred_check_branch
    %22 = sbr.rel (0) target = $region25
  $region24: #{lenet_manessi_forward.1} parent=0 // pred_region
    _
  $region25: #{lenet_manessi_forward.1} parent=0 // pred_fallthru
    _
  %v24 = vld [vmem:[%s0] sm:$0xf]
  %v25 = vld [vmem:[%s0 + $0x4] sm:$0xf]
  %v26 = vld [vmem:[%s0 + $0x8] sm:$0xf]
  %v27 = vld [vmem:[%s0 + $0xc] sm:$0xf]
  %v28 = vld [vmem:[%s0 + $0x10] sm:$0xf]
  %v29 = vld [vmem:[%s0 + $0x14] sm:$0xf]
  %v30 = vld [vmem:[%s0 + $0x18] sm:$0xf]
  %v31 = vld [vmem:[%s0 + $0x1c] sm:$0xf]
  %v32 = vld [vmem:[%s0 + $0x20] sm:$0xf]
  %v33 = vld [vmem:[%s0 + $0x24] sm:$0xf]
  %v34 = vld [vmem:[%s0 + $0x28] sm:$0xf]
  %v35 = vld [vmem:[%s0 + $0x2c] sm:$0xf]
  %v36 = vld [vmem:[%s0 + $0x30] sm:$0xf]
  %v37 = vld [vmem:[%s0 + $0x34] sm:$0xf]
  %v52 = vunpack.c.l.b16 %v24
  %v53 = vunpack.c.l.b16 %v25
  %v54 = vunpack.c.l.b16 %v26
  %v55 = vunpack.c.l.b16 %v27
  %v56 = vunpack.c.l.b16 %v28
  %v57 = vunpack.c.l.b16 %v29
  %v58 = vunpack.c.l.b16 %v30
  %v59 = vunpack.c.l.b16 %v31
  %v60 = vunpack.c.l.b16 %v32
  %v61 = vunpack.c.l.b16 %v33
  %v62 = vunpack.c.l.b16 %v34
  %v63 = vunpack.c.l.b16 %v35
  %v64 = vunpack.c.l.b16 %v36
  %v65 = vunpack.c.l.b16 %v37
  %v66 = vpack.c.b16 %v53, %v52
  %v67 = vpack.c.b16 %v55, %v54
  %v68 = vpack.c.b16 %v57, %v56
  %v69 = vpack.c.b16 %v59, %v58
  %v70 = vpack.c.b16 %v61, %v60
  %v71 = vpack.c.b16 %v63, %v62
  %v72 = vpack.c.b16 %v65, %v64
  %vm73 = vsmask.f32 7424
  %v75 = vshrl.u32 %v66, 16
  %v77 = vshll.u32 %v66, 16
  %v79 = vrot.slane %v77, 1
  %v80 = vor.u32 %v75, %v79
  %v82 = vshll.u32 %v67, 16
  %v84 = vrot.slane %v82, 1
  %v85 = vsel %vm73, %v80, %v84
  %v86 = vshrl.u32 %v67, 16
  %v88 = vor.u32 %v86, %v84
  %v90 = vshll.u32 %v68, 16
  %v92 = vrot.slane %v90, 1
  %v93 = vsel %vm73, %v88, %v92
  %v94 = vshrl.u32 %v68, 16
  %v96 = vor.u32 %v94, %v92
  %v98 = vshll.u32 %v69, 16
  %v100 = vrot.slane %v98, 1
  %v101 = vsel %vm73, %v96, %v100
  %v102 = vshrl.u32 %v69, 16
  %v104 = vor.u32 %v102, %v100
  %v106 = vshll.u32 %v70, 16
  %v108 = vrot.slane %v106, 1
  %v109 = vsel %vm73, %v104, %v108
  %v110 = vshrl.u32 %v70, 16
  %v112 = vor.u32 %v110, %v108
  %v114 = vshll.u32 %v71, 16
  %v116 = vrot.slane %v114, 1
  %v117 = vsel %vm73, %v112, %v116
  %v118 = vshrl.u32 %v71, 16
  %v120 = vor.u32 %v118, %v116
  %v122 = vshll.u32 %v72, 16
  %v124 = vrot.slane %v122, 1
  %v125 = vsel %vm73, %v120, %v124
  %v126 = vshrl.u32 %v72, 16
  %v128 = vor.u32 %v126, %v124
  %v130 = vpack.c.b16 %v52, %v52
  %v132 = vshll.u32 %v130, 16
  %v134 = vrot.slane %v132, 1
  %vm136 = vcmask 1047552
  %vm137 = vmand %vm136, %vm73
  %v138 = vsel %vm137, %v128, %v134
  %v139 = vld [vmem:[%s1] sm:$0xff]
  %v140 = vld [vmem:[%s1 + $0x8] sm:$0xff]
  %v141 = vld [vmem:[%s1 + $0x10] sm:$0xff]
  %v142 = vld [vmem:[%s1 + $0x18] sm:$0xff]
  %v143 = vld [vmem:[%s1 + $0x20] sm:$0xff]
  %v144 = vld [vmem:[%s1 + $0x28] sm:$0xff]
  %v145 = vld [vmem:[%s1 + $0x30] sm:$0xff]
  %v146 = vld [vmem:[%s1 + $0x38] sm:$0xff]
  %v147 = vld [vmem:[%s1 + $0x40] sm:$0xff]
  %v148 = vld [vmem:[%s1 + $0x48] sm:$0xff]
  %v149 = vld [vmem:[%s1 + $0x50] sm:$0xff]
  %v150 = vld [vmem:[%s1 + $0x58] sm:$0xff]
  %v151 = vld [vmem:[%s1 + $0x60] sm:$0xff]
  %v152 = vld [vmem:[%s1 + $0x68] sm:$0xff]
  %v153 = vld [vmem:[%s1 + $0x70] sm:$0xff]
  %v154 = vld [vmem:[%s1 + $0x78] sm:$0xff]
  %v155 = vld [vmem:[%s1 + $0x80] sm:$0xff]
  %v156 = vld [vmem:[%s1 + $0x88] sm:$0xff]
  %v157 = vld [vmem:[%s1 + $0x90] sm:$0xff]
  %v158 = vld [vmem:[%s1 + $0x98] sm:$0xff]
  %v159 = vld [vmem:[%s1 + $0xa0] sm:$0xff]
  %v160 = vld [vmem:[%s1 + $0xa8] sm:$0xff]
  %v161 = vld [vmem:[%s1 + $0xb0] sm:$0xff]
  %v162 = vld [vmem:[%s1 + $0xb8] sm:$0xff]
  %v163 = vld [vmem:[%s1 + $0xc0] sm:$0xff]
  %v164 = vld [vmem:[%s1 + $0xc8] sm:$0xff]
  %v165 = vld [vmem:[%s1 + $0xd0] sm:$0xff]
  %v166 = vld [vmem:[%s1 + $0xd8] sm:$0xff]
  %v167 = vld [vmem:[%s1 + $0xe0] sm:$0xff]
  %v168 = vld [vmem:[%s1 + $0xe8] sm:$0xff]
  %v169 = vld [vmem:[%s1 + $0xf0] sm:$0xff]
  %v170 = vld [vmem:[%s1 + $0xf8] sm:$0xff]
  %v171 = vld [vmem:[%s1 + $0x100] sm:$0xff]
  %v172 = vld [vmem:[%s1 + $0x108] sm:$0xff]
  %v173 = vld [vmem:[%s1 + $0x110] sm:$0xff]
  %v174 = vld [vmem:[%s1 + $0x118] sm:$0xff]
  %v175 = vld [vmem:[%s1 + $0x120] sm:$0xff]
  %v176 = vld [vmem:[%s1 + $0x128] sm:$0xff]
  %v177 = vld [vmem:[%s1 + $0x130] sm:$0xff]
  %v178 = vld [vmem:[%s1 + $0x138] sm:$0xff]
  %v179 = vld [vmem:[%s1 + $0x140] sm:$0xff]
  %v180 = vld [vmem:[%s1 + $0x148] sm:$0xff]
  %v181 = vld [vmem:[%s1 + $0x150] sm:$0xff]
  %v182 = vld [vmem:[%s1 + $0x158] sm:$0xff]
  %v183 = vld [vmem:[%s1 + $0x160] sm:$0xff]
  %v184 = vld [vmem:[%s1 + $0x168] sm:$0xff]
  %v185 = vld [vmem:[%s1 + $0x170] sm:$0xff]
  %v186 = vld [vmem:[%s1 + $0x178] sm:$0xff]
  %v187 = vld [vmem:[%s1 + $0x180] sm:$0xff]
  %v188 = vld [vmem:[%s1 + $0x188] sm:$0xff]
  %v189 = vld [vmem:[%s1 + $0x190] sm:$0xff]
  %v190 = vld [vmem:[%s1 + $0x198] sm:$0xff]
  %v191 = vld [vmem:[%s1 + $0x1a0] sm:$0xff]
  %v192 = vld [vmem:[%s1 + $0x1a8] sm:$0xff]
  %v193 = vld [vmem:[%s1 + $0x1b0] sm:$0xff]
  %v194 = vld [vmem:[%s1 + $0x1b8] sm:$0xff]
  %v195 = vld [vmem:[%s1 + $0x1c0] sm:$0xff]
  %v196 = vld [vmem:[%s1 + $0x1c8] sm:$0xff]
  %v197 = vld [vmem:[%s1 + $0x1d0] sm:$0xff]
  %v198 = vld [vmem:[%s1 + $0x1d8] sm:$0xff]
  %v199 = vld [vmem:[%s1 + $0x1e0] sm:$0xff]
  %v200 = vld [vmem:[%s1 + $0x1e8] sm:$0xff]
  %v201 = vld [vmem:[%s1 + $0x1f0] sm:$0xff]
  %v202 = vld [vmem:[%s1 + $0x1f8] sm:$0xff]
  %v203 = vld [vmem:[%s1 + $0x200] sm:$0xff]
  %v204 = vld [vmem:[%s1 + $0x208] sm:$0xff]
  %v205 = vld [vmem:[%s1 + $0x210] sm:$0xff]
  %v206 = vld [vmem:[%s1 + $0x218] sm:$0xff]
  %v207 = vld [vmem:[%s1 + $0x220] sm:$0xff]
  %v208 = vld [vmem:[%s1 + $0x228] sm:$0xff]
  %v209 = vld [vmem:[%s1 + $0x230] sm:$0xff]
  %v210 = vld [vmem:[%s1 + $0x238] sm:$0xff]
  %v211 = vld [vmem:[%s1 + $0x240] sm:$0xff]
  %v212 = vld [vmem:[%s1 + $0x248] sm:$0xff]
  %v213 = vld [vmem:[%s1 + $0x250] sm:$0xff]
  %v214 = vld [vmem:[%s1 + $0x258] sm:$0xff]
  %v215 = vld [vmem:[%s1 + $0x260] sm:$0xff]
  %v216 = vld [vmem:[%s1 + $0x268] sm:$0xff]
  %v217 = vld [vmem:[%s1 + $0x270] sm:$0xff]
  %v218 = vld [vmem:[%s1 + $0x278] sm:$0xff]
  %v219 = vld [vmem:[%s1 + $0x280] sm:$0xff]
  %v220 = vld [vmem:[%s1 + $0x288] sm:$0xff]
  %v221 = vld [vmem:[%s1 + $0x290] sm:$0xff]
  %v222 = vld [vmem:[%s1 + $0x298] sm:$0xff]
  %v223 = vld [vmem:[%s1 + $0x2a0] sm:$0xff]
  %v224 = vld [vmem:[%s1 + $0x2a8] sm:$0xff]
  %v225 = vld [vmem:[%s1 + $0x2b0] sm:$0xff]
  %v226 = vld [vmem:[%s1 + $0x2b8] sm:$0xff]
  %v227 = vld [vmem:[%s1 + $0x2c0] sm:$0xff]
  %v228 = vld [vmem:[%s1 + $0x2c8] sm:$0xff]
  %v229 = vld [vmem:[%s1 + $0x2d0] sm:$0xff]
  %v230 = vld [vmem:[%s1 + $0x2d8] sm:$0xff]
  %v231 = vld [vmem:[%s1 + $0x2e0] sm:$0xff]
  %v232 = vld [vmem:[%s1 + $0x2e8] sm:$0xff]
  %v233 = vld [vmem:[%s1 + $0x2f0] sm:$0xff]
  %v234 = vld [vmem:[%s1 + $0x2f8] sm:$0xff]
  %v235 = vld [vmem:[%s1 + $0x300] sm:$0xff]
  %v236 = vld [vmem:[%s1 + $0x308] sm:$0xff]
  %v237 = vld [vmem:[%s1 + $0x310] sm:$0xff]
  %v238 = vld [vmem:[%s1 + $0x318] sm:$0xff]
  %v239 = vld [vmem:[%s1 + $0x320] sm:$0xff]
  %v240 = vld [vmem:[%s1 + $0x328] sm:$0xff]
  %v241 = vld [vmem:[%s1 + $0x330] sm:$0xff]
  %v242 = vld [vmem:[%s1 + $0x338] sm:$0xff]
  %v243 = vld [vmem:[%s1 + $0x340] sm:$0xff]
  %v244 = vld [vmem:[%s1 + $0x348] sm:$0xff]
  %v245 = vld [vmem:[%s1 + $0x350] sm:$0xff]
  %v246 = vld [vmem:[%s1 + $0x358] sm:$0xff]
  %v247 = vld [vmem:[%s1 + $0x360] sm:$0xff]
  %v248 = vld [vmem:[%s1 + $0x368] sm:$0xff]
  %v249 = vld [vmem:[%s1 + $0x370] sm:$0xff]
  %v250 = vld [vmem:[%s1 + $0x378] sm:$0xff]
  %s251 = scalar_lea.vmem %s1, 896
  %v252 = vld [vmem:[%s251] sm:$0xff]
  %v253 = vld [vmem:[%s251 + $0x8] sm:$0xff]
  %v254 = vld [vmem:[%s251 + $0x10] sm:$0xff]
  %v255 = vld [vmem:[%s251 + $0x18] sm:$0xff]
  %v256 = vld [vmem:[%s251 + $0x20] sm:$0xff]
  %v257 = vld [vmem:[%s251 + $0x28] sm:$0xff]
  %v258 = vld [vmem:[%s251 + $0x30] sm:$0xff]
  %v259 = vld [vmem:[%s251 + $0x38] sm:$0xff]
  %v260 = vld [vmem:[%s251 + $0x40] sm:$0xff]
  %v261 = vld [vmem:[%s251 + $0x48] sm:$0xff]
  %v262 = vld [vmem:[%s251 + $0x50] sm:$0xff]
  %v263 = vld [vmem:[%s251 + $0x58] sm:$0xff]
  %v264 = vld [vmem:[%s251 + $0x60] sm:$0xff]
  %v265 = vld [vmem:[%s251 + $0x68] sm:$0xff]
  %v266 = vld [vmem:[%s251 + $0x70] sm:$0xff]
  %v267 = vld [vmem:[%s251 + $0x78] sm:$0xff]
  %v268 = vld [vmem:[%s251 + $0x80] sm:$0xff]
  %v269 = vld [vmem:[%s251 + $0x88] sm:$0xff]
  %v270 = vld [vmem:[%s251 + $0x90] sm:$0xff]
  %v271 = vld [vmem:[%s251 + $0x98] sm:$0xff]
  %v272 = vld [vmem:[%s251 + $0xa0] sm:$0xff]
  %v273 = vld [vmem:[%s251 + $0xa8] sm:$0xff]
  %v274 = vld [vmem:[%s251 + $0xb0] sm:$0xff]
  %v275 = vld [vmem:[%s251 + $0xb8] sm:$0xff]
  %v276 = vld [vmem:[%s251 + $0xc0] sm:$0xff]
  %v277 = vld [vmem:[%s251 + $0xc8] sm:$0xff]
  %v278 = vld [vmem:[%s251 + $0xd0] sm:$0xff]
  %v279 = vld [vmem:[%s251 + $0xd8] sm:$0xff]
  %v280 = vld [vmem:[%s251 + $0xe0] sm:$0xff]
  %v281 = vld [vmem:[%s251 + $0xe8] sm:$0xff]
  %v282 = vld [vmem:[%s251 + $0xf0] sm:$0xff]
  %v283 = vld [vmem:[%s251 + $0xf8] sm:$0xff]
  %v284 = vld [vmem:[%s251 + $0x100] sm:$0xff]
  %v285 = vld [vmem:[%s251 + $0x108] sm:$0xff]
  %v286 = vld [vmem:[%s251 + $0x110] sm:$0xff]
  %v287 = vld [vmem:[%s251 + $0x118] sm:$0xff]
  %v288 = vld [vmem:[%s251 + $0x120] sm:$0xff]
  %v289 = vld [vmem:[%s251 + $0x128] sm:$0xff]
  %v290 = vld [vmem:[%s251 + $0x130] sm:$0xff]
  %v291 = vld [vmem:[%s251 + $0x138] sm:$0xff]
  %v292 = vld [vmem:[%s251 + $0x140] sm:$0xff]
  %v293 = vld [vmem:[%s251 + $0x148] sm:$0xff]
  %v294 = vld [vmem:[%s251 + $0x150] sm:$0xff]
  %v295 = vld [vmem:[%s251 + $0x158] sm:$0xff]
  %v296 = vld [vmem:[%s251 + $0x160] sm:$0xff]
  %v297 = vld [vmem:[%s251 + $0x168] sm:$0xff]
  %v298 = vld [vmem:[%s251 + $0x170] sm:$0xff]
  %v299 = vld [vmem:[%s251 + $0x178] sm:$0xff]
  %v300 = vld [vmem:[%s251 + $0x180] sm:$0xff]
  %v301 = vld [vmem:[%s251 + $0x188] sm:$0xff]
  %v302 = vld [vmem:[%s251 + $0x190] sm:$0xff]
  %v303 = vld [vmem:[%s251 + $0x198] sm:$0xff]
  %v304 = vld [vmem:[%s251 + $0x1a0] sm:$0xff]
  %v305 = vld [vmem:[%s251 + $0x1a8] sm:$0xff]
  %v306 = vld [vmem:[%s251 + $0x1b0] sm:$0xff]
  %v307 = vld [vmem:[%s251 + $0x1b8] sm:$0xff]
  %v308 = vld [vmem:[%s251 + $0x1c0] sm:$0xff]
  %v309 = vld [vmem:[%s251 + $0x1c8] sm:$0xff]
  %v310 = vld [vmem:[%s251 + $0x1d0] sm:$0xff]
  %v311 = vld [vmem:[%s251 + $0x1d8] sm:$0xff]
  %v312 = vld [vmem:[%s251 + $0x1e0] sm:$0xff]
  %v313 = vld [vmem:[%s251 + $0x1e8] sm:$0xff]
  %v314 = vld [vmem:[%s251 + $0x1f0] sm:$0xff]
  %v315 = vld [vmem:[%s251 + $0x1f8] sm:$0xff]
  %v316 = vld [vmem:[%s251 + $0x200] sm:$0xff]
  %v317 = vld [vmem:[%s251 + $0x208] sm:$0xff]
  %v318 = vld [vmem:[%s251 + $0x210] sm:$0xff]
  %v319 = vld [vmem:[%s251 + $0x218] sm:$0xff]
  %v320 = vld [vmem:[%s251 + $0x220] sm:$0xff]
  %v321 = vld [vmem:[%s251 + $0x228] sm:$0xff]
  %v322 = vld [vmem:[%s251 + $0x230] sm:$0xff]
  %v323 = vld [vmem:[%s251 + $0x238] sm:$0xff]
  %v324 = vld [vmem:[%s251 + $0x240] sm:$0xff]
  %v325 = vld [vmem:[%s251 + $0x248] sm:$0xff]
  %v326 = vld [vmem:[%s251 + $0x250] sm:$0xff]
  %v327 = vld [vmem:[%s251 + $0x258] sm:$0xff]
  %v328 = vld [vmem:[%s251 + $0x260] sm:$0xff]
  %v329 = vld [vmem:[%s251 + $0x268] sm:$0xff]
  %v330 = vld [vmem:[%s251 + $0x270] sm:$0xff]
  %v331 = vld [vmem:[%s251 + $0x278] sm:$0xff]
  %v332 = vld [vmem:[%s251 + $0x280] sm:$0xff]
  %v333 = vld [vmem:[%s251 + $0x288] sm:$0xff]
  %v334 = vld [vmem:[%s251 + $0x290] sm:$0xff]
  %v335 = vld [vmem:[%s251 + $0x298] sm:$0xff]
  %v336 = vld [vmem:[%s251 + $0x2a0] sm:$0xff]
  %v337 = vld [vmem:[%s251 + $0x2a8] sm:$0xff]
  %v338 = vld [vmem:[%s251 + $0x2b0] sm:$0xff]
  %v339 = vld [vmem:[%s251 + $0x2b8] sm:$0xff]
  %v340 = vld [vmem:[%s251 + $0x2c0] sm:$0xff]
  %v341 = vld [vmem:[%s251 + $0x2c8] sm:$0xff]
  %v342 = vld [vmem:[%s251 + $0x2d0] sm:$0xff]
  %v343 = vld [vmem:[%s251 + $0x2d8] sm:$0xff]
  %v344 = vld [vmem:[%s251 + $0x2e0] sm:$0xff]
  %v345 = vld [vmem:[%s251 + $0x2e8] sm:$0xff]
  %v346 = vld [vmem:[%s251 + $0x2f0] sm:$0xff]
  %v347 = vld [vmem:[%s251 + $0x2f8] sm:$0xff]
  %v348 = vld [vmem:[%s251 + $0x300] sm:$0xff]
  %v349 = vld [vmem:[%s251 + $0x308] sm:$0xff]
  %v350 = vld [vmem:[%s251 + $0x310] sm:$0xff]
  %v351 = vld [vmem:[%s251 + $0x318] sm:$0xff]
  %v352 = vld [vmem:[%s251 + $0x320] sm:$0xff]
  %v353 = vld [vmem:[%s251 + $0x328] sm:$0xff]
  %v354 = vld [vmem:[%s251 + $0x330] sm:$0xff]
  %v355 = vld [vmem:[%s251 + $0x338] sm:$0xff]
  %v356 = vld [vmem:[%s251 + $0x340] sm:$0xff]
  %v357 = vld [vmem:[%s251 + $0x348] sm:$0xff]
  %v358 = vld [vmem:[%s251 + $0x350] sm:$0xff]
  %v359 = vld [vmem:[%s251 + $0x358] sm:$0xff]
  %v360 = vld [vmem:[%s251 + $0x360] sm:$0xff]
  %v361 = vld [vmem:[%s251 + $0x368] sm:$0xff]
  %v362 = vld [vmem:[%s251 + $0x370] sm:$0xff]
  %v363 = vld [vmem:[%s251 + $0x378] sm:$0xff]
  %v476 = vunpack.c.l.b16 %v252
  %v477 = vunpack.c.h.b16 %v252
  %v478 = vunpack.c.l.b16 %v253
  %v479 = vunpack.c.h.b16 %v253
  %v480 = vunpack.c.l.b16 %v254
  %v481 = vunpack.c.h.b16 %v254
  %v482 = vunpack.c.l.b16 %v255
  %v483 = vunpack.c.h.b16 %v255
  %v484 = vunpack.c.l.b16 %v256
  %v485 = vunpack.c.h.b16 %v256
  %v486 = vunpack.c.l.b16 %v257
  %v487 = vunpack.c.h.b16 %v257
  %v488 = vunpack.c.l.b16 %v258
  %v489 = vunpack.c.h.b16 %v258
  %v490 = vunpack.c.l.b16 %v259
  %v491 = vunpack.c.h.b16 %v259
  %v492 = vunpack.c.l.b16 %v260
  %v493 = vunpack.c.h.b16 %v260
  %v494 = vunpack.c.l.b16 %v261
  %v495 = vunpack.c.h.b16 %v261
  %v496 = vunpack.c.l.b16 %v262
  %v497 = vunpack.c.h.b16 %v262
  %v498 = vunpack.c.l.b16 %v263
  %v499 = vunpack.c.h.b16 %v263
  %v500 = vunpack.c.l.b16 %v264
  %v501 = vunpack.c.h.b16 %v264
  %v502 = vunpack.c.l.b16 %v265
  %v503 = vunpack.c.h.b16 %v265
  %v504 = vunpack.c.l.b16 %v266
  %v505 = vunpack.c.h.b16 %v266
  %v506 = vunpack.c.l.b16 %v267
  %v507 = vunpack.c.h.b16 %v267
  %v508 = vunpack.c.l.b16 %v268
  %v509 = vunpack.c.h.b16 %v268
  %v510 = vunpack.c.l.b16 %v269
  %v511 = vunpack.c.h.b16 %v269
  %v512 = vunpack.c.l.b16 %v270
  %v513 = vunpack.c.h.b16 %v270
  %v514 = vunpack.c.l.b16 %v271
  %v515 = vunpack.c.h.b16 %v271
  %v516 = vunpack.c.l.b16 %v272
  %v517 = vunpack.c.h.b16 %v272
  %v518 = vunpack.c.l.b16 %v273
  %v519 = vunpack.c.h.b16 %v273
  %v520 = vunpack.c.l.b16 %v274
  %v521 = vunpack.c.h.b16 %v274
  %v522 = vunpack.c.l.b16 %v275
  %v523 = vunpack.c.h.b16 %v275
  %v524 = vunpack.c.l.b16 %v276
  %v525 = vunpack.c.h.b16 %v276
  %v526 = vunpack.c.l.b16 %v277
  %v527 = vunpack.c.h.b16 %v277
  %v528 = vunpack.c.l.b16 %v278
  %v529 = vunpack.c.h.b16 %v278
  %v530 = vunpack.c.l.b16 %v279
  %v531 = vunpack.c.h.b16 %v279
  %v532 = vunpack.c.l.b16 %v280
  %v533 = vunpack.c.h.b16 %v280
  %v534 = vunpack.c.l.b16 %v281
  %v535 = vunpack.c.h.b16 %v281
  %v536 = vunpack.c.l.b16 %v282
  %v537 = vunpack.c.h.b16 %v282
  %v538 = vunpack.c.l.b16 %v283
  %v539 = vunpack.c.h.b16 %v283
  %v540 = vunpack.c.l.b16 %v284
  %v541 = vunpack.c.h.b16 %v284
  %v542 = vunpack.c.l.b16 %v285
  %v543 = vunpack.c.h.b16 %v285
  %v544 = vunpack.c.l.b16 %v286
  %v545 = vunpack.c.h.b16 %v286
  %v546 = vunpack.c.l.b16 %v287
  %v547 = vunpack.c.h.b16 %v287
  %v548 = vunpack.c.l.b16 %v288
  %v549 = vunpack.c.h.b16 %v288
  %v550 = vunpack.c.l.b16 %v289
  %v551 = vunpack.c.h.b16 %v289
  %v552 = vunpack.c.l.b16 %v290
  %v553 = vunpack.c.h.b16 %v290
  %v554 = vunpack.c.l.b16 %v291
  %v555 = vunpack.c.h.b16 %v291
  %v556 = vunpack.c.l.b16 %v292
  %v557 = vunpack.c.h.b16 %v292
  %v558 = vunpack.c.l.b16 %v293
  %v559 = vunpack.c.h.b16 %v293
  %v560 = vunpack.c.l.b16 %v294
  %v561 = vunpack.c.h.b16 %v294
  %v562 = vunpack.c.l.b16 %v295
  %v563 = vunpack.c.h.b16 %v295
  %v564 = vunpack.c.l.b16 %v296
  %v565 = vunpack.c.h.b16 %v296
  %v566 = vunpack.c.l.b16 %v297
  %v567 = vunpack.c.h.b16 %v297
  %v568 = vunpack.c.l.b16 %v298
  %v569 = vunpack.c.h.b16 %v298
  %v570 = vunpack.c.l.b16 %v299
  %v571 = vunpack.c.h.b16 %v299
  %v572 = vunpack.c.l.b16 %v300
  %v573 = vunpack.c.h.b16 %v300
  %v574 = vunpack.c.l.b16 %v301
  %v575 = vunpack.c.h.b16 %v301
  %v576 = vunpack.c.l.b16 %v302
  %v577 = vunpack.c.h.b16 %v302
  %v578 = vunpack.c.l.b16 %v303
  %v579 = vunpack.c.h.b16 %v303
  %v580 = vunpack.c.l.b16 %v304
  %v581 = vunpack.c.h.b16 %v304
  %v582 = vunpack.c.l.b16 %v305
  %v583 = vunpack.c.h.b16 %v305
  %v584 = vunpack.c.l.b16 %v306
  %v585 = vunpack.c.h.b16 %v306
  %v586 = vunpack.c.l.b16 %v307
  %v587 = vunpack.c.h.b16 %v307
  %v588 = vunpack.c.l.b16 %v308
  %v589 = vunpack.c.h.b16 %v308
  %v590 = vunpack.c.l.b16 %v309
  %v591 = vunpack.c.h.b16 %v309
  %v592 = vunpack.c.l.b16 %v310
  %v593 = vunpack.c.h.b16 %v310
  %v594 = vunpack.c.l.b16 %v311
  %v595 = vunpack.c.h.b16 %v311
  %v596 = vunpack.c.l.b16 %v312
  %v597 = vunpack.c.h.b16 %v312
  %v598 = vunpack.c.l.b16 %v313
  %v599 = vunpack.c.h.b16 %v313
  %v600 = vunpack.c.l.b16 %v314
  %v601 = vunpack.c.h.b16 %v314
  %v602 = vunpack.c.l.b16 %v315
  %v603 = vunpack.c.h.b16 %v315
  %v604 = vunpack.c.l.b16 %v316
  %v605 = vunpack.c.h.b16 %v316
  %v606 = vunpack.c.l.b16 %v317
  %v607 = vunpack.c.h.b16 %v317
  %v608 = vunpack.c.l.b16 %v318
  %v609 = vunpack.c.h.b16 %v318
  %v610 = vunpack.c.l.b16 %v319
  %v611 = vunpack.c.h.b16 %v319
  %v612 = vunpack.c.l.b16 %v320
  %v613 = vunpack.c.h.b16 %v320
  %v614 = vunpack.c.l.b16 %v321
  %v615 = vunpack.c.h.b16 %v321
  %v616 = vunpack.c.l.b16 %v322
  %v617 = vunpack.c.h.b16 %v322
  %v618 = vunpack.c.l.b16 %v323
  %v619 = vunpack.c.h.b16 %v323
  %v620 = vunpack.c.l.b16 %v324
  %v621 = vunpack.c.h.b16 %v324
  %v622 = vunpack.c.l.b16 %v325
  %v623 = vunpack.c.h.b16 %v325
  %v624 = vunpack.c.l.b16 %v326
  %v625 = vunpack.c.h.b16 %v326
  %v626 = vunpack.c.l.b16 %v327
  %v627 = vunpack.c.h.b16 %v327
  %v628 = vunpack.c.l.b16 %v328
  %v629 = vunpack.c.h.b16 %v328
  %v630 = vunpack.c.l.b16 %v329
  %v631 = vunpack.c.h.b16 %v329
  %v632 = vunpack.c.l.b16 %v330
  %v633 = vunpack.c.h.b16 %v330
  %v634 = vunpack.c.l.b16 %v331
  %v635 = vunpack.c.h.b16 %v331
  %v636 = vunpack.c.l.b16 %v332
  %v637 = vunpack.c.h.b16 %v332
  %v638 = vunpack.c.l.b16 %v333
  %v639 = vunpack.c.h.b16 %v333
  %v640 = vunpack.c.l.b16 %v334
  %v641 = vunpack.c.h.b16 %v334
  %v642 = vunpack.c.l.b16 %v335
  %v643 = vunpack.c.h.b16 %v335
  %v644 = vunpack.c.l.b16 %v336
  %v645 = vunpack.c.h.b16 %v336
  %v646 = vunpack.c.l.b16 %v337
  %v647 = vunpack.c.h.b16 %v337
  %v648 = vunpack.c.l.b16 %v338
  %v649 = vunpack.c.h.b16 %v338
  %v650 = vunpack.c.l.b16 %v339
  %v651 = vunpack.c.h.b16 %v339
  %v652 = vunpack.c.l.b16 %v340
  %v653 = vunpack.c.h.b16 %v340
  %v654 = vunpack.c.l.b16 %v341
  %v655 = vunpack.c.h.b16 %v341
  %v656 = vunpack.c.l.b16 %v342
  %v657 = vunpack.c.h.b16 %v342
  %v658 = vunpack.c.l.b16 %v343
  %v659 = vunpack.c.h.b16 %v343
  %v660 = vunpack.c.l.b16 %v344
  %v661 = vunpack.c.h.b16 %v344
  %v662 = vunpack.c.l.b16 %v345
  %v663 = vunpack.c.h.b16 %v345
  %v664 = vunpack.c.l.b16 %v346
  %v665 = vunpack.c.h.b16 %v346
  %v666 = vunpack.c.l.b16 %v347
  %v667 = vunpack.c.h.b16 %v347
  %v668 = vunpack.c.l.b16 %v348
  %v669 = vunpack.c.h.b16 %v348
  %v670 = vunpack.c.l.b16 %v349
  %v671 = vunpack.c.h.b16 %v349
  %v672 = vunpack.c.l.b16 %v350
  %v673 = vunpack.c.h.b16 %v350
  %v674 = vunpack.c.l.b16 %v351
  %v675 = vunpack.c.h.b16 %v351
  %v676 = vunpack.c.l.b16 %v352
  %v677 = vunpack.c.h.b16 %v352
  %v678 = vunpack.c.l.b16 %v353
  %v679 = vunpack.c.h.b16 %v353
  %v680 = vunpack.c.l.b16 %v354
  %v681 = vunpack.c.h.b16 %v354
  %v682 = vunpack.c.l.b16 %v355
  %v683 = vunpack.c.h.b16 %v355
  %v684 = vunpack.c.l.b16 %v356
  %v685 = vunpack.c.h.b16 %v356
  %v686 = vunpack.c.l.b16 %v357
  %v687 = vunpack.c.h.b16 %v357
  %v688 = vunpack.c.l.b16 %v358
  %v689 = vunpack.c.h.b16 %v358
  %v690 = vunpack.c.l.b16 %v359
  %v691 = vunpack.c.h.b16 %v359
  %v692 = vunpack.c.l.b16 %v360
  %v693 = vunpack.c.h.b16 %v360
  %v694 = vunpack.c.l.b16 %v361
  %v695 = vunpack.c.h.b16 %v361
  %v696 = vunpack.c.l.b16 %v362
  %v697 = vunpack.c.h.b16 %v362
  %v698 = vunpack.c.l.b16 %v363
  %v699 = vunpack.c.h.b16 %v363
  %v700 = vpack.c.b16 %v492, %v476
  %v701 = vpack.c.b16 %v493, %v477
  %v702 = vpack.c.b16 %v494, %v478
  %v703 = vpack.c.b16 %v495, %v479
  %v704 = vpack.c.b16 %v496, %v480
  %v705 = vpack.c.b16 %v497, %v481
  %v706 = vpack.c.b16 %v498, %v482
  %v707 = vpack.c.b16 %v499, %v483
  %v708 = vpack.c.b16 %v500, %v484
  %v709 = vpack.c.b16 %v501, %v485
  %v710 = vpack.c.b16 %v502, %v486
  %v711 = vpack.c.b16 %v503, %v487
  %v712 = vpack.c.b16 %v504, %v488
  %v713 = vpack.c.b16 %v505, %v489
  %v714 = vpack.c.b16 %v506, %v490
  %v715 = vpack.c.b16 %v507, %v491
  %v716 = vpack.c.b16 %v524, %v508
  %v717 = vpack.c.b16 %v525, %v509
  %v718 = vpack.c.b16 %v526, %v510
  %v719 = vpack.c.b16 %v527, %v511
  %v720 = vpack.c.b16 %v528, %v512
  %v721 = vpack.c.b16 %v529, %v513
  %v722 = vpack.c.b16 %v530, %v514
  %v723 = vpack.c.b16 %v531, %v515
  %v724 = vpack.c.b16 %v532, %v516
  %v725 = vpack.c.b16 %v533, %v517
  %v726 = vpack.c.b16 %v534, %v518
  %v727 = vpack.c.b16 %v535, %v519
  %v728 = vpack.c.b16 %v536, %v520
  %v729 = vpack.c.b16 %v537, %v521
  %v730 = vpack.c.b16 %v538, %v522
  %v731 = vpack.c.b16 %v539, %v523
  %v732 = vpack.c.b16 %v556, %v540
  %v733 = vpack.c.b16 %v557, %v541
  %v734 = vpack.c.b16 %v558, %v542
  %v735 = vpack.c.b16 %v559, %v543
  %v736 = vpack.c.b16 %v560, %v544
  %v737 = vpack.c.b16 %v561, %v545
  %v738 = vpack.c.b16 %v562, %v546
  %v739 = vpack.c.b16 %v563, %v547
  %v740 = vpack.c.b16 %v564, %v548
  %v741 = vpack.c.b16 %v565, %v549
  %v742 = vpack.c.b16 %v566, %v550
  %v743 = vpack.c.b16 %v567, %v551
  %v744 = vpack.c.b16 %v568, %v552
  %v745 = vpack.c.b16 %v569, %v553
  %v746 = vpack.c.b16 %v570, %v554
  %v747 = vpack.c.b16 %v571, %v555
  %v748 = vpack.c.b16 %v588, %v572
  %v749 = vpack.c.b16 %v589, %v573
  %v750 = vpack.c.b16 %v590, %v574
  %v751 = vpack.c.b16 %v591, %v575
  %v752 = vpack.c.b16 %v592, %v576
  %v753 = vpack.c.b16 %v593, %v577
  %v754 = vpack.c.b16 %v594, %v578
  %v755 = vpack.c.b16 %v595, %v579
  %v756 = vpack.c.b16 %v596, %v580
  %v757 = vpack.c.b16 %v597, %v581
  %v758 = vpack.c.b16 %v598, %v582
  %v759 = vpack.c.b16 %v599, %v583
  %v760 = vpack.c.b16 %v600, %v584
  %v761 = vpack.c.b16 %v601, %v585
  %v762 = vpack.c.b16 %v602, %v586
  %v763 = vpack.c.b16 %v603, %v587
  %v764 = vpack.c.b16 %v620, %v604
  %v765 = vpack.c.b16 %v621, %v605
  %v766 = vpack.c.b16 %v622, %v606
  %v767 = vpack.c.b16 %v623, %v607
  %v768 = vpack.c.b16 %v624, %v608
  %v769 = vpack.c.b16 %v625, %v609
  %v770 = vpack.c.b16 %v626, %v610
  %v771 = vpack.c.b16 %v627, %v611
  %v772 = vpack.c.b16 %v628, %v612
  %v773 = vpack.c.b16 %v629, %v613
  %v774 = vpack.c.b16 %v630, %v614
  %v775 = vpack.c.b16 %v631, %v615
  %v776 = vpack.c.b16 %v632, %v616
  %v777 = vpack.c.b16 %v633, %v617
  %v778 = vpack.c.b16 %v634, %v618
  %v779 = vpack.c.b16 %v635, %v619
  %v780 = vpack.c.b16 %v652, %v636
  %v781 = vpack.c.b16 %v653, %v637
  %v782 = vpack.c.b16 %v654, %v638
  %v783 = vpack.c.b16 %v655, %v639
  %v784 = vpack.c.b16 %v656, %v640
  %v785 = vpack.c.b16 %v657, %v641
  %v786 = vpack.c.b16 %v658, %v642
  %v787 = vpack.c.b16 %v659, %v643
  %v788 = vpack.c.b16 %v660, %v644
  %v789 = vpack.c.b16 %v661, %v645
  %v790 = vpack.c.b16 %v662, %v646
  %v791 = vpack.c.b16 %v663, %v647
  %v792 = vpack.c.b16 %v664, %v648
  %v793 = vpack.c.b16 %v665, %v649
  %v794 = vpack.c.b16 %v666, %v650
  %v795 = vpack.c.b16 %v667, %v651
  %v796 = vpack.c.b16 %v684, %v668
  %v797 = vpack.c.b16 %v685, %v669
  %v798 = vpack.c.b16 %v686, %v670
  %v799 = vpack.c.b16 %v687, %v671
  %v800 = vpack.c.b16 %v688, %v672
  %v801 = vpack.c.b16 %v689, %v673
  %v802 = vpack.c.b16 %v690, %v674
  %v803 = vpack.c.b16 %v691, %v675
  %v804 = vpack.c.b16 %v692, %v676
  %v805 = vpack.c.b16 %v693, %v677
  %v806 = vpack.c.b16 %v694, %v678
  %v807 = vpack.c.b16 %v695, %v679
  %v808 = vpack.c.b16 %v696, %v680
  %v809 = vpack.c.b16 %v697, %v681
  %v810 = vpack.c.b16 %v698, %v682
  %v811 = vpack.c.b16 %v699, %v683
  %vm924 = vcmask 916480
  %v926 = vsel %vm924, %v85, 0
  %v929 = vsel %vm924, %v93, 0
  %v932 = vsel %vm924, %v101, 0
  %v935 = vsel %vm924, %v109, 0
  %v938 = vsel %vm924, %v117, 0
  %v941 = vsel %vm924, %v125, 0
  %v944 = vsel %vm924, %v138, 0
  %946 = vmatpush.bf16.msra.mxu0 0
  %947 = vmatpush.bf16.msra.mxu0 %v796
  %948 = vmatpush.bf16.msra.mxu0 %v780
  %949 = vmatpush.bf16.msra.mxu0 %v764
  %950 = vmatpush.bf16.msra.mxu0 %v748
  %951 = vmatpush.bf16.msra.mxu0 %v732
  %952 = vmatpush.bf16.msra.mxu0 %v716
  %953 = vmatpush.bf16.msra.mxu0 %v700
  %954 = vmatmul.bf16.gmra.mxu0 %v926
  %v955 = vpop.f32.mrf.mxu0
  %v956 = vadd.f32 0.0, %v955
  %v957 = vpop.f32.mrf.mxu0
  %v958 = vadd.f32 0.0, %v957
  %959 = vmatmul.bf16.gmra.mxu0 %v929
  %v960 = vpop.f32.mrf.mxu0
  %v961 = vadd.f32 0.0, %v960
  %v962 = vpop.f32.mrf.mxu0
  %v963 = vadd.f32 0.0, %v962
  %964 = vmatmul.bf16.gmra.mxu0 %v932
  %v965 = vpop.f32.mrf.mxu0
  %v966 = vadd.f32 0.0, %v965
  %v967 = vpop.f32.mrf.mxu0
  %v968 = vadd.f32 0.0, %v967
  %969 = vmatmul.bf16.gmra.mxu0 %v935
  %v970 = vpop.f32.mrf.mxu0
  %v971 = vadd.f32 0.0, %v970
  %v972 = vpop.f32.mrf.mxu0
  %v973 = vadd.f32 0.0, %v972
  %974 = vmatmul.bf16.gmra.mxu0 %v938
  %v975 = vpop.f32.mrf.mxu0
  %v976 = vadd.f32 0.0, %v975
  %v977 = vpop.f32.mrf.mxu0
  %v978 = vadd.f32 0.0, %v977
  %979 = vmatmul.bf16.gmra.mxu0 %v941
  %v980 = vpop.f32.mrf.mxu0
  %v981 = vadd.f32 0.0, %v980
  %v982 = vpop.f32.mrf.mxu0
  %v983 = vadd.f32 0.0, %v982
  %984 = vmatmul.bf16.gmra.mxu0 %v944
  %v985 = vpop.f32.mrf.mxu0
  %v986 = vadd.f32 0.0, %v985
  %v987 = vpop.f32.mrf.mxu0
  %v988 = vadd.f32 0.0, %v987
  %989 = vdwg.mxu0
  %990 = vmatpush.bf16.msra.mxu0 0
  %991 = vmatpush.bf16.msra.mxu0 %v797
  %992 = vmatpush.bf16.msra.mxu0 %v781
  %993 = vmatpush.bf16.msra.mxu0 %v765
  %994 = vmatpush.bf16.msra.mxu0 %v749
  %995 = vmatpush.bf16.msra.mxu0 %v733
  %996 = vmatpush.bf16.msra.mxu0 %v717
  %997 = vmatpush.bf16.msra.mxu0 %v701
  %998 = vmatmul.bf16.gmra.mxu0 %v926
  %v999 = vpop.f32.mrf.mxu0
  %v1000 = vadd.f32 0.0, %v999
  %v1001 = vpop.f32.mrf.mxu0
  %v1002 = vadd.f32 0.0, %v1001
  %1003 = vmatmul.bf16.gmra.mxu0 %v929
  %v1004 = vpop.f32.mrf.mxu0
  %v1005 = vadd.f32 0.0, %v1004
  %v1006 = vpop.f32.mrf.mxu0
  %v1007 = vadd.f32 0.0, %v1006
  %1008 = vmatmul.bf16.gmra.mxu0 %v932
  %v1009 = vpop.f32.mrf.mxu0
  %v1010 = vadd.f32 0.0, %v1009
  %v1011 = vpop.f32.mrf.mxu0
  %v1012 = vadd.f32 0.0, %v1011
  %1013 = vmatmul.bf16.gmra.mxu0 %v935
  %v1014 = vpop.f32.mrf.mxu0
  %v1015 = vadd.f32 0.0, %v1014
  %v1016 = vpop.f32.mrf.mxu0
  %v1017 = vadd.f32 0.0, %v1016
  %1018 = vmatmul.bf16.gmra.mxu0 %v938
  %v1019 = vpop.f32.mrf.mxu0
  %v1020 = vadd.f32 0.0, %v1019
  %v1021 = vpop.f32.mrf.mxu0
  %v1022 = vadd.f32 0.0, %v1021
  %1023 = vmatmul.bf16.gmra.mxu0 %v941
  %v1024 = vpop.f32.mrf.mxu0
  %v1025 = vadd.f32 0.0, %v1024
  %v1026 = vpop.f32.mrf.mxu0
  %v1027 = vadd.f32 0.0, %v1026
  %1028 = vmatmul.bf16.gmra.mxu0 %v944
  %v1029 = vpop.f32.mrf.mxu0
  %v1030 = vadd.f32 0.0, %v1029
  %v1031 = vpop.f32.mrf.mxu0
  %v1032 = vadd.f32 0.0, %v1031
  %1033 = vdwg.mxu0
  %1034 = vmatpush.bf16.msra.mxu0 0
  %1035 = vmatpush.bf16.msra.mxu0 %v798
  %1036 = vmatpush.bf16.msra.mxu0 %v782
  %1037 = vmatpush.bf16.msra.mxu0 %v766
  %1038 = vmatpush.bf16.msra.mxu0 %v750
  %1039 = vmatpush.bf16.msra.mxu0 %v734
  %1040 = vmatpush.bf16.msra.mxu0 %v718
  %1041 = vmatpush.bf16.msra.mxu0 %v702
  %1042 = vmatmul.bf16.gmra.mxu0 %v926
  %v1043 = vpop.f32.mrf.mxu0
  %v1044 = vadd.f32 0.0, %v1043
  %v1045 = vpop.f32.mrf.mxu0
  %v1046 = vadd.f32 0.0, %v1045
  %1047 = vmatmul.bf16.gmra.mxu0 %v929
  %v1048 = vpop.f32.mrf.mxu0
  %v1049 = vadd.f32 0.0, %v1048
  %v1050 = vpop.f32.mrf.mxu0
  %v1051 = vadd.f32 0.0, %v1050
  %1052 = vmatmul.bf16.gmra.mxu0 %v932
  %v1053 = vpop.f32.mrf.mxu0
  %v1054 = vadd.f32 0.0, %v1053
  %v1055 = vpop.f32.mrf.mxu0
  %v1056 = vadd.f32 0.0, %v1055
  %1057 = vmatmul.bf16.gmra.mxu0 %v935
  %v1058 = vpop.f32.mrf.mxu0
  %v1059 = vadd.f32 0.0, %v1058
  %v1060 = vpop.f32.mrf.mxu0
  %v1061 = vadd.f32 0.0, %v1060
  %1062 = vmatmul.bf16.gmra.mxu0 %v938
  %v1063 = vpop.f32.mrf.mxu0
  %v1064 = vadd.f32 0.0, %v1063
  %v1065 = vpop.f32.mrf.mxu0
  %v1066 = vadd.f32 0.0, %v1065
  %1067 = vmatmul.bf16.gmra.mxu0 %v941
  %v1068 = vpop.f32.mrf.mxu0
  %v1069 = vadd.f32 0.0, %v1068
  %v1070 = vpop.f32.mrf.mxu0
  %v1071 = vadd.f32 0.0, %v1070
  %1072 = vmatmul.bf16.gmra.mxu0 %v944
  %v1073 = vpop.f32.mrf.mxu0
  %v1074 = vadd.f32 0.0, %v1073
  %v1075 = vpop.f32.mrf.mxu0
  %v1076 = vadd.f32 0.0, %v1075
  %1077 = vdwg.mxu0
  %1078 = vmatpush.bf16.msra.mxu0 0
  %1079 = vmatpush.bf16.msra.mxu0 %v799
  %1080 = vmatpush.bf16.msra.mxu0 %v783
  %1081 = vmatpush.bf16.msra.mxu0 %v767
  %1082 = vmatpush.bf16.msra.mxu0 %v751
  %1083 = vmatpush.bf16.msra.mxu0 %v735
  %1084 = vmatpush.bf16.msra.mxu0 %v719
  %1085 = vmatpush.bf16.msra.mxu0 %v703
  %1086 = vmatmul.bf16.gmra.mxu0 %v926
  %v1087 = vpop.f32.mrf.mxu0
  %v1088 = vadd.f32 0.0, %v1087
  %v1089 = vpop.f32.mrf.mxu0
  %v1090 = vadd.f32 0.0, %v1089
  %1091 = vmatmul.bf16.gmra.mxu0 %v929
  %v1092 = vpop.f32.mrf.mxu0
  %v1093 = vadd.f32 0.0, %v1092
  %v1094 = vpop.f32.mrf.mxu0
  %v1095 = vadd.f32 0.0, %v1094
  %1096 = vmatmul.bf16.gmra.mxu0 %v932
  %v1097 = vpop.f32.mrf.mxu0
  %v1098 = vadd.f32 0.0, %v1097
  %v1099 = vpop.f32.mrf.mxu0
  %v1100 = vadd.f32 0.0, %v1099
  %1101 = vmatmul.bf16.gmra.mxu0 %v935
  %v1102 = vpop.f32.mrf.mxu0
  %v1103 = vadd.f32 0.0, %v1102
  %v1104 = vpop.f32.mrf.mxu0
  %v1105 = vadd.f32 0.0, %v1104
  %1106 = vmatmul.bf16.gmra.mxu0 %v938
  %v1107 = vpop.f32.mrf.mxu0
  %v1108 = vadd.f32 0.0, %v1107
  %v1109 = vpop.f32.mrf.mxu0
  %v1110 = vadd.f32 0.0, %v1109
  %1111 = vmatmul.bf16.gmra.mxu0 %v941
  %v1112 = vpop.f32.mrf.mxu0
  %v1113 = vadd.f32 0.0, %v1112
  %v1114 = vpop.f32.mrf.mxu0
  %v1115 = vadd.f32 0.0, %v1114
  %1116 = vmatmul.bf16.gmra.mxu0 %v944
  %v1117 = vpop.f32.mrf.mxu0
  %v1118 = vadd.f32 0.0, %v1117
  %v1119 = vpop.f32.mrf.mxu0
  %v1120 = vadd.f32 0.0, %v1119
  %1121 = vdwg.mxu0
  %1122 = vmatpush.bf16.msra.mxu0 0
  %1123 = vmatpush.bf16.msra.mxu0 %v800
  %1124 = vmatpush.bf16.msra.mxu0 %v784
  %1125 = vmatpush.bf16.msra.mxu0 %v768
  %1126 = vmatpush.bf16.msra.mxu0 %v752
  %1127 = vmatpush.bf16.msra.mxu0 %v736
  %1128 = vmatpush.bf16.msra.mxu0 %v720
  %1129 = vmatpush.bf16.msra.mxu0 %v704
  %1130 = vmatmul.bf16.gmra.mxu0 %v926
  %v1131 = vpop.f32.mrf.mxu0
  %v1132 = vadd.f32 0.0, %v1131
  %v1133 = vpop.f32.mrf.mxu0
  %v1134 = vadd.f32 0.0, %v1133
  %1135 = vmatmul.bf16.gmra.mxu0 %v929
  %v1136 = vpop.f32.mrf.mxu0
  %v1137 = vadd.f32 0.0, %v1136
  %v1138 = vpop.f32.mrf.mxu0
  %v1139 = vadd.f32 0.0, %v1138
  %1140 = vmatmul.bf16.gmra.mxu0 %v932
  %v1141 = vpop.f32.mrf.mxu0
  %v1142 = vadd.f32 0.0, %v1141
  %v1143 = vpop.f32.mrf.mxu0
  %v1144 = vadd.f32 0.0, %v1143
  %1145 = vmatmul.bf16.gmra.mxu0 %v935
  %v1146 = vpop.f32.mrf.mxu0
  %v1147 = vadd.f32 0.0, %v1146
  %v1148 = vpop.f32.mrf.mxu0
  %v1149 = vadd.f32 0.0, %v1148
  %1150 = vmatmul.bf16.gmra.mxu0 %v938
  %v1151 = vpop.f32.mrf.mxu0
  %v1152 = vadd.f32 0.0, %v1151
  %v1153 = vpop.f32.mrf.mxu0
  %v1154 = vadd.f32 0.0, %v1153
  %1155 = vmatmul.bf16.gmra.mxu0 %v941
  %v1156 = vpop.f32.mrf.mxu0
  %v1157 = vadd.f32 0.0, %v1156
  %v1158 = vpop.f32.mrf.mxu0
  %v1159 = vadd.f32 0.0, %v1158
  %1160 = vmatmul.bf16.gmra.mxu0 %v944
  %v1161 = vpop.f32.mrf.mxu0
  %v1162 = vadd.f32 0.0, %v1161
  %v1163 = vpop.f32.mrf.mxu0
  %v1164 = vadd.f32 0.0, %v1163
  %1165 = vdwg.mxu0
  %1166 = vmatpush.bf16.msra.mxu0 0
  %1167 = vmatpush.bf16.msra.mxu0 %v801
  %1168 = vmatpush.bf16.msra.mxu0 %v785
  %1169 = vmatpush.bf16.msra.mxu0 %v769
  %1170 = vmatpush.bf16.msra.mxu0 %v753
  %1171 = vmatpush.bf16.msra.mxu0 %v737
  %1172 = vmatpush.bf16.msra.mxu0 %v721
  %1173 = vmatpush.bf16.msra.mxu0 %v705
  %1174 = vmatmul.bf16.gmra.mxu0 %v926
  %v1175 = vpop.f32.mrf.mxu0
  %v1176 = vadd.f32 0.0, %v1175
  %v1177 = vpop.f32.mrf.mxu0
  %v1178 = vadd.f32 0.0, %v1177
  %1179 = vmatmul.bf16.gmra.mxu0 %v929
  %v1180 = vpop.f32.mrf.mxu0
  %v1181 = vadd.f32 0.0, %v1180
  %v1182 = vpop.f32.mrf.mxu0
  %v1183 = vadd.f32 0.0, %v1182
  %1184 = vmatmul.bf16.gmra.mxu0 %v932
  %v1185 = vpop.f32.mrf.mxu0
  %v1186 = vadd.f32 0.0, %v1185
  %v1187 = vpop.f32.mrf.mxu0
  %v1188 = vadd.f32 0.0, %v1187
  %1189 = vmatmul.bf16.gmra.mxu0 %v935
  %v1190 = vpop.f32.mrf.mxu0
  %v1191 = vadd.f32 0.0, %v1190
  %v1192 = vpop.f32.mrf.mxu0
  %v1193 = vadd.f32 0.0, %v1192
  %1194 = vmatmul.bf16.gmra.mxu0 %v938
  %v1195 = vpop.f32.mrf.mxu0
  %v1196 = vadd.f32 0.0, %v1195
  %v1197 = vpop.f32.mrf.mxu0
  %v1198 = vadd.f32 0.0, %v1197
  %1199 = vmatmul.bf16.gmra.mxu0 %v941
  %v1200 = vpop.f32.mrf.mxu0
  %v1201 = vadd.f32 0.0, %v1200
  %v1202 = vpop.f32.mrf.mxu0
  %v1203 = vadd.f32 0.0, %v1202
  %1204 = vmatmul.bf16.gmra.mxu0 %v944
  %v1205 = vpop.f32.mrf.mxu0
  %v1206 = vadd.f32 0.0, %v1205
  %v1207 = vpop.f32.mrf.mxu0
  %v1208 = vadd.f32 0.0, %v1207
  %1209 = vdwg.mxu0
  %1210 = vmatpush.bf16.msra.mxu0 0
  %1211 = vmatpush.bf16.msra.mxu0 %v802
  %1212 = vmatpush.bf16.msra.mxu0 %v786
  %1213 = vmatpush.bf16.msra.mxu0 %v770
  %1214 = vmatpush.bf16.msra.mxu0 %v754
  %1215 = vmatpush.bf16.msra.mxu0 %v738
  %1216 = vmatpush.bf16.msra.mxu0 %v722
  %1217 = vmatpush.bf16.msra.mxu0 %v706
  %1218 = vmatmul.bf16.gmra.mxu0 %v926
  %v1219 = vpop.f32.mrf.mxu0
  %v1220 = vadd.f32 0.0, %v1219
  %v1221 = vpop.f32.mrf.mxu0
  %v1222 = vadd.f32 0.0, %v1221
  %1223 = vmatmul.bf16.gmra.mxu0 %v929
  %v1224 = vpop.f32.mrf.mxu0
  %v1225 = vadd.f32 0.0, %v1224
  %v1226 = vpop.f32.mrf.mxu0
  %v1227 = vadd.f32 0.0, %v1226
  %1228 = vmatmul.bf16.gmra.mxu0 %v932
  %v1229 = vpop.f32.mrf.mxu0
  %v1230 = vadd.f32 0.0, %v1229
  %v1231 = vpop.f32.mrf.mxu0
  %v1232 = vadd.f32 0.0, %v1231
  %1233 = vmatmul.bf16.gmra.mxu0 %v935
  %v1234 = vpop.f32.mrf.mxu0
  %v1235 = vadd.f32 0.0, %v1234
  %v1236 = vpop.f32.mrf.mxu0
  %v1237 = vadd.f32 0.0, %v1236
  %1238 = vmatmul.bf16.gmra.mxu0 %v938
  %v1239 = vpop.f32.mrf.mxu0
  %v1240 = vadd.f32 0.0, %v1239
  %v1241 = vpop.f32.mrf.mxu0
  %v1242 = vadd.f32 0.0, %v1241
  %1243 = vmatmul.bf16.gmra.mxu0 %v941
  %v1244 = vpop.f32.mrf.mxu0
  %v1245 = vadd.f32 0.0, %v1244
  %v1246 = vpop.f32.mrf.mxu0
  %v1247 = vadd.f32 0.0, %v1246
  %1248 = vmatmul.bf16.gmra.mxu0 %v944
  %v1249 = vpop.f32.mrf.mxu0
  %v1250 = vadd.f32 0.0, %v1249
  %v1251 = vpop.f32.mrf.mxu0
  %v1252 = vadd.f32 0.0, %v1251
  %1253 = vdwg.mxu0
  %1254 = vmatpush.bf16.msra.mxu0 0
  %1255 = vmatpush.bf16.msra.mxu0 %v803
  %1256 = vmatpush.bf16.msra.mxu0 %v787
  %1257 = vmatpush.bf16.msra.mxu0 %v771
  %1258 = vmatpush.bf16.msra.mxu0 %v755
  %1259 = vmatpush.bf16.msra.mxu0 %v739
  %1260 = vmatpush.bf16.msra.mxu0 %v723
  %1261 = vmatpush.bf16.msra.mxu0 %v707
  %1262 = vmatmul.bf16.gmra.mxu0 %v926
  %v1263 = vpop.f32.mrf.mxu0
  %v1264 = vadd.f32 0.0, %v1263
  %v1265 = vpop.f32.mrf.mxu0
  %v1266 = vadd.f32 0.0, %v1265
  %1267 = vmatmul.bf16.gmra.mxu0 %v929
  %v1268 = vpop.f32.mrf.mxu0
  %v1269 = vadd.f32 0.0, %v1268
  %v1270 = vpop.f32.mrf.mxu0
  %v1271 = vadd.f32 0.0, %v1270
  %1272 = vmatmul.bf16.gmra.mxu0 %v932
  %v1273 = vpop.f32.mrf.mxu0
  %v1274 = vadd.f32 0.0, %v1273
  %v1275 = vpop.f32.mrf.mxu0
  %v1276 = vadd.f32 0.0, %v1275
  %1277 = vmatmul.bf16.gmra.mxu0 %v935
  %v1278 = vpop.f32.mrf.mxu0
  %v1279 = vadd.f32 0.0, %v1278
  %v1280 = vpop.f32.mrf.mxu0
  %v1281 = vadd.f32 0.0, %v1280
  %1282 = vmatmul.bf16.gmra.mxu0 %v938
  %v1283 = vpop.f32.mrf.mxu0
  %v1284 = vadd.f32 0.0, %v1283
  %v1285 = vpop.f32.mrf.mxu0
  %v1286 = vadd.f32 0.0, %v1285
  %1287 = vmatmul.bf16.gmra.mxu0 %v941
  %v1288 = vpop.f32.mrf.mxu0
  %v1289 = vadd.f32 0.0, %v1288
  %v1290 = vpop.f32.mrf.mxu0
  %v1291 = vadd.f32 0.0, %v1290
  %1292 = vmatmul.bf16.gmra.mxu0 %v944
  %v1293 = vpop.f32.mrf.mxu0
  %v1294 = vadd.f32 0.0, %v1293
  %v1295 = vpop.f32.mrf.mxu0
  %v1296 = vadd.f32 0.0, %v1295
  %1297 = vdwg.mxu0
  %1298 = vmatpush.bf16.msra.mxu0 0
  %1299 = vmatpush.bf16.msra.mxu0 %v804
  %1300 = vmatpush.bf16.msra.mxu0 %v788
  %1301 = vmatpush.bf16.msra.mxu0 %v772
  %1302 = vmatpush.bf16.msra.mxu0 %v756
  %1303 = vmatpush.bf16.msra.mxu0 %v740
  %1304 = vmatpush.bf16.msra.mxu0 %v724
  %1305 = vmatpush.bf16.msra.mxu0 %v708
  %1306 = vmatmul.bf16.gmra.mxu0 %v926
  %v1307 = vpop.f32.mrf.mxu0
  %v1308 = vadd.f32 0.0, %v1307
  %v1309 = vpop.f32.mrf.mxu0
  %v1310 = vadd.f32 0.0, %v1309
  %1311 = vmatmul.bf16.gmra.mxu0 %v929
  %v1312 = vpop.f32.mrf.mxu0
  %v1313 = vadd.f32 0.0, %v1312
  %v1314 = vpop.f32.mrf.mxu0
  %v1315 = vadd.f32 0.0, %v1314
  %1316 = vmatmul.bf16.gmra.mxu0 %v932
  %v1317 = vpop.f32.mrf.mxu0
  %v1318 = vadd.f32 0.0, %v1317
  %v1319 = vpop.f32.mrf.mxu0
  %v1320 = vadd.f32 0.0, %v1319
  %1321 = vmatmul.bf16.gmra.mxu0 %v935
  %v1322 = vpop.f32.mrf.mxu0
  %v1323 = vadd.f32 0.0, %v1322
  %v1324 = vpop.f32.mrf.mxu0
  %v1325 = vadd.f32 0.0, %v1324
  %1326 = vmatmul.bf16.gmra.mxu0 %v938
  %v1327 = vpop.f32.mrf.mxu0
  %v1328 = vadd.f32 0.0, %v1327
  %v1329 = vpop.f32.mrf.mxu0
  %v1330 = vadd.f32 0.0, %v1329
  %1331 = vmatmul.bf16.gmra.mxu0 %v941
  %v1332 = vpop.f32.mrf.mxu0
  %v1333 = vadd.f32 0.0, %v1332
  %v1334 = vpop.f32.mrf.mxu0
  %v1335 = vadd.f32 0.0, %v1334
  %1336 = vmatmul.bf16.gmra.mxu0 %v944
  %v1337 = vpop.f32.mrf.mxu0
  %v1338 = vadd.f32 0.0, %v1337
  %v1339 = vpop.f32.mrf.mxu0
  %v1340 = vadd.f32 0.0, %v1339
  %1341 = vdwg.mxu0
  %1342 = vmatpush.bf16.msra.mxu0 0
  %1343 = vmatpush.bf16.msra.mxu0 %v805
  %1344 = vmatpush.bf16.msra.mxu0 %v789
  %1345 = vmatpush.bf16.msra.mxu0 %v773
  %1346 = vmatpush.bf16.msra.mxu0 %v757
  %1347 = vmatpush.bf16.msra.mxu0 %v741
  %1348 = vmatpush.bf16.msra.mxu0 %v725
  %1349 = vmatpush.bf16.msra.mxu0 %v709
  %1350 = vmatmul.bf16.gmra.mxu0 %v926
  %v1351 = vpop.f32.mrf.mxu0
  %v1352 = vadd.f32 0.0, %v1351
  %v1353 = vpop.f32.mrf.mxu0
  %v1354 = vadd.f32 0.0, %v1353
  %1355 = vmatmul.bf16.gmra.mxu0 %v929
  %v1356 = vpop.f32.mrf.mxu0
  %v1357 = vadd.f32 0.0, %v1356
  %v1358 = vpop.f32.mrf.mxu0
  %v1359 = vadd.f32 0.0, %v1358
  %1360 = vmatmul.bf16.gmra.mxu0 %v932
  %v1361 = vpop.f32.mrf.mxu0
  %v1362 = vadd.f32 0.0, %v1361
  %v1363 = vpop.f32.mrf.mxu0
  %v1364 = vadd.f32 0.0, %v1363
  %1365 = vmatmul.bf16.gmra.mxu0 %v935
  %v1366 = vpop.f32.mrf.mxu0
  %v1367 = vadd.f32 0.0, %v1366
  %v1368 = vpop.f32.mrf.mxu0
  %v1369 = vadd.f32 0.0, %v1368
  %1370 = vmatmul.bf16.gmra.mxu0 %v938
  %v1371 = vpop.f32.mrf.mxu0
  %v1372 = vadd.f32 0.0, %v1371
  %v1373 = vpop.f32.mrf.mxu0
  %v1374 = vadd.f32 0.0, %v1373
  %1375 = vmatmul.bf16.gmra.mxu0 %v941
  %v1376 = vpop.f32.mrf.mxu0
  %v1377 = vadd.f32 0.0, %v1376
  %v1378 = vpop.f32.mrf.mxu0
  %v1379 = vadd.f32 0.0, %v1378
  %1380 = vmatmul.bf16.gmra.mxu0 %v944
  %v1381 = vpop.f32.mrf.mxu0
  %v1382 = vadd.f32 0.0, %v1381
  %v1383 = vpop.f32.mrf.mxu0
  %v1384 = vadd.f32 0.0, %v1383
  %1385 = vdwg.mxu0
  %1386 = vmatpush.bf16.msra.mxu0 0
  %1387 = vmatpush.bf16.msra.mxu0 %v806
  %1388 = vmatpush.bf16.msra.mxu0 %v790
  %1389 = vmatpush.bf16.msra.mxu0 %v774
  %1390 = vmatpush.bf16.msra.mxu0 %v758
  %1391 = vmatpush.bf16.msra.mxu0 %v742
  %1392 = vmatpush.bf16.msra.mxu0 %v726
  %1393 = vmatpush.bf16.msra.mxu0 %v710
  %1394 = vmatmul.bf16.gmra.mxu0 %v926
  %v1395 = vpop.f32.mrf.mxu0
  %v1396 = vadd.f32 0.0, %v1395
  %v1397 = vpop.f32.mrf.mxu0
  %v1398 = vadd.f32 0.0, %v1397
  %1399 = vmatmul.bf16.gmra.mxu0 %v929
  %v1400 = vpop.f32.mrf.mxu0
  %v1401 = vadd.f32 0.0, %v1400
  %v1402 = vpop.f32.mrf.mxu0
  %v1403 = vadd.f32 0.0, %v1402
  %1404 = vmatmul.bf16.gmra.mxu0 %v932
  %v1405 = vpop.f32.mrf.mxu0
  %v1406 = vadd.f32 0.0, %v1405
  %v1407 = vpop.f32.mrf.mxu0
  %v1408 = vadd.f32 0.0, %v1407
  %1409 = vmatmul.bf16.gmra.mxu0 %v935
  %v1410 = vpop.f32.mrf.mxu0
  %v1411 = vadd.f32 0.0, %v1410
  %v1412 = vpop.f32.mrf.mxu0
  %v1413 = vadd.f32 0.0, %v1412
  %1414 = vmatmul.bf16.gmra.mxu0 %v938
  %v1415 = vpop.f32.mrf.mxu0
  %v1416 = vadd.f32 0.0, %v1415
  %v1417 = vpop.f32.mrf.mxu0
  %v1418 = vadd.f32 0.0, %v1417
  %1419 = vmatmul.bf16.gmra.mxu0 %v941
  %v1420 = vpop.f32.mrf.mxu0
  %v1421 = vadd.f32 0.0, %v1420
  %v1422 = vpop.f32.mrf.mxu0
  %v1423 = vadd.f32 0.0, %v1422
  %1424 = vmatmul.bf16.gmra.mxu0 %v944
  %v1425 = vpop.f32.mrf.mxu0
  %v1426 = vadd.f32 0.0, %v1425
  %v1427 = vpop.f32.mrf.mxu0
  %v1428 = vadd.f32 0.0, %v1427
  %1429 = vdwg.mxu0
  %1430 = vmatpush.bf16.msra.mxu0 0
  %1431 = vmatpush.bf16.msra.mxu0 %v807
  %1432 = vmatpush.bf16.msra.mxu0 %v791
  %1433 = vmatpush.bf16.msra.mxu0 %v775
  %1434 = vmatpush.bf16.msra.mxu0 %v759
  %1435 = vmatpush.bf16.msra.mxu0 %v743
  %1436 = vmatpush.bf16.msra.mxu0 %v727
  %1437 = vmatpush.bf16.msra.mxu0 %v711
  %1438 = vmatmul.bf16.gmra.mxu0 %v926
  %v1439 = vpop.f32.mrf.mxu0
  %v1440 = vadd.f32 0.0, %v1439
  %v1441 = vpop.f32.mrf.mxu0
  %v1442 = vadd.f32 0.0, %v1441
  %1443 = vmatmul.bf16.gmra.mxu0 %v929
  %v1444 = vpop.f32.mrf.mxu0
  %v1445 = vadd.f32 0.0, %v1444
  %v1446 = vpop.f32.mrf.mxu0
  %v1447 = vadd.f32 0.0, %v1446
  %1448 = vmatmul.bf16.gmra.mxu0 %v932
  %v1449 = vpop.f32.mrf.mxu0
  %v1450 = vadd.f32 0.0, %v1449
  %v1451 = vpop.f32.mrf.mxu0
  %v1452 = vadd.f32 0.0, %v1451
  %1453 = vmatmul.bf16.gmra.mxu0 %v935
  %v1454 = vpop.f32.mrf.mxu0
  %v1455 = vadd.f32 0.0, %v1454
  %v1456 = vpop.f32.mrf.mxu0
  %v1457 = vadd.f32 0.0, %v1456
  %1458 = vmatmul.bf16.gmra.mxu0 %v938
  %v1459 = vpop.f32.mrf.mxu0
  %v1460 = vadd.f32 0.0, %v1459
  %v1461 = vpop.f32.mrf.mxu0
  %v1462 = vadd.f32 0.0, %v1461
  %1463 = vmatmul.bf16.gmra.mxu0 %v941
  %v1464 = vpop.f32.mrf.mxu0
  %v1465 = vadd.f32 0.0, %v1464
  %v1466 = vpop.f32.mrf.mxu0
  %v1467 = vadd.f32 0.0, %v1466
  %1468 = vmatmul.bf16.gmra.mxu0 %v944
  %v1469 = vpop.f32.mrf.mxu0
  %v1470 = vadd.f32 0.0, %v1469
  %v1471 = vpop.f32.mrf.mxu0
  %v1472 = vadd.f32 0.0, %v1471
  %1473 = vdwg.mxu0
  %1474 = vmatpush.bf16.msra.mxu0 0
  %1475 = vmatpush.bf16.msra.mxu0 %v808
  %1476 = vmatpush.bf16.msra.mxu0 %v792
  %1477 = vmatpush.bf16.msra.mxu0 %v776
  %1478 = vmatpush.bf16.msra.mxu0 %v760
  %1479 = vmatpush.bf16.msra.mxu0 %v744
  %1480 = vmatpush.bf16.msra.mxu0 %v728
  %1481 = vmatpush.bf16.msra.mxu0 %v712
  %1482 = vmatmul.bf16.gmra.mxu0 %v926
  %v1483 = vpop.f32.mrf.mxu0
  %v1484 = vadd.f32 0.0, %v1483
  %v1485 = vpop.f32.mrf.mxu0
  %v1486 = vadd.f32 0.0, %v1485
  %1487 = vmatmul.bf16.gmra.mxu0 %v929
  %v1488 = vpop.f32.mrf.mxu0
  %v1489 = vadd.f32 0.0, %v1488
  %v1490 = vpop.f32.mrf.mxu0
  %v1491 = vadd.f32 0.0, %v1490
  %1492 = vmatmul.bf16.gmra.mxu0 %v932
  %v1493 = vpop.f32.mrf.mxu0
  %v1494 = vadd.f32 0.0, %v1493
  %v1495 = vpop.f32.mrf.mxu0
  %v1496 = vadd.f32 0.0, %v1495
  %1497 = vmatmul.bf16.gmra.mxu0 %v935
  %v1498 = vpop.f32.mrf.mxu0
  %v1499 = vadd.f32 0.0, %v1498
  %v1500 = vpop.f32.mrf.mxu0
  %v1501 = vadd.f32 0.0, %v1500
  %1502 = vmatmul.bf16.gmra.mxu0 %v938
  %v1503 = vpop.f32.mrf.mxu0
  %v1504 = vadd.f32 0.0, %v1503
  %v1505 = vpop.f32.mrf.mxu0
  %v1506 = vadd.f32 0.0, %v1505
  %1507 = vmatmul.bf16.gmra.mxu0 %v941
  %v1508 = vpop.f32.mrf.mxu0
  %v1509 = vadd.f32 0.0, %v1508
  %v1510 = vpop.f32.mrf.mxu0
  %v1511 = vadd.f32 0.0, %v1510
  %1512 = vmatmul.bf16.gmra.mxu0 %v944
  %v1513 = vpop.f32.mrf.mxu0
  %v1514 = vadd.f32 0.0, %v1513
  %v1515 = vpop.f32.mrf.mxu0
  %v1516 = vadd.f32 0.0, %v1515
  %1517 = vdwg.mxu0
  %1518 = vmatpush.bf16.msra.mxu0 0
  %1519 = vmatpush.bf16.msra.mxu0 %v809
  %1520 = vmatpush.bf16.msra.mxu0 %v793
  %1521 = vmatpush.bf16.msra.mxu0 %v777
  %1522 = vmatpush.bf16.msra.mxu0 %v761
  %1523 = vmatpush.bf16.msra.mxu0 %v745
  %1524 = vmatpush.bf16.msra.mxu0 %v729
  %1525 = vmatpush.bf16.msra.mxu0 %v713
  %1526 = vmatmul.bf16.gmra.mxu0 %v926
  %v1527 = vpop.f32.mrf.mxu0
  %v1528 = vadd.f32 0.0, %v1527
  %v1529 = vpop.f32.mrf.mxu0
  %v1530 = vadd.f32 0.0, %v1529
  %1531 = vmatmul.bf16.gmra.mxu0 %v929
  %v1532 = vpop.f32.mrf.mxu0
  %v1533 = vadd.f32 0.0, %v1532
  %v1534 = vpop.f32.mrf.mxu0
  %v1535 = vadd.f32 0.0, %v1534
  %1536 = vmatmul.bf16.gmra.mxu0 %v932
  %v1537 = vpop.f32.mrf.mxu0
  %v1538 = vadd.f32 0.0, %v1537
  %v1539 = vpop.f32.mrf.mxu0
  %v1540 = vadd.f32 0.0, %v1539
  %1541 = vmatmul.bf16.gmra.mxu0 %v935
  %v1542 = vpop.f32.mrf.mxu0
  %v1543 = vadd.f32 0.0, %v1542
  %v1544 = vpop.f32.mrf.mxu0
  %v1545 = vadd.f32 0.0, %v1544
  %1546 = vmatmul.bf16.gmra.mxu0 %v938
  %v1547 = vpop.f32.mrf.mxu0
  %v1548 = vadd.f32 0.0, %v1547
  %v1549 = vpop.f32.mrf.mxu0
  %v1550 = vadd.f32 0.0, %v1549
  %1551 = vmatmul.bf16.gmra.mxu0 %v941
  %v1552 = vpop.f32.mrf.mxu0
  %v1553 = vadd.f32 0.0, %v1552
  %v1554 = vpop.f32.mrf.mxu0
  %v1555 = vadd.f32 0.0, %v1554
  %1556 = vmatmul.bf16.gmra.mxu0 %v944
  %v1557 = vpop.f32.mrf.mxu0
  %v1558 = vadd.f32 0.0, %v1557
  %v1559 = vpop.f32.mrf.mxu0
  %v1560 = vadd.f32 0.0, %v1559
  %1561 = vdwg.mxu0
  %1562 = vmatpush.bf16.msra.mxu0 0
  %1563 = vmatpush.bf16.msra.mxu0 %v810
  %1564 = vmatpush.bf16.msra.mxu0 %v794
  %1565 = vmatpush.bf16.msra.mxu0 %v778
  %1566 = vmatpush.bf16.msra.mxu0 %v762
  %1567 = vmatpush.bf16.msra.mxu0 %v746
  %1568 = vmatpush.bf16.msra.mxu0 %v730
  %1569 = vmatpush.bf16.msra.mxu0 %v714
  %1570 = vmatmul.bf16.gmra.mxu0 %v926
  %v1571 = vpop.f32.mrf.mxu0
  %v1572 = vadd.f32 0.0, %v1571
  %v1573 = vpop.f32.mrf.mxu0
  %v1574 = vadd.f32 0.0, %v1573
  %1575 = vmatmul.bf16.gmra.mxu0 %v929
  %v1576 = vpop.f32.mrf.mxu0
  %v1577 = vadd.f32 0.0, %v1576
  %v1578 = vpop.f32.mrf.mxu0
  %v1579 = vadd.f32 0.0, %v1578
  %1580 = vmatmul.bf16.gmra.mxu0 %v932
  %v1581 = vpop.f32.mrf.mxu0
  %v1582 = vadd.f32 0.0, %v1581
  %v1583 = vpop.f32.mrf.mxu0
  %v1584 = vadd.f32 0.0, %v1583
  %1585 = vmatmul.bf16.gmra.mxu0 %v935
  %v1586 = vpop.f32.mrf.mxu0
  %v1587 = vadd.f32 0.0, %v1586
  %v1588 = vpop.f32.mrf.mxu0
  %v1589 = vadd.f32 0.0, %v1588
  %1590 = vmatmul.bf16.gmra.mxu0 %v938
  %v1591 = vpop.f32.mrf.mxu0
  %v1592 = vadd.f32 0.0, %v1591
  %v1593 = vpop.f32.mrf.mxu0
  %v1594 = vadd.f32 0.0, %v1593
  %1595 = vmatmul.bf16.gmra.mxu0 %v941
  %v1596 = vpop.f32.mrf.mxu0
  %v1597 = vadd.f32 0.0, %v1596
  %v1598 = vpop.f32.mrf.mxu0
  %v1599 = vadd.f32 0.0, %v1598
  %1600 = vmatmul.bf16.gmra.mxu0 %v944
  %v1601 = vpop.f32.mrf.mxu0
  %v1602 = vadd.f32 0.0, %v1601
  %v1603 = vpop.f32.mrf.mxu0
  %v1604 = vadd.f32 0.0, %v1603
  %1605 = vdwg.mxu0
  %1606 = vmatpush.bf16.msra.mxu0 0
  %1607 = vmatpush.bf16.msra.mxu0 %v811
  %1608 = vmatpush.bf16.msra.mxu0 %v795
  %1609 = vmatpush.bf16.msra.mxu0 %v779
  %1610 = vmatpush.bf16.msra.mxu0 %v763
  %1611 = vmatpush.bf16.msra.mxu0 %v747
  %1612 = vmatpush.bf16.msra.mxu0 %v731
  %1613 = vmatpush.bf16.msra.mxu0 %v715
  %1614 = vmatmul.bf16.gmra.mxu0 %v926
  %v1615 = vpop.f32.mrf.mxu0
  %v1616 = vadd.f32 0.0, %v1615
  %v1617 = vpop.f32.mrf.mxu0
  %v1618 = vadd.f32 0.0, %v1617
  %1619 = vmatmul.bf16.gmra.mxu0 %v929
  %v1620 = vpop.f32.mrf.mxu0
  %v1621 = vadd.f32 0.0, %v1620
  %v1622 = vpop.f32.mrf.mxu0
  %v1623 = vadd.f32 0.0, %v1622
  %1624 = vmatmul.bf16.gmra.mxu0 %v932
  %v1625 = vpop.f32.mrf.mxu0
  %v1626 = vadd.f32 0.0, %v1625
  %v1627 = vpop.f32.mrf.mxu0
  %v1628 = vadd.f32 0.0, %v1627
  %1629 = vmatmul.bf16.gmra.mxu0 %v935
  %v1630 = vpop.f32.mrf.mxu0
  %v1631 = vadd.f32 0.0, %v1630
  %v1632 = vpop.f32.mrf.mxu0
  %v1633 = vadd.f32 0.0, %v1632
  %1634 = vmatmul.bf16.gmra.mxu0 %v938
  %v1635 = vpop.f32.mrf.mxu0
  %v1636 = vadd.f32 0.0, %v1635
  %v1637 = vpop.f32.mrf.mxu0
  %v1638 = vadd.f32 0.0, %v1637
  %1639 = vmatmul.bf16.gmra.mxu0 %v941
  %v1640 = vpop.f32.mrf.mxu0
  %v1641 = vadd.f32 0.0, %v1640
  %v1642 = vpop.f32.mrf.mxu0
  %v1643 = vadd.f32 0.0, %v1642
  %1644 = vmatmul.bf16.gmra.mxu0 %v944
  %v1645 = vpop.f32.mrf.mxu0
  %v1646 = vadd.f32 0.0, %v1645
  %v1647 = vpop.f32.mrf.mxu0
  %v1648 = vadd.f32 0.0, %v1647
  %1649 = vdwg.mxu0
  %v1762 = vunpack.c.l.b16 %v139
  %v1763 = vunpack.c.h.b16 %v139
  %v1764 = vunpack.c.l.b16 %v140
  %v1765 = vunpack.c.h.b16 %v140
  %v1766 = vunpack.c.l.b16 %v141
  %v1767 = vunpack.c.h.b16 %v141
  %v1768 = vunpack.c.l.b16 %v142
  %v1769 = vunpack.c.h.b16 %v142
  %v1770 = vunpack.c.l.b16 %v143
  %v1771 = vunpack.c.h.b16 %v143
  %v1772 = vunpack.c.l.b16 %v144
  %v1773 = vunpack.c.h.b16 %v144
  %v1774 = vunpack.c.l.b16 %v145
  %v1775 = vunpack.c.h.b16 %v145
  %v1776 = vunpack.c.l.b16 %v146
  %v1777 = vunpack.c.h.b16 %v146
  %v1778 = vunpack.c.l.b16 %v147
  %v1779 = vunpack.c.h.b16 %v147
  %v1780 = vunpack.c.l.b16 %v148
  %v1781 = vunpack.c.h.b16 %v148
  %v1782 = vunpack.c.l.b16 %v149
  %v1783 = vunpack.c.h.b16 %v149
  %v1784 = vunpack.c.l.b16 %v150
  %v1785 = vunpack.c.h.b16 %v150
  %v1786 = vunpack.c.l.b16 %v151
  %v1787 = vunpack.c.h.b16 %v151
  %v1788 = vunpack.c.l.b16 %v152
  %v1789 = vunpack.c.h.b16 %v152
  %v1790 = vunpack.c.l.b16 %v153
  %v1791 = vunpack.c.h.b16 %v153
  %v1792 = vunpack.c.l.b16 %v154
  %v1793 = vunpack.c.h.b16 %v154
  %v1794 = vunpack.c.l.b16 %v155
  %v1795 = vunpack.c.h.b16 %v155
  %v1796 = vunpack.c.l.b16 %v156
  %v1797 = vunpack.c.h.b16 %v156
  %v1798 = vunpack.c.l.b16 %v157
  %v1799 = vunpack.c.h.b16 %v157
  %v1800 = vunpack.c.l.b16 %v158
  %v1801 = vunpack.c.h.b16 %v158
  %v1802 = vunpack.c.l.b16 %v159
  %v1803 = vunpack.c.h.b16 %v159
  %v1804 = vunpack.c.l.b16 %v160
  %v1805 = vunpack.c.h.b16 %v160
  %v1806 = vunpack.c.l.b16 %v161
  %v1807 = vunpack.c.h.b16 %v161
  %v1808 = vunpack.c.l.b16 %v162
  %v1809 = vunpack.c.h.b16 %v162
  %v1810 = vunpack.c.l.b16 %v163
  %v1811 = vunpack.c.h.b16 %v163
  %v1812 = vunpack.c.l.b16 %v164
  %v1813 = vunpack.c.h.b16 %v164
  %v1814 = vunpack.c.l.b16 %v165
  %v1815 = vunpack.c.h.b16 %v165
  %v1816 = vunpack.c.l.b16 %v166
  %v1817 = vunpack.c.h.b16 %v166
  %v1818 = vunpack.c.l.b16 %v167
  %v1819 = vunpack.c.h.b16 %v167
  %v1820 = vunpack.c.l.b16 %v168
  %v1821 = vunpack.c.h.b16 %v168
  %v1822 = vunpack.c.l.b16 %v169
  %v1823 = vunpack.c.h.b16 %v169
  %v1824 = vunpack.c.l.b16 %v170
  %v1825 = vunpack.c.h.b16 %v170
  %v1826 = vunpack.c.l.b16 %v171
  %v1827 = vunpack.c.h.b16 %v171
  %v1828 = vunpack.c.l.b16 %v172
  %v1829 = vunpack.c.h.b16 %v172
  %v1830 = vunpack.c.l.b16 %v173
  %v1831 = vunpack.c.h.b16 %v173
  %v1832 = vunpack.c.l.b16 %v174
  %v1833 = vunpack.c.h.b16 %v174
  %v1834 = vunpack.c.l.b16 %v175
  %v1835 = vunpack.c.h.b16 %v175
  %v1836 = vunpack.c.l.b16 %v176
  %v1837 = vunpack.c.h.b16 %v176
  %v1838 = vunpack.c.l.b16 %v177
  %v1839 = vunpack.c.h.b16 %v177
  %v1840 = vunpack.c.l.b16 %v178
  %v1841 = vunpack.c.h.b16 %v178
  %v1842 = vunpack.c.l.b16 %v179
  %v1843 = vunpack.c.h.b16 %v179
  %v1844 = vunpack.c.l.b16 %v180
  %v1845 = vunpack.c.h.b16 %v180
  %v1846 = vunpack.c.l.b16 %v181
  %v1847 = vunpack.c.h.b16 %v181
  %v1848 = vunpack.c.l.b16 %v182
  %v1849 = vunpack.c.h.b16 %v182
  %v1850 = vunpack.c.l.b16 %v183
  %v1851 = vunpack.c.h.b16 %v183
  %v1852 = vunpack.c.l.b16 %v184
  %v1853 = vunpack.c.h.b16 %v184
  %v1854 = vunpack.c.l.b16 %v185
  %v1855 = vunpack.c.h.b16 %v185
  %v1856 = vunpack.c.l.b16 %v186
  %v1857 = vunpack.c.h.b16 %v186
  %v1858 = vunpack.c.l.b16 %v187
  %v1859 = vunpack.c.h.b16 %v187
  %v1860 = vunpack.c.l.b16 %v188
  %v1861 = vunpack.c.h.b16 %v188
  %v1862 = vunpack.c.l.b16 %v189
  %v1863 = vunpack.c.h.b16 %v189
  %v1864 = vunpack.c.l.b16 %v190
  %v1865 = vunpack.c.h.b16 %v190
  %v1866 = vunpack.c.l.b16 %v191
  %v1867 = vunpack.c.h.b16 %v191
  %v1868 = vunpack.c.l.b16 %v192
  %v1869 = vunpack.c.h.b16 %v192
  %v1870 = vunpack.c.l.b16 %v193
  %v1871 = vunpack.c.h.b16 %v193
  %v1872 = vunpack.c.l.b16 %v194
  %v1873 = vunpack.c.h.b16 %v194
  %v1874 = vunpack.c.l.b16 %v195
  %v1875 = vunpack.c.h.b16 %v195
  %v1876 = vunpack.c.l.b16 %v196
  %v1877 = vunpack.c.h.b16 %v196
  %v1878 = vunpack.c.l.b16 %v197
  %v1879 = vunpack.c.h.b16 %v197
  %v1880 = vunpack.c.l.b16 %v198
  %v1881 = vunpack.c.h.b16 %v198
  %v1882 = vunpack.c.l.b16 %v199
  %v1883 = vunpack.c.h.b16 %v199
  %v1884 = vunpack.c.l.b16 %v200
  %v1885 = vunpack.c.h.b16 %v200
  %v1886 = vunpack.c.l.b16 %v201
  %v1887 = vunpack.c.h.b16 %v201
  %v1888 = vunpack.c.l.b16 %v202
  %v1889 = vunpack.c.h.b16 %v202
  %v1890 = vunpack.c.l.b16 %v203
  %v1891 = vunpack.c.h.b16 %v203
  %v1892 = vunpack.c.l.b16 %v204
  %v1893 = vunpack.c.h.b16 %v204
  %v1894 = vunpack.c.l.b16 %v205
  %v1895 = vunpack.c.h.b16 %v205
  %v1896 = vunpack.c.l.b16 %v206
  %v1897 = vunpack.c.h.b16 %v206
  %v1898 = vunpack.c.l.b16 %v207
  %v1899 = vunpack.c.h.b16 %v207
  %v1900 = vunpack.c.l.b16 %v208
  %v1901 = vunpack.c.h.b16 %v208
  %v1902 = vunpack.c.l.b16 %v209
  %v1903 = vunpack.c.h.b16 %v209
  %v1904 = vunpack.c.l.b16 %v210
  %v1905 = vunpack.c.h.b16 %v210
  %v1906 = vunpack.c.l.b16 %v211
  %v1907 = vunpack.c.h.b16 %v211
  %v1908 = vunpack.c.l.b16 %v212
  %v1909 = vunpack.c.h.b16 %v212
  %v1910 = vunpack.c.l.b16 %v213
  %v1911 = vunpack.c.h.b16 %v213
  %v1912 = vunpack.c.l.b16 %v214
  %v1913 = vunpack.c.h.b16 %v214
  %v1914 = vunpack.c.l.b16 %v215
  %v1915 = vunpack.c.h.b16 %v215
  %v1916 = vunpack.c.l.b16 %v216
  %v1917 = vunpack.c.h.b16 %v216
  %v1918 = vunpack.c.l.b16 %v217
  %v1919 = vunpack.c.h.b16 %v217
  %v1920 = vunpack.c.l.b16 %v218
  %v1921 = vunpack.c.h.b16 %v218
  %v1922 = vunpack.c.l.b16 %v219
  %v1923 = vunpack.c.h.b16 %v219
  %v1924 = vunpack.c.l.b16 %v220
  %v1925 = vunpack.c.h.b16 %v220
  %v1926 = vunpack.c.l.b16 %v221
  %v1927 = vunpack.c.h.b16 %v221
  %v1928 = vunpack.c.l.b16 %v222
  %v1929 = vunpack.c.h.b16 %v222
  %v1930 = vunpack.c.l.b16 %v223
  %v1931 = vunpack.c.h.b16 %v223
  %v1932 = vunpack.c.l.b16 %v224
  %v1933 = vunpack.c.h.b16 %v224
  %v1934 = vunpack.c.l.b16 %v225
  %v1935 = vunpack.c.h.b16 %v225
  %v1936 = vunpack.c.l.b16 %v226
  %v1937 = vunpack.c.h.b16 %v226
  %v1938 = vunpack.c.l.b16 %v227
  %v1939 = vunpack.c.h.b16 %v227
  %v1940 = vunpack.c.l.b16 %v228
  %v1941 = vunpack.c.h.b16 %v228
  %v1942 = vunpack.c.l.b16 %v229
  %v1943 = vunpack.c.h.b16 %v229
  %v1944 = vunpack.c.l.b16 %v230
  %v1945 = vunpack.c.h.b16 %v230
  %v1946 = vunpack.c.l.b16 %v231
  %v1947 = vunpack.c.h.b16 %v231
  %v1948 = vunpack.c.l.b16 %v232
  %v1949 = vunpack.c.h.b16 %v232
  %v1950 = vunpack.c.l.b16 %v233
  %v1951 = vunpack.c.h.b16 %v233
  %v1952 = vunpack.c.l.b16 %v234
  %v1953 = vunpack.c.h.b16 %v234
  %v1954 = vunpack.c.l.b16 %v235
  %v1955 = vunpack.c.h.b16 %v235
  %v1956 = vunpack.c.l.b16 %v236
  %v1957 = vunpack.c.h.b16 %v236
  %v1958 = vunpack.c.l.b16 %v237
  %v1959 = vunpack.c.h.b16 %v237
  %v1960 = vunpack.c.l.b16 %v238
  %v1961 = vunpack.c.h.b16 %v238
  %v1962 = vunpack.c.l.b16 %v239
  %v1963 = vunpack.c.h.b16 %v239
  %v1964 = vunpack.c.l.b16 %v240
  %v1965 = vunpack.c.h.b16 %v240
  %v1966 = vunpack.c.l.b16 %v241
  %v1967 = vunpack.c.h.b16 %v241
  %v1968 = vunpack.c.l.b16 %v242
  %v1969 = vunpack.c.h.b16 %v242
  %v1970 = vunpack.c.l.b16 %v243
  %v1971 = vunpack.c.h.b16 %v243
  %v1972 = vunpack.c.l.b16 %v244
  %v1973 = vunpack.c.h.b16 %v244
  %v1974 = vunpack.c.l.b16 %v245
  %v1975 = vunpack.c.h.b16 %v245
  %v1976 = vunpack.c.l.b16 %v246
  %v1977 = vunpack.c.h.b16 %v246
  %v1978 = vunpack.c.l.b16 %v247
  %v1979 = vunpack.c.h.b16 %v247
  %v1980 = vunpack.c.l.b16 %v248
  %v1981 = vunpack.c.h.b16 %v248
  %v1982 = vunpack.c.l.b16 %v249
  %v1983 = vunpack.c.h.b16 %v249
  %v1984 = vunpack.c.l.b16 %v250
  %v1985 = vunpack.c.h.b16 %v250
  %v1986 = vpack.c.b16 %v1778, %v1762
  %v1987 = vpack.c.b16 %v1779, %v1763
  %v1988 = vpack.c.b16 %v1780, %v1764
  %v1989 = vpack.c.b16 %v1781, %v1765
  %v1990 = vpack.c.b16 %v1782, %v1766
  %v1991 = vpack.c.b16 %v1783, %v1767
  %v1992 = vpack.c.b16 %v1784, %v1768
  %v1993 = vpack.c.b16 %v1785, %v1769
  %v1994 = vpack.c.b16 %v1786, %v1770
  %v1995 = vpack.c.b16 %v1787, %v1771
  %v1996 = vpack.c.b16 %v1788, %v1772
  %v1997 = vpack.c.b16 %v1789, %v1773
  %v1998 = vpack.c.b16 %v1790, %v1774
  %v1999 = vpack.c.b16 %v1791, %v1775
  %v2000 = vpack.c.b16 %v1792, %v1776
  %v2001 = vpack.c.b16 %v1793, %v1777
  %v2002 = vpack.c.b16 %v1810, %v1794
  %v2003 = vpack.c.b16 %v1811, %v1795
  %v2004 = vpack.c.b16 %v1812, %v1796
  %v2005 = vpack.c.b16 %v1813, %v1797
  %v2006 = vpack.c.b16 %v1814, %v1798
  %v2007 = vpack.c.b16 %v1815, %v1799
  %v2008 = vpack.c.b16 %v1816, %v1800
  %v2009 = vpack.c.b16 %v1817, %v1801
  %v2010 = vpack.c.b16 %v1818, %v1802
  %v2011 = vpack.c.b16 %v1819, %v1803
  %v2012 = vpack.c.b16 %v1820, %v1804
  %v2013 = vpack.c.b16 %v1821, %v1805
  %v2014 = vpack.c.b16 %v1822, %v1806
  %v2015 = vpack.c.b16 %v1823, %v1807
  %v2016 = vpack.c.b16 %v1824, %v1808
  %v2017 = vpack.c.b16 %v1825, %v1809
  %v2018 = vpack.c.b16 %v1842, %v1826
  %v2019 = vpack.c.b16 %v1843, %v1827
  %v2020 = vpack.c.b16 %v1844, %v1828
  %v2021 = vpack.c.b16 %v1845, %v1829
  %v2022 = vpack.c.b16 %v1846, %v1830
  %v2023 = vpack.c.b16 %v1847, %v1831
  %v2024 = vpack.c.b16 %v1848, %v1832
  %v2025 = vpack.c.b16 %v1849, %v1833
  %v2026 = vpack.c.b16 %v1850, %v1834
  %v2027 = vpack.c.b16 %v1851, %v1835
  %v2028 = vpack.c.b16 %v1852, %v1836
  %v2029 = vpack.c.b16 %v1853, %v1837
  %v2030 = vpack.c.b16 %v1854, %v1838
  %v2031 = vpack.c.b16 %v1855, %v1839
  %v2032 = vpack.c.b16 %v1856, %v1840
  %v2033 = vpack.c.b16 %v1857, %v1841
  %v2034 = vpack.c.b16 %v1874, %v1858
  %v2035 = vpack.c.b16 %v1875, %v1859
  %v2036 = vpack.c.b16 %v1876, %v1860
  %v2037 = vpack.c.b16 %v1877, %v1861
  %v2038 = vpack.c.b16 %v1878, %v1862
  %v2039 = vpack.c.b16 %v1879, %v1863
  %v2040 = vpack.c.b16 %v1880, %v1864
  %v2041 = vpack.c.b16 %v1881, %v1865
  %v2042 = vpack.c.b16 %v1882, %v1866
  %v2043 = vpack.c.b16 %v1883, %v1867
  %v2044 = vpack.c.b16 %v1884, %v1868
  %v2045 = vpack.c.b16 %v1885, %v1869
  %v2046 = vpack.c.b16 %v1886, %v1870
  %v2047 = vpack.c.b16 %v1887, %v1871
  %v2048 = vpack.c.b16 %v1888, %v1872
  %v2049 = vpack.c.b16 %v1889, %v1873
  %v2050 = vpack.c.b16 %v1906, %v1890
  %v2051 = vpack.c.b16 %v1907, %v1891
  %v2052 = vpack.c.b16 %v1908, %v1892
  %v2053 = vpack.c.b16 %v1909, %v1893
  %v2054 = vpack.c.b16 %v1910, %v1894
  %v2055 = vpack.c.b16 %v1911, %v1895
  %v2056 = vpack.c.b16 %v1912, %v1896
  %v2057 = vpack.c.b16 %v1913, %v1897
  %v2058 = vpack.c.b16 %v1914, %v1898
  %v2059 = vpack.c.b16 %v1915, %v1899
  %v2060 = vpack.c.b16 %v1916, %v1900
  %v2061 = vpack.c.b16 %v1917, %v1901
  %v2062 = vpack.c.b16 %v1918, %v1902
  %v2063 = vpack.c.b16 %v1919, %v1903
  %v2064 = vpack.c.b16 %v1920, %v1904
  %v2065 = vpack.c.b16 %v1921, %v1905
  %v2066 = vpack.c.b16 %v1938, %v1922
  %v2067 = vpack.c.b16 %v1939, %v1923
  %v2068 = vpack.c.b16 %v1940, %v1924
  %v2069 = vpack.c.b16 %v1941, %v1925
  %v2070 = vpack.c.b16 %v1942, %v1926
  %v2071 = vpack.c.b16 %v1943, %v1927
  %v2072 = vpack.c.b16 %v1944, %v1928
  %v2073 = vpack.c.b16 %v1945, %v1929
  %v2074 = vpack.c.b16 %v1946, %v1930
  %v2075 = vpack.c.b16 %v1947, %v1931
  %v2076 = vpack.c.b16 %v1948, %v1932
  %v2077 = vpack.c.b16 %v1949, %v1933
  %v2078 = vpack.c.b16 %v1950, %v1934
  %v2079 = vpack.c.b16 %v1951, %v1935
  %v2080 = vpack.c.b16 %v1952, %v1936
  %v2081 = vpack.c.b16 %v1953, %v1937
  %v2082 = vpack.c.b16 %v1970, %v1954
  %v2083 = vpack.c.b16 %v1971, %v1955
  %v2084 = vpack.c.b16 %v1972, %v1956
  %v2085 = vpack.c.b16 %v1973, %v1957
  %v2086 = vpack.c.b16 %v1974, %v1958
  %v2087 = vpack.c.b16 %v1975, %v1959
  %v2088 = vpack.c.b16 %v1976, %v1960
  %v2089 = vpack.c.b16 %v1977, %v1961
  %v2090 = vpack.c.b16 %v1978, %v1962
  %v2091 = vpack.c.b16 %v1979, %v1963
  %v2092 = vpack.c.b16 %v1980, %v1964
  %v2093 = vpack.c.b16 %v1981, %v1965
  %v2094 = vpack.c.b16 %v1982, %v1966
  %v2095 = vpack.c.b16 %v1983, %v1967
  %v2096 = vpack.c.b16 %v1984, %v1968
  %v2097 = vpack.c.b16 %v1985, %v1969
  %v2210 = vsel %vm924, %v66, 0
  %v2212 = vsel %vm924, %v67, 0
  %v2214 = vsel %vm924, %v68, 0
  %v2216 = vsel %vm924, %v69, 0
  %v2218 = vsel %vm924, %v70, 0
  %v2220 = vsel %vm924, %v71, 0
  %v2222 = vsel %vm924, %v72, 0
  %2224 = vmatpush.bf16.msra.mxu0 0
  %2225 = vmatpush.bf16.msra.mxu0 %v2082
  %2226 = vmatpush.bf16.msra.mxu0 %v2066
  %2227 = vmatpush.bf16.msra.mxu0 %v2050
  %2228 = vmatpush.bf16.msra.mxu0 %v2034
  %2229 = vmatpush.bf16.msra.mxu0 %v2018
  %2230 = vmatpush.bf16.msra.mxu0 %v2002
  %2231 = vmatpush.bf16.msra.mxu0 %v1986
  %2232 = vmatmul.bf16.gmra.mxu0 %v2210
  %v2233 = vpop.f32.mrf.mxu0
  %v2234 = vadd.f32 %v956, %v2233
  %v2235 = vpop.f32.mrf.mxu0
  %v2236 = vadd.f32 %v958, %v2235
  %2237 = vmatmul.bf16.gmra.mxu0 %v2212
  %v2238 = vpop.f32.mrf.mxu0
  %v2239 = vadd.f32 %v961, %v2238
  %v2240 = vpop.f32.mrf.mxu0
  %v2241 = vadd.f32 %v963, %v2240
  %2242 = vmatmul.bf16.gmra.mxu0 %v2214
  %v2243 = vpop.f32.mrf.mxu0
  %v2244 = vadd.f32 %v966, %v2243
  %v2245 = vpop.f32.mrf.mxu0
  %v2246 = vadd.f32 %v968, %v2245
  %2247 = vmatmul.bf16.gmra.mxu0 %v2216
  %v2248 = vpop.f32.mrf.mxu0
  %v2249 = vadd.f32 %v971, %v2248
  %v2250 = vpop.f32.mrf.mxu0
  %v2251 = vadd.f32 %v973, %v2250
  %2252 = vmatmul.bf16.gmra.mxu0 %v2218
  %v2253 = vpop.f32.mrf.mxu0
  %v2254 = vadd.f32 %v976, %v2253
  %v2255 = vpop.f32.mrf.mxu0
  %v2256 = vadd.f32 %v978, %v2255
  %2257 = vmatmul.bf16.gmra.mxu0 %v2220
  %v2258 = vpop.f32.mrf.mxu0
  %v2259 = vadd.f32 %v981, %v2258
  %v2260 = vpop.f32.mrf.mxu0
  %v2261 = vadd.f32 %v983, %v2260
  %2262 = vmatmul.bf16.gmra.mxu0 %v2222
  %v2263 = vpop.f32.mrf.mxu0
  %v2264 = vadd.f32 %v986, %v2263
  %v2265 = vpop.f32.mrf.mxu0
  %v2266 = vadd.f32 %v988, %v2265
  %2267 = vdwg.mxu0
  %2268 = vmatpush.bf16.msra.mxu0 0
  %2269 = vmatpush.bf16.msra.mxu0 %v2083
  %2270 = vmatpush.bf16.msra.mxu0 %v2067
  %2271 = vmatpush.bf16.msra.mxu0 %v2051
  %2272 = vmatpush.bf16.msra.mxu0 %v2035
  %2273 = vmatpush.bf16.msra.mxu0 %v2019
  %2274 = vmatpush.bf16.msra.mxu0 %v2003
  %2275 = vmatpush.bf16.msra.mxu0 %v1987
  %2276 = vmatmul.bf16.gmra.mxu0 %v2210
  %v2277 = vpop.f32.mrf.mxu0
  %v2278 = vadd.f32 %v1000, %v2277
  %v2279 = vpop.f32.mrf.mxu0
  %v2280 = vadd.f32 %v1002, %v2279
  %2281 = vmatmul.bf16.gmra.mxu0 %v2212
  %v2282 = vpop.f32.mrf.mxu0
  %v2283 = vadd.f32 %v1005, %v2282
  %v2284 = vpop.f32.mrf.mxu0
  %v2285 = vadd.f32 %v1007, %v2284
  %2286 = vmatmul.bf16.gmra.mxu0 %v2214
  %v2287 = vpop.f32.mrf.mxu0
  %v2288 = vadd.f32 %v1010, %v2287
  %v2289 = vpop.f32.mrf.mxu0
  %v2290 = vadd.f32 %v1012, %v2289
  %2291 = vmatmul.bf16.gmra.mxu0 %v2216
  %v2292 = vpop.f32.mrf.mxu0
  %v2293 = vadd.f32 %v1015, %v2292
  %v2294 = vpop.f32.mrf.mxu0
  %v2295 = vadd.f32 %v1017, %v2294
  %2296 = vmatmul.bf16.gmra.mxu0 %v2218
  %v2297 = vpop.f32.mrf.mxu0
  %v2298 = vadd.f32 %v1020, %v2297
  %v2299 = vpop.f32.mrf.mxu0
  %v2300 = vadd.f32 %v1022, %v2299
  %2301 = vmatmul.bf16.gmra.mxu0 %v2220
  %v2302 = vpop.f32.mrf.mxu0
  %v2303 = vadd.f32 %v1025, %v2302
  %v2304 = vpop.f32.mrf.mxu0
  %v2305 = vadd.f32 %v1027, %v2304
  %2306 = vmatmul.bf16.gmra.mxu0 %v2222
  %v2307 = vpop.f32.mrf.mxu0
  %v2308 = vadd.f32 %v1030, %v2307
  %v2309 = vpop.f32.mrf.mxu0
  %v2310 = vadd.f32 %v1032, %v2309
  %2311 = vdwg.mxu0
  %2312 = vmatpush.bf16.msra.mxu0 0
  %2313 = vmatpush.bf16.msra.mxu0 %v2084
  %2314 = vmatpush.bf16.msra.mxu0 %v2068
  %2315 = vmatpush.bf16.msra.mxu0 %v2052
  %2316 = vmatpush.bf16.msra.mxu0 %v2036
  %2317 = vmatpush.bf16.msra.mxu0 %v2020
  %2318 = vmatpush.bf16.msra.mxu0 %v2004
  %2319 = vmatpush.bf16.msra.mxu0 %v1988
  %2320 = vmatmul.bf16.gmra.mxu0 %v2210
  %v2321 = vpop.f32.mrf.mxu0
  %v2322 = vadd.f32 %v1044, %v2321
  %v2323 = vpop.f32.mrf.mxu0
  %v2324 = vadd.f32 %v1046, %v2323
  %2325 = vmatmul.bf16.gmra.mxu0 %v2212
  %v2326 = vpop.f32.mrf.mxu0
  %v2327 = vadd.f32 %v1049, %v2326
  %v2328 = vpop.f32.mrf.mxu0
  %v2329 = vadd.f32 %v1051, %v2328
  %2330 = vmatmul.bf16.gmra.mxu0 %v2214
  %v2331 = vpop.f32.mrf.mxu0
  %v2332 = vadd.f32 %v1054, %v2331
  %v2333 = vpop.f32.mrf.mxu0
  %v2334 = vadd.f32 %v1056, %v2333
  %2335 = vmatmul.bf16.gmra.mxu0 %v2216
  %v2336 = vpop.f32.mrf.mxu0
  %v2337 = vadd.f32 %v1059, %v2336
  %v2338 = vpop.f32.mrf.mxu0
  %v2339 = vadd.f32 %v1061, %v2338
  %2340 = vmatmul.bf16.gmra.mxu0 %v2218
  %v2341 = vpop.f32.mrf.mxu0
  %v2342 = vadd.f32 %v1064, %v2341
  %v2343 = vpop.f32.mrf.mxu0
  %v2344 = vadd.f32 %v1066, %v2343
  %2345 = vmatmul.bf16.gmra.mxu0 %v2220
  %v2346 = vpop.f32.mrf.mxu0
  %v2347 = vadd.f32 %v1069, %v2346
  %v2348 = vpop.f32.mrf.mxu0
  %v2349 = vadd.f32 %v1071, %v2348
  %2350 = vmatmul.bf16.gmra.mxu0 %v2222
  %v2351 = vpop.f32.mrf.mxu0
  %v2352 = vadd.f32 %v1074, %v2351
  %v2353 = vpop.f32.mrf.mxu0
  %v2354 = vadd.f32 %v1076, %v2353
  %2355 = vdwg.mxu0
  %2356 = vmatpush.bf16.msra.mxu0 0
  %2357 = vmatpush.bf16.msra.mxu0 %v2085
  %2358 = vmatpush.bf16.msra.mxu0 %v2069
  %2359 = vmatpush.bf16.msra.mxu0 %v2053
  %2360 = vmatpush.bf16.msra.mxu0 %v2037
  %2361 = vmatpush.bf16.msra.mxu0 %v2021
  %2362 = vmatpush.bf16.msra.mxu0 %v2005
  %2363 = vmatpush.bf16.msra.mxu0 %v1989
  %2364 = vmatmul.bf16.gmra.mxu0 %v2210
  %v2365 = vpop.f32.mrf.mxu0
  %v2366 = vadd.f32 %v1088, %v2365
  %v2367 = vpop.f32.mrf.mxu0
  %v2368 = vadd.f32 %v1090, %v2367
  %2369 = vmatmul.bf16.gmra.mxu0 %v2212
  %v2370 = vpop.f32.mrf.mxu0
  %v2371 = vadd.f32 %v1093, %v2370
  %v2372 = vpop.f32.mrf.mxu0
  %v2373 = vadd.f32 %v1095, %v2372
  %2374 = vmatmul.bf16.gmra.mxu0 %v2214
  %v2375 = vpop.f32.mrf.mxu0
  %v2376 = vadd.f32 %v1098, %v2375
  %v2377 = vpop.f32.mrf.mxu0
  %v2378 = vadd.f32 %v1100, %v2377
  %2379 = vmatmul.bf16.gmra.mxu0 %v2216
  %v2380 = vpop.f32.mrf.mxu0
  %v2381 = vadd.f32 %v1103, %v2380
  %v2382 = vpop.f32.mrf.mxu0
  %v2383 = vadd.f32 %v1105, %v2382
  %2384 = vmatmul.bf16.gmra.mxu0 %v2218
  %v2385 = vpop.f32.mrf.mxu0
  %v2386 = vadd.f32 %v1108, %v2385
  %v2387 = vpop.f32.mrf.mxu0
  %v2388 = vadd.f32 %v1110, %v2387
  %2389 = vmatmul.bf16.gmra.mxu0 %v2220
  %v2390 = vpop.f32.mrf.mxu0
  %v2391 = vadd.f32 %v1113, %v2390
  %v2392 = vpop.f32.mrf.mxu0
  %v2393 = vadd.f32 %v1115, %v2392
  %2394 = vmatmul.bf16.gmra.mxu0 %v2222
  %v2395 = vpop.f32.mrf.mxu0
  %v2396 = vadd.f32 %v1118, %v2395
  %v2397 = vpop.f32.mrf.mxu0
  %v2398 = vadd.f32 %v1120, %v2397
  %2399 = vdwg.mxu0
  %2400 = vmatpush.bf16.msra.mxu0 0
  %2401 = vmatpush.bf16.msra.mxu0 %v2086
  %2402 = vmatpush.bf16.msra.mxu0 %v2070
  %2403 = vmatpush.bf16.msra.mxu0 %v2054
  %2404 = vmatpush.bf16.msra.mxu0 %v2038
  %2405 = vmatpush.bf16.msra.mxu0 %v2022
  %2406 = vmatpush.bf16.msra.mxu0 %v2006
  %2407 = vmatpush.bf16.msra.mxu0 %v1990
  %2408 = vmatmul.bf16.gmra.mxu0 %v2210
  %v2409 = vpop.f32.mrf.mxu0
  %v2410 = vadd.f32 %v1132, %v2409
  %v2411 = vpop.f32.mrf.mxu0
  %v2412 = vadd.f32 %v1134, %v2411
  %2413 = vmatmul.bf16.gmra.mxu0 %v2212
  %v2414 = vpop.f32.mrf.mxu0
  %v2415 = vadd.f32 %v1137, %v2414
  %v2416 = vpop.f32.mrf.mxu0
  %v2417 = vadd.f32 %v1139, %v2416
  %2418 = vmatmul.bf16.gmra.mxu0 %v2214
  %v2419 = vpop.f32.mrf.mxu0
  %v2420 = vadd.f32 %v1142, %v2419
  %v2421 = vpop.f32.mrf.mxu0
  %v2422 = vadd.f32 %v1144, %v2421
  %2423 = vmatmul.bf16.gmra.mxu0 %v2216
  %v2424 = vpop.f32.mrf.mxu0
  %v2425 = vadd.f32 %v1147, %v2424
  %v2426 = vpop.f32.mrf.mxu0
  %v2427 = vadd.f32 %v1149, %v2426
  %2428 = vmatmul.bf16.gmra.mxu0 %v2218
  %v2429 = vpop.f32.mrf.mxu0
  %v2430 = vadd.f32 %v1152, %v2429
  %v2431 = vpop.f32.mrf.mxu0
  %v2432 = vadd.f32 %v1154, %v2431
  %2433 = vmatmul.bf16.gmra.mxu0 %v2220
  %v2434 = vpop.f32.mrf.mxu0
  %v2435 = vadd.f32 %v1157, %v2434
  %v2436 = vpop.f32.mrf.mxu0
  %v2437 = vadd.f32 %v1159, %v2436
  %2438 = vmatmul.bf16.gmra.mxu0 %v2222
  %v2439 = vpop.f32.mrf.mxu0
  %v2440 = vadd.f32 %v1162, %v2439
  %v2441 = vpop.f32.mrf.mxu0
  %v2442 = vadd.f32 %v1164, %v2441
  %2443 = vdwg.mxu0
  %2444 = vmatpush.bf16.msra.mxu0 0
  %2445 = vmatpush.bf16.msra.mxu0 %v2087
  %2446 = vmatpush.bf16.msra.mxu0 %v2071
  %2447 = vmatpush.bf16.msra.mxu0 %v2055
  %2448 = vmatpush.bf16.msra.mxu0 %v2039
  %2449 = vmatpush.bf16.msra.mxu0 %v2023
  %2450 = vmatpush.bf16.msra.mxu0 %v2007
  %2451 = vmatpush.bf16.msra.mxu0 %v1991
  %2452 = vmatmul.bf16.gmra.mxu0 %v2210
  %v2453 = vpop.f32.mrf.mxu0
  %v2454 = vadd.f32 %v1176, %v2453
  %v2455 = vpop.f32.mrf.mxu0
  %v2456 = vadd.f32 %v1178, %v2455
  %2457 = vmatmul.bf16.gmra.mxu0 %v2212
  %v2458 = vpop.f32.mrf.mxu0
  %v2459 = vadd.f32 %v1181, %v2458
  %v2460 = vpop.f32.mrf.mxu0
  %v2461 = vadd.f32 %v1183, %v2460
  %2462 = vmatmul.bf16.gmra.mxu0 %v2214
  %v2463 = vpop.f32.mrf.mxu0
  %v2464 = vadd.f32 %v1186, %v2463
  %v2465 = vpop.f32.mrf.mxu0
  %v2466 = vadd.f32 %v1188, %v2465
  %2467 = vmatmul.bf16.gmra.mxu0 %v2216
  %v2468 = vpop.f32.mrf.mxu0
  %v2469 = vadd.f32 %v1191, %v2468
  %v2470 = vpop.f32.mrf.mxu0
  %v2471 = vadd.f32 %v1193, %v2470
  %2472 = vmatmul.bf16.gmra.mxu0 %v2218
  %v2473 = vpop.f32.mrf.mxu0
  %v2474 = vadd.f32 %v1196, %v2473
  %v2475 = vpop.f32.mrf.mxu0
  %v2476 = vadd.f32 %v1198, %v2475
  %2477 = vmatmul.bf16.gmra.mxu0 %v2220
  %v2478 = vpop.f32.mrf.mxu0
  %v2479 = vadd.f32 %v1201, %v2478
  %v2480 = vpop.f32.mrf.mxu0
  %v2481 = vadd.f32 %v1203, %v2480
  %2482 = vmatmul.bf16.gmra.mxu0 %v2222
  %v2483 = vpop.f32.mrf.mxu0
  %v2484 = vadd.f32 %v1206, %v2483
  %v2485 = vpop.f32.mrf.mxu0
  %v2486 = vadd.f32 %v1208, %v2485
  %2487 = vdwg.mxu0
  %2488 = vmatpush.bf16.msra.mxu0 0
  %2489 = vmatpush.bf16.msra.mxu0 %v2088
  %2490 = vmatpush.bf16.msra.mxu0 %v2072
  %2491 = vmatpush.bf16.msra.mxu0 %v2056
  %2492 = vmatpush.bf16.msra.mxu0 %v2040
  %2493 = vmatpush.bf16.msra.mxu0 %v2024
  %2494 = vmatpush.bf16.msra.mxu0 %v2008
  %2495 = vmatpush.bf16.msra.mxu0 %v1992
  %2496 = vmatmul.bf16.gmra.mxu0 %v2210
  %v2497 = vpop.f32.mrf.mxu0
  %v2498 = vadd.f32 %v1220, %v2497
  %v2499 = vpop.f32.mrf.mxu0
  %v2500 = vadd.f32 %v1222, %v2499
  %2501 = vmatmul.bf16.gmra.mxu0 %v2212
  %v2502 = vpop.f32.mrf.mxu0
  %v2503 = vadd.f32 %v1225, %v2502
  %v2504 = vpop.f32.mrf.mxu0
  %v2505 = vadd.f32 %v1227, %v2504
  %2506 = vmatmul.bf16.gmra.mxu0 %v2214
  %v2507 = vpop.f32.mrf.mxu0
  %v2508 = vadd.f32 %v1230, %v2507
  %v2509 = vpop.f32.mrf.mxu0
  %v2510 = vadd.f32 %v1232, %v2509
  %2511 = vmatmul.bf16.gmra.mxu0 %v2216
  %v2512 = vpop.f32.mrf.mxu0
  %v2513 = vadd.f32 %v1235, %v2512
  %v2514 = vpop.f32.mrf.mxu0
  %v2515 = vadd.f32 %v1237, %v2514
  %2516 = vmatmul.bf16.gmra.mxu0 %v2218
  %v2517 = vpop.f32.mrf.mxu0
  %v2518 = vadd.f32 %v1240, %v2517
  %v2519 = vpop.f32.mrf.mxu0
  %v2520 = vadd.f32 %v1242, %v2519
  %2521 = vmatmul.bf16.gmra.mxu0 %v2220
  %v2522 = vpop.f32.mrf.mxu0
  %v2523 = vadd.f32 %v1245, %v2522
  %v2524 = vpop.f32.mrf.mxu0
  %v2525 = vadd.f32 %v1247, %v2524
  %2526 = vmatmul.bf16.gmra.mxu0 %v2222
  %v2527 = vpop.f32.mrf.mxu0
  %v2528 = vadd.f32 %v1250, %v2527
  %v2529 = vpop.f32.mrf.mxu0
  %v2530 = vadd.f32 %v1252, %v2529
  %2531 = vdwg.mxu0
  %2532 = vmatpush.bf16.msra.mxu0 0
  %2533 = vmatpush.bf16.msra.mxu0 %v2089
  %2534 = vmatpush.bf16.msra.mxu0 %v2073
  %2535 = vmatpush.bf16.msra.mxu0 %v2057
  %2536 = vmatpush.bf16.msra.mxu0 %v2041
  %2537 = vmatpush.bf16.msra.mxu0 %v2025
  %2538 = vmatpush.bf16.msra.mxu0 %v2009
  %2539 = vmatpush.bf16.msra.mxu0 %v1993
  %2540 = vmatmul.bf16.gmra.mxu0 %v2210
  %v2541 = vpop.f32.mrf.mxu0
  %v2542 = vadd.f32 %v1264, %v2541
  %v2543 = vpop.f32.mrf.mxu0
  %v2544 = vadd.f32 %v1266, %v2543
  %2545 = vmatmul.bf16.gmra.mxu0 %v2212
  %v2546 = vpop.f32.mrf.mxu0
  %v2547 = vadd.f32 %v1269, %v2546
  %v2548 = vpop.f32.mrf.mxu0
  %v2549 = vadd.f32 %v1271, %v2548
  %2550 = vmatmul.bf16.gmra.mxu0 %v2214
  %v2551 = vpop.f32.mrf.mxu0
  %v2552 = vadd.f32 %v1274, %v2551
  %v2553 = vpop.f32.mrf.mxu0
  %v2554 = vadd.f32 %v1276, %v2553
  %2555 = vmatmul.bf16.gmra.mxu0 %v2216
  %v2556 = vpop.f32.mrf.mxu0
  %v2557 = vadd.f32 %v1279, %v2556
  %v2558 = vpop.f32.mrf.mxu0
  %v2559 = vadd.f32 %v1281, %v2558
  %2560 = vmatmul.bf16.gmra.mxu0 %v2218
  %v2561 = vpop.f32.mrf.mxu0
  %v2562 = vadd.f32 %v1284, %v2561
  %v2563 = vpop.f32.mrf.mxu0
  %v2564 = vadd.f32 %v1286, %v2563
  %2565 = vmatmul.bf16.gmra.mxu0 %v2220
  %v2566 = vpop.f32.mrf.mxu0
  %v2567 = vadd.f32 %v1289, %v2566
  %v2568 = vpop.f32.mrf.mxu0
  %v2569 = vadd.f32 %v1291, %v2568
  %2570 = vmatmul.bf16.gmra.mxu0 %v2222
  %v2571 = vpop.f32.mrf.mxu0
  %v2572 = vadd.f32 %v1294, %v2571
  %v2573 = vpop.f32.mrf.mxu0
  %v2574 = vadd.f32 %v1296, %v2573
  %2575 = vdwg.mxu0
  %2576 = vmatpush.bf16.msra.mxu0 0
  %2577 = vmatpush.bf16.msra.mxu0 %v2090
  %2578 = vmatpush.bf16.msra.mxu0 %v2074
  %2579 = vmatpush.bf16.msra.mxu0 %v2058
  %2580 = vmatpush.bf16.msra.mxu0 %v2042
  %2581 = vmatpush.bf16.msra.mxu0 %v2026
  %2582 = vmatpush.bf16.msra.mxu0 %v2010
  %2583 = vmatpush.bf16.msra.mxu0 %v1994
  %2584 = vmatmul.bf16.gmra.mxu0 %v2210
  %v2585 = vpop.f32.mrf.mxu0
  %v2586 = vadd.f32 %v1308, %v2585
  %v2587 = vpop.f32.mrf.mxu0
  %v2588 = vadd.f32 %v1310, %v2587
  %2589 = vmatmul.bf16.gmra.mxu0 %v2212
  %v2590 = vpop.f32.mrf.mxu0
  %v2591 = vadd.f32 %v1313, %v2590
  %v2592 = vpop.f32.mrf.mxu0
  %v2593 = vadd.f32 %v1315, %v2592
  %2594 = vmatmul.bf16.gmra.mxu0 %v2214
  %v2595 = vpop.f32.mrf.mxu0
  %v2596 = vadd.f32 %v1318, %v2595
  %v2597 = vpop.f32.mrf.mxu0
  %v2598 = vadd.f32 %v1320, %v2597
  %2599 = vmatmul.bf16.gmra.mxu0 %v2216
  %v2600 = vpop.f32.mrf.mxu0
  %v2601 = vadd.f32 %v1323, %v2600
  %v2602 = vpop.f32.mrf.mxu0
  %v2603 = vadd.f32 %v1325, %v2602
  %2604 = vmatmul.bf16.gmra.mxu0 %v2218
  %v2605 = vpop.f32.mrf.mxu0
  %v2606 = vadd.f32 %v1328, %v2605
  %v2607 = vpop.f32.mrf.mxu0
  %v2608 = vadd.f32 %v1330, %v2607
  %2609 = vmatmul.bf16.gmra.mxu0 %v2220
  %v2610 = vpop.f32.mrf.mxu0
  %v2611 = vadd.f32 %v1333, %v2610
  %v2612 = vpop.f32.mrf.mxu0
  %v2613 = vadd.f32 %v1335, %v2612
  %2614 = vmatmul.bf16.gmra.mxu0 %v2222
  %v2615 = vpop.f32.mrf.mxu0
  %v2616 = vadd.f32 %v1338, %v2615
  %v2617 = vpop.f32.mrf.mxu0
  %v2618 = vadd.f32 %v1340, %v2617
  %2619 = vdwg.mxu0
  %2620 = vmatpush.bf16.msra.mxu0 0
  %2621 = vmatpush.bf16.msra.mxu0 %v2091
  %2622 = vmatpush.bf16.msra.mxu0 %v2075
  %2623 = vmatpush.bf16.msra.mxu0 %v2059
  %2624 = vmatpush.bf16.msra.mxu0 %v2043
  %2625 = vmatpush.bf16.msra.mxu0 %v2027
  %2626 = vmatpush.bf16.msra.mxu0 %v2011
  %2627 = vmatpush.bf16.msra.mxu0 %v1995
  %2628 = vmatmul.bf16.gmra.mxu0 %v2210
  %v2629 = vpop.f32.mrf.mxu0
  %v2630 = vadd.f32 %v1352, %v2629
  %v2631 = vpop.f32.mrf.mxu0
  %v2632 = vadd.f32 %v1354, %v2631
  %2633 = vmatmul.bf16.gmra.mxu0 %v2212
  %v2634 = vpop.f32.mrf.mxu0
  %v2635 = vadd.f32 %v1357, %v2634
  %v2636 = vpop.f32.mrf.mxu0
  %v2637 = vadd.f32 %v1359, %v2636
  %2638 = vmatmul.bf16.gmra.mxu0 %v2214
  %v2639 = vpop.f32.mrf.mxu0
  %v2640 = vadd.f32 %v1362, %v2639
  %v2641 = vpop.f32.mrf.mxu0
  %v2642 = vadd.f32 %v1364, %v2641
  %2643 = vmatmul.bf16.gmra.mxu0 %v2216
  %v2644 = vpop.f32.mrf.mxu0
  %v2645 = vadd.f32 %v1367, %v2644
  %v2646 = vpop.f32.mrf.mxu0
  %v2647 = vadd.f32 %v1369, %v2646
  %2648 = vmatmul.bf16.gmra.mxu0 %v2218
  %v2649 = vpop.f32.mrf.mxu0
  %v2650 = vadd.f32 %v1372, %v2649
  %v2651 = vpop.f32.mrf.mxu0
  %v2652 = vadd.f32 %v1374, %v2651
  %2653 = vmatmul.bf16.gmra.mxu0 %v2220
  %v2654 = vpop.f32.mrf.mxu0
  %v2655 = vadd.f32 %v1377, %v2654
  %v2656 = vpop.f32.mrf.mxu0
  %v2657 = vadd.f32 %v1379, %v2656
  %2658 = vmatmul.bf16.gmra.mxu0 %v2222
  %v2659 = vpop.f32.mrf.mxu0
  %v2660 = vadd.f32 %v1382, %v2659
  %v2661 = vpop.f32.mrf.mxu0
  %v2662 = vadd.f32 %v1384, %v2661
  %2663 = vdwg.mxu0
  %2664 = vmatpush.bf16.msra.mxu0 0
  %2665 = vmatpush.bf16.msra.mxu0 %v2092
  %2666 = vmatpush.bf16.msra.mxu0 %v2076
  %2667 = vmatpush.bf16.msra.mxu0 %v2060
  %2668 = vmatpush.bf16.msra.mxu0 %v2044
  %2669 = vmatpush.bf16.msra.mxu0 %v2028
  %2670 = vmatpush.bf16.msra.mxu0 %v2012
  %2671 = vmatpush.bf16.msra.mxu0 %v1996
  %2672 = vmatmul.bf16.gmra.mxu0 %v2210
  %v2673 = vpop.f32.mrf.mxu0
  %v2674 = vadd.f32 %v1396, %v2673
  %v2675 = vpop.f32.mrf.mxu0
  %v2676 = vadd.f32 %v1398, %v2675
  %2677 = vmatmul.bf16.gmra.mxu0 %v2212
  %v2678 = vpop.f32.mrf.mxu0
  %v2679 = vadd.f32 %v1401, %v2678
  %v2680 = vpop.f32.mrf.mxu0
  %v2681 = vadd.f32 %v1403, %v2680
  %2682 = vmatmul.bf16.gmra.mxu0 %v2214
  %v2683 = vpop.f32.mrf.mxu0
  %v2684 = vadd.f32 %v1406, %v2683
  %v2685 = vpop.f32.mrf.mxu0
  %v2686 = vadd.f32 %v1408, %v2685
  %2687 = vmatmul.bf16.gmra.mxu0 %v2216
  %v2688 = vpop.f32.mrf.mxu0
  %v2689 = vadd.f32 %v1411, %v2688
  %v2690 = vpop.f32.mrf.mxu0
  %v2691 = vadd.f32 %v1413, %v2690
  %2692 = vmatmul.bf16.gmra.mxu0 %v2218
  %v2693 = vpop.f32.mrf.mxu0
  %v2694 = vadd.f32 %v1416, %v2693
  %v2695 = vpop.f32.mrf.mxu0
  %v2696 = vadd.f32 %v1418, %v2695
  %2697 = vmatmul.bf16.gmra.mxu0 %v2220
  %v2698 = vpop.f32.mrf.mxu0
  %v2699 = vadd.f32 %v1421, %v2698
  %v2700 = vpop.f32.mrf.mxu0
  %v2701 = vadd.f32 %v1423, %v2700
  %2702 = vmatmul.bf16.gmra.mxu0 %v2222
  %v2703 = vpop.f32.mrf.mxu0
  %v2704 = vadd.f32 %v1426, %v2703
  %v2705 = vpop.f32.mrf.mxu0
  %v2706 = vadd.f32 %v1428, %v2705
  %2707 = vdwg.mxu0
  %2708 = vmatpush.bf16.msra.mxu0 0
  %2709 = vmatpush.bf16.msra.mxu0 %v2093
  %2710 = vmatpush.bf16.msra.mxu0 %v2077
  %2711 = vmatpush.bf16.msra.mxu0 %v2061
  %2712 = vmatpush.bf16.msra.mxu0 %v2045
  %2713 = vmatpush.bf16.msra.mxu0 %v2029
  %2714 = vmatpush.bf16.msra.mxu0 %v2013
  %2715 = vmatpush.bf16.msra.mxu0 %v1997
  %2716 = vmatmul.bf16.gmra.mxu0 %v2210
  %v2717 = vpop.f32.mrf.mxu0
  %v2718 = vadd.f32 %v1440, %v2717
  %v2719 = vpop.f32.mrf.mxu0
  %v2720 = vadd.f32 %v1442, %v2719
  %2721 = vmatmul.bf16.gmra.mxu0 %v2212
  %v2722 = vpop.f32.mrf.mxu0
  %v2723 = vadd.f32 %v1445, %v2722
  %v2724 = vpop.f32.mrf.mxu0
  %v2725 = vadd.f32 %v1447, %v2724
  %2726 = vmatmul.bf16.gmra.mxu0 %v2214
  %v2727 = vpop.f32.mrf.mxu0
  %v2728 = vadd.f32 %v1450, %v2727
  %v2729 = vpop.f32.mrf.mxu0
  %v2730 = vadd.f32 %v1452, %v2729
  %2731 = vmatmul.bf16.gmra.mxu0 %v2216
  %v2732 = vpop.f32.mrf.mxu0
  %v2733 = vadd.f32 %v1455, %v2732
  %v2734 = vpop.f32.mrf.mxu0
  %v2735 = vadd.f32 %v1457, %v2734
  %2736 = vmatmul.bf16.gmra.mxu0 %v2218
  %v2737 = vpop.f32.mrf.mxu0
  %v2738 = vadd.f32 %v1460, %v2737
  %v2739 = vpop.f32.mrf.mxu0
  %v2740 = vadd.f32 %v1462, %v2739
  %2741 = vmatmul.bf16.gmra.mxu0 %v2220
  %v2742 = vpop.f32.mrf.mxu0
  %v2743 = vadd.f32 %v1465, %v2742
  %v2744 = vpop.f32.mrf.mxu0
  %v2745 = vadd.f32 %v1467, %v2744
  %2746 = vmatmul.bf16.gmra.mxu0 %v2222
  %v2747 = vpop.f32.mrf.mxu0
  %v2748 = vadd.f32 %v1470, %v2747
  %v2749 = vpop.f32.mrf.mxu0
  %v2750 = vadd.f32 %v1472, %v2749
  %2751 = vdwg.mxu0
  %2752 = vmatpush.bf16.msra.mxu0 0
  %2753 = vmatpush.bf16.msra.mxu0 %v2094
  %2754 = vmatpush.bf16.msra.mxu0 %v2078
  %2755 = vmatpush.bf16.msra.mxu0 %v2062
  %2756 = vmatpush.bf16.msra.mxu0 %v2046
  %2757 = vmatpush.bf16.msra.mxu0 %v2030
  %2758 = vmatpush.bf16.msra.mxu0 %v2014
  %2759 = vmatpush.bf16.msra.mxu0 %v1998
  %2760 = vmatmul.bf16.gmra.mxu0 %v2210
  %v2761 = vpop.f32.mrf.mxu0
  %v2762 = vadd.f32 %v1484, %v2761
  %v2763 = vpop.f32.mrf.mxu0
  %v2764 = vadd.f32 %v1486, %v2763
  %2765 = vmatmul.bf16.gmra.mxu0 %v2212
  %v2766 = vpop.f32.mrf.mxu0
  %v2767 = vadd.f32 %v1489, %v2766
  %v2768 = vpop.f32.mrf.mxu0
  %v2769 = vadd.f32 %v1491, %v2768
  %2770 = vmatmul.bf16.gmra.mxu0 %v2214
  %v2771 = vpop.f32.mrf.mxu0
  %v2772 = vadd.f32 %v1494, %v2771
  %v2773 = vpop.f32.mrf.mxu0
  %v2774 = vadd.f32 %v1496, %v2773
  %2775 = vmatmul.bf16.gmra.mxu0 %v2216
  %v2776 = vpop.f32.mrf.mxu0
  %v2777 = vadd.f32 %v1499, %v2776
  %v2778 = vpop.f32.mrf.mxu0
  %v2779 = vadd.f32 %v1501, %v2778
  %2780 = vmatmul.bf16.gmra.mxu0 %v2218
  %v2781 = vpop.f32.mrf.mxu0
  %v2782 = vadd.f32 %v1504, %v2781
  %v2783 = vpop.f32.mrf.mxu0
  %v2784 = vadd.f32 %v1506, %v2783
  %2785 = vmatmul.bf16.gmra.mxu0 %v2220
  %v2786 = vpop.f32.mrf.mxu0
  %v2787 = vadd.f32 %v1509, %v2786
  %v2788 = vpop.f32.mrf.mxu0
  %v2789 = vadd.f32 %v1511, %v2788
  %2790 = vmatmul.bf16.gmra.mxu0 %v2222
  %v2791 = vpop.f32.mrf.mxu0
  %v2792 = vadd.f32 %v1514, %v2791
  %v2793 = vpop.f32.mrf.mxu0
  %v2794 = vadd.f32 %v1516, %v2793
  %2795 = vdwg.mxu0
  %2796 = vmatpush.bf16.msra.mxu0 0
  %2797 = vmatpush.bf16.msra.mxu0 %v2095
  %2798 = vmatpush.bf16.msra.mxu0 %v2079
  %2799 = vmatpush.bf16.msra.mxu0 %v2063
  %2800 = vmatpush.bf16.msra.mxu0 %v2047
  %2801 = vmatpush.bf16.msra.mxu0 %v2031
  %2802 = vmatpush.bf16.msra.mxu0 %v2015
  %2803 = vmatpush.bf16.msra.mxu0 %v1999
  %2804 = vmatmul.bf16.gmra.mxu0 %v2210
  %v2805 = vpop.f32.mrf.mxu0
  %v2806 = vadd.f32 %v1528, %v2805
  %v2807 = vpop.f32.mrf.mxu0
  %v2808 = vadd.f32 %v1530, %v2807
  %2809 = vmatmul.bf16.gmra.mxu0 %v2212
  %v2810 = vpop.f32.mrf.mxu0
  %v2811 = vadd.f32 %v1533, %v2810
  %v2812 = vpop.f32.mrf.mxu0
  %v2813 = vadd.f32 %v1535, %v2812
  %2814 = vmatmul.bf16.gmra.mxu0 %v2214
  %v2815 = vpop.f32.mrf.mxu0
  %v2816 = vadd.f32 %v1538, %v2815
  %v2817 = vpop.f32.mrf.mxu0
  %v2818 = vadd.f32 %v1540, %v2817
  %2819 = vmatmul.bf16.gmra.mxu0 %v2216
  %v2820 = vpop.f32.mrf.mxu0
  %v2821 = vadd.f32 %v1543, %v2820
  %v2822 = vpop.f32.mrf.mxu0
  %v2823 = vadd.f32 %v1545, %v2822
  %2824 = vmatmul.bf16.gmra.mxu0 %v2218
  %v2825 = vpop.f32.mrf.mxu0
  %v2826 = vadd.f32 %v1548, %v2825
  %v2827 = vpop.f32.mrf.mxu0
  %v2828 = vadd.f32 %v1550, %v2827
  %2829 = vmatmul.bf16.gmra.mxu0 %v2220
  %v2830 = vpop.f32.mrf.mxu0
  %v2831 = vadd.f32 %v1553, %v2830
  %v2832 = vpop.f32.mrf.mxu0
  %v2833 = vadd.f32 %v1555, %v2832
  %2834 = vmatmul.bf16.gmra.mxu0 %v2222
  %v2835 = vpop.f32.mrf.mxu0
  %v2836 = vadd.f32 %v1558, %v2835
  %v2837 = vpop.f32.mrf.mxu0
  %v2838 = vadd.f32 %v1560, %v2837
  %2839 = vdwg.mxu0
  %2840 = vmatpush.bf16.msra.mxu0 0
  %2841 = vmatpush.bf16.msra.mxu0 %v2096
  %2842 = vmatpush.bf16.msra.mxu0 %v2080
  %2843 = vmatpush.bf16.msra.mxu0 %v2064
  %2844 = vmatpush.bf16.msra.mxu0 %v2048
  %2845 = vmatpush.bf16.msra.mxu0 %v2032
  %2846 = vmatpush.bf16.msra.mxu0 %v2016
  %2847 = vmatpush.bf16.msra.mxu0 %v2000
  %2848 = vmatmul.bf16.gmra.mxu0 %v2210
  %v2849 = vpop.f32.mrf.mxu0
  %v2850 = vadd.f32 %v1572, %v2849
  %v2851 = vpop.f32.mrf.mxu0
  %v2852 = vadd.f32 %v1574, %v2851
  %2853 = vmatmul.bf16.gmra.mxu0 %v2212
  %v2854 = vpop.f32.mrf.mxu0
  %v2855 = vadd.f32 %v1577, %v2854
  %v2856 = vpop.f32.mrf.mxu0
  %v2857 = vadd.f32 %v1579, %v2856
  %2858 = vmatmul.bf16.gmra.mxu0 %v2214
  %v2859 = vpop.f32.mrf.mxu0
  %v2860 = vadd.f32 %v1582, %v2859
  %v2861 = vpop.f32.mrf.mxu0
  %v2862 = vadd.f32 %v1584, %v2861
  %2863 = vmatmul.bf16.gmra.mxu0 %v2216
  %v2864 = vpop.f32.mrf.mxu0
  %v2865 = vadd.f32 %v1587, %v2864
  %v2866 = vpop.f32.mrf.mxu0
  %v2867 = vadd.f32 %v1589, %v2866
  %2868 = vmatmul.bf16.gmra.mxu0 %v2218
  %v2869 = vpop.f32.mrf.mxu0
  %v2870 = vadd.f32 %v1592, %v2869
  %v2871 = vpop.f32.mrf.mxu0
  %v2872 = vadd.f32 %v1594, %v2871
  %2873 = vmatmul.bf16.gmra.mxu0 %v2220
  %v2874 = vpop.f32.mrf.mxu0
  %v2875 = vadd.f32 %v1597, %v2874
  %v2876 = vpop.f32.mrf.mxu0
  %v2877 = vadd.f32 %v1599, %v2876
  %2878 = vmatmul.bf16.gmra.mxu0 %v2222
  %v2879 = vpop.f32.mrf.mxu0
  %v2880 = vadd.f32 %v1602, %v2879
  %v2881 = vpop.f32.mrf.mxu0
  %v2882 = vadd.f32 %v1604, %v2881
  %2883 = vdwg.mxu0
  %2884 = vmatpush.bf16.msra.mxu0 0
  %2885 = vmatpush.bf16.msra.mxu0 %v2097
  %2886 = vmatpush.bf16.msra.mxu0 %v2081
  %2887 = vmatpush.bf16.msra.mxu0 %v2065
  %2888 = vmatpush.bf16.msra.mxu0 %v2049
  %2889 = vmatpush.bf16.msra.mxu0 %v2033
  %2890 = vmatpush.bf16.msra.mxu0 %v2017
  %2891 = vmatpush.bf16.msra.mxu0 %v2001
  %2892 = vmatmul.bf16.gmra.mxu0 %v2210
  %v2893 = vpop.f32.mrf.mxu0
  %v2894 = vadd.f32 %v1616, %v2893
  %v2895 = vpop.f32.mrf.mxu0
  %v2896 = vadd.f32 %v1618, %v2895
  %2897 = vmatmul.bf16.gmra.mxu0 %v2212
  %v2898 = vpop.f32.mrf.mxu0
  %v2899 = vadd.f32 %v1621, %v2898
  %v2900 = vpop.f32.mrf.mxu0
  %v2901 = vadd.f32 %v1623, %v2900
  %2902 = vmatmul.bf16.gmra.mxu0 %v2214
  %v2903 = vpop.f32.mrf.mxu0
  %v2904 = vadd.f32 %v1626, %v2903
  %v2905 = vpop.f32.mrf.mxu0
  %v2906 = vadd.f32 %v1628, %v2905
  %2907 = vmatmul.bf16.gmra.mxu0 %v2216
  %v2908 = vpop.f32.mrf.mxu0
  %v2909 = vadd.f32 %v1631, %v2908
  %v2910 = vpop.f32.mrf.mxu0
  %v2911 = vadd.f32 %v1633, %v2910
  %2912 = vmatmul.bf16.gmra.mxu0 %v2218
  %v2913 = vpop.f32.mrf.mxu0
  %v2914 = vadd.f32 %v1636, %v2913
  %v2915 = vpop.f32.mrf.mxu0
  %v2916 = vadd.f32 %v1638, %v2915
  %2917 = vmatmul.bf16.gmra.mxu0 %v2220
  %v2918 = vpop.f32.mrf.mxu0
  %v2919 = vadd.f32 %v1641, %v2918
  %v2920 = vpop.f32.mrf.mxu0
  %v2921 = vadd.f32 %v1643, %v2920
  %2922 = vmatmul.bf16.gmra.mxu0 %v2222
  %v2923 = vpop.f32.mrf.mxu0
  %v2924 = vadd.f32 %v1646, %v2923
  %v2925 = vpop.f32.mrf.mxu0
  %v2926 = vadd.f32 %v1648, %v2925
  %2927 = vdwg.mxu0
  %v2928 = vmax.f32 %v2234, %v2410
  %v2929 = vmax.f32 %v2278, %v2454
  %v2930 = vmax.f32 %v2322, %v2498
  %v2931 = vmax.f32 %v2366, %v2542
  %v2932 = vmax.f32 %v2236, %v2412
  %v2933 = vmax.f32 %v2280, %v2456
  %v2934 = vmax.f32 %v2324, %v2500
  %v2935 = vmax.f32 %v2368, %v2544
  %v2936 = vmax.f32 %v2239, %v2415
  %v2937 = vmax.f32 %v2283, %v2459
  %v2938 = vmax.f32 %v2327, %v2503
  %v2939 = vmax.f32 %v2371, %v2547
  %v2940 = vmax.f32 %v2241, %v2417
  %v2941 = vmax.f32 %v2285, %v2461
  %v2942 = vmax.f32 %v2329, %v2505
  %v2943 = vmax.f32 %v2373, %v2549
  %v2944 = vmax.f32 %v2244, %v2420
  %v2945 = vmax.f32 %v2288, %v2464
  %v2946 = vmax.f32 %v2332, %v2508
  %v2947 = vmax.f32 %v2376, %v2552
  %v2948 = vmax.f32 %v2246, %v2422
  %v2949 = vmax.f32 %v2290, %v2466
  %v2950 = vmax.f32 %v2334, %v2510
  %v2951 = vmax.f32 %v2378, %v2554
  %v2952 = vmax.f32 %v2249, %v2425
  %v2953 = vmax.f32 %v2293, %v2469
  %v2954 = vmax.f32 %v2337, %v2513
  %v2955 = vmax.f32 %v2381, %v2557
  %v2956 = vmax.f32 %v2251, %v2427
  %v2957 = vmax.f32 %v2295, %v2471
  %v2958 = vmax.f32 %v2339, %v2515
  %v2959 = vmax.f32 %v2383, %v2559
  %v2960 = vmax.f32 %v2254, %v2430
  %v2961 = vmax.f32 %v2298, %v2474
  %v2962 = vmax.f32 %v2342, %v2518
  %v2963 = vmax.f32 %v2386, %v2562
  %v2964 = vmax.f32 %v2256, %v2432
  %v2965 = vmax.f32 %v2300, %v2476
  %v2966 = vmax.f32 %v2344, %v2520
  %v2967 = vmax.f32 %v2388, %v2564
  %v2968 = vmax.f32 %v2259, %v2435
  %v2969 = vmax.f32 %v2303, %v2479
  %v2970 = vmax.f32 %v2347, %v2523
  %v2971 = vmax.f32 %v2391, %v2567
  %v2972 = vmax.f32 %v2261, %v2437
  %v2973 = vmax.f32 %v2305, %v2481
  %v2974 = vmax.f32 %v2349, %v2525
  %v2975 = vmax.f32 %v2393, %v2569
  %v2976 = vmax.f32 %v2264, %v2440
  %v2977 = vmax.f32 %v2308, %v2484
  %v2978 = vmax.f32 %v2352, %v2528
  %v2979 = vmax.f32 %v2396, %v2572
  %v2980 = vmax.f32 %v2266, %v2442
  %v2981 = vmax.f32 %v2310, %v2486
  %v2982 = vmax.f32 %v2354, %v2530
  %v2983 = vmax.f32 %v2398, %v2574
  %v2984 = vmax.f32 %v2928, %v2930
  %v2985 = vmax.f32 %v2929, %v2931
  %v2986 = vmax.f32 %v2932, %v2934
  %v2987 = vmax.f32 %v2933, %v2935
  %v2988 = vmax.f32 %v2936, %v2938
  %v2989 = vmax.f32 %v2937, %v2939
  %v2990 = vmax.f32 %v2940, %v2942
  %v2991 = vmax.f32 %v2941, %v2943
  %v2992 = vmax.f32 %v2944, %v2946
  %v2993 = vmax.f32 %v2945, %v2947
  %v2994 = vmax.f32 %v2948, %v2950
  %v2995 = vmax.f32 %v2949, %v2951
  %v2996 = vmax.f32 %v2952, %v2954
  %v2997 = vmax.f32 %v2953, %v2955
  %v2998 = vmax.f32 %v2956, %v2958
  %v2999 = vmax.f32 %v2957, %v2959
  %v3000 = vmax.f32 %v2960, %v2962
  %v3001 = vmax.f32 %v2961, %v2963
  %v3002 = vmax.f32 %v2964, %v2966
  %v3003 = vmax.f32 %v2965, %v2967
  %v3004 = vmax.f32 %v2968, %v2970
  %v3005 = vmax.f32 %v2969, %v2971
  %v3006 = vmax.f32 %v2972, %v2974
  %v3007 = vmax.f32 %v2973, %v2975
  %v3008 = vmax.f32 %v2976, %v2978
  %v3009 = vmax.f32 %v2977, %v2979
  %v3010 = vmax.f32 %v2980, %v2982
  %v3011 = vmax.f32 %v2981, %v2983
  %v3012 = vmax.f32 %v2984, 0.0
  %v3013 = vmax.f32 %v2985, 0.0
  %v3014 = vmax.f32 %v2986, 0.0
  %v3015 = vmax.f32 %v2987, 0.0
  %v3016 = vmax.f32 %v2988, 0.0
  %v3017 = vmax.f32 %v2989, 0.0
  %v3018 = vmax.f32 %v2990, 0.0
  %v3019 = vmax.f32 %v2991, 0.0
  %v3020 = vmax.f32 %v2992, 0.0
  %v3021 = vmax.f32 %v2993, 0.0
  %v3022 = vmax.f32 %v2994, 0.0
  %v3023 = vmax.f32 %v2995, 0.0
  %v3024 = vmax.f32 %v2996, 0.0
  %v3025 = vmax.f32 %v2997, 0.0
  %v3026 = vmax.f32 %v2998, 0.0
  %v3027 = vmax.f32 %v2999, 0.0
  %v3028 = vmax.f32 %v3000, 0.0
  %v3029 = vmax.f32 %v3001, 0.0
  %v3030 = vmax.f32 %v3002, 0.0
  %v3031 = vmax.f32 %v3003, 0.0
  %v3032 = vmax.f32 %v3004, 0.0
  %v3033 = vmax.f32 %v3005, 0.0
  %v3034 = vmax.f32 %v3006, 0.0
  %v3035 = vmax.f32 %v3007, 0.0
  %v3036 = vmax.f32 %v3008, 0.0
  %v3037 = vmax.f32 %v3009, 0.0
  %v3038 = vmax.f32 %v3010, 0.0
  %v3039 = vmax.f32 %v3011, 0.0
  %v3040 = vpack.c.bf16 %v3013, %v3012
  %v3041 = vpack.c.bf16 %v3015, %v3014
  %v3042 = vpack.c.bf16 %v3017, %v3016
  %v3043 = vpack.c.bf16 %v3019, %v3018
  %v3044 = vpack.c.bf16 %v3021, %v3020
  %v3045 = vpack.c.bf16 %v3023, %v3022
  %v3046 = vpack.c.bf16 %v3025, %v3024
  %v3047 = vpack.c.bf16 %v3027, %v3026
  %v3048 = vpack.c.bf16 %v3029, %v3028
  %v3049 = vpack.c.bf16 %v3031, %v3030
  %v3050 = vpack.c.bf16 %v3033, %v3032
  %v3051 = vpack.c.bf16 %v3035, %v3034
  %v3052 = vpack.c.bf16 %v3037, %v3036
  %v3053 = vpack.c.bf16 %v3039, %v3038
  %v3054 = vmax.f32 %v2586, %v2762
  %v3055 = vmax.f32 %v2630, %v2806
  %v3056 = vmax.f32 %v2674, %v2850
  %v3057 = vmax.f32 %v2718, %v2894
  %v3058 = vmax.f32 %v2588, %v2764
  %v3059 = vmax.f32 %v2632, %v2808
  %v3060 = vmax.f32 %v2676, %v2852
  %v3061 = vmax.f32 %v2720, %v2896
  %v3062 = vmax.f32 %v2591, %v2767
  %v3063 = vmax.f32 %v2635, %v2811
  %v3064 = vmax.f32 %v2679, %v2855
  %v3065 = vmax.f32 %v2723, %v2899
  %v3066 = vmax.f32 %v2593, %v2769
  %v3067 = vmax.f32 %v2637, %v2813
  %v3068 = vmax.f32 %v2681, %v2857
  %v3069 = vmax.f32 %v2725, %v2901
  %v3070 = vmax.f32 %v2596, %v2772
  %v3071 = vmax.f32 %v2640, %v2816
  %v3072 = vmax.f32 %v2684, %v2860
  %v3073 = vmax.f32 %v2728, %v2904
  %v3074 = vmax.f32 %v2598, %v2774
  %v3075 = vmax.f32 %v2642, %v2818
  %v3076 = vmax.f32 %v2686, %v2862
  %v3077 = vmax.f32 %v2730, %v2906
  %v3078 = vmax.f32 %v2601, %v2777
  %v3079 = vmax.f32 %v2645, %v2821
  %v3080 = vmax.f32 %v2689, %v2865
  %v3081 = vmax.f32 %v2733, %v2909
  %v3082 = vmax.f32 %v2603, %v2779
  %v3083 = vmax.f32 %v2647, %v2823
  %v3084 = vmax.f32 %v2691, %v2867
  %v3085 = vmax.f32 %v2735, %v2911
  %v3086 = vmax.f32 %v2606, %v2782
  %v3087 = vmax.f32 %v2650, %v2826
  %v3088 = vmax.f32 %v2694, %v2870
  %v3089 = vmax.f32 %v2738, %v2914
  %v3090 = vmax.f32 %v2608, %v2784
  %v3091 = vmax.f32 %v2652, %v2828
  %v3092 = vmax.f32 %v2696, %v2872
  %v3093 = vmax.f32 %v2740, %v2916
  %v3094 = vmax.f32 %v2611, %v2787
  %v3095 = vmax.f32 %v2655, %v2831
  %v3096 = vmax.f32 %v2699, %v2875
  %v3097 = vmax.f32 %v2743, %v2919
  %v3098 = vmax.f32 %v2613, %v2789
  %v3099 = vmax.f32 %v2657, %v2833
  %v3100 = vmax.f32 %v2701, %v2877
  %v3101 = vmax.f32 %v2745, %v2921
  %v3102 = vmax.f32 %v2616, %v2792
  %v3103 = vmax.f32 %v2660, %v2836
  %v3104 = vmax.f32 %v2704, %v2880
  %v3105 = vmax.f32 %v2748, %v2924
  %v3106 = vmax.f32 %v2618, %v2794
  %v3107 = vmax.f32 %v2662, %v2838
  %v3108 = vmax.f32 %v2706, %v2882
  %v3109 = vmax.f32 %v2750, %v2926
  %v3110 = vmax.f32 %v3054, %v3056
  %v3111 = vmax.f32 %v3055, %v3057
  %v3112 = vmax.f32 %v3058, %v3060
  %v3113 = vmax.f32 %v3059, %v3061
  %v3114 = vmax.f32 %v3062, %v3064
  %v3115 = vmax.f32 %v3063, %v3065
  %v3116 = vmax.f32 %v3066, %v3068
  %v3117 = vmax.f32 %v3067, %v3069
  %v3118 = vmax.f32 %v3070, %v3072
  %v3119 = vmax.f32 %v3071, %v3073
  %v3120 = vmax.f32 %v3074, %v3076
  %v3121 = vmax.f32 %v3075, %v3077
  %v3122 = vmax.f32 %v3078, %v3080
  %v3123 = vmax.f32 %v3079, %v3081
  %v3124 = vmax.f32 %v3082, %v3084
  %v3125 = vmax.f32 %v3083, %v3085
  %v3126 = vmax.f32 %v3086, %v3088
  %v3127 = vmax.f32 %v3087, %v3089
  %v3128 = vmax.f32 %v3090, %v3092
  %v3129 = vmax.f32 %v3091, %v3093
  %v3130 = vmax.f32 %v3094, %v3096
  %v3131 = vmax.f32 %v3095, %v3097
  %v3132 = vmax.f32 %v3098, %v3100
  %v3133 = vmax.f32 %v3099, %v3101
  %v3134 = vmax.f32 %v3102, %v3104
  %v3135 = vmax.f32 %v3103, %v3105
  %v3136 = vmax.f32 %v3106, %v3108
  %v3137 = vmax.f32 %v3107, %v3109
  %v3138 = vmax.f32 %v3110, 0.0
  %v3139 = vmax.f32 %v3111, 0.0
  %v3140 = vmax.f32 %v3112, 0.0
  %v3141 = vmax.f32 %v3113, 0.0
  %v3142 = vmax.f32 %v3114, 0.0
  %v3143 = vmax.f32 %v3115, 0.0
  %v3144 = vmax.f32 %v3116, 0.0
  %v3145 = vmax.f32 %v3117, 0.0
  %v3146 = vmax.f32 %v3118, 0.0
  %v3147 = vmax.f32 %v3119, 0.0
  %v3148 = vmax.f32 %v3120, 0.0
  %v3149 = vmax.f32 %v3121, 0.0
  %v3150 = vmax.f32 %v3122, 0.0
  %v3151 = vmax.f32 %v3123, 0.0
  %v3152 = vmax.f32 %v3124, 0.0
  %v3153 = vmax.f32 %v3125, 0.0
  %v3154 = vmax.f32 %v3126, 0.0
  %v3155 = vmax.f32 %v3127, 0.0
  %v3156 = vmax.f32 %v3128, 0.0
  %v3157 = vmax.f32 %v3129, 0.0
  %v3158 = vmax.f32 %v3130, 0.0
  %v3159 = vmax.f32 %v3131, 0.0
  %v3160 = vmax.f32 %v3132, 0.0
  %v3161 = vmax.f32 %v3133, 0.0
  %v3162 = vmax.f32 %v3134, 0.0
  %v3163 = vmax.f32 %v3135, 0.0
  %v3164 = vmax.f32 %v3136, 0.0
  %v3165 = vmax.f32 %v3137, 0.0
  %v3166 = vpack.c.bf16 %v3139, %v3138
  %v3167 = vpack.c.bf16 %v3141, %v3140
  %v3168 = vpack.c.bf16 %v3143, %v3142
  %v3169 = vpack.c.bf16 %v3145, %v3144
  %v3170 = vpack.c.bf16 %v3147, %v3146
  %v3171 = vpack.c.bf16 %v3149, %v3148
  %v3172 = vpack.c.bf16 %v3151, %v3150
  %v3173 = vpack.c.bf16 %v3153, %v3152
  %v3174 = vpack.c.bf16 %v3155, %v3154
  %v3175 = vpack.c.bf16 %v3157, %v3156
  %v3176 = vpack.c.bf16 %v3159, %v3158
  %v3177 = vpack.c.bf16 %v3161, %v3160
  %v3178 = vpack.c.bf16 %v3163, %v3162
  %v3179 = vpack.c.bf16 %v3165, %v3164
  %v3194 = vunpack.c.l.b16 %v3040
  %v3195 = vunpack.c.h.b16 %v3040
  %v3196 = vunpack.c.l.b16 %v3041
  %v3197 = vunpack.c.h.b16 %v3041
  %v3198 = vunpack.c.l.b16 %v3042
  %v3199 = vunpack.c.h.b16 %v3042
  %v3200 = vunpack.c.l.b16 %v3043
  %v3201 = vunpack.c.h.b16 %v3043
  %v3202 = vunpack.c.l.b16 %v3044
  %v3203 = vunpack.c.h.b16 %v3044
  %v3204 = vunpack.c.l.b16 %v3045
  %v3205 = vunpack.c.h.b16 %v3045
  %v3206 = vunpack.c.l.b16 %v3046
  %v3207 = vunpack.c.h.b16 %v3046
  %v3208 = vunpack.c.l.b16 %v3047
  %v3209 = vunpack.c.h.b16 %v3047
  %v3210 = vunpack.c.l.b16 %v3048
  %v3211 = vunpack.c.h.b16 %v3048
  %v3212 = vunpack.c.l.b16 %v3049
  %v3213 = vunpack.c.h.b16 %v3049
  %v3214 = vunpack.c.l.b16 %v3050
  %v3215 = vunpack.c.h.b16 %v3050
  %v3216 = vunpack.c.l.b16 %v3051
  %v3217 = vunpack.c.h.b16 %v3051
  %v3218 = vunpack.c.l.b16 %v3052
  %v3219 = vunpack.c.h.b16 %v3052
  %v3220 = vunpack.c.l.b16 %v3053
  %v3221 = vunpack.c.h.b16 %v3053
  %v3222 = vpack.c.b16 %v3196, %v3194
  %v3223 = vpack.c.b16 %v3197, %v3195
  %v3224 = vpack.c.b16 %v3200, %v3198
  %v3225 = vpack.c.b16 %v3201, %v3199
  %v3226 = vpack.c.b16 %v3204, %v3202
  %v3227 = vpack.c.b16 %v3205, %v3203
  %v3228 = vpack.c.b16 %v3208, %v3206
  %v3229 = vpack.c.b16 %v3209, %v3207
  %v3230 = vpack.c.b16 %v3212, %v3210
  %v3231 = vpack.c.b16 %v3213, %v3211
  %v3232 = vpack.c.b16 %v3216, %v3214
  %v3233 = vpack.c.b16 %v3217, %v3215
  %v3234 = vpack.c.b16 %v3220, %v3218
  %v3235 = vpack.c.b16 %v3221, %v3219
  %v3237 = vshrl.u32 %v3222, 16
  %v3239 = vshll.u32 %v3222, 16
  %v3241 = vrot.slane %v3239, 1
  %v3242 = vor.u32 %v3237, %v3241
  %v3244 = vshll.u32 %v3224, 16
  %v3246 = vrot.slane %v3244, 1
  %v3247 = vsel %vm73, %v3242, %v3246
  %v3249 = vshrl.u32 %v3223, 16
  %v3251 = vshll.u32 %v3223, 16
  %v3253 = vrot.slane %v3251, 1
  %v3254 = vor.u32 %v3249, %v3253
  %v3256 = vshll.u32 %v3225, 16
  %v3258 = vrot.slane %v3256, 1
  %v3259 = vsel %vm73, %v3254, %v3258
  %v3260 = vshrl.u32 %v3224, 16
  %v3262 = vor.u32 %v3260, %v3246
  %v3264 = vshll.u32 %v3226, 16
  %v3266 = vrot.slane %v3264, 1
  %v3267 = vsel %vm73, %v3262, %v3266
  %v3268 = vshrl.u32 %v3225, 16
  %v3270 = vor.u32 %v3268, %v3258
  %v3272 = vshll.u32 %v3227, 16
  %v3274 = vrot.slane %v3272, 1
  %v3275 = vsel %vm73, %v3270, %v3274
  %v3276 = vshrl.u32 %v3226, 16
  %v3278 = vor.u32 %v3276, %v3266
  %v3280 = vshll.u32 %v3228, 16
  %v3282 = vrot.slane %v3280, 1
  %v3283 = vsel %vm73, %v3278, %v3282
  %v3284 = vshrl.u32 %v3227, 16
  %v3286 = vor.u32 %v3284, %v3274
  %v3288 = vshll.u32 %v3229, 16
  %v3290 = vrot.slane %v3288, 1
  %v3291 = vsel %vm73, %v3286, %v3290
  %v3292 = vshrl.u32 %v3228, 16
  %v3294 = vor.u32 %v3292, %v3282
  %v3296 = vshll.u32 %v3230, 16
  %v3298 = vrot.slane %v3296, 1
  %v3299 = vsel %vm73, %v3294, %v3298
  %v3300 = vshrl.u32 %v3229, 16
  %v3302 = vor.u32 %v3300, %v3290
  %v3304 = vshll.u32 %v3231, 16
  %v3306 = vrot.slane %v3304, 1
  %v3307 = vsel %vm73, %v3302, %v3306
  %v3308 = vshrl.u32 %v3230, 16
  %v3310 = vor.u32 %v3308, %v3298
  %v3312 = vshll.u32 %v3232, 16
  %v3314 = vrot.slane %v3312, 1
  %v3315 = vsel %vm73, %v3310, %v3314
  %v3316 = vshrl.u32 %v3231, 16
  %v3318 = vor.u32 %v3316, %v3306
  %v3320 = vshll.u32 %v3233, 16
  %v3322 = vrot.slane %v3320, 1
  %v3323 = vsel %vm73, %v3318, %v3322
  %v3324 = vshrl.u32 %v3232, 16
  %v3326 = vor.u32 %v3324, %v3314
  %v3328 = vshll.u32 %v3234, 16
  %v3330 = vrot.slane %v3328, 1
  %v3331 = vsel %vm73, %v3326, %v3330
  %v3332 = vshrl.u32 %v3233, 16
  %v3334 = vor.u32 %v3332, %v3322
  %v3336 = vshll.u32 %v3235, 16
  %v3338 = vrot.slane %v3336, 1
  %v3339 = vsel %vm73, %v3334, %v3338
  %v3340 = vshrl.u32 %v3234, 16
  %v3342 = vor.u32 %v3340, %v3330
  %v3343 = vshrl.u32 %v3235, 16
  %v3345 = vor.u32 %v3343, %v3338
  %v3360 = vpack.c.b16 %v3194, %v3194
  %v3361 = vpack.c.b16 %v3195, %v3195
  %v3363 = vshll.u32 %v3360, 16
  %v3365 = vrot.slane %v3363, 1
  %v3367 = vshll.u32 %v3361, 16
  %v3369 = vrot.slane %v3367, 1
  %v3372 = vsel %vm137, %v3342, %v3365
  %v3373 = vsel %vm137, %v3345, %v3369
  %v3388 = vunpack.c.l.b16 %v3166
  %v3389 = vunpack.c.h.b16 %v3166
  %v3390 = vunpack.c.l.b16 %v3167
  %v3391 = vunpack.c.h.b16 %v3167
  %v3392 = vunpack.c.l.b16 %v3168
  %v3393 = vunpack.c.h.b16 %v3168
  %v3394 = vunpack.c.l.b16 %v3169
  %v3395 = vunpack.c.h.b16 %v3169
  %v3396 = vunpack.c.l.b16 %v3170
  %v3397 = vunpack.c.h.b16 %v3170
  %v3398 = vunpack.c.l.b16 %v3171
  %v3399 = vunpack.c.h.b16 %v3171
  %v3400 = vunpack.c.l.b16 %v3172
  %v3401 = vunpack.c.h.b16 %v3172
  %v3402 = vunpack.c.l.b16 %v3173
  %v3403 = vunpack.c.h.b16 %v3173
  %v3404 = vunpack.c.l.b16 %v3174
  %v3405 = vunpack.c.h.b16 %v3174
  %v3406 = vunpack.c.l.b16 %v3175
  %v3407 = vunpack.c.h.b16 %v3175
  %v3408 = vunpack.c.l.b16 %v3176
  %v3409 = vunpack.c.h.b16 %v3176
  %v3410 = vunpack.c.l.b16 %v3177
  %v3411 = vunpack.c.h.b16 %v3177
  %v3412 = vunpack.c.l.b16 %v3178
  %v3413 = vunpack.c.h.b16 %v3178
  %v3414 = vunpack.c.l.b16 %v3179
  %v3415 = vunpack.c.h.b16 %v3179
  %v3416 = vpack.c.b16 %v3390, %v3388
  %v3417 = vpack.c.b16 %v3391, %v3389
  %v3418 = vpack.c.b16 %v3394, %v3392
  %v3419 = vpack.c.b16 %v3395, %v3393
  %v3420 = vpack.c.b16 %v3398, %v3396
  %v3421 = vpack.c.b16 %v3399, %v3397
  %v3422 = vpack.c.b16 %v3402, %v3400
  %v3423 = vpack.c.b16 %v3403, %v3401
  %v3424 = vpack.c.b16 %v3406, %v3404
  %v3425 = vpack.c.b16 %v3407, %v3405
  %v3426 = vpack.c.b16 %v3410, %v3408
  %v3427 = vpack.c.b16 %v3411, %v3409
  %v3428 = vpack.c.b16 %v3414, %v3412
  %v3429 = vpack.c.b16 %v3415, %v3413
  %v3431 = vshrl.u32 %v3416, 16
  %v3433 = vshll.u32 %v3416, 16
  %v3435 = vrot.slane %v3433, 1
  %v3436 = vor.u32 %v3431, %v3435
  %v3438 = vshll.u32 %v3418, 16
  %v3440 = vrot.slane %v3438, 1
  %v3441 = vsel %vm73, %v3436, %v3440
  %v3443 = vshrl.u32 %v3417, 16
  %v3445 = vshll.u32 %v3417, 16
  %v3447 = vrot.slane %v3445, 1
  %v3448 = vor.u32 %v3443, %v3447
  %v3450 = vshll.u32 %v3419, 16
  %v3452 = vrot.slane %v3450, 1
  %v3453 = vsel %vm73, %v3448, %v3452
  %v3454 = vshrl.u32 %v3418, 16
  %v3456 = vor.u32 %v3454, %v3440
  %v3458 = vshll.u32 %v3420, 16
  %v3460 = vrot.slane %v3458, 1
  %v3461 = vsel %vm73, %v3456, %v3460
  %v3462 = vshrl.u32 %v3419, 16
  %v3464 = vor.u32 %v3462, %v3452
  %v3466 = vshll.u32 %v3421, 16
  %v3468 = vrot.slane %v3466, 1
  %v3469 = vsel %vm73, %v3464, %v3468
  %v3470 = vshrl.u32 %v3420, 16
  %v3472 = vor.u32 %v3470, %v3460
  %v3474 = vshll.u32 %v3422, 16
  %v3476 = vrot.slane %v3474, 1
  %v3477 = vsel %vm73, %v3472, %v3476
  %v3478 = vshrl.u32 %v3421, 16
  %v3480 = vor.u32 %v3478, %v3468
  %v3482 = vshll.u32 %v3423, 16
  %v3484 = vrot.slane %v3482, 1
  %v3485 = vsel %vm73, %v3480, %v3484
  %v3486 = vshrl.u32 %v3422, 16
  %v3488 = vor.u32 %v3486, %v3476
  %v3490 = vshll.u32 %v3424, 16
  %v3492 = vrot.slane %v3490, 1
  %v3493 = vsel %vm73, %v3488, %v3492
  %v3494 = vshrl.u32 %v3423, 16
  %v3496 = vor.u32 %v3494, %v3484
  %v3498 = vshll.u32 %v3425, 16
  %v3500 = vrot.slane %v3498, 1
  %v3501 = vsel %vm73, %v3496, %v3500
  %v3502 = vshrl.u32 %v3424, 16
  %v3504 = vor.u32 %v3502, %v3492
  %v3506 = vshll.u32 %v3426, 16
  %v3508 = vrot.slane %v3506, 1
  %v3509 = vsel %vm73, %v3504, %v3508
  %v3510 = vshrl.u32 %v3425, 16
  %v3512 = vor.u32 %v3510, %v3500
  %v3514 = vshll.u32 %v3427, 16
  %v3516 = vrot.slane %v3514, 1
  %v3517 = vsel %vm73, %v3512, %v3516
  %v3518 = vshrl.u32 %v3426, 16
  %v3520 = vor.u32 %v3518, %v3508
  %v3522 = vshll.u32 %v3428, 16
  %v3524 = vrot.slane %v3522, 1
  %v3525 = vsel %vm73, %v3520, %v3524
  %v3526 = vshrl.u32 %v3427, 16
  %v3528 = vor.u32 %v3526, %v3516
  %v3530 = vshll.u32 %v3429, 16
  %v3532 = vrot.slane %v3530, 1
  %v3533 = vsel %vm73, %v3528, %v3532
  %v3534 = vshrl.u32 %v3428, 16
  %v3536 = vor.u32 %v3534, %v3524
  %v3537 = vshrl.u32 %v3429, 16
  %v3539 = vor.u32 %v3537, %v3532
  %v3554 = vpack.c.b16 %v3388, %v3388
  %v3555 = vpack.c.b16 %v3389, %v3389
  %v3557 = vshll.u32 %v3554, 16
  %v3559 = vrot.slane %v3557, 1
  %v3561 = vshll.u32 %v3555, 16
  %v3563 = vrot.slane %v3561, 1
  %v3566 = vsel %vm137, %v3536, %v3559
  %v3567 = vsel %vm137, %v3539, %v3563
  %vm3568 = vcmask 1046528
  %v3569 = vrot.slane %v3222, 1
  %v3570 = vrot.slane %v3224, 1
  %v3571 = vsel %vm3568, %v3569, %v3570
  %v3572 = vrot.slane %v3223, 1
  %v3573 = vrot.slane %v3225, 1
  %v3574 = vsel %vm3568, %v3572, %v3573
  %v3575 = vrot.slane %v3226, 1
  %v3576 = vsel %vm3568, %v3570, %v3575
  %v3577 = vrot.slane %v3227, 1
  %v3578 = vsel %vm3568, %v3573, %v3577
  %v3579 = vrot.slane %v3228, 1
  %v3580 = vsel %vm3568, %v3575, %v3579
  %v3581 = vrot.slane %v3229, 1
  %v3582 = vsel %vm3568, %v3577, %v3581
  %v3583 = vrot.slane %v3230, 1
  %v3584 = vsel %vm3568, %v3579, %v3583
  %v3585 = vrot.slane %v3231, 1
  %v3586 = vsel %vm3568, %v3581, %v3585
  %v3587 = vrot.slane %v3232, 1
  %v3588 = vsel %vm3568, %v3583, %v3587
  %v3589 = vrot.slane %v3233, 1
  %v3590 = vsel %vm3568, %v3585, %v3589
  %v3591 = vrot.slane %v3234, 1
  %v3592 = vsel %vm3568, %v3587, %v3591
  %v3593 = vrot.slane %v3235, 1
  %v3594 = vsel %vm3568, %v3589, %v3593
  %v3607 = vrot.slane %v3360, 1
  %v3608 = vrot.slane %v3361, 1
  %vm3609 = vcmask 1046528
  %v3612 = vsel %vm3609, %v3591, %v3607
  %v3616 = vsel %vm3609, %v3593, %v3608
  %v3618 = vrot.slane %v3416, 1
  %v3619 = vrot.slane %v3418, 1
  %v3620 = vsel %vm3568, %v3618, %v3619
  %v3621 = vrot.slane %v3417, 1
  %v3622 = vrot.slane %v3419, 1
  %v3623 = vsel %vm3568, %v3621, %v3622
  %v3624 = vrot.slane %v3420, 1
  %v3625 = vsel %vm3568, %v3619, %v3624
  %v3626 = vrot.slane %v3421, 1
  %v3627 = vsel %vm3568, %v3622, %v3626
  %v3628 = vrot.slane %v3422, 1
  %v3629 = vsel %vm3568, %v3624, %v3628
  %v3630 = vrot.slane %v3423, 1
  %v3631 = vsel %vm3568, %v3626, %v3630
  %v3632 = vrot.slane %v3424, 1
  %v3633 = vsel %vm3568, %v3628, %v3632
  %v3634 = vrot.slane %v3425, 1
  %v3635 = vsel %vm3568, %v3630, %v3634
  %v3636 = vrot.slane %v3426, 1
  %v3637 = vsel %vm3568, %v3632, %v3636
  %v3638 = vrot.slane %v3427, 1
  %v3639 = vsel %vm3568, %v3634, %v3638
  %v3640 = vrot.slane %v3428, 1
  %v3641 = vsel %vm3568, %v3636, %v3640
  %v3642 = vrot.slane %v3429, 1
  %v3643 = vsel %vm3568, %v3638, %v3642
  %v3656 = vrot.slane %v3554, 1
  %v3657 = vrot.slane %v3555, 1
  %v3660 = vsel %vm3609, %v3640, %v3656
  %v3664 = vsel %vm3609, %v3642, %v3657
  %v3666 = vld [vmem:[%s2] sm:$0xff]
  %v3667 = vld [vmem:[%s2 + $0x8] sm:$0xff]
  %v3668 = vld [vmem:[%s2 + $0x10] sm:$0xff]
  %v3669 = vld [vmem:[%s2 + $0x18] sm:$0xff]
  %v3670 = vld [vmem:[%s2 + $0x20] sm:$0xff]
  %v3671 = vld [vmem:[%s2 + $0x28] sm:$0xff]
  %v3672 = vld [vmem:[%s2 + $0x30] sm:$0xff]
  %v3673 = vld [vmem:[%s2 + $0x38] sm:$0xff]
  %v3674 = vld [vmem:[%s2 + $0x40] sm:$0xff]
  %v3675 = vld [vmem:[%s2 + $0x48] sm:$0xff]
  %v3676 = vld [vmem:[%s2 + $0x50] sm:$0xff]
  %v3677 = vld [vmem:[%s2 + $0x58] sm:$0xff]
  %v3678 = vld [vmem:[%s2 + $0x60] sm:$0xff]
  %v3679 = vld [vmem:[%s2 + $0x68] sm:$0xff]
  %v3680 = vld [vmem:[%s2 + $0x70] sm:$0xff]
  %v3681 = vld [vmem:[%s2 + $0x78] sm:$0xff]
  %v3682 = vld [vmem:[%s2 + $0x80] sm:$0xff]
  %v3683 = vld [vmem:[%s2 + $0x88] sm:$0xff]
  %v3684 = vld [vmem:[%s2 + $0x90] sm:$0xff]
  %v3685 = vld [vmem:[%s2 + $0x98] sm:$0xff]
  %v3686 = vld [vmem:[%s2 + $0xa0] sm:$0xff]
  %v3687 = vld [vmem:[%s2 + $0xa8] sm:$0xff]
  %v3688 = vld [vmem:[%s2 + $0xb0] sm:$0xff]
  %v3689 = vld [vmem:[%s2 + $0xb8] sm:$0xff]
  %v3690 = vld [vmem:[%s2 + $0xc0] sm:$0xff]
  %v3691 = vld [vmem:[%s2 + $0xc8] sm:$0xff]
  %v3692 = vld [vmem:[%s2 + $0xd0] sm:$0xff]
  %v3693 = vld [vmem:[%s2 + $0xd8] sm:$0xff]
  %v3694 = vld [vmem:[%s2 + $0xe0] sm:$0xff]
  %v3695 = vld [vmem:[%s2 + $0xe8] sm:$0xff]
  %v3696 = vld [vmem:[%s2 + $0xf0] sm:$0xff]
  %v3697 = vld [vmem:[%s2 + $0xf8] sm:$0xff]
  %v3698 = vld [vmem:[%s2 + $0x100] sm:$0xff]
  %v3699 = vld [vmem:[%s2 + $0x108] sm:$0xff]
  %v3700 = vld [vmem:[%s2 + $0x110] sm:$0xff]
  %v3701 = vld [vmem:[%s2 + $0x118] sm:$0xff]
  %v3702 = vld [vmem:[%s2 + $0x120] sm:$0xff]
  %v3703 = vld [vmem:[%s2 + $0x128] sm:$0xff]
  %v3704 = vld [vmem:[%s2 + $0x130] sm:$0xff]
  %v3705 = vld [vmem:[%s2 + $0x138] sm:$0xff]
  %v3706 = vld [vmem:[%s2 + $0x140] sm:$0xff]
  %v3707 = vld [vmem:[%s2 + $0x148] sm:$0xff]
  %v3708 = vld [vmem:[%s2 + $0x150] sm:$0xff]
  %v3709 = vld [vmem:[%s2 + $0x158] sm:$0xff]
  %v3710 = vld [vmem:[%s2 + $0x160] sm:$0xff]
  %v3711 = vld [vmem:[%s2 + $0x168] sm:$0xff]
  %v3712 = vld [vmem:[%s2 + $0x170] sm:$0xff]
  %v3713 = vld [vmem:[%s2 + $0x178] sm:$0xff]
  %v3714 = vld [vmem:[%s2 + $0x180] sm:$0xff]
  %v3715 = vld [vmem:[%s2 + $0x188] sm:$0xff]
  %v3716 = vld [vmem:[%s2 + $0x190] sm:$0xff]
  %v3717 = vld [vmem:[%s2 + $0x198] sm:$0xff]
  %v3718 = vld [vmem:[%s2 + $0x1a0] sm:$0xff]
  %v3719 = vld [vmem:[%s2 + $0x1a8] sm:$0xff]
  %v3720 = vld [vmem:[%s2 + $0x1b0] sm:$0xff]
  %v3721 = vld [vmem:[%s2 + $0x1b8] sm:$0xff]
  %v3722 = vld [vmem:[%s2 + $0x1c0] sm:$0xff]
  %v3723 = vld [vmem:[%s2 + $0x1c8] sm:$0xff]
  %v3724 = vld [vmem:[%s2 + $0x1d0] sm:$0xff]
  %v3725 = vld [vmem:[%s2 + $0x1d8] sm:$0xff]
  %v3726 = vld [vmem:[%s2 + $0x1e0] sm:$0xff]
  %v3727 = vld [vmem:[%s2 + $0x1e8] sm:$0xff]
  %v3728 = vld [vmem:[%s2 + $0x1f0] sm:$0xff]
  %v3729 = vld [vmem:[%s2 + $0x1f8] sm:$0xff]
  %s3730 = scalar_lea.vmem %s2, 512
  %v3731 = vld [vmem:[%s3730] sm:$0xff]
  %v3732 = vld [vmem:[%s3730 + $0x8] sm:$0xff]
  %v3733 = vld [vmem:[%s3730 + $0x10] sm:$0xff]
  %v3734 = vld [vmem:[%s3730 + $0x18] sm:$0xff]
  %v3735 = vld [vmem:[%s3730 + $0x20] sm:$0xff]
  %v3736 = vld [vmem:[%s3730 + $0x28] sm:$0xff]
  %v3737 = vld [vmem:[%s3730 + $0x30] sm:$0xff]
  %v3738 = vld [vmem:[%s3730 + $0x38] sm:$0xff]
  %v3739 = vld [vmem:[%s3730 + $0x40] sm:$0xff]
  %v3740 = vld [vmem:[%s3730 + $0x48] sm:$0xff]
  %v3741 = vld [vmem:[%s3730 + $0x50] sm:$0xff]
  %v3742 = vld [vmem:[%s3730 + $0x58] sm:$0xff]
  %v3743 = vld [vmem:[%s3730 + $0x60] sm:$0xff]
  %v3744 = vld [vmem:[%s3730 + $0x68] sm:$0xff]
  %v3745 = vld [vmem:[%s3730 + $0x70] sm:$0xff]
  %v3746 = vld [vmem:[%s3730 + $0x78] sm:$0xff]
  %v3747 = vld [vmem:[%s3730 + $0x80] sm:$0xff]
  %v3748 = vld [vmem:[%s3730 + $0x88] sm:$0xff]
  %v3749 = vld [vmem:[%s3730 + $0x90] sm:$0xff]
  %v3750 = vld [vmem:[%s3730 + $0x98] sm:$0xff]
  %v3751 = vld [vmem:[%s3730 + $0xa0] sm:$0xff]
  %v3752 = vld [vmem:[%s3730 + $0xa8] sm:$0xff]
  %v3753 = vld [vmem:[%s3730 + $0xb0] sm:$0xff]
  %v3754 = vld [vmem:[%s3730 + $0xb8] sm:$0xff]
  %v3755 = vld [vmem:[%s3730 + $0xc0] sm:$0xff]
  %v3756 = vld [vmem:[%s3730 + $0xc8] sm:$0xff]
  %v3757 = vld [vmem:[%s3730 + $0xd0] sm:$0xff]
  %v3758 = vld [vmem:[%s3730 + $0xd8] sm:$0xff]
  %v3759 = vld [vmem:[%s3730 + $0xe0] sm:$0xff]
  %v3760 = vld [vmem:[%s3730 + $0xe8] sm:$0xff]
  %v3761 = vld [vmem:[%s3730 + $0xf0] sm:$0xff]
  %v3762 = vld [vmem:[%s3730 + $0xf8] sm:$0xff]
  %v3763 = vld [vmem:[%s3730 + $0x100] sm:$0xff]
  %v3764 = vld [vmem:[%s3730 + $0x108] sm:$0xff]
  %v3765 = vld [vmem:[%s3730 + $0x110] sm:$0xff]
  %v3766 = vld [vmem:[%s3730 + $0x118] sm:$0xff]
  %v3767 = vld [vmem:[%s3730 + $0x120] sm:$0xff]
  %v3768 = vld [vmem:[%s3730 + $0x128] sm:$0xff]
  %v3769 = vld [vmem:[%s3730 + $0x130] sm:$0xff]
  %v3770 = vld [vmem:[%s3730 + $0x138] sm:$0xff]
  %v3771 = vld [vmem:[%s3730 + $0x140] sm:$0xff]
  %v3772 = vld [vmem:[%s3730 + $0x148] sm:$0xff]
  %v3773 = vld [vmem:[%s3730 + $0x150] sm:$0xff]
  %v3774 = vld [vmem:[%s3730 + $0x158] sm:$0xff]
  %v3775 = vld [vmem:[%s3730 + $0x160] sm:$0xff]
  %v3776 = vld [vmem:[%s3730 + $0x168] sm:$0xff]
  %v3777 = vld [vmem:[%s3730 + $0x170] sm:$0xff]
  %v3778 = vld [vmem:[%s3730 + $0x178] sm:$0xff]
  %v3779 = vld [vmem:[%s3730 + $0x180] sm:$0xff]
  %v3780 = vld [vmem:[%s3730 + $0x188] sm:$0xff]
  %v3781 = vld [vmem:[%s3730 + $0x190] sm:$0xff]
  %v3782 = vld [vmem:[%s3730 + $0x198] sm:$0xff]
  %v3783 = vld [vmem:[%s3730 + $0x1a0] sm:$0xff]
  %v3784 = vld [vmem:[%s3730 + $0x1a8] sm:$0xff]
  %v3785 = vld [vmem:[%s3730 + $0x1b0] sm:$0xff]
  %v3786 = vld [vmem:[%s3730 + $0x1b8] sm:$0xff]
  %v3787 = vld [vmem:[%s3730 + $0x1c0] sm:$0xff]
  %v3788 = vld [vmem:[%s3730 + $0x1c8] sm:$0xff]
  %v3789 = vld [vmem:[%s3730 + $0x1d0] sm:$0xff]
  %v3790 = vld [vmem:[%s3730 + $0x1d8] sm:$0xff]
  %v3791 = vld [vmem:[%s3730 + $0x1e0] sm:$0xff]
  %v3792 = vld [vmem:[%s3730 + $0x1e8] sm:$0xff]
  %v3793 = vld [vmem:[%s3730 + $0x1f0] sm:$0xff]
  %v3794 = vld [vmem:[%s3730 + $0x1f8] sm:$0xff]
  %v3873 = vunpack.c.l.b16 %v3731
  %v3874 = vunpack.c.h.b16 %v3731
  %v3875 = vunpack.c.l.b16 %v3732
  %v3876 = vunpack.c.h.b16 %v3732
  %v3877 = vunpack.c.l.b16 %v3733
  %v3878 = vunpack.c.h.b16 %v3733
  %v3879 = vunpack.c.l.b16 %v3734
  %v3880 = vunpack.c.h.b16 %v3734
  %v3881 = vunpack.c.l.b16 %v3735
  %v3882 = vunpack.c.h.b16 %v3735
  %v3883 = vunpack.c.l.b16 %v3736
  %v3884 = vunpack.c.h.b16 %v3736
  %v3885 = vunpack.c.l.b16 %v3737
  %v3886 = vunpack.c.h.b16 %v3737
  %v3887 = vunpack.c.l.b16 %v3738
  %v3888 = vunpack.c.h.b16 %v3738
  %v3889 = vunpack.c.l.b16 %v3739
  %v3890 = vunpack.c.h.b16 %v3739
  %v3891 = vunpack.c.l.b16 %v3740
  %v3892 = vunpack.c.h.b16 %v3740
  %v3893 = vunpack.c.l.b16 %v3741
  %v3894 = vunpack.c.h.b16 %v3741
  %v3895 = vunpack.c.l.b16 %v3742
  %v3896 = vunpack.c.h.b16 %v3742
  %v3897 = vunpack.c.l.b16 %v3743
  %v3898 = vunpack.c.h.b16 %v3743
  %v3899 = vunpack.c.l.b16 %v3744
  %v3900 = vunpack.c.h.b16 %v3744
  %v3901 = vunpack.c.l.b16 %v3745
  %v3902 = vunpack.c.h.b16 %v3745
  %v3903 = vunpack.c.l.b16 %v3746
  %v3904 = vunpack.c.h.b16 %v3746
  %v3905 = vunpack.c.l.b16 %v3747
  %v3906 = vunpack.c.h.b16 %v3747
  %v3907 = vunpack.c.l.b16 %v3748
  %v3908 = vunpack.c.h.b16 %v3748
  %v3909 = vunpack.c.l.b16 %v3749
  %v3910 = vunpack.c.h.b16 %v3749
  %v3911 = vunpack.c.l.b16 %v3750
  %v3912 = vunpack.c.h.b16 %v3750
  %v3913 = vunpack.c.l.b16 %v3751
  %v3914 = vunpack.c.h.b16 %v3751
  %v3915 = vunpack.c.l.b16 %v3752
  %v3916 = vunpack.c.h.b16 %v3752
  %v3917 = vunpack.c.l.b16 %v3753
  %v3918 = vunpack.c.h.b16 %v3753
  %v3919 = vunpack.c.l.b16 %v3754
  %v3920 = vunpack.c.h.b16 %v3754
  %v3921 = vunpack.c.l.b16 %v3755
  %v3922 = vunpack.c.h.b16 %v3755
  %v3923 = vunpack.c.l.b16 %v3756
  %v3924 = vunpack.c.h.b16 %v3756
  %v3925 = vunpack.c.l.b16 %v3757
  %v3926 = vunpack.c.h.b16 %v3757
  %v3927 = vunpack.c.l.b16 %v3758
  %v3928 = vunpack.c.h.b16 %v3758
  %v3929 = vunpack.c.l.b16 %v3759
  %v3930 = vunpack.c.h.b16 %v3759
  %v3931 = vunpack.c.l.b16 %v3760
  %v3932 = vunpack.c.h.b16 %v3760
  %v3933 = vunpack.c.l.b16 %v3761
  %v3934 = vunpack.c.h.b16 %v3761
  %v3935 = vunpack.c.l.b16 %v3762
  %v3936 = vunpack.c.h.b16 %v3762
  %v3937 = vunpack.c.l.b16 %v3763
  %v3938 = vunpack.c.h.b16 %v3763
  %v3939 = vunpack.c.l.b16 %v3764
  %v3940 = vunpack.c.h.b16 %v3764
  %v3941 = vunpack.c.l.b16 %v3765
  %v3942 = vunpack.c.h.b16 %v3765
  %v3943 = vunpack.c.l.b16 %v3766
  %v3944 = vunpack.c.h.b16 %v3766
  %v3945 = vunpack.c.l.b16 %v3767
  %v3946 = vunpack.c.h.b16 %v3767
  %v3947 = vunpack.c.l.b16 %v3768
  %v3948 = vunpack.c.h.b16 %v3768
  %v3949 = vunpack.c.l.b16 %v3769
  %v3950 = vunpack.c.h.b16 %v3769
  %v3951 = vunpack.c.l.b16 %v3770
  %v3952 = vunpack.c.h.b16 %v3770
  %v3953 = vunpack.c.l.b16 %v3771
  %v3954 = vunpack.c.h.b16 %v3771
  %v3955 = vunpack.c.l.b16 %v3772
  %v3956 = vunpack.c.h.b16 %v3772
  %v3957 = vunpack.c.l.b16 %v3773
  %v3958 = vunpack.c.h.b16 %v3773
  %v3959 = vunpack.c.l.b16 %v3774
  %v3960 = vunpack.c.h.b16 %v3774
  %v3961 = vunpack.c.l.b16 %v3775
  %v3962 = vunpack.c.h.b16 %v3775
  %v3963 = vunpack.c.l.b16 %v3776
  %v3964 = vunpack.c.h.b16 %v3776
  %v3965 = vunpack.c.l.b16 %v3777
  %v3966 = vunpack.c.h.b16 %v3777
  %v3967 = vunpack.c.l.b16 %v3778
  %v3968 = vunpack.c.h.b16 %v3778
  %v3969 = vunpack.c.l.b16 %v3779
  %v3970 = vunpack.c.h.b16 %v3779
  %v3971 = vunpack.c.l.b16 %v3780
  %v3972 = vunpack.c.h.b16 %v3780
  %v3973 = vunpack.c.l.b16 %v3781
  %v3974 = vunpack.c.h.b16 %v3781
  %v3975 = vunpack.c.l.b16 %v3782
  %v3976 = vunpack.c.h.b16 %v3782
  %v3977 = vunpack.c.l.b16 %v3783
  %v3978 = vunpack.c.h.b16 %v3783
  %v3979 = vunpack.c.l.b16 %v3784
  %v3980 = vunpack.c.h.b16 %v3784
  %v3981 = vunpack.c.l.b16 %v3785
  %v3982 = vunpack.c.h.b16 %v3785
  %v3983 = vunpack.c.l.b16 %v3786
  %v3984 = vunpack.c.h.b16 %v3786
  %v3985 = vunpack.c.l.b16 %v3787
  %v3986 = vunpack.c.h.b16 %v3787
  %v3987 = vunpack.c.l.b16 %v3788
  %v3988 = vunpack.c.h.b16 %v3788
  %v3989 = vunpack.c.l.b16 %v3789
  %v3990 = vunpack.c.h.b16 %v3789
  %v3991 = vunpack.c.l.b16 %v3790
  %v3992 = vunpack.c.h.b16 %v3790
  %v3993 = vunpack.c.l.b16 %v3791
  %v3994 = vunpack.c.h.b16 %v3791
  %v3995 = vunpack.c.l.b16 %v3792
  %v3996 = vunpack.c.h.b16 %v3792
  %v3997 = vunpack.c.l.b16 %v3793
  %v3998 = vunpack.c.h.b16 %v3793
  %v3999 = vunpack.c.l.b16 %v3794
  %v4000 = vunpack.c.h.b16 %v3794
  %v4001 = vpack.c.b16 %v3877, %v3873
  %v4002 = vpack.c.b16 %v3878, %v3874
  %v4003 = vpack.c.b16 %v3879, %v3875
  %v4004 = vpack.c.b16 %v3880, %v3876
  %v4005 = vpack.c.b16 %v3885, %v3881
  %v4006 = vpack.c.b16 %v3886, %v3882
  %v4007 = vpack.c.b16 %v3887, %v3883
  %v4008 = vpack.c.b16 %v3888, %v3884
  %v4009 = vpack.c.b16 %v3893, %v3889
  %v4010 = vpack.c.b16 %v3894, %v3890
  %v4011 = vpack.c.b16 %v3895, %v3891
  %v4012 = vpack.c.b16 %v3896, %v3892
  %v4013 = vpack.c.b16 %v3901, %v3897
  %v4014 = vpack.c.b16 %v3902, %v3898
  %v4015 = vpack.c.b16 %v3903, %v3899
  %v4016 = vpack.c.b16 %v3904, %v3900
  %v4017 = vpack.c.b16 %v3909, %v3905
  %v4018 = vpack.c.b16 %v3910, %v3906
  %v4019 = vpack.c.b16 %v3911, %v3907
  %v4020 = vpack.c.b16 %v3912, %v3908
  %v4021 = vpack.c.b16 %v3917, %v3913
  %v4022 = vpack.c.b16 %v3918, %v3914
  %v4023 = vpack.c.b16 %v3919, %v3915
  %v4024 = vpack.c.b16 %v3920, %v3916
  %v4025 = vpack.c.b16 %v3925, %v3921
  %v4026 = vpack.c.b16 %v3926, %v3922
  %v4027 = vpack.c.b16 %v3927, %v3923
  %v4028 = vpack.c.b16 %v3928, %v3924
  %v4029 = vpack.c.b16 %v3933, %v3929
  %v4030 = vpack.c.b16 %v3934, %v3930
  %v4031 = vpack.c.b16 %v3935, %v3931
  %v4032 = vpack.c.b16 %v3936, %v3932
  %v4033 = vpack.c.b16 %v3941, %v3937
  %v4034 = vpack.c.b16 %v3942, %v3938
  %v4035 = vpack.c.b16 %v3943, %v3939
  %v4036 = vpack.c.b16 %v3944, %v3940
  %v4037 = vpack.c.b16 %v3949, %v3945
  %v4038 = vpack.c.b16 %v3950, %v3946
  %v4039 = vpack.c.b16 %v3951, %v3947
  %v4040 = vpack.c.b16 %v3952, %v3948
  %v4041 = vpack.c.b16 %v3957, %v3953
  %v4042 = vpack.c.b16 %v3958, %v3954
  %v4043 = vpack.c.b16 %v3959, %v3955
  %v4044 = vpack.c.b16 %v3960, %v3956
  %v4045 = vpack.c.b16 %v3965, %v3961
  %v4046 = vpack.c.b16 %v3966, %v3962
  %v4047 = vpack.c.b16 %v3967, %v3963
  %v4048 = vpack.c.b16 %v3968, %v3964
  %v4049 = vpack.c.b16 %v3973, %v3969
  %v4050 = vpack.c.b16 %v3974, %v3970
  %v4051 = vpack.c.b16 %v3975, %v3971
  %v4052 = vpack.c.b16 %v3976, %v3972
  %v4053 = vpack.c.b16 %v3981, %v3977
  %v4054 = vpack.c.b16 %v3982, %v3978
  %v4055 = vpack.c.b16 %v3983, %v3979
  %v4056 = vpack.c.b16 %v3984, %v3980
  %v4057 = vpack.c.b16 %v3989, %v3985
  %v4058 = vpack.c.b16 %v3990, %v3986
  %v4059 = vpack.c.b16 %v3991, %v3987
  %v4060 = vpack.c.b16 %v3992, %v3988
  %v4061 = vpack.c.b16 %v3997, %v3993
  %v4062 = vpack.c.b16 %v3998, %v3994
  %v4063 = vpack.c.b16 %v3999, %v3995
  %v4064 = vpack.c.b16 %v4000, %v3996
  %4129 = vmatpush.bf16.msra.mxu0 %v4029
  %4130 = vmatpush.bf16.msra.mxu0 %v4025
  %4131 = vmatpush.bf16.msra.mxu0 %v4021
  %4132 = vmatpush.bf16.msra.mxu0 %v4017
  %4133 = vmatpush.bf16.msra.mxu0 %v4013
  %4134 = vmatpush.bf16.msra.mxu0 %v4009
  %4135 = vmatpush.bf16.msra.mxu0 %v4005
  %4136 = vmatpush.bf16.msra.mxu0 %v4001
  %4137 = vmatmul.bf16.gmra.mxu0 %v3416
  %v4138 = vpop.f32.mrf.mxu0
  %v4139 = vadd.f32 0.0, %v4138
  %v4140 = vpop.f32.mrf.mxu0
  %v4141 = vadd.f32 0.0, %v4140
  %4142 = vmatmul.bf16.gmra.mxu0 %v3418
  %v4143 = vpop.f32.mrf.mxu0
  %v4144 = vadd.f32 0.0, %v4143
  %v4145 = vpop.f32.mrf.mxu0
  %v4146 = vadd.f32 0.0, %v4145
  %4147 = vmatmul.bf16.gmra.mxu0 %v3420
  %v4148 = vpop.f32.mrf.mxu0
  %v4149 = vadd.f32 0.0, %v4148
  %v4150 = vpop.f32.mrf.mxu0
  %v4151 = vadd.f32 0.0, %v4150
  %4152 = vmatmul.bf16.gmra.mxu0 %v3422
  %v4153 = vpop.f32.mrf.mxu0
  %v4154 = vadd.f32 0.0, %v4153
  %v4155 = vpop.f32.mrf.mxu0
  %v4156 = vadd.f32 0.0, %v4155
  %4157 = vmatmul.bf16.gmra.mxu0 %v3424
  %v4158 = vpop.f32.mrf.mxu0
  %v4159 = vadd.f32 0.0, %v4158
  %v4160 = vpop.f32.mrf.mxu0
  %v4161 = vadd.f32 0.0, %v4160
  %4162 = vmatmul.bf16.gmra.mxu0 %v3426
  %v4163 = vpop.f32.mrf.mxu0
  %v4164 = vadd.f32 0.0, %v4163
  %v4165 = vpop.f32.mrf.mxu0
  %v4166 = vadd.f32 0.0, %v4165
  %4167 = vmatmul.bf16.gmra.mxu0 %v3428
  %v4168 = vpop.f32.mrf.mxu0
  %v4169 = vadd.f32 0.0, %v4168
  %v4170 = vpop.f32.mrf.mxu0
  %v4171 = vadd.f32 0.0, %v4170
  %4172 = vdwg.mxu0
  %4173 = vmatpush.bf16.msra.mxu0 %v4061
  %4174 = vmatpush.bf16.msra.mxu0 %v4057
  %4175 = vmatpush.bf16.msra.mxu0 %v4053
  %4176 = vmatpush.bf16.msra.mxu0 %v4049
  %4177 = vmatpush.bf16.msra.mxu0 %v4045
  %4178 = vmatpush.bf16.msra.mxu0 %v4041
  %4179 = vmatpush.bf16.msra.mxu0 %v4037
  %4180 = vmatpush.bf16.msra.mxu0 %v4033
  %4181 = vmatmul.bf16.gmra.mxu0 %v3417
  %v4182 = vpop.f32.mrf.mxu0
  %v4183 = vadd.f32 %v4139, %v4182
  %v4184 = vpop.f32.mrf.mxu0
  %v4185 = vadd.f32 %v4141, %v4184
  %4186 = vmatmul.bf16.gmra.mxu0 %v3419
  %v4187 = vpop.f32.mrf.mxu0
  %v4188 = vadd.f32 %v4144, %v4187
  %v4189 = vpop.f32.mrf.mxu0
  %v4190 = vadd.f32 %v4146, %v4189
  %4191 = vmatmul.bf16.gmra.mxu0 %v3421
  %v4192 = vpop.f32.mrf.mxu0
  %v4193 = vadd.f32 %v4149, %v4192
  %v4194 = vpop.f32.mrf.mxu0
  %v4195 = vadd.f32 %v4151, %v4194
  %4196 = vmatmul.bf16.gmra.mxu0 %v3423
  %v4197 = vpop.f32.mrf.mxu0
  %v4198 = vadd.f32 %v4154, %v4197
  %v4199 = vpop.f32.mrf.mxu0
  %v4200 = vadd.f32 %v4156, %v4199
  %4201 = vmatmul.bf16.gmra.mxu0 %v3425
  %v4202 = vpop.f32.mrf.mxu0
  %v4203 = vadd.f32 %v4159, %v4202
  %v4204 = vpop.f32.mrf.mxu0
  %v4205 = vadd.f32 %v4161, %v4204
  %4206 = vmatmul.bf16.gmra.mxu0 %v3427
  %v4207 = vpop.f32.mrf.mxu0
  %v4208 = vadd.f32 %v4164, %v4207
  %v4209 = vpop.f32.mrf.mxu0
  %v4210 = vadd.f32 %v4166, %v4209
  %4211 = vmatmul.bf16.gmra.mxu0 %v3429
  %v4212 = vpop.f32.mrf.mxu0
  %v4213 = vadd.f32 %v4169, %v4212
  %v4214 = vpop.f32.mrf.mxu0
  %v4215 = vadd.f32 %v4171, %v4214
  %4216 = vdwg.mxu0
  %4217 = vmatpush.bf16.msra.mxu0 %v4030
  %4218 = vmatpush.bf16.msra.mxu0 %v4026
  %4219 = vmatpush.bf16.msra.mxu0 %v4022
  %4220 = vmatpush.bf16.msra.mxu0 %v4018
  %4221 = vmatpush.bf16.msra.mxu0 %v4014
  %4222 = vmatpush.bf16.msra.mxu0 %v4010
  %4223 = vmatpush.bf16.msra.mxu0 %v4006
  %4224 = vmatpush.bf16.msra.mxu0 %v4002
  %4225 = vmatmul.bf16.gmra.mxu0 %v3416
  %v4226 = vpop.f32.mrf.mxu0
  %v4227 = vadd.f32 0.0, %v4226
  %v4228 = vpop.f32.mrf.mxu0
  %v4229 = vadd.f32 0.0, %v4228
  %4230 = vmatmul.bf16.gmra.mxu0 %v3418
  %v4231 = vpop.f32.mrf.mxu0
  %v4232 = vadd.f32 0.0, %v4231
  %v4233 = vpop.f32.mrf.mxu0
  %v4234 = vadd.f32 0.0, %v4233
  %4235 = vmatmul.bf16.gmra.mxu0 %v3420
  %v4236 = vpop.f32.mrf.mxu0
  %v4237 = vadd.f32 0.0, %v4236
  %v4238 = vpop.f32.mrf.mxu0
  %v4239 = vadd.f32 0.0, %v4238
  %4240 = vmatmul.bf16.gmra.mxu0 %v3422
  %v4241 = vpop.f32.mrf.mxu0
  %v4242 = vadd.f32 0.0, %v4241
  %v4243 = vpop.f32.mrf.mxu0
  %v4244 = vadd.f32 0.0, %v4243
  %4245 = vmatmul.bf16.gmra.mxu0 %v3424
  %v4246 = vpop.f32.mrf.mxu0
  %v4247 = vadd.f32 0.0, %v4246
  %v4248 = vpop.f32.mrf.mxu0
  %v4249 = vadd.f32 0.0, %v4248
  %4250 = vmatmul.bf16.gmra.mxu0 %v3426
  %v4251 = vpop.f32.mrf.mxu0
  %v4252 = vadd.f32 0.0, %v4251
  %v4253 = vpop.f32.mrf.mxu0
  %v4254 = vadd.f32 0.0, %v4253
  %4255 = vmatmul.bf16.gmra.mxu0 %v3428
  %v4256 = vpop.f32.mrf.mxu0
  %v4257 = vadd.f32 0.0, %v4256
  %v4258 = vpop.f32.mrf.mxu0
  %v4259 = vadd.f32 0.0, %v4258
  %4260 = vdwg.mxu0
  %4261 = vmatpush.bf16.msra.mxu0 %v4062
  %4262 = vmatpush.bf16.msra.mxu0 %v4058
  %4263 = vmatpush.bf16.msra.mxu0 %v4054
  %4264 = vmatpush.bf16.msra.mxu0 %v4050
  %4265 = vmatpush.bf16.msra.mxu0 %v4046
  %4266 = vmatpush.bf16.msra.mxu0 %v4042
  %4267 = vmatpush.bf16.msra.mxu0 %v4038
  %4268 = vmatpush.bf16.msra.mxu0 %v4034
  %4269 = vmatmul.bf16.gmra.mxu0 %v3417
  %v4270 = vpop.f32.mrf.mxu0
  %v4271 = vadd.f32 %v4227, %v4270
  %v4272 = vpop.f32.mrf.mxu0
  %v4273 = vadd.f32 %v4229, %v4272
  %4274 = vmatmul.bf16.gmra.mxu0 %v3419
  %v4275 = vpop.f32.mrf.mxu0
  %v4276 = vadd.f32 %v4232, %v4275
  %v4277 = vpop.f32.mrf.mxu0
  %v4278 = vadd.f32 %v4234, %v4277
  %4279 = vmatmul.bf16.gmra.mxu0 %v3421
  %v4280 = vpop.f32.mrf.mxu0
  %v4281 = vadd.f32 %v4237, %v4280
  %v4282 = vpop.f32.mrf.mxu0
  %v4283 = vadd.f32 %v4239, %v4282
  %4284 = vmatmul.bf16.gmra.mxu0 %v3423
  %v4285 = vpop.f32.mrf.mxu0
  %v4286 = vadd.f32 %v4242, %v4285
  %v4287 = vpop.f32.mrf.mxu0
  %v4288 = vadd.f32 %v4244, %v4287
  %4289 = vmatmul.bf16.gmra.mxu0 %v3425
  %v4290 = vpop.f32.mrf.mxu0
  %v4291 = vadd.f32 %v4247, %v4290
  %v4292 = vpop.f32.mrf.mxu0
  %v4293 = vadd.f32 %v4249, %v4292
  %4294 = vmatmul.bf16.gmra.mxu0 %v3427
  %v4295 = vpop.f32.mrf.mxu0
  %v4296 = vadd.f32 %v4252, %v4295
  %v4297 = vpop.f32.mrf.mxu0
  %v4298 = vadd.f32 %v4254, %v4297
  %4299 = vmatmul.bf16.gmra.mxu0 %v3429
  %v4300 = vpop.f32.mrf.mxu0
  %v4301 = vadd.f32 %v4257, %v4300
  %v4302 = vpop.f32.mrf.mxu0
  %v4303 = vadd.f32 %v4259, %v4302
  %4304 = vdwg.mxu0
  %4305 = vmatpush.bf16.msra.mxu0 %v4031
  %4306 = vmatpush.bf16.msra.mxu0 %v4027
  %4307 = vmatpush.bf16.msra.mxu0 %v4023
  %4308 = vmatpush.bf16.msra.mxu0 %v4019
  %4309 = vmatpush.bf16.msra.mxu0 %v4015
  %4310 = vmatpush.bf16.msra.mxu0 %v4011
  %4311 = vmatpush.bf16.msra.mxu0 %v4007
  %4312 = vmatpush.bf16.msra.mxu0 %v4003
  %4313 = vmatmul.bf16.gmra.mxu0 %v3416
  %v4314 = vpop.f32.mrf.mxu0
  %v4315 = vadd.f32 0.0, %v4314
  %v4316 = vpop.f32.mrf.mxu0
  %v4317 = vadd.f32 0.0, %v4316
  %4318 = vmatmul.bf16.gmra.mxu0 %v3418
  %v4319 = vpop.f32.mrf.mxu0
  %v4320 = vadd.f32 0.0, %v4319
  %v4321 = vpop.f32.mrf.mxu0
  %v4322 = vadd.f32 0.0, %v4321
  %4323 = vmatmul.bf16.gmra.mxu0 %v3420
  %v4324 = vpop.f32.mrf.mxu0
  %v4325 = vadd.f32 0.0, %v4324
  %v4326 = vpop.f32.mrf.mxu0
  %v4327 = vadd.f32 0.0, %v4326
  %4328 = vmatmul.bf16.gmra.mxu0 %v3422
  %v4329 = vpop.f32.mrf.mxu0
  %v4330 = vadd.f32 0.0, %v4329
  %v4331 = vpop.f32.mrf.mxu0
  %v4332 = vadd.f32 0.0, %v4331
  %4333 = vmatmul.bf16.gmra.mxu0 %v3424
  %v4334 = vpop.f32.mrf.mxu0
  %v4335 = vadd.f32 0.0, %v4334
  %v4336 = vpop.f32.mrf.mxu0
  %v4337 = vadd.f32 0.0, %v4336
  %4338 = vmatmul.bf16.gmra.mxu0 %v3426
  %v4339 = vpop.f32.mrf.mxu0
  %v4340 = vadd.f32 0.0, %v4339
  %v4341 = vpop.f32.mrf.mxu0
  %v4342 = vadd.f32 0.0, %v4341
  %4343 = vmatmul.bf16.gmra.mxu0 %v3428
  %v4344 = vpop.f32.mrf.mxu0
  %v4345 = vadd.f32 0.0, %v4344
  %v4346 = vpop.f32.mrf.mxu0
  %v4347 = vadd.f32 0.0, %v4346
  %4348 = vdwg.mxu0
  %4349 = vmatpush.bf16.msra.mxu0 %v4063
  %4350 = vmatpush.bf16.msra.mxu0 %v4059
  %4351 = vmatpush.bf16.msra.mxu0 %v4055
  %4352 = vmatpush.bf16.msra.mxu0 %v4051
  %4353 = vmatpush.bf16.msra.mxu0 %v4047
  %4354 = vmatpush.bf16.msra.mxu0 %v4043
  %4355 = vmatpush.bf16.msra.mxu0 %v4039
  %4356 = vmatpush.bf16.msra.mxu0 %v4035
  %4357 = vmatmul.bf16.gmra.mxu0 %v3417
  %v4358 = vpop.f32.mrf.mxu0
  %v4359 = vadd.f32 %v4315, %v4358
  %v4360 = vpop.f32.mrf.mxu0
  %v4361 = vadd.f32 %v4317, %v4360
  %4362 = vmatmul.bf16.gmra.mxu0 %v3419
  %v4363 = vpop.f32.mrf.mxu0
  %v4364 = vadd.f32 %v4320, %v4363
  %v4365 = vpop.f32.mrf.mxu0
  %v4366 = vadd.f32 %v4322, %v4365
  %4367 = vmatmul.bf16.gmra.mxu0 %v3421
  %v4368 = vpop.f32.mrf.mxu0
  %v4369 = vadd.f32 %v4325, %v4368
  %v4370 = vpop.f32.mrf.mxu0
  %v4371 = vadd.f32 %v4327, %v4370
  %4372 = vmatmul.bf16.gmra.mxu0 %v3423
  %v4373 = vpop.f32.mrf.mxu0
  %v4374 = vadd.f32 %v4330, %v4373
  %v4375 = vpop.f32.mrf.mxu0
  %v4376 = vadd.f32 %v4332, %v4375
  %4377 = vmatmul.bf16.gmra.mxu0 %v3425
  %v4378 = vpop.f32.mrf.mxu0
  %v4379 = vadd.f32 %v4335, %v4378
  %v4380 = vpop.f32.mrf.mxu0
  %v4381 = vadd.f32 %v4337, %v4380
  %4382 = vmatmul.bf16.gmra.mxu0 %v3427
  %v4383 = vpop.f32.mrf.mxu0
  %v4384 = vadd.f32 %v4340, %v4383
  %v4385 = vpop.f32.mrf.mxu0
  %v4386 = vadd.f32 %v4342, %v4385
  %4387 = vmatmul.bf16.gmra.mxu0 %v3429
  %v4388 = vpop.f32.mrf.mxu0
  %v4389 = vadd.f32 %v4345, %v4388
  %v4390 = vpop.f32.mrf.mxu0
  %v4391 = vadd.f32 %v4347, %v4390
  %4392 = vdwg.mxu0
  %4393 = vmatpush.bf16.msra.mxu0 %v4032
  %4394 = vmatpush.bf16.msra.mxu0 %v4028
  %4395 = vmatpush.bf16.msra.mxu0 %v4024
  %4396 = vmatpush.bf16.msra.mxu0 %v4020
  %4397 = vmatpush.bf16.msra.mxu0 %v4016
  %4398 = vmatpush.bf16.msra.mxu0 %v4012
  %4399 = vmatpush.bf16.msra.mxu0 %v4008
  %4400 = vmatpush.bf16.msra.mxu0 %v4004
  %4401 = vmatmul.bf16.gmra.mxu0 %v3416
  %v4402 = vpop.f32.mrf.mxu0
  %v4403 = vadd.f32 0.0, %v4402
  %v4404 = vpop.f32.mrf.mxu0
  %v4405 = vadd.f32 0.0, %v4404
  %4406 = vmatmul.bf16.gmra.mxu0 %v3418
  %v4407 = vpop.f32.mrf.mxu0
  %v4408 = vadd.f32 0.0, %v4407
  %v4409 = vpop.f32.mrf.mxu0
  %v4410 = vadd.f32 0.0, %v4409
  %4411 = vmatmul.bf16.gmra.mxu0 %v3420
  %v4412 = vpop.f32.mrf.mxu0
  %v4413 = vadd.f32 0.0, %v4412
  %v4414 = vpop.f32.mrf.mxu0
  %v4415 = vadd.f32 0.0, %v4414
  %4416 = vmatmul.bf16.gmra.mxu0 %v3422
  %v4417 = vpop.f32.mrf.mxu0
  %v4418 = vadd.f32 0.0, %v4417
  %v4419 = vpop.f32.mrf.mxu0
  %v4420 = vadd.f32 0.0, %v4419
  %4421 = vmatmul.bf16.gmra.mxu0 %v3424
  %v4422 = vpop.f32.mrf.mxu0
  %v4423 = vadd.f32 0.0, %v4422
  %v4424 = vpop.f32.mrf.mxu0
  %v4425 = vadd.f32 0.0, %v4424
  %4426 = vmatmul.bf16.gmra.mxu0 %v3426
  %v4427 = vpop.f32.mrf.mxu0
  %v4428 = vadd.f32 0.0, %v4427
  %v4429 = vpop.f32.mrf.mxu0
  %v4430 = vadd.f32 0.0, %v4429
  %4431 = vmatmul.bf16.gmra.mxu0 %v3428
  %v4432 = vpop.f32.mrf.mxu0
  %v4433 = vadd.f32 0.0, %v4432
  %v4434 = vpop.f32.mrf.mxu0
  %v4435 = vadd.f32 0.0, %v4434
  %4436 = vdwg.mxu0
  %4437 = vmatpush.bf16.msra.mxu0 %v4064
  %4438 = vmatpush.bf16.msra.mxu0 %v4060
  %4439 = vmatpush.bf16.msra.mxu0 %v4056
  %4440 = vmatpush.bf16.msra.mxu0 %v4052
  %4441 = vmatpush.bf16.msra.mxu0 %v4048
  %4442 = vmatpush.bf16.msra.mxu0 %v4044
  %4443 = vmatpush.bf16.msra.mxu0 %v4040
  %4444 = vmatpush.bf16.msra.mxu0 %v4036
  %4445 = vmatmul.bf16.gmra.mxu0 %v3417
  %v4446 = vpop.f32.mrf.mxu0
  %v4447 = vadd.f32 %v4403, %v4446
  %v4448 = vpop.f32.mrf.mxu0
  %v4449 = vadd.f32 %v4405, %v4448
  %4450 = vmatmul.bf16.gmra.mxu0 %v3419
  %v4451 = vpop.f32.mrf.mxu0
  %v4452 = vadd.f32 %v4408, %v4451
  %v4453 = vpop.f32.mrf.mxu0
  %v4454 = vadd.f32 %v4410, %v4453
  %4455 = vmatmul.bf16.gmra.mxu0 %v3421
  %v4456 = vpop.f32.mrf.mxu0
  %v4457 = vadd.f32 %v4413, %v4456
  %v4458 = vpop.f32.mrf.mxu0
  %v4459 = vadd.f32 %v4415, %v4458
  %4460 = vmatmul.bf16.gmra.mxu0 %v3423
  %v4461 = vpop.f32.mrf.mxu0
  %v4462 = vadd.f32 %v4418, %v4461
  %v4463 = vpop.f32.mrf.mxu0
  %v4464 = vadd.f32 %v4420, %v4463
  %4465 = vmatmul.bf16.gmra.mxu0 %v3425
  %v4466 = vpop.f32.mrf.mxu0
  %v4467 = vadd.f32 %v4423, %v4466
  %v4468 = vpop.f32.mrf.mxu0
  %v4469 = vadd.f32 %v4425, %v4468
  %4470 = vmatmul.bf16.gmra.mxu0 %v3427
  %v4471 = vpop.f32.mrf.mxu0
  %v4472 = vadd.f32 %v4428, %v4471
  %v4473 = vpop.f32.mrf.mxu0
  %v4474 = vadd.f32 %v4430, %v4473
  %4475 = vmatmul.bf16.gmra.mxu0 %v3429
  %v4476 = vpop.f32.mrf.mxu0
  %v4477 = vadd.f32 %v4433, %v4476
  %v4478 = vpop.f32.mrf.mxu0
  %v4479 = vadd.f32 %v4435, %v4478
  %4480 = vdwg.mxu0
  %v4559 = vunpack.c.l.b16 %v3666
  %v4560 = vunpack.c.h.b16 %v3666
  %v4561 = vunpack.c.l.b16 %v3667
  %v4562 = vunpack.c.h.b16 %v3667
  %v4563 = vunpack.c.l.b16 %v3668
  %v4564 = vunpack.c.h.b16 %v3668
  %v4565 = vunpack.c.l.b16 %v3669
  %v4566 = vunpack.c.h.b16 %v3669
  %v4567 = vunpack.c.l.b16 %v3670
  %v4568 = vunpack.c.h.b16 %v3670
  %v4569 = vunpack.c.l.b16 %v3671
  %v4570 = vunpack.c.h.b16 %v3671
  %v4571 = vunpack.c.l.b16 %v3672
  %v4572 = vunpack.c.h.b16 %v3672
  %v4573 = vunpack.c.l.b16 %v3673
  %v4574 = vunpack.c.h.b16 %v3673
  %v4575 = vunpack.c.l.b16 %v3674
  %v4576 = vunpack.c.h.b16 %v3674
  %v4577 = vunpack.c.l.b16 %v3675
  %v4578 = vunpack.c.h.b16 %v3675
  %v4579 = vunpack.c.l.b16 %v3676
  %v4580 = vunpack.c.h.b16 %v3676
  %v4581 = vunpack.c.l.b16 %v3677
  %v4582 = vunpack.c.h.b16 %v3677
  %v4583 = vunpack.c.l.b16 %v3678
  %v4584 = vunpack.c.h.b16 %v3678
  %v4585 = vunpack.c.l.b16 %v3679
  %v4586 = vunpack.c.h.b16 %v3679
  %v4587 = vunpack.c.l.b16 %v3680
  %v4588 = vunpack.c.h.b16 %v3680
  %v4589 = vunpack.c.l.b16 %v3681
  %v4590 = vunpack.c.h.b16 %v3681
  %v4591 = vunpack.c.l.b16 %v3682
  %v4592 = vunpack.c.h.b16 %v3682
  %v4593 = vunpack.c.l.b16 %v3683
  %v4594 = vunpack.c.h.b16 %v3683
  %v4595 = vunpack.c.l.b16 %v3684
  %v4596 = vunpack.c.h.b16 %v3684
  %v4597 = vunpack.c.l.b16 %v3685
  %v4598 = vunpack.c.h.b16 %v3685
  %v4599 = vunpack.c.l.b16 %v3686
  %v4600 = vunpack.c.h.b16 %v3686
  %v4601 = vunpack.c.l.b16 %v3687
  %v4602 = vunpack.c.h.b16 %v3687
  %v4603 = vunpack.c.l.b16 %v3688
  %v4604 = vunpack.c.h.b16 %v3688
  %v4605 = vunpack.c.l.b16 %v3689
  %v4606 = vunpack.c.h.b16 %v3689
  %v4607 = vunpack.c.l.b16 %v3690
  %v4608 = vunpack.c.h.b16 %v3690
  %v4609 = vunpack.c.l.b16 %v3691
  %v4610 = vunpack.c.h.b16 %v3691
  %v4611 = vunpack.c.l.b16 %v3692
  %v4612 = vunpack.c.h.b16 %v3692
  %v4613 = vunpack.c.l.b16 %v3693
  %v4614 = vunpack.c.h.b16 %v3693
  %v4615 = vunpack.c.l.b16 %v3694
  %v4616 = vunpack.c.h.b16 %v3694
  %v4617 = vunpack.c.l.b16 %v3695
  %v4618 = vunpack.c.h.b16 %v3695
  %v4619 = vunpack.c.l.b16 %v3696
  %v4620 = vunpack.c.h.b16 %v3696
  %v4621 = vunpack.c.l.b16 %v3697
  %v4622 = vunpack.c.h.b16 %v3697
  %v4623 = vunpack.c.l.b16 %v3698
  %v4624 = vunpack.c.h.b16 %v3698
  %v4625 = vunpack.c.l.b16 %v3699
  %v4626 = vunpack.c.h.b16 %v3699
  %v4627 = vunpack.c.l.b16 %v3700
  %v4628 = vunpack.c.h.b16 %v3700
  %v4629 = vunpack.c.l.b16 %v3701
  %v4630 = vunpack.c.h.b16 %v3701
  %v4631 = vunpack.c.l.b16 %v3702
  %v4632 = vunpack.c.h.b16 %v3702
  %v4633 = vunpack.c.l.b16 %v3703
  %v4634 = vunpack.c.h.b16 %v3703
  %v4635 = vunpack.c.l.b16 %v3704
  %v4636 = vunpack.c.h.b16 %v3704
  %v4637 = vunpack.c.l.b16 %v3705
  %v4638 = vunpack.c.h.b16 %v3705
  %v4639 = vunpack.c.l.b16 %v3706
  %v4640 = vunpack.c.h.b16 %v3706
  %v4641 = vunpack.c.l.b16 %v3707
  %v4642 = vunpack.c.h.b16 %v3707
  %v4643 = vunpack.c.l.b16 %v3708
  %v4644 = vunpack.c.h.b16 %v3708
  %v4645 = vunpack.c.l.b16 %v3709
  %v4646 = vunpack.c.h.b16 %v3709
  %v4647 = vunpack.c.l.b16 %v3710
  %v4648 = vunpack.c.h.b16 %v3710
  %v4649 = vunpack.c.l.b16 %v3711
  %v4650 = vunpack.c.h.b16 %v3711
  %v4651 = vunpack.c.l.b16 %v3712
  %v4652 = vunpack.c.h.b16 %v3712
  %v4653 = vunpack.c.l.b16 %v3713
  %v4654 = vunpack.c.h.b16 %v3713
  %v4655 = vunpack.c.l.b16 %v3714
  %v4656 = vunpack.c.h.b16 %v3714
  %v4657 = vunpack.c.l.b16 %v3715
  %v4658 = vunpack.c.h.b16 %v3715
  %v4659 = vunpack.c.l.b16 %v3716
  %v4660 = vunpack.c.h.b16 %v3716
  %v4661 = vunpack.c.l.b16 %v3717
  %v4662 = vunpack.c.h.b16 %v3717
  %v4663 = vunpack.c.l.b16 %v3718
  %v4664 = vunpack.c.h.b16 %v3718
  %v4665 = vunpack.c.l.b16 %v3719
  %v4666 = vunpack.c.h.b16 %v3719
  %v4667 = vunpack.c.l.b16 %v3720
  %v4668 = vunpack.c.h.b16 %v3720
  %v4669 = vunpack.c.l.b16 %v3721
  %v4670 = vunpack.c.h.b16 %v3721
  %v4671 = vunpack.c.l.b16 %v3722
  %v4672 = vunpack.c.h.b16 %v3722
  %v4673 = vunpack.c.l.b16 %v3723
  %v4674 = vunpack.c.h.b16 %v3723
  %v4675 = vunpack.c.l.b16 %v3724
  %v4676 = vunpack.c.h.b16 %v3724
  %v4677 = vunpack.c.l.b16 %v3725
  %v4678 = vunpack.c.h.b16 %v3725
  %v4679 = vunpack.c.l.b16 %v3726
  %v4680 = vunpack.c.h.b16 %v3726
  %v4681 = vunpack.c.l.b16 %v3727
  %v4682 = vunpack.c.h.b16 %v3727
  %v4683 = vunpack.c.l.b16 %v3728
  %v4684 = vunpack.c.h.b16 %v3728
  %v4685 = vunpack.c.l.b16 %v3729
  %v4686 = vunpack.c.h.b16 %v3729
  %v4687 = vpack.c.b16 %v4563, %v4559
  %v4688 = vpack.c.b16 %v4564, %v4560
  %v4689 = vpack.c.b16 %v4565, %v4561
  %v4690 = vpack.c.b16 %v4566, %v4562
  %v4691 = vpack.c.b16 %v4571, %v4567
  %v4692 = vpack.c.b16 %v4572, %v4568
  %v4693 = vpack.c.b16 %v4573, %v4569
  %v4694 = vpack.c.b16 %v4574, %v4570
  %v4695 = vpack.c.b16 %v4579, %v4575
  %v4696 = vpack.c.b16 %v4580, %v4576
  %v4697 = vpack.c.b16 %v4581, %v4577
  %v4698 = vpack.c.b16 %v4582, %v4578
  %v4699 = vpack.c.b16 %v4587, %v4583
  %v4700 = vpack.c.b16 %v4588, %v4584
  %v4701 = vpack.c.b16 %v4589, %v4585
  %v4702 = vpack.c.b16 %v4590, %v4586
  %v4703 = vpack.c.b16 %v4595, %v4591
  %v4704 = vpack.c.b16 %v4596, %v4592
  %v4705 = vpack.c.b16 %v4597, %v4593
  %v4706 = vpack.c.b16 %v4598, %v4594
  %v4707 = vpack.c.b16 %v4603, %v4599
  %v4708 = vpack.c.b16 %v4604, %v4600
  %v4709 = vpack.c.b16 %v4605, %v4601
  %v4710 = vpack.c.b16 %v4606, %v4602
  %v4711 = vpack.c.b16 %v4611, %v4607
  %v4712 = vpack.c.b16 %v4612, %v4608
  %v4713 = vpack.c.b16 %v4613, %v4609
  %v4714 = vpack.c.b16 %v4614, %v4610
  %v4715 = vpack.c.b16 %v4619, %v4615
  %v4716 = vpack.c.b16 %v4620, %v4616
  %v4717 = vpack.c.b16 %v4621, %v4617
  %v4718 = vpack.c.b16 %v4622, %v4618
  %v4719 = vpack.c.b16 %v4627, %v4623
  %v4720 = vpack.c.b16 %v4628, %v4624
  %v4721 = vpack.c.b16 %v4629, %v4625
  %v4722 = vpack.c.b16 %v4630, %v4626
  %v4723 = vpack.c.b16 %v4635, %v4631
  %v4724 = vpack.c.b16 %v4636, %v4632
  %v4725 = vpack.c.b16 %v4637, %v4633
  %v4726 = vpack.c.b16 %v4638, %v4634
  %v4727 = vpack.c.b16 %v4643, %v4639
  %v4728 = vpack.c.b16 %v4644, %v4640
  %v4729 = vpack.c.b16 %v4645, %v4641
  %v4730 = vpack.c.b16 %v4646, %v4642
  %v4731 = vpack.c.b16 %v4651, %v4647
  %v4732 = vpack.c.b16 %v4652, %v4648
  %v4733 = vpack.c.b16 %v4653, %v4649
  %v4734 = vpack.c.b16 %v4654, %v4650
  %v4735 = vpack.c.b16 %v4659, %v4655
  %v4736 = vpack.c.b16 %v4660, %v4656
  %v4737 = vpack.c.b16 %v4661, %v4657
  %v4738 = vpack.c.b16 %v4662, %v4658
  %v4739 = vpack.c.b16 %v4667, %v4663
  %v4740 = vpack.c.b16 %v4668, %v4664
  %v4741 = vpack.c.b16 %v4669, %v4665
  %v4742 = vpack.c.b16 %v4670, %v4666
  %v4743 = vpack.c.b16 %v4675, %v4671
  %v4744 = vpack.c.b16 %v4676, %v4672
  %v4745 = vpack.c.b16 %v4677, %v4673
  %v4746 = vpack.c.b16 %v4678, %v4674
  %v4747 = vpack.c.b16 %v4683, %v4679
  %v4748 = vpack.c.b16 %v4684, %v4680
  %v4749 = vpack.c.b16 %v4685, %v4681
  %v4750 = vpack.c.b16 %v4686, %v4682
  %4815 = vmatpush.bf16.msra.mxu0 %v4715
  %4816 = vmatpush.bf16.msra.mxu0 %v4711
  %4817 = vmatpush.bf16.msra.mxu0 %v4707
  %4818 = vmatpush.bf16.msra.mxu0 %v4703
  %4819 = vmatpush.bf16.msra.mxu0 %v4699
  %4820 = vmatpush.bf16.msra.mxu0 %v4695
  %4821 = vmatpush.bf16.msra.mxu0 %v4691
  %4822 = vmatpush.bf16.msra.mxu0 %v4687
  %4823 = vmatmul.bf16.gmra.mxu0 %v3222
  %v4824 = vpop.f32.mrf.mxu0
  %v4825 = vadd.f32 %v4183, %v4824
  %v4826 = vpop.f32.mrf.mxu0
  %v4827 = vadd.f32 %v4185, %v4826
  %4828 = vmatmul.bf16.gmra.mxu0 %v3224
  %v4829 = vpop.f32.mrf.mxu0
  %v4830 = vadd.f32 %v4188, %v4829
  %v4831 = vpop.f32.mrf.mxu0
  %v4832 = vadd.f32 %v4190, %v4831
  %4833 = vmatmul.bf16.gmra.mxu0 %v3226
  %v4834 = vpop.f32.mrf.mxu0
  %v4835 = vadd.f32 %v4193, %v4834
  %v4836 = vpop.f32.mrf.mxu0
  %v4837 = vadd.f32 %v4195, %v4836
  %4838 = vmatmul.bf16.gmra.mxu0 %v3228
  %v4839 = vpop.f32.mrf.mxu0
  %v4840 = vadd.f32 %v4198, %v4839
  %v4841 = vpop.f32.mrf.mxu0
  %v4842 = vadd.f32 %v4200, %v4841
  %4843 = vmatmul.bf16.gmra.mxu0 %v3230
  %v4844 = vpop.f32.mrf.mxu0
  %v4845 = vadd.f32 %v4203, %v4844
  %v4846 = vpop.f32.mrf.mxu0
  %v4847 = vadd.f32 %v4205, %v4846
  %4848 = vmatmul.bf16.gmra.mxu0 %v3232
  %v4849 = vpop.f32.mrf.mxu0
  %v4850 = vadd.f32 %v4208, %v4849
  %v4851 = vpop.f32.mrf.mxu0
  %v4852 = vadd.f32 %v4210, %v4851
  %4853 = vmatmul.bf16.gmra.mxu0 %v3234
  %v4854 = vpop.f32.mrf.mxu0
  %v4855 = vadd.f32 %v4213, %v4854
  %v4856 = vpop.f32.mrf.mxu0
  %v4857 = vadd.f32 %v4215, %v4856
  %4858 = vdwg.mxu0
  %4859 = vmatpush.bf16.msra.mxu0 %v4747
  %4860 = vmatpush.bf16.msra.mxu0 %v4743
  %4861 = vmatpush.bf16.msra.mxu0 %v4739
  %4862 = vmatpush.bf16.msra.mxu0 %v4735
  %4863 = vmatpush.bf16.msra.mxu0 %v4731
  %4864 = vmatpush.bf16.msra.mxu0 %v4727
  %4865 = vmatpush.bf16.msra.mxu0 %v4723
  %4866 = vmatpush.bf16.msra.mxu0 %v4719
  %4867 = vmatmul.bf16.gmra.mxu0 %v3223
  %v4868 = vpop.f32.mrf.mxu0
  %v4869 = vadd.f32 %v4825, %v4868
  %v4870 = vpop.f32.mrf.mxu0
  %v4871 = vadd.f32 %v4827, %v4870
  %4872 = vmatmul.bf16.gmra.mxu0 %v3225
  %v4873 = vpop.f32.mrf.mxu0
  %v4874 = vadd.f32 %v4830, %v4873
  %v4875 = vpop.f32.mrf.mxu0
  %v4876 = vadd.f32 %v4832, %v4875
  %4877 = vmatmul.bf16.gmra.mxu0 %v3227
  %v4878 = vpop.f32.mrf.mxu0
  %v4879 = vadd.f32 %v4835, %v4878
  %v4880 = vpop.f32.mrf.mxu0
  %v4881 = vadd.f32 %v4837, %v4880
  %4882 = vmatmul.bf16.gmra.mxu0 %v3229
  %v4883 = vpop.f32.mrf.mxu0
  %v4884 = vadd.f32 %v4840, %v4883
  %v4885 = vpop.f32.mrf.mxu0
  %v4886 = vadd.f32 %v4842, %v4885
  %4887 = vmatmul.bf16.gmra.mxu0 %v3231
  %v4888 = vpop.f32.mrf.mxu0
  %v4889 = vadd.f32 %v4845, %v4888
  %v4890 = vpop.f32.mrf.mxu0
  %v4891 = vadd.f32 %v4847, %v4890
  %4892 = vmatmul.bf16.gmra.mxu0 %v3233
  %v4893 = vpop.f32.mrf.mxu0
  %v4894 = vadd.f32 %v4850, %v4893
  %v4895 = vpop.f32.mrf.mxu0
  %v4896 = vadd.f32 %v4852, %v4895
  %4897 = vmatmul.bf16.gmra.mxu0 %v3235
  %v4898 = vpop.f32.mrf.mxu0
  %v4899 = vadd.f32 %v4855, %v4898
  %v4900 = vpop.f32.mrf.mxu0
  %v4901 = vadd.f32 %v4857, %v4900
  %4902 = vdwg.mxu0
  %4903 = vmatpush.bf16.msra.mxu0 %v4716
  %4904 = vmatpush.bf16.msra.mxu0 %v4712
  %4905 = vmatpush.bf16.msra.mxu0 %v4708
  %4906 = vmatpush.bf16.msra.mxu0 %v4704
  %4907 = vmatpush.bf16.msra.mxu0 %v4700
  %4908 = vmatpush.bf16.msra.mxu0 %v4696
  %4909 = vmatpush.bf16.msra.mxu0 %v4692
  %4910 = vmatpush.bf16.msra.mxu0 %v4688
  %4911 = vmatmul.bf16.gmra.mxu0 %v3222
  %v4912 = vpop.f32.mrf.mxu0
  %v4913 = vadd.f32 %v4271, %v4912
  %v4914 = vpop.f32.mrf.mxu0
  %v4915 = vadd.f32 %v4273, %v4914
  %4916 = vmatmul.bf16.gmra.mxu0 %v3224
  %v4917 = vpop.f32.mrf.mxu0
  %v4918 = vadd.f32 %v4276, %v4917
  %v4919 = vpop.f32.mrf.mxu0
  %v4920 = vadd.f32 %v4278, %v4919
  %4921 = vmatmul.bf16.gmra.mxu0 %v3226
  %v4922 = vpop.f32.mrf.mxu0
  %v4923 = vadd.f32 %v4281, %v4922
  %v4924 = vpop.f32.mrf.mxu0
  %v4925 = vadd.f32 %v4283, %v4924
  %4926 = vmatmul.bf16.gmra.mxu0 %v3228
  %v4927 = vpop.f32.mrf.mxu0
  %v4928 = vadd.f32 %v4286, %v4927
  %v4929 = vpop.f32.mrf.mxu0
  %v4930 = vadd.f32 %v4288, %v4929
  %4931 = vmatmul.bf16.gmra.mxu0 %v3230
  %v4932 = vpop.f32.mrf.mxu0
  %v4933 = vadd.f32 %v4291, %v4932
  %v4934 = vpop.f32.mrf.mxu0
  %v4935 = vadd.f32 %v4293, %v4934
  %4936 = vmatmul.bf16.gmra.mxu0 %v3232
  %v4937 = vpop.f32.mrf.mxu0
  %v4938 = vadd.f32 %v4296, %v4937
  %v4939 = vpop.f32.mrf.mxu0
  %v4940 = vadd.f32 %v4298, %v4939
  %4941 = vmatmul.bf16.gmra.mxu0 %v3234
  %v4942 = vpop.f32.mrf.mxu0
  %v4943 = vadd.f32 %v4301, %v4942
  %v4944 = vpop.f32.mrf.mxu0
  %v4945 = vadd.f32 %v4303, %v4944
  %4946 = vdwg.mxu0
  %4947 = vmatpush.bf16.msra.mxu0 %v4748
  %4948 = vmatpush.bf16.msra.mxu0 %v4744
  %4949 = vmatpush.bf16.msra.mxu0 %v4740
  %4950 = vmatpush.bf16.msra.mxu0 %v4736
  %4951 = vmatpush.bf16.msra.mxu0 %v4732
  %4952 = vmatpush.bf16.msra.mxu0 %v4728
  %4953 = vmatpush.bf16.msra.mxu0 %v4724
  %4954 = vmatpush.bf16.msra.mxu0 %v4720
  %4955 = vmatmul.bf16.gmra.mxu0 %v3223
  %v4956 = vpop.f32.mrf.mxu0
  %v4957 = vadd.f32 %v4913, %v4956
  %v4958 = vpop.f32.mrf.mxu0
  %v4959 = vadd.f32 %v4915, %v4958
  %4960 = vmatmul.bf16.gmra.mxu0 %v3225
  %v4961 = vpop.f32.mrf.mxu0
  %v4962 = vadd.f32 %v4918, %v4961
  %v4963 = vpop.f32.mrf.mxu0
  %v4964 = vadd.f32 %v4920, %v4963
  %4965 = vmatmul.bf16.gmra.mxu0 %v3227
  %v4966 = vpop.f32.mrf.mxu0
  %v4967 = vadd.f32 %v4923, %v4966
  %v4968 = vpop.f32.mrf.mxu0
  %v4969 = vadd.f32 %v4925, %v4968
  %4970 = vmatmul.bf16.gmra.mxu0 %v3229
  %v4971 = vpop.f32.mrf.mxu0
  %v4972 = vadd.f32 %v4928, %v4971
  %v4973 = vpop.f32.mrf.mxu0
  %v4974 = vadd.f32 %v4930, %v4973
  %4975 = vmatmul.bf16.gmra.mxu0 %v3231
  %v4976 = vpop.f32.mrf.mxu0
  %v4977 = vadd.f32 %v4933, %v4976
  %v4978 = vpop.f32.mrf.mxu0
  %v4979 = vadd.f32 %v4935, %v4978
  %4980 = vmatmul.bf16.gmra.mxu0 %v3233
  %v4981 = vpop.f32.mrf.mxu0
  %v4982 = vadd.f32 %v4938, %v4981
  %v4983 = vpop.f32.mrf.mxu0
  %v4984 = vadd.f32 %v4940, %v4983
  %4985 = vmatmul.bf16.gmra.mxu0 %v3235
  %v4986 = vpop.f32.mrf.mxu0
  %v4987 = vadd.f32 %v4943, %v4986
  %v4988 = vpop.f32.mrf.mxu0
  %v4989 = vadd.f32 %v4945, %v4988
  %4990 = vdwg.mxu0
  %4991 = vmatpush.bf16.msra.mxu0 %v4717
  %4992 = vmatpush.bf16.msra.mxu0 %v4713
  %4993 = vmatpush.bf16.msra.mxu0 %v4709
  %4994 = vmatpush.bf16.msra.mxu0 %v4705
  %4995 = vmatpush.bf16.msra.mxu0 %v4701
  %4996 = vmatpush.bf16.msra.mxu0 %v4697
  %4997 = vmatpush.bf16.msra.mxu0 %v4693
  %4998 = vmatpush.bf16.msra.mxu0 %v4689
  %4999 = vmatmul.bf16.gmra.mxu0 %v3222
  %v5000 = vpop.f32.mrf.mxu0
  %v5001 = vadd.f32 %v4359, %v5000
  %v5002 = vpop.f32.mrf.mxu0
  %v5003 = vadd.f32 %v4361, %v5002
  %5004 = vmatmul.bf16.gmra.mxu0 %v3224
  %v5005 = vpop.f32.mrf.mxu0
  %v5006 = vadd.f32 %v4364, %v5005
  %v5007 = vpop.f32.mrf.mxu0
  %v5008 = vadd.f32 %v4366, %v5007
  %5009 = vmatmul.bf16.gmra.mxu0 %v3226
  %v5010 = vpop.f32.mrf.mxu0
  %v5011 = vadd.f32 %v4369, %v5010
  %v5012 = vpop.f32.mrf.mxu0
  %v5013 = vadd.f32 %v4371, %v5012
  %5014 = vmatmul.bf16.gmra.mxu0 %v3228
  %v5015 = vpop.f32.mrf.mxu0
  %v5016 = vadd.f32 %v4374, %v5015
  %v5017 = vpop.f32.mrf.mxu0
  %v5018 = vadd.f32 %v4376, %v5017
  %5019 = vmatmul.bf16.gmra.mxu0 %v3230
  %v5020 = vpop.f32.mrf.mxu0
  %v5021 = vadd.f32 %v4379, %v5020
  %v5022 = vpop.f32.mrf.mxu0
  %v5023 = vadd.f32 %v4381, %v5022
  %5024 = vmatmul.bf16.gmra.mxu0 %v3232
  %v5025 = vpop.f32.mrf.mxu0
  %v5026 = vadd.f32 %v4384, %v5025
  %v5027 = vpop.f32.mrf.mxu0
  %v5028 = vadd.f32 %v4386, %v5027
  %5029 = vmatmul.bf16.gmra.mxu0 %v3234
  %v5030 = vpop.f32.mrf.mxu0
  %v5031 = vadd.f32 %v4389, %v5030
  %v5032 = vpop.f32.mrf.mxu0
  %v5033 = vadd.f32 %v4391, %v5032
  %5034 = vdwg.mxu0
  %5035 = vmatpush.bf16.msra.mxu0 %v4749
  %5036 = vmatpush.bf16.msra.mxu0 %v4745
  %5037 = vmatpush.bf16.msra.mxu0 %v4741
  %5038 = vmatpush.bf16.msra.mxu0 %v4737
  %5039 = vmatpush.bf16.msra.mxu0 %v4733
  %5040 = vmatpush.bf16.msra.mxu0 %v4729
  %5041 = vmatpush.bf16.msra.mxu0 %v4725
  %5042 = vmatpush.bf16.msra.mxu0 %v4721
  %5043 = vmatmul.bf16.gmra.mxu0 %v3223
  %v5044 = vpop.f32.mrf.mxu0
  %v5045 = vadd.f32 %v5001, %v5044
  %v5046 = vpop.f32.mrf.mxu0
  %v5047 = vadd.f32 %v5003, %v5046
  %5048 = vmatmul.bf16.gmra.mxu0 %v3225
  %v5049 = vpop.f32.mrf.mxu0
  %v5050 = vadd.f32 %v5006, %v5049
  %v5051 = vpop.f32.mrf.mxu0
  %v5052 = vadd.f32 %v5008, %v5051
  %5053 = vmatmul.bf16.gmra.mxu0 %v3227
  %v5054 = vpop.f32.mrf.mxu0
  %v5055 = vadd.f32 %v5011, %v5054
  %v5056 = vpop.f32.mrf.mxu0
  %v5057 = vadd.f32 %v5013, %v5056
  %5058 = vmatmul.bf16.gmra.mxu0 %v3229
  %v5059 = vpop.f32.mrf.mxu0
  %v5060 = vadd.f32 %v5016, %v5059
  %v5061 = vpop.f32.mrf.mxu0
  %v5062 = vadd.f32 %v5018, %v5061
  %5063 = vmatmul.bf16.gmra.mxu0 %v3231
  %v5064 = vpop.f32.mrf.mxu0
  %v5065 = vadd.f32 %v5021, %v5064
  %v5066 = vpop.f32.mrf.mxu0
  %v5067 = vadd.f32 %v5023, %v5066
  %5068 = vmatmul.bf16.gmra.mxu0 %v3233
  %v5069 = vpop.f32.mrf.mxu0
  %v5070 = vadd.f32 %v5026, %v5069
  %v5071 = vpop.f32.mrf.mxu0
  %v5072 = vadd.f32 %v5028, %v5071
  %5073 = vmatmul.bf16.gmra.mxu0 %v3235
  %v5074 = vpop.f32.mrf.mxu0
  %v5075 = vadd.f32 %v5031, %v5074
  %v5076 = vpop.f32.mrf.mxu0
  %v5077 = vadd.f32 %v5033, %v5076
  %5078 = vdwg.mxu0
  %5079 = vmatpush.bf16.msra.mxu0 %v4718
  %5080 = vmatpush.bf16.msra.mxu0 %v4714
  %5081 = vmatpush.bf16.msra.mxu0 %v4710
  %5082 = vmatpush.bf16.msra.mxu0 %v4706
  %5083 = vmatpush.bf16.msra.mxu0 %v4702
  %5084 = vmatpush.bf16.msra.mxu0 %v4698
  %5085 = vmatpush.bf16.msra.mxu0 %v4694
  %5086 = vmatpush.bf16.msra.mxu0 %v4690
  %5087 = vmatmul.bf16.gmra.mxu0 %v3222
  %v5088 = vpop.f32.mrf.mxu0
  %v5089 = vadd.f32 %v4447, %v5088
  %v5090 = vpop.f32.mrf.mxu0
  %v5091 = vadd.f32 %v4449, %v5090
  %5092 = vmatmul.bf16.gmra.mxu0 %v3224
  %v5093 = vpop.f32.mrf.mxu0
  %v5094 = vadd.f32 %v4452, %v5093
  %v5095 = vpop.f32.mrf.mxu0
  %v5096 = vadd.f32 %v4454, %v5095
  %5097 = vmatmul.bf16.gmra.mxu0 %v3226
  %v5098 = vpop.f32.mrf.mxu0
  %v5099 = vadd.f32 %v4457, %v5098
  %v5100 = vpop.f32.mrf.mxu0
  %v5101 = vadd.f32 %v4459, %v5100
  %5102 = vmatmul.bf16.gmra.mxu0 %v3228
  %v5103 = vpop.f32.mrf.mxu0
  %v5104 = vadd.f32 %v4462, %v5103
  %v5105 = vpop.f32.mrf.mxu0
  %v5106 = vadd.f32 %v4464, %v5105
  %5107 = vmatmul.bf16.gmra.mxu0 %v3230
  %v5108 = vpop.f32.mrf.mxu0
  %v5109 = vadd.f32 %v4467, %v5108
  %v5110 = vpop.f32.mrf.mxu0
  %v5111 = vadd.f32 %v4469, %v5110
  %5112 = vmatmul.bf16.gmra.mxu0 %v3232
  %v5113 = vpop.f32.mrf.mxu0
  %v5114 = vadd.f32 %v4472, %v5113
  %v5115 = vpop.f32.mrf.mxu0
  %v5116 = vadd.f32 %v4474, %v5115
  %5117 = vmatmul.bf16.gmra.mxu0 %v3234
  %v5118 = vpop.f32.mrf.mxu0
  %v5119 = vadd.f32 %v4477, %v5118
  %v5120 = vpop.f32.mrf.mxu0
  %v5121 = vadd.f32 %v4479, %v5120
  %5122 = vdwg.mxu0
  %5123 = vmatpush.bf16.msra.mxu0 %v4750
  %5124 = vmatpush.bf16.msra.mxu0 %v4746
  %5125 = vmatpush.bf16.msra.mxu0 %v4742
  %5126 = vmatpush.bf16.msra.mxu0 %v4738
  %5127 = vmatpush.bf16.msra.mxu0 %v4734
  %5128 = vmatpush.bf16.msra.mxu0 %v4730
  %5129 = vmatpush.bf16.msra.mxu0 %v4726
  %5130 = vmatpush.bf16.msra.mxu0 %v4722
  %5131 = vmatmul.bf16.gmra.mxu0 %v3223
  %v5132 = vpop.f32.mrf.mxu0
  %v5133 = vadd.f32 %v5089, %v5132
  %v5134 = vpop.f32.mrf.mxu0
  %v5135 = vadd.f32 %v5091, %v5134
  %5136 = vmatmul.bf16.gmra.mxu0 %v3225
  %v5137 = vpop.f32.mrf.mxu0
  %v5138 = vadd.f32 %v5094, %v5137
  %v5139 = vpop.f32.mrf.mxu0
  %v5140 = vadd.f32 %v5096, %v5139
  %5141 = vmatmul.bf16.gmra.mxu0 %v3227
  %v5142 = vpop.f32.mrf.mxu0
  %v5143 = vadd.f32 %v5099, %v5142
  %v5144 = vpop.f32.mrf.mxu0
  %v5145 = vadd.f32 %v5101, %v5144
  %5146 = vmatmul.bf16.gmra.mxu0 %v3229
  %v5147 = vpop.f32.mrf.mxu0
  %v5148 = vadd.f32 %v5104, %v5147
  %v5149 = vpop.f32.mrf.mxu0
  %v5150 = vadd.f32 %v5106, %v5149
  %5151 = vmatmul.bf16.gmra.mxu0 %v3231
  %v5152 = vpop.f32.mrf.mxu0
  %v5153 = vadd.f32 %v5109, %v5152
  %v5154 = vpop.f32.mrf.mxu0
  %v5155 = vadd.f32 %v5111, %v5154
  %5156 = vmatmul.bf16.gmra.mxu0 %v3233
  %v5157 = vpop.f32.mrf.mxu0
  %v5158 = vadd.f32 %v5114, %v5157
  %v5159 = vpop.f32.mrf.mxu0
  %v5160 = vadd.f32 %v5116, %v5159
  %5161 = vmatmul.bf16.gmra.mxu0 %v3235
  %v5162 = vpop.f32.mrf.mxu0
  %v5163 = vadd.f32 %v5119, %v5162
  %v5164 = vpop.f32.mrf.mxu0
  %v5165 = vadd.f32 %v5121, %v5164
  %5166 = vdwg.mxu0
  %s5167 = scalar_lea.vmem %s2, 1024
  %v5168 = vld [vmem:[%s5167] sm:$0xff]
  %v5169 = vld [vmem:[%s5167 + $0x8] sm:$0xff]
  %v5170 = vld [vmem:[%s5167 + $0x10] sm:$0xff]
  %v5171 = vld [vmem:[%s5167 + $0x18] sm:$0xff]
  %v5172 = vld [vmem:[%s5167 + $0x20] sm:$0xff]
  %v5173 = vld [vmem:[%s5167 + $0x28] sm:$0xff]
  %v5174 = vld [vmem:[%s5167 + $0x30] sm:$0xff]
  %v5175 = vld [vmem:[%s5167 + $0x38] sm:$0xff]
  %v5176 = vld [vmem:[%s5167 + $0x40] sm:$0xff]
  %v5177 = vld [vmem:[%s5167 + $0x48] sm:$0xff]
  %v5178 = vld [vmem:[%s5167 + $0x50] sm:$0xff]
  %v5179 = vld [vmem:[%s5167 + $0x58] sm:$0xff]
  %v5180 = vld [vmem:[%s5167 + $0x60] sm:$0xff]
  %v5181 = vld [vmem:[%s5167 + $0x68] sm:$0xff]
  %v5182 = vld [vmem:[%s5167 + $0x70] sm:$0xff]
  %v5183 = vld [vmem:[%s5167 + $0x78] sm:$0xff]
  %v5184 = vld [vmem:[%s5167 + $0x80] sm:$0xff]
  %v5185 = vld [vmem:[%s5167 + $0x88] sm:$0xff]
  %v5186 = vld [vmem:[%s5167 + $0x90] sm:$0xff]
  %v5187 = vld [vmem:[%s5167 + $0x98] sm:$0xff]
  %v5188 = vld [vmem:[%s5167 + $0xa0] sm:$0xff]
  %v5189 = vld [vmem:[%s5167 + $0xa8] sm:$0xff]
  %v5190 = vld [vmem:[%s5167 + $0xb0] sm:$0xff]
  %v5191 = vld [vmem:[%s5167 + $0xb8] sm:$0xff]
  %v5192 = vld [vmem:[%s5167 + $0xc0] sm:$0xff]
  %v5193 = vld [vmem:[%s5167 + $0xc8] sm:$0xff]
  %v5194 = vld [vmem:[%s5167 + $0xd0] sm:$0xff]
  %v5195 = vld [vmem:[%s5167 + $0xd8] sm:$0xff]
  %v5196 = vld [vmem:[%s5167 + $0xe0] sm:$0xff]
  %v5197 = vld [vmem:[%s5167 + $0xe8] sm:$0xff]
  %v5198 = vld [vmem:[%s5167 + $0xf0] sm:$0xff]
  %v5199 = vld [vmem:[%s5167 + $0xf8] sm:$0xff]
  %v5200 = vld [vmem:[%s5167 + $0x100] sm:$0xff]
  %v5201 = vld [vmem:[%s5167 + $0x108] sm:$0xff]
  %v5202 = vld [vmem:[%s5167 + $0x110] sm:$0xff]
  %v5203 = vld [vmem:[%s5167 + $0x118] sm:$0xff]
  %v5204 = vld [vmem:[%s5167 + $0x120] sm:$0xff]
  %v5205 = vld [vmem:[%s5167 + $0x128] sm:$0xff]
  %v5206 = vld [vmem:[%s5167 + $0x130] sm:$0xff]
  %v5207 = vld [vmem:[%s5167 + $0x138] sm:$0xff]
  %v5208 = vld [vmem:[%s5167 + $0x140] sm:$0xff]
  %v5209 = vld [vmem:[%s5167 + $0x148] sm:$0xff]
  %v5210 = vld [vmem:[%s5167 + $0x150] sm:$0xff]
  %v5211 = vld [vmem:[%s5167 + $0x158] sm:$0xff]
  %v5212 = vld [vmem:[%s5167 + $0x160] sm:$0xff]
  %v5213 = vld [vmem:[%s5167 + $0x168] sm:$0xff]
  %v5214 = vld [vmem:[%s5167 + $0x170] sm:$0xff]
  %v5215 = vld [vmem:[%s5167 + $0x178] sm:$0xff]
  %v5216 = vld [vmem:[%s5167 + $0x180] sm:$0xff]
  %v5217 = vld [vmem:[%s5167 + $0x188] sm:$0xff]
  %v5218 = vld [vmem:[%s5167 + $0x190] sm:$0xff]
  %v5219 = vld [vmem:[%s5167 + $0x198] sm:$0xff]
  %v5220 = vld [vmem:[%s5167 + $0x1a0] sm:$0xff]
  %v5221 = vld [vmem:[%s5167 + $0x1a8] sm:$0xff]
  %v5222 = vld [vmem:[%s5167 + $0x1b0] sm:$0xff]
  %v5223 = vld [vmem:[%s5167 + $0x1b8] sm:$0xff]
  %v5224 = vld [vmem:[%s5167 + $0x1c0] sm:$0xff]
  %v5225 = vld [vmem:[%s5167 + $0x1c8] sm:$0xff]
  %v5226 = vld [vmem:[%s5167 + $0x1d0] sm:$0xff]
  %v5227 = vld [vmem:[%s5167 + $0x1d8] sm:$0xff]
  %v5228 = vld [vmem:[%s5167 + $0x1e0] sm:$0xff]
  %v5229 = vld [vmem:[%s5167 + $0x1e8] sm:$0xff]
  %v5230 = vld [vmem:[%s5167 + $0x1f0] sm:$0xff]
  %v5231 = vld [vmem:[%s5167 + $0x1f8] sm:$0xff]
  %v5296 = vunpack.c.l.b16 %v5168
  %v5297 = vunpack.c.h.b16 %v5168
  %v5298 = vunpack.c.l.b16 %v5169
  %v5299 = vunpack.c.h.b16 %v5169
  %v5300 = vunpack.c.l.b16 %v5170
  %v5301 = vunpack.c.h.b16 %v5170
  %v5302 = vunpack.c.l.b16 %v5171
  %v5303 = vunpack.c.h.b16 %v5171
  %v5304 = vunpack.c.l.b16 %v5172
  %v5305 = vunpack.c.h.b16 %v5172
  %v5306 = vunpack.c.l.b16 %v5173
  %v5307 = vunpack.c.h.b16 %v5173
  %v5308 = vunpack.c.l.b16 %v5174
  %v5309 = vunpack.c.h.b16 %v5174
  %v5310 = vunpack.c.l.b16 %v5175
  %v5311 = vunpack.c.h.b16 %v5175
  %v5312 = vunpack.c.l.b16 %v5176
  %v5313 = vunpack.c.h.b16 %v5176
  %v5314 = vunpack.c.l.b16 %v5177
  %v5315 = vunpack.c.h.b16 %v5177
  %v5316 = vunpack.c.l.b16 %v5178
  %v5317 = vunpack.c.h.b16 %v5178
  %v5318 = vunpack.c.l.b16 %v5179
  %v5319 = vunpack.c.h.b16 %v5179
  %v5320 = vunpack.c.l.b16 %v5180
  %v5321 = vunpack.c.h.b16 %v5180
  %v5322 = vunpack.c.l.b16 %v5181
  %v5323 = vunpack.c.h.b16 %v5181
  %v5324 = vunpack.c.l.b16 %v5182
  %v5325 = vunpack.c.h.b16 %v5182
  %v5326 = vunpack.c.l.b16 %v5183
  %v5327 = vunpack.c.h.b16 %v5183
  %v5328 = vunpack.c.l.b16 %v5184
  %v5329 = vunpack.c.h.b16 %v5184
  %v5330 = vunpack.c.l.b16 %v5185
  %v5331 = vunpack.c.h.b16 %v5185
  %v5332 = vunpack.c.l.b16 %v5186
  %v5333 = vunpack.c.h.b16 %v5186
  %v5334 = vunpack.c.l.b16 %v5187
  %v5335 = vunpack.c.h.b16 %v5187
  %v5336 = vunpack.c.l.b16 %v5188
  %v5337 = vunpack.c.h.b16 %v5188
  %v5338 = vunpack.c.l.b16 %v5189
  %v5339 = vunpack.c.h.b16 %v5189
  %v5340 = vunpack.c.l.b16 %v5190
  %v5341 = vunpack.c.h.b16 %v5190
  %v5342 = vunpack.c.l.b16 %v5191
  %v5343 = vunpack.c.h.b16 %v5191
  %v5344 = vunpack.c.l.b16 %v5192
  %v5345 = vunpack.c.h.b16 %v5192
  %v5346 = vunpack.c.l.b16 %v5193
  %v5347 = vunpack.c.h.b16 %v5193
  %v5348 = vunpack.c.l.b16 %v5194
  %v5349 = vunpack.c.h.b16 %v5194
  %v5350 = vunpack.c.l.b16 %v5195
  %v5351 = vunpack.c.h.b16 %v5195
  %v5352 = vunpack.c.l.b16 %v5196
  %v5353 = vunpack.c.h.b16 %v5196
  %v5354 = vunpack.c.l.b16 %v5197
  %v5355 = vunpack.c.h.b16 %v5197
  %v5356 = vunpack.c.l.b16 %v5198
  %v5357 = vunpack.c.h.b16 %v5198
  %v5358 = vunpack.c.l.b16 %v5199
  %v5359 = vunpack.c.h.b16 %v5199
  %v5360 = vunpack.c.l.b16 %v5200
  %v5361 = vunpack.c.h.b16 %v5200
  %v5362 = vunpack.c.l.b16 %v5201
  %v5363 = vunpack.c.h.b16 %v5201
  %v5364 = vunpack.c.l.b16 %v5202
  %v5365 = vunpack.c.h.b16 %v5202
  %v5366 = vunpack.c.l.b16 %v5203
  %v5367 = vunpack.c.h.b16 %v5203
  %v5368 = vunpack.c.l.b16 %v5204
  %v5369 = vunpack.c.h.b16 %v5204
  %v5370 = vunpack.c.l.b16 %v5205
  %v5371 = vunpack.c.h.b16 %v5205
  %v5372 = vunpack.c.l.b16 %v5206
  %v5373 = vunpack.c.h.b16 %v5206
  %v5374 = vunpack.c.l.b16 %v5207
  %v5375 = vunpack.c.h.b16 %v5207
  %v5376 = vunpack.c.l.b16 %v5208
  %v5377 = vunpack.c.h.b16 %v5208
  %v5378 = vunpack.c.l.b16 %v5209
  %v5379 = vunpack.c.h.b16 %v5209
  %v5380 = vunpack.c.l.b16 %v5210
  %v5381 = vunpack.c.h.b16 %v5210
  %v5382 = vunpack.c.l.b16 %v5211
  %v5383 = vunpack.c.h.b16 %v5211
  %v5384 = vunpack.c.l.b16 %v5212
  %v5385 = vunpack.c.h.b16 %v5212
  %v5386 = vunpack.c.l.b16 %v5213
  %v5387 = vunpack.c.h.b16 %v5213
  %v5388 = vunpack.c.l.b16 %v5214
  %v5389 = vunpack.c.h.b16 %v5214
  %v5390 = vunpack.c.l.b16 %v5215
  %v5391 = vunpack.c.h.b16 %v5215
  %v5392 = vunpack.c.l.b16 %v5216
  %v5393 = vunpack.c.h.b16 %v5216
  %v5394 = vunpack.c.l.b16 %v5217
  %v5395 = vunpack.c.h.b16 %v5217
  %v5396 = vunpack.c.l.b16 %v5218
  %v5397 = vunpack.c.h.b16 %v5218
  %v5398 = vunpack.c.l.b16 %v5219
  %v5399 = vunpack.c.h.b16 %v5219
  %v5400 = vunpack.c.l.b16 %v5220
  %v5401 = vunpack.c.h.b16 %v5220
  %v5402 = vunpack.c.l.b16 %v5221
  %v5403 = vunpack.c.h.b16 %v5221
  %v5404 = vunpack.c.l.b16 %v5222
  %v5405 = vunpack.c.h.b16 %v5222
  %v5406 = vunpack.c.l.b16 %v5223
  %v5407 = vunpack.c.h.b16 %v5223
  %v5408 = vunpack.c.l.b16 %v5224
  %v5409 = vunpack.c.h.b16 %v5224
  %v5410 = vunpack.c.l.b16 %v5225
  %v5411 = vunpack.c.h.b16 %v5225
  %v5412 = vunpack.c.l.b16 %v5226
  %v5413 = vunpack.c.h.b16 %v5226
  %v5414 = vunpack.c.l.b16 %v5227
  %v5415 = vunpack.c.h.b16 %v5227
  %v5416 = vunpack.c.l.b16 %v5228
  %v5417 = vunpack.c.h.b16 %v5228
  %v5418 = vunpack.c.l.b16 %v5229
  %v5419 = vunpack.c.h.b16 %v5229
  %v5420 = vunpack.c.l.b16 %v5230
  %v5421 = vunpack.c.h.b16 %v5230
  %v5422 = vunpack.c.l.b16 %v5231
  %v5423 = vunpack.c.h.b16 %v5231
  %v5424 = vpack.c.b16 %v5300, %v5296
  %v5425 = vpack.c.b16 %v5301, %v5297
  %v5426 = vpack.c.b16 %v5302, %v5298
  %v5427 = vpack.c.b16 %v5303, %v5299
  %v5428 = vpack.c.b16 %v5308, %v5304
  %v5429 = vpack.c.b16 %v5309, %v5305
  %v5430 = vpack.c.b16 %v5310, %v5306
  %v5431 = vpack.c.b16 %v5311, %v5307
  %v5432 = vpack.c.b16 %v5316, %v5312
  %v5433 = vpack.c.b16 %v5317, %v5313
  %v5434 = vpack.c.b16 %v5318, %v5314
  %v5435 = vpack.c.b16 %v5319, %v5315
  %v5436 = vpack.c.b16 %v5324, %v5320
  %v5437 = vpack.c.b16 %v5325, %v5321
  %v5438 = vpack.c.b16 %v5326, %v5322
  %v5439 = vpack.c.b16 %v5327, %v5323
  %v5440 = vpack.c.b16 %v5332, %v5328
  %v5441 = vpack.c.b16 %v5333, %v5329
  %v5442 = vpack.c.b16 %v5334, %v5330
  %v5443 = vpack.c.b16 %v5335, %v5331
  %v5444 = vpack.c.b16 %v5340, %v5336
  %v5445 = vpack.c.b16 %v5341, %v5337
  %v5446 = vpack.c.b16 %v5342, %v5338
  %v5447 = vpack.c.b16 %v5343, %v5339
  %v5448 = vpack.c.b16 %v5348, %v5344
  %v5449 = vpack.c.b16 %v5349, %v5345
  %v5450 = vpack.c.b16 %v5350, %v5346
  %v5451 = vpack.c.b16 %v5351, %v5347
  %v5452 = vpack.c.b16 %v5356, %v5352
  %v5453 = vpack.c.b16 %v5357, %v5353
  %v5454 = vpack.c.b16 %v5358, %v5354
  %v5455 = vpack.c.b16 %v5359, %v5355
  %v5456 = vpack.c.b16 %v5364, %v5360
  %v5457 = vpack.c.b16 %v5365, %v5361
  %v5458 = vpack.c.b16 %v5366, %v5362
  %v5459 = vpack.c.b16 %v5367, %v5363
  %v5460 = vpack.c.b16 %v5372, %v5368
  %v5461 = vpack.c.b16 %v5373, %v5369
  %v5462 = vpack.c.b16 %v5374, %v5370
  %v5463 = vpack.c.b16 %v5375, %v5371
  %v5464 = vpack.c.b16 %v5380, %v5376
  %v5465 = vpack.c.b16 %v5381, %v5377
  %v5466 = vpack.c.b16 %v5382, %v5378
  %v5467 = vpack.c.b16 %v5383, %v5379
  %v5468 = vpack.c.b16 %v5388, %v5384
  %v5469 = vpack.c.b16 %v5389, %v5385
  %v5470 = vpack.c.b16 %v5390, %v5386
  %v5471 = vpack.c.b16 %v5391, %v5387
  %v5472 = vpack.c.b16 %v5396, %v5392
  %v5473 = vpack.c.b16 %v5397, %v5393
  %v5474 = vpack.c.b16 %v5398, %v5394
  %v5475 = vpack.c.b16 %v5399, %v5395
  %v5476 = vpack.c.b16 %v5404, %v5400
  %v5477 = vpack.c.b16 %v5405, %v5401
  %v5478 = vpack.c.b16 %v5406, %v5402
  %v5479 = vpack.c.b16 %v5407, %v5403
  %v5480 = vpack.c.b16 %v5412, %v5408
  %v5481 = vpack.c.b16 %v5413, %v5409
  %v5482 = vpack.c.b16 %v5414, %v5410
  %v5483 = vpack.c.b16 %v5415, %v5411
  %v5484 = vpack.c.b16 %v5420, %v5416
  %v5485 = vpack.c.b16 %v5421, %v5417
  %v5486 = vpack.c.b16 %v5422, %v5418
  %v5487 = vpack.c.b16 %v5423, %v5419
  %5552 = vmatpush.bf16.msra.mxu0 %v5452
  %5553 = vmatpush.bf16.msra.mxu0 %v5448
  %5554 = vmatpush.bf16.msra.mxu0 %v5444
  %5555 = vmatpush.bf16.msra.mxu0 %v5440
  %5556 = vmatpush.bf16.msra.mxu0 %v5436
  %5557 = vmatpush.bf16.msra.mxu0 %v5432
  %5558 = vmatpush.bf16.msra.mxu0 %v5428
  %5559 = vmatpush.bf16.msra.mxu0 %v5424
  %5560 = vmatmul.bf16.gmra.mxu0 %v3247
  %v5561 = vpop.f32.mrf.mxu0
  %v5562 = vadd.f32 0.0, %v5561
  %v5563 = vpop.f32.mrf.mxu0
  %v5564 = vadd.f32 0.0, %v5563
  %5565 = vmatmul.bf16.gmra.mxu0 %v3267
  %v5566 = vpop.f32.mrf.mxu0
  %v5567 = vadd.f32 0.0, %v5566
  %v5568 = vpop.f32.mrf.mxu0
  %v5569 = vadd.f32 0.0, %v5568
  %5570 = vmatmul.bf16.gmra.mxu0 %v3283
  %v5571 = vpop.f32.mrf.mxu0
  %v5572 = vadd.f32 0.0, %v5571
  %v5573 = vpop.f32.mrf.mxu0
  %v5574 = vadd.f32 0.0, %v5573
  %5575 = vmatmul.bf16.gmra.mxu0 %v3299
  %v5576 = vpop.f32.mrf.mxu0
  %v5577 = vadd.f32 0.0, %v5576
  %v5578 = vpop.f32.mrf.mxu0
  %v5579 = vadd.f32 0.0, %v5578
  %5580 = vmatmul.bf16.gmra.mxu0 %v3315
  %v5581 = vpop.f32.mrf.mxu0
  %v5582 = vadd.f32 0.0, %v5581
  %v5583 = vpop.f32.mrf.mxu0
  %v5584 = vadd.f32 0.0, %v5583
  %5585 = vmatmul.bf16.gmra.mxu0 %v3331
  %v5586 = vpop.f32.mrf.mxu0
  %v5587 = vadd.f32 0.0, %v5586
  %v5588 = vpop.f32.mrf.mxu0
  %v5589 = vadd.f32 0.0, %v5588
  %5590 = vmatmul.bf16.gmra.mxu0 %v3372
  %v5591 = vpop.f32.mrf.mxu0
  %v5592 = vadd.f32 0.0, %v5591
  %v5593 = vpop.f32.mrf.mxu0
  %v5594 = vadd.f32 0.0, %v5593
  %5595 = vdwg.mxu0
  %5596 = vmatpush.bf16.msra.mxu0 %v5484
  %5597 = vmatpush.bf16.msra.mxu0 %v5480
  %5598 = vmatpush.bf16.msra.mxu0 %v5476
  %5599 = vmatpush.bf16.msra.mxu0 %v5472
  %5600 = vmatpush.bf16.msra.mxu0 %v5468
  %5601 = vmatpush.bf16.msra.mxu0 %v5464
  %5602 = vmatpush.bf16.msra.mxu0 %v5460
  %5603 = vmatpush.bf16.msra.mxu0 %v5456
  %5604 = vmatmul.bf16.gmra.mxu0 %v3259
  %v5605 = vpop.f32.mrf.mxu0
  %v5606 = vadd.f32 %v5562, %v5605
  %v5607 = vpop.f32.mrf.mxu0
  %v5608 = vadd.f32 %v5564, %v5607
  %5609 = vmatmul.bf16.gmra.mxu0 %v3275
  %v5610 = vpop.f32.mrf.mxu0
  %v5611 = vadd.f32 %v5567, %v5610
  %v5612 = vpop.f32.mrf.mxu0
  %v5613 = vadd.f32 %v5569, %v5612
  %5614 = vmatmul.bf16.gmra.mxu0 %v3291
  %v5615 = vpop.f32.mrf.mxu0
  %v5616 = vadd.f32 %v5572, %v5615
  %v5617 = vpop.f32.mrf.mxu0
  %v5618 = vadd.f32 %v5574, %v5617
  %5619 = vmatmul.bf16.gmra.mxu0 %v3307
  %v5620 = vpop.f32.mrf.mxu0
  %v5621 = vadd.f32 %v5577, %v5620
  %v5622 = vpop.f32.mrf.mxu0
  %v5623 = vadd.f32 %v5579, %v5622
  %5624 = vmatmul.bf16.gmra.mxu0 %v3323
  %v5625 = vpop.f32.mrf.mxu0
  %v5626 = vadd.f32 %v5582, %v5625
  %v5627 = vpop.f32.mrf.mxu0
  %v5628 = vadd.f32 %v5584, %v5627
  %5629 = vmatmul.bf16.gmra.mxu0 %v3339
  %v5630 = vpop.f32.mrf.mxu0
  %v5631 = vadd.f32 %v5587, %v5630
  %v5632 = vpop.f32.mrf.mxu0
  %v5633 = vadd.f32 %v5589, %v5632
  %5634 = vmatmul.bf16.gmra.mxu0 %v3373
  %v5635 = vpop.f32.mrf.mxu0
  %v5636 = vadd.f32 %v5592, %v5635
  %v5637 = vpop.f32.mrf.mxu0
  %v5638 = vadd.f32 %v5594, %v5637
  %5639 = vdwg.mxu0
  %5640 = vmatpush.bf16.msra.mxu0 %v5453
  %5641 = vmatpush.bf16.msra.mxu0 %v5449
  %5642 = vmatpush.bf16.msra.mxu0 %v5445
  %5643 = vmatpush.bf16.msra.mxu0 %v5441
  %5644 = vmatpush.bf16.msra.mxu0 %v5437
  %5645 = vmatpush.bf16.msra.mxu0 %v5433
  %5646 = vmatpush.bf16.msra.mxu0 %v5429
  %5647 = vmatpush.bf16.msra.mxu0 %v5425
  %5648 = vmatmul.bf16.gmra.mxu0 %v3247
  %v5649 = vpop.f32.mrf.mxu0
  %v5650 = vadd.f32 0.0, %v5649
  %v5651 = vpop.f32.mrf.mxu0
  %v5652 = vadd.f32 0.0, %v5651
  %5653 = vmatmul.bf16.gmra.mxu0 %v3267
  %v5654 = vpop.f32.mrf.mxu0
  %v5655 = vadd.f32 0.0, %v5654
  %v5656 = vpop.f32.mrf.mxu0
  %v5657 = vadd.f32 0.0, %v5656
  %5658 = vmatmul.bf16.gmra.mxu0 %v3283
  %v5659 = vpop.f32.mrf.mxu0
  %v5660 = vadd.f32 0.0, %v5659
  %v5661 = vpop.f32.mrf.mxu0
  %v5662 = vadd.f32 0.0, %v5661
  %5663 = vmatmul.bf16.gmra.mxu0 %v3299
  %v5664 = vpop.f32.mrf.mxu0
  %v5665 = vadd.f32 0.0, %v5664
  %v5666 = vpop.f32.mrf.mxu0
  %v5667 = vadd.f32 0.0, %v5666
  %5668 = vmatmul.bf16.gmra.mxu0 %v3315
  %v5669 = vpop.f32.mrf.mxu0
  %v5670 = vadd.f32 0.0, %v5669
  %v5671 = vpop.f32.mrf.mxu0
  %v5672 = vadd.f32 0.0, %v5671
  %5673 = vmatmul.bf16.gmra.mxu0 %v3331
  %v5674 = vpop.f32.mrf.mxu0
  %v5675 = vadd.f32 0.0, %v5674
  %v5676 = vpop.f32.mrf.mxu0
  %v5677 = vadd.f32 0.0, %v5676
  %5678 = vmatmul.bf16.gmra.mxu0 %v3372
  %v5679 = vpop.f32.mrf.mxu0
  %v5680 = vadd.f32 0.0, %v5679
  %v5681 = vpop.f32.mrf.mxu0
  %v5682 = vadd.f32 0.0, %v5681
  %5683 = vdwg.mxu0
  %5684 = vmatpush.bf16.msra.mxu0 %v5485
  %5685 = vmatpush.bf16.msra.mxu0 %v5481
  %5686 = vmatpush.bf16.msra.mxu0 %v5477
  %5687 = vmatpush.bf16.msra.mxu0 %v5473
  %5688 = vmatpush.bf16.msra.mxu0 %v5469
  %5689 = vmatpush.bf16.msra.mxu0 %v5465
  %5690 = vmatpush.bf16.msra.mxu0 %v5461
  %5691 = vmatpush.bf16.msra.mxu0 %v5457
  %5692 = vmatmul.bf16.gmra.mxu0 %v3259
  %v5693 = vpop.f32.mrf.mxu0
  %v5694 = vadd.f32 %v5650, %v5693
  %v5695 = vpop.f32.mrf.mxu0
  %v5696 = vadd.f32 %v5652, %v5695
  %5697 = vmatmul.bf16.gmra.mxu0 %v3275
  %v5698 = vpop.f32.mrf.mxu0
  %v5699 = vadd.f32 %v5655, %v5698
  %v5700 = vpop.f32.mrf.mxu0
  %v5701 = vadd.f32 %v5657, %v5700
  %5702 = vmatmul.bf16.gmra.mxu0 %v3291
  %v5703 = vpop.f32.mrf.mxu0
  %v5704 = vadd.f32 %v5660, %v5703
  %v5705 = vpop.f32.mrf.mxu0
  %v5706 = vadd.f32 %v5662, %v5705
  %5707 = vmatmul.bf16.gmra.mxu0 %v3307
  %v5708 = vpop.f32.mrf.mxu0
  %v5709 = vadd.f32 %v5665, %v5708
  %v5710 = vpop.f32.mrf.mxu0
  %v5711 = vadd.f32 %v5667, %v5710
  %5712 = vmatmul.bf16.gmra.mxu0 %v3323
  %v5713 = vpop.f32.mrf.mxu0
  %v5714 = vadd.f32 %v5670, %v5713
  %v5715 = vpop.f32.mrf.mxu0
  %v5716 = vadd.f32 %v5672, %v5715
  %5717 = vmatmul.bf16.gmra.mxu0 %v3339
  %v5718 = vpop.f32.mrf.mxu0
  %v5719 = vadd.f32 %v5675, %v5718
  %v5720 = vpop.f32.mrf.mxu0
  %v5721 = vadd.f32 %v5677, %v5720
  %5722 = vmatmul.bf16.gmra.mxu0 %v3373
  %v5723 = vpop.f32.mrf.mxu0
  %v5724 = vadd.f32 %v5680, %v5723
  %v5725 = vpop.f32.mrf.mxu0
  %v5726 = vadd.f32 %v5682, %v5725
  %5727 = vdwg.mxu0
  %5728 = vmatpush.bf16.msra.mxu0 %v5454
  %5729 = vmatpush.bf16.msra.mxu0 %v5450
  %5730 = vmatpush.bf16.msra.mxu0 %v5446
  %5731 = vmatpush.bf16.msra.mxu0 %v5442
  %5732 = vmatpush.bf16.msra.mxu0 %v5438
  %5733 = vmatpush.bf16.msra.mxu0 %v5434
  %5734 = vmatpush.bf16.msra.mxu0 %v5430
  %5735 = vmatpush.bf16.msra.mxu0 %v5426
  %5736 = vmatmul.bf16.gmra.mxu0 %v3247
  %v5737 = vpop.f32.mrf.mxu0
  %v5738 = vadd.f32 0.0, %v5737
  %v5739 = vpop.f32.mrf.mxu0
  %v5740 = vadd.f32 0.0, %v5739
  %5741 = vmatmul.bf16.gmra.mxu0 %v3267
  %v5742 = vpop.f32.mrf.mxu0
  %v5743 = vadd.f32 0.0, %v5742
  %v5744 = vpop.f32.mrf.mxu0
  %v5745 = vadd.f32 0.0, %v5744
  %5746 = vmatmul.bf16.gmra.mxu0 %v3283
  %v5747 = vpop.f32.mrf.mxu0
  %v5748 = vadd.f32 0.0, %v5747
  %v5749 = vpop.f32.mrf.mxu0
  %v5750 = vadd.f32 0.0, %v5749
  %5751 = vmatmul.bf16.gmra.mxu0 %v3299
  %v5752 = vpop.f32.mrf.mxu0
  %v5753 = vadd.f32 0.0, %v5752
  %v5754 = vpop.f32.mrf.mxu0
  %v5755 = vadd.f32 0.0, %v5754
  %5756 = vmatmul.bf16.gmra.mxu0 %v3315
  %v5757 = vpop.f32.mrf.mxu0
  %v5758 = vadd.f32 0.0, %v5757
  %v5759 = vpop.f32.mrf.mxu0
  %v5760 = vadd.f32 0.0, %v5759
  %5761 = vmatmul.bf16.gmra.mxu0 %v3331
  %v5762 = vpop.f32.mrf.mxu0
  %v5763 = vadd.f32 0.0, %v5762
  %v5764 = vpop.f32.mrf.mxu0
  %v5765 = vadd.f32 0.0, %v5764
  %5766 = vmatmul.bf16.gmra.mxu0 %v3372
  %v5767 = vpop.f32.mrf.mxu0
  %v5768 = vadd.f32 0.0, %v5767
  %v5769 = vpop.f32.mrf.mxu0
  %v5770 = vadd.f32 0.0, %v5769
  %5771 = vdwg.mxu0
  %5772 = vmatpush.bf16.msra.mxu0 %v5486
  %5773 = vmatpush.bf16.msra.mxu0 %v5482
  %5774 = vmatpush.bf16.msra.mxu0 %v5478
  %5775 = vmatpush.bf16.msra.mxu0 %v5474
  %5776 = vmatpush.bf16.msra.mxu0 %v5470
  %5777 = vmatpush.bf16.msra.mxu0 %v5466
  %5778 = vmatpush.bf16.msra.mxu0 %v5462
  %5779 = vmatpush.bf16.msra.mxu0 %v5458
  %5780 = vmatmul.bf16.gmra.mxu0 %v3259
  %v5781 = vpop.f32.mrf.mxu0
  %v5782 = vadd.f32 %v5738, %v5781
  %v5783 = vpop.f32.mrf.mxu0
  %v5784 = vadd.f32 %v5740, %v5783
  %5785 = vmatmul.bf16.gmra.mxu0 %v3275
  %v5786 = vpop.f32.mrf.mxu0
  %v5787 = vadd.f32 %v5743, %v5786
  %v5788 = vpop.f32.mrf.mxu0
  %v5789 = vadd.f32 %v5745, %v5788
  %5790 = vmatmul.bf16.gmra.mxu0 %v3291
  %v5791 = vpop.f32.mrf.mxu0
  %v5792 = vadd.f32 %v5748, %v5791
  %v5793 = vpop.f32.mrf.mxu0
  %v5794 = vadd.f32 %v5750, %v5793
  %5795 = vmatmul.bf16.gmra.mxu0 %v3307
  %v5796 = vpop.f32.mrf.mxu0
  %v5797 = vadd.f32 %v5753, %v5796
  %v5798 = vpop.f32.mrf.mxu0
  %v5799 = vadd.f32 %v5755, %v5798
  %5800 = vmatmul.bf16.gmra.mxu0 %v3323
  %v5801 = vpop.f32.mrf.mxu0
  %v5802 = vadd.f32 %v5758, %v5801
  %v5803 = vpop.f32.mrf.mxu0
  %v5804 = vadd.f32 %v5760, %v5803
  %5805 = vmatmul.bf16.gmra.mxu0 %v3339
  %v5806 = vpop.f32.mrf.mxu0
  %v5807 = vadd.f32 %v5763, %v5806
  %v5808 = vpop.f32.mrf.mxu0
  %v5809 = vadd.f32 %v5765, %v5808
  %5810 = vmatmul.bf16.gmra.mxu0 %v3373
  %v5811 = vpop.f32.mrf.mxu0
  %v5812 = vadd.f32 %v5768, %v5811
  %v5813 = vpop.f32.mrf.mxu0
  %v5814 = vadd.f32 %v5770, %v5813
  %5815 = vdwg.mxu0
  %5816 = vmatpush.bf16.msra.mxu0 %v5455
  %5817 = vmatpush.bf16.msra.mxu0 %v5451
  %5818 = vmatpush.bf16.msra.mxu0 %v5447
  %5819 = vmatpush.bf16.msra.mxu0 %v5443
  %5820 = vmatpush.bf16.msra.mxu0 %v5439
  %5821 = vmatpush.bf16.msra.mxu0 %v5435
  %5822 = vmatpush.bf16.msra.mxu0 %v5431
  %5823 = vmatpush.bf16.msra.mxu0 %v5427
  %5824 = vmatmul.bf16.gmra.mxu0 %v3247
  %v5825 = vpop.f32.mrf.mxu0
  %v5826 = vadd.f32 0.0, %v5825
  %v5827 = vpop.f32.mrf.mxu0
  %v5828 = vadd.f32 0.0, %v5827
  %5829 = vmatmul.bf16.gmra.mxu0 %v3267
  %v5830 = vpop.f32.mrf.mxu0
  %v5831 = vadd.f32 0.0, %v5830
  %v5832 = vpop.f32.mrf.mxu0
  %v5833 = vadd.f32 0.0, %v5832
  %5834 = vmatmul.bf16.gmra.mxu0 %v3283
  %v5835 = vpop.f32.mrf.mxu0
  %v5836 = vadd.f32 0.0, %v5835
  %v5837 = vpop.f32.mrf.mxu0
  %v5838 = vadd.f32 0.0, %v5837
  %5839 = vmatmul.bf16.gmra.mxu0 %v3299
  %v5840 = vpop.f32.mrf.mxu0
  %v5841 = vadd.f32 0.0, %v5840
  %v5842 = vpop.f32.mrf.mxu0
  %v5843 = vadd.f32 0.0, %v5842
  %5844 = vmatmul.bf16.gmra.mxu0 %v3315
  %v5845 = vpop.f32.mrf.mxu0
  %v5846 = vadd.f32 0.0, %v5845
  %v5847 = vpop.f32.mrf.mxu0
  %v5848 = vadd.f32 0.0, %v5847
  %5849 = vmatmul.bf16.gmra.mxu0 %v3331
  %v5850 = vpop.f32.mrf.mxu0
  %v5851 = vadd.f32 0.0, %v5850
  %v5852 = vpop.f32.mrf.mxu0
  %v5853 = vadd.f32 0.0, %v5852
  %5854 = vmatmul.bf16.gmra.mxu0 %v3372
  %v5855 = vpop.f32.mrf.mxu0
  %v5856 = vadd.f32 0.0, %v5855
  %v5857 = vpop.f32.mrf.mxu0
  %v5858 = vadd.f32 0.0, %v5857
  %5859 = vdwg.mxu0
  %5860 = vmatpush.bf16.msra.mxu0 %v5487
  %5861 = vmatpush.bf16.msra.mxu0 %v5483
  %5862 = vmatpush.bf16.msra.mxu0 %v5479
  %5863 = vmatpush.bf16.msra.mxu0 %v5475
  %5864 = vmatpush.bf16.msra.mxu0 %v5471
  %5865 = vmatpush.bf16.msra.mxu0 %v5467
  %5866 = vmatpush.bf16.msra.mxu0 %v5463
  %5867 = vmatpush.bf16.msra.mxu0 %v5459
  %5868 = vmatmul.bf16.gmra.mxu0 %v3259
  %v5869 = vpop.f32.mrf.mxu0
  %v5870 = vadd.f32 %v5826, %v5869
  %v5871 = vpop.f32.mrf.mxu0
  %v5872 = vadd.f32 %v5828, %v5871
  %5873 = vmatmul.bf16.gmra.mxu0 %v3275
  %v5874 = vpop.f32.mrf.mxu0
  %v5875 = vadd.f32 %v5831, %v5874
  %v5876 = vpop.f32.mrf.mxu0
  %v5877 = vadd.f32 %v5833, %v5876
  %5878 = vmatmul.bf16.gmra.mxu0 %v3291
  %v5879 = vpop.f32.mrf.mxu0
  %v5880 = vadd.f32 %v5836, %v5879
  %v5881 = vpop.f32.mrf.mxu0
  %v5882 = vadd.f32 %v5838, %v5881
  %5883 = vmatmul.bf16.gmra.mxu0 %v3307
  %v5884 = vpop.f32.mrf.mxu0
  %v5885 = vadd.f32 %v5841, %v5884
  %v5886 = vpop.f32.mrf.mxu0
  %v5887 = vadd.f32 %v5843, %v5886
  %5888 = vmatmul.bf16.gmra.mxu0 %v3323
  %v5889 = vpop.f32.mrf.mxu0
  %v5890 = vadd.f32 %v5846, %v5889
  %v5891 = vpop.f32.mrf.mxu0
  %v5892 = vadd.f32 %v5848, %v5891
  %5893 = vmatmul.bf16.gmra.mxu0 %v3339
  %v5894 = vpop.f32.mrf.mxu0
  %v5895 = vadd.f32 %v5851, %v5894
  %v5896 = vpop.f32.mrf.mxu0
  %v5897 = vadd.f32 %v5853, %v5896
  %5898 = vmatmul.bf16.gmra.mxu0 %v3373
  %v5899 = vpop.f32.mrf.mxu0
  %v5900 = vadd.f32 %v5856, %v5899
  %v5901 = vpop.f32.mrf.mxu0
  %v5902 = vadd.f32 %v5858, %v5901
  %5903 = vdwg.mxu0
  %v5904 = vadd.f32 %v4869, %v5606
  %v5905 = vadd.f32 %v4957, %v5694
  %v5906 = vadd.f32 %v5045, %v5782
  %v5907 = vadd.f32 %v5133, %v5870
  %v5908 = vadd.f32 %v4871, %v5608
  %v5909 = vadd.f32 %v4959, %v5696
  %v5910 = vadd.f32 %v5047, %v5784
  %v5911 = vadd.f32 %v5135, %v5872
  %v5912 = vadd.f32 %v4874, %v5611
  %v5913 = vadd.f32 %v4962, %v5699
  %v5914 = vadd.f32 %v5050, %v5787
  %v5915 = vadd.f32 %v5138, %v5875
  %v5916 = vadd.f32 %v4876, %v5613
  %v5917 = vadd.f32 %v4964, %v5701
  %v5918 = vadd.f32 %v5052, %v5789
  %v5919 = vadd.f32 %v5140, %v5877
  %v5920 = vadd.f32 %v4879, %v5616
  %v5921 = vadd.f32 %v4967, %v5704
  %v5922 = vadd.f32 %v5055, %v5792
  %v5923 = vadd.f32 %v5143, %v5880
  %v5924 = vadd.f32 %v4881, %v5618
  %v5925 = vadd.f32 %v4969, %v5706
  %v5926 = vadd.f32 %v5057, %v5794
  %v5927 = vadd.f32 %v5145, %v5882
  %v5928 = vadd.f32 %v4884, %v5621
  %v5929 = vadd.f32 %v4972, %v5709
  %v5930 = vadd.f32 %v5060, %v5797
  %v5931 = vadd.f32 %v5148, %v5885
  %v5932 = vadd.f32 %v4886, %v5623
  %v5933 = vadd.f32 %v4974, %v5711
  %v5934 = vadd.f32 %v5062, %v5799
  %v5935 = vadd.f32 %v5150, %v5887
  %v5936 = vadd.f32 %v4889, %v5626
  %v5937 = vadd.f32 %v4977, %v5714
  %v5938 = vadd.f32 %v5065, %v5802
  %v5939 = vadd.f32 %v5153, %v5890
  %v5940 = vadd.f32 %v4891, %v5628
  %v5941 = vadd.f32 %v4979, %v5716
  %v5942 = vadd.f32 %v5067, %v5804
  %v5943 = vadd.f32 %v5155, %v5892
  %v5944 = vadd.f32 %v4894, %v5631
  %v5945 = vadd.f32 %v4982, %v5719
  %v5946 = vadd.f32 %v5070, %v5807
  %v5947 = vadd.f32 %v5158, %v5895
  %v5948 = vadd.f32 %v4896, %v5633
  %v5949 = vadd.f32 %v4984, %v5721
  %v5950 = vadd.f32 %v5072, %v5809
  %v5951 = vadd.f32 %v5160, %v5897
  %v5952 = vadd.f32 %v4899, %v5636
  %v5953 = vadd.f32 %v4987, %v5724
  %v5954 = vadd.f32 %v5075, %v5812
  %v5955 = vadd.f32 %v5163, %v5900
  %v5956 = vadd.f32 %v4901, %v5638
  %v5957 = vadd.f32 %v4989, %v5726
  %v5958 = vadd.f32 %v5077, %v5814
  %v5959 = vadd.f32 %v5165, %v5902
  %s5960 = scalar_lea.vmem %s2, 1536
  %v5961 = vld [vmem:[%s5960] sm:$0xff]
  %v5962 = vld [vmem:[%s5960 + $0x8] sm:$0xff]
  %v5963 = vld [vmem:[%s5960 + $0x10] sm:$0xff]
  %v5964 = vld [vmem:[%s5960 + $0x18] sm:$0xff]
  %v5965 = vld [vmem:[%s5960 + $0x20] sm:$0xff]
  %v5966 = vld [vmem:[%s5960 + $0x28] sm:$0xff]
  %v5967 = vld [vmem:[%s5960 + $0x30] sm:$0xff]
  %v5968 = vld [vmem:[%s5960 + $0x38] sm:$0xff]
  %v5969 = vld [vmem:[%s5960 + $0x40] sm:$0xff]
  %v5970 = vld [vmem:[%s5960 + $0x48] sm:$0xff]
  %v5971 = vld [vmem:[%s5960 + $0x50] sm:$0xff]
  %v5972 = vld [vmem:[%s5960 + $0x58] sm:$0xff]
  %v5973 = vld [vmem:[%s5960 + $0x60] sm:$0xff]
  %v5974 = vld [vmem:[%s5960 + $0x68] sm:$0xff]
  %v5975 = vld [vmem:[%s5960 + $0x70] sm:$0xff]
  %v5976 = vld [vmem:[%s5960 + $0x78] sm:$0xff]
  %v5977 = vld [vmem:[%s5960 + $0x80] sm:$0xff]
  %v5978 = vld [vmem:[%s5960 + $0x88] sm:$0xff]
  %v5979 = vld [vmem:[%s5960 + $0x90] sm:$0xff]
  %v5980 = vld [vmem:[%s5960 + $0x98] sm:$0xff]
  %v5981 = vld [vmem:[%s5960 + $0xa0] sm:$0xff]
  %v5982 = vld [vmem:[%s5960 + $0xa8] sm:$0xff]
  %v5983 = vld [vmem:[%s5960 + $0xb0] sm:$0xff]
  %v5984 = vld [vmem:[%s5960 + $0xb8] sm:$0xff]
  %v5985 = vld [vmem:[%s5960 + $0xc0] sm:$0xff]
  %v5986 = vld [vmem:[%s5960 + $0xc8] sm:$0xff]
  %v5987 = vld [vmem:[%s5960 + $0xd0] sm:$0xff]
  %v5988 = vld [vmem:[%s5960 + $0xd8] sm:$0xff]
  %v5989 = vld [vmem:[%s5960 + $0xe0] sm:$0xff]
  %v5990 = vld [vmem:[%s5960 + $0xe8] sm:$0xff]
  %v5991 = vld [vmem:[%s5960 + $0xf0] sm:$0xff]
  %v5992 = vld [vmem:[%s5960 + $0xf8] sm:$0xff]
  %v5993 = vld [vmem:[%s5960 + $0x100] sm:$0xff]
  %v5994 = vld [vmem:[%s5960 + $0x108] sm:$0xff]
  %v5995 = vld [vmem:[%s5960 + $0x110] sm:$0xff]
  %v5996 = vld [vmem:[%s5960 + $0x118] sm:$0xff]
  %v5997 = vld [vmem:[%s5960 + $0x120] sm:$0xff]
  %v5998 = vld [vmem:[%s5960 + $0x128] sm:$0xff]
  %v5999 = vld [vmem:[%s5960 + $0x130] sm:$0xff]
  %v6000 = vld [vmem:[%s5960 + $0x138] sm:$0xff]
  %v6001 = vld [vmem:[%s5960 + $0x140] sm:$0xff]
  %v6002 = vld [vmem:[%s5960 + $0x148] sm:$0xff]
  %v6003 = vld [vmem:[%s5960 + $0x150] sm:$0xff]
  %v6004 = vld [vmem:[%s5960 + $0x158] sm:$0xff]
  %v6005 = vld [vmem:[%s5960 + $0x160] sm:$0xff]
  %v6006 = vld [vmem:[%s5960 + $0x168] sm:$0xff]
  %v6007 = vld [vmem:[%s5960 + $0x170] sm:$0xff]
  %v6008 = vld [vmem:[%s5960 + $0x178] sm:$0xff]
  %v6009 = vld [vmem:[%s5960 + $0x180] sm:$0xff]
  %v6010 = vld [vmem:[%s5960 + $0x188] sm:$0xff]
  %v6011 = vld [vmem:[%s5960 + $0x190] sm:$0xff]
  %v6012 = vld [vmem:[%s5960 + $0x198] sm:$0xff]
  %v6013 = vld [vmem:[%s5960 + $0x1a0] sm:$0xff]
  %v6014 = vld [vmem:[%s5960 + $0x1a8] sm:$0xff]
  %v6015 = vld [vmem:[%s5960 + $0x1b0] sm:$0xff]
  %v6016 = vld [vmem:[%s5960 + $0x1b8] sm:$0xff]
  %v6017 = vld [vmem:[%s5960 + $0x1c0] sm:$0xff]
  %v6018 = vld [vmem:[%s5960 + $0x1c8] sm:$0xff]
  %v6019 = vld [vmem:[%s5960 + $0x1d0] sm:$0xff]
  %v6020 = vld [vmem:[%s5960 + $0x1d8] sm:$0xff]
  %v6021 = vld [vmem:[%s5960 + $0x1e0] sm:$0xff]
  %v6022 = vld [vmem:[%s5960 + $0x1e8] sm:$0xff]
  %v6023 = vld [vmem:[%s5960 + $0x1f0] sm:$0xff]
  %v6024 = vld [vmem:[%s5960 + $0x1f8] sm:$0xff]
  %v6089 = vunpack.c.l.b16 %v5961
  %v6090 = vunpack.c.h.b16 %v5961
  %v6091 = vunpack.c.l.b16 %v5962
  %v6092 = vunpack.c.h.b16 %v5962
  %v6093 = vunpack.c.l.b16 %v5963
  %v6094 = vunpack.c.h.b16 %v5963
  %v6095 = vunpack.c.l.b16 %v5964
  %v6096 = vunpack.c.h.b16 %v5964
  %v6097 = vunpack.c.l.b16 %v5965
  %v6098 = vunpack.c.h.b16 %v5965
  %v6099 = vunpack.c.l.b16 %v5966
  %v6100 = vunpack.c.h.b16 %v5966
  %v6101 = vunpack.c.l.b16 %v5967
  %v6102 = vunpack.c.h.b16 %v5967
  %v6103 = vunpack.c.l.b16 %v5968
  %v6104 = vunpack.c.h.b16 %v5968
  %v6105 = vunpack.c.l.b16 %v5969
  %v6106 = vunpack.c.h.b16 %v5969
  %v6107 = vunpack.c.l.b16 %v5970
  %v6108 = vunpack.c.h.b16 %v5970
  %v6109 = vunpack.c.l.b16 %v5971
  %v6110 = vunpack.c.h.b16 %v5971
  %v6111 = vunpack.c.l.b16 %v5972
  %v6112 = vunpack.c.h.b16 %v5972
  %v6113 = vunpack.c.l.b16 %v5973
  %v6114 = vunpack.c.h.b16 %v5973
  %v6115 = vunpack.c.l.b16 %v5974
  %v6116 = vunpack.c.h.b16 %v5974
  %v6117 = vunpack.c.l.b16 %v5975
  %v6118 = vunpack.c.h.b16 %v5975
  %v6119 = vunpack.c.l.b16 %v5976
  %v6120 = vunpack.c.h.b16 %v5976
  %v6121 = vunpack.c.l.b16 %v5977
  %v6122 = vunpack.c.h.b16 %v5977
  %v6123 = vunpack.c.l.b16 %v5978
  %v6124 = vunpack.c.h.b16 %v5978
  %v6125 = vunpack.c.l.b16 %v5979
  %v6126 = vunpack.c.h.b16 %v5979
  %v6127 = vunpack.c.l.b16 %v5980
  %v6128 = vunpack.c.h.b16 %v5980
  %v6129 = vunpack.c.l.b16 %v5981
  %v6130 = vunpack.c.h.b16 %v5981
  %v6131 = vunpack.c.l.b16 %v5982
  %v6132 = vunpack.c.h.b16 %v5982
  %v6133 = vunpack.c.l.b16 %v5983
  %v6134 = vunpack.c.h.b16 %v5983
  %v6135 = vunpack.c.l.b16 %v5984
  %v6136 = vunpack.c.h.b16 %v5984
  %v6137 = vunpack.c.l.b16 %v5985
  %v6138 = vunpack.c.h.b16 %v5985
  %v6139 = vunpack.c.l.b16 %v5986
  %v6140 = vunpack.c.h.b16 %v5986
  %v6141 = vunpack.c.l.b16 %v5987
  %v6142 = vunpack.c.h.b16 %v5987
  %v6143 = vunpack.c.l.b16 %v5988
  %v6144 = vunpack.c.h.b16 %v5988
  %v6145 = vunpack.c.l.b16 %v5989
  %v6146 = vunpack.c.h.b16 %v5989
  %v6147 = vunpack.c.l.b16 %v5990
  %v6148 = vunpack.c.h.b16 %v5990
  %v6149 = vunpack.c.l.b16 %v5991
  %v6150 = vunpack.c.h.b16 %v5991
  %v6151 = vunpack.c.l.b16 %v5992
  %v6152 = vunpack.c.h.b16 %v5992
  %v6153 = vunpack.c.l.b16 %v5993
  %v6154 = vunpack.c.h.b16 %v5993
  %v6155 = vunpack.c.l.b16 %v5994
  %v6156 = vunpack.c.h.b16 %v5994
  %v6157 = vunpack.c.l.b16 %v5995
  %v6158 = vunpack.c.h.b16 %v5995
  %v6159 = vunpack.c.l.b16 %v5996
  %v6160 = vunpack.c.h.b16 %v5996
  %v6161 = vunpack.c.l.b16 %v5997
  %v6162 = vunpack.c.h.b16 %v5997
  %v6163 = vunpack.c.l.b16 %v5998
  %v6164 = vunpack.c.h.b16 %v5998
  %v6165 = vunpack.c.l.b16 %v5999
  %v6166 = vunpack.c.h.b16 %v5999
  %v6167 = vunpack.c.l.b16 %v6000
  %v6168 = vunpack.c.h.b16 %v6000
  %v6169 = vunpack.c.l.b16 %v6001
  %v6170 = vunpack.c.h.b16 %v6001
  %v6171 = vunpack.c.l.b16 %v6002
  %v6172 = vunpack.c.h.b16 %v6002
  %v6173 = vunpack.c.l.b16 %v6003
  %v6174 = vunpack.c.h.b16 %v6003
  %v6175 = vunpack.c.l.b16 %v6004
  %v6176 = vunpack.c.h.b16 %v6004
  %v6177 = vunpack.c.l.b16 %v6005
  %v6178 = vunpack.c.h.b16 %v6005
  %v6179 = vunpack.c.l.b16 %v6006
  %v6180 = vunpack.c.h.b16 %v6006
  %v6181 = vunpack.c.l.b16 %v6007
  %v6182 = vunpack.c.h.b16 %v6007
  %v6183 = vunpack.c.l.b16 %v6008
  %v6184 = vunpack.c.h.b16 %v6008
  %v6185 = vunpack.c.l.b16 %v6009
  %v6186 = vunpack.c.h.b16 %v6009
  %v6187 = vunpack.c.l.b16 %v6010
  %v6188 = vunpack.c.h.b16 %v6010
  %v6189 = vunpack.c.l.b16 %v6011
  %v6190 = vunpack.c.h.b16 %v6011
  %v6191 = vunpack.c.l.b16 %v6012
  %v6192 = vunpack.c.h.b16 %v6012
  %v6193 = vunpack.c.l.b16 %v6013
  %v6194 = vunpack.c.h.b16 %v6013
  %v6195 = vunpack.c.l.b16 %v6014
  %v6196 = vunpack.c.h.b16 %v6014
  %v6197 = vunpack.c.l.b16 %v6015
  %v6198 = vunpack.c.h.b16 %v6015
  %v6199 = vunpack.c.l.b16 %v6016
  %v6200 = vunpack.c.h.b16 %v6016
  %v6201 = vunpack.c.l.b16 %v6017
  %v6202 = vunpack.c.h.b16 %v6017
  %v6203 = vunpack.c.l.b16 %v6018
  %v6204 = vunpack.c.h.b16 %v6018
  %v6205 = vunpack.c.l.b16 %v6019
  %v6206 = vunpack.c.h.b16 %v6019
  %v6207 = vunpack.c.l.b16 %v6020
  %v6208 = vunpack.c.h.b16 %v6020
  %v6209 = vunpack.c.l.b16 %v6021
  %v6210 = vunpack.c.h.b16 %v6021
  %v6211 = vunpack.c.l.b16 %v6022
  %v6212 = vunpack.c.h.b16 %v6022
  %v6213 = vunpack.c.l.b16 %v6023
  %v6214 = vunpack.c.h.b16 %v6023
  %v6215 = vunpack.c.l.b16 %v6024
  %v6216 = vunpack.c.h.b16 %v6024
  %v6217 = vpack.c.b16 %v6093, %v6089
  %v6218 = vpack.c.b16 %v6094, %v6090
  %v6219 = vpack.c.b16 %v6095, %v6091
  %v6220 = vpack.c.b16 %v6096, %v6092
  %v6221 = vpack.c.b16 %v6101, %v6097
  %v6222 = vpack.c.b16 %v6102, %v6098
  %v6223 = vpack.c.b16 %v6103, %v6099
  %v6224 = vpack.c.b16 %v6104, %v6100
  %v6225 = vpack.c.b16 %v6109, %v6105
  %v6226 = vpack.c.b16 %v6110, %v6106
  %v6227 = vpack.c.b16 %v6111, %v6107
  %v6228 = vpack.c.b16 %v6112, %v6108
  %v6229 = vpack.c.b16 %v6117, %v6113
  %v6230 = vpack.c.b16 %v6118, %v6114
  %v6231 = vpack.c.b16 %v6119, %v6115
  %v6232 = vpack.c.b16 %v6120, %v6116
  %v6233 = vpack.c.b16 %v6125, %v6121
  %v6234 = vpack.c.b16 %v6126, %v6122
  %v6235 = vpack.c.b16 %v6127, %v6123
  %v6236 = vpack.c.b16 %v6128, %v6124
  %v6237 = vpack.c.b16 %v6133, %v6129
  %v6238 = vpack.c.b16 %v6134, %v6130
  %v6239 = vpack.c.b16 %v6135, %v6131
  %v6240 = vpack.c.b16 %v6136, %v6132
  %v6241 = vpack.c.b16 %v6141, %v6137
  %v6242 = vpack.c.b16 %v6142, %v6138
  %v6243 = vpack.c.b16 %v6143, %v6139
  %v6244 = vpack.c.b16 %v6144, %v6140
  %v6245 = vpack.c.b16 %v6149, %v6145
  %v6246 = vpack.c.b16 %v6150, %v6146
  %v6247 = vpack.c.b16 %v6151, %v6147
  %v6248 = vpack.c.b16 %v6152, %v6148
  %v6249 = vpack.c.b16 %v6157, %v6153
  %v6250 = vpack.c.b16 %v6158, %v6154
  %v6251 = vpack.c.b16 %v6159, %v6155
  %v6252 = vpack.c.b16 %v6160, %v6156
  %v6253 = vpack.c.b16 %v6165, %v6161
  %v6254 = vpack.c.b16 %v6166, %v6162
  %v6255 = vpack.c.b16 %v6167, %v6163
  %v6256 = vpack.c.b16 %v6168, %v6164
  %v6257 = vpack.c.b16 %v6173, %v6169
  %v6258 = vpack.c.b16 %v6174, %v6170
  %v6259 = vpack.c.b16 %v6175, %v6171
  %v6260 = vpack.c.b16 %v6176, %v6172
  %v6261 = vpack.c.b16 %v6181, %v6177
  %v6262 = vpack.c.b16 %v6182, %v6178
  %v6263 = vpack.c.b16 %v6183, %v6179
  %v6264 = vpack.c.b16 %v6184, %v6180
  %v6265 = vpack.c.b16 %v6189, %v6185
  %v6266 = vpack.c.b16 %v6190, %v6186
  %v6267 = vpack.c.b16 %v6191, %v6187
  %v6268 = vpack.c.b16 %v6192, %v6188
  %v6269 = vpack.c.b16 %v6197, %v6193
  %v6270 = vpack.c.b16 %v6198, %v6194
  %v6271 = vpack.c.b16 %v6199, %v6195
  %v6272 = vpack.c.b16 %v6200, %v6196
  %v6273 = vpack.c.b16 %v6205, %v6201
  %v6274 = vpack.c.b16 %v6206, %v6202
  %v6275 = vpack.c.b16 %v6207, %v6203
  %v6276 = vpack.c.b16 %v6208, %v6204
  %v6277 = vpack.c.b16 %v6213, %v6209
  %v6278 = vpack.c.b16 %v6214, %v6210
  %v6279 = vpack.c.b16 %v6215, %v6211
  %v6280 = vpack.c.b16 %v6216, %v6212
  %6345 = vmatpush.bf16.msra.mxu0 %v6245
  %6346 = vmatpush.bf16.msra.mxu0 %v6241
  %6347 = vmatpush.bf16.msra.mxu0 %v6237
  %6348 = vmatpush.bf16.msra.mxu0 %v6233
  %6349 = vmatpush.bf16.msra.mxu0 %v6229
  %6350 = vmatpush.bf16.msra.mxu0 %v6225
  %6351 = vmatpush.bf16.msra.mxu0 %v6221
  %6352 = vmatpush.bf16.msra.mxu0 %v6217
  %6353 = vmatmul.bf16.gmra.mxu0 %v3441
  %v6354 = vpop.f32.mrf.mxu0
  %v6355 = vadd.f32 0.0, %v6354
  %v6356 = vpop.f32.mrf.mxu0
  %v6357 = vadd.f32 0.0, %v6356
  %6358 = vmatmul.bf16.gmra.mxu0 %v3461
  %v6359 = vpop.f32.mrf.mxu0
  %v6360 = vadd.f32 0.0, %v6359
  %v6361 = vpop.f32.mrf.mxu0
  %v6362 = vadd.f32 0.0, %v6361
  %6363 = vmatmul.bf16.gmra.mxu0 %v3477
  %v6364 = vpop.f32.mrf.mxu0
  %v6365 = vadd.f32 0.0, %v6364
  %v6366 = vpop.f32.mrf.mxu0
  %v6367 = vadd.f32 0.0, %v6366
  %6368 = vmatmul.bf16.gmra.mxu0 %v3493
  %v6369 = vpop.f32.mrf.mxu0
  %v6370 = vadd.f32 0.0, %v6369
  %v6371 = vpop.f32.mrf.mxu0
  %v6372 = vadd.f32 0.0, %v6371
  %6373 = vmatmul.bf16.gmra.mxu0 %v3509
  %v6374 = vpop.f32.mrf.mxu0
  %v6375 = vadd.f32 0.0, %v6374
  %v6376 = vpop.f32.mrf.mxu0
  %v6377 = vadd.f32 0.0, %v6376
  %6378 = vmatmul.bf16.gmra.mxu0 %v3525
  %v6379 = vpop.f32.mrf.mxu0
  %v6380 = vadd.f32 0.0, %v6379
  %v6381 = vpop.f32.mrf.mxu0
  %v6382 = vadd.f32 0.0, %v6381
  %6383 = vmatmul.bf16.gmra.mxu0 %v3566
  %v6384 = vpop.f32.mrf.mxu0
  %v6385 = vadd.f32 0.0, %v6384
  %v6386 = vpop.f32.mrf.mxu0
  %v6387 = vadd.f32 0.0, %v6386
  %6388 = vdwg.mxu0
  %6389 = vmatpush.bf16.msra.mxu0 %v6277
  %6390 = vmatpush.bf16.msra.mxu0 %v6273
  %6391 = vmatpush.bf16.msra.mxu0 %v6269
  %6392 = vmatpush.bf16.msra.mxu0 %v6265
  %6393 = vmatpush.bf16.msra.mxu0 %v6261
  %6394 = vmatpush.bf16.msra.mxu0 %v6257
  %6395 = vmatpush.bf16.msra.mxu0 %v6253
  %6396 = vmatpush.bf16.msra.mxu0 %v6249
  %6397 = vmatmul.bf16.gmra.mxu0 %v3453
  %v6398 = vpop.f32.mrf.mxu0
  %v6399 = vadd.f32 %v6355, %v6398
  %v6400 = vpop.f32.mrf.mxu0
  %v6401 = vadd.f32 %v6357, %v6400
  %6402 = vmatmul.bf16.gmra.mxu0 %v3469
  %v6403 = vpop.f32.mrf.mxu0
  %v6404 = vadd.f32 %v6360, %v6403
  %v6405 = vpop.f32.mrf.mxu0
  %v6406 = vadd.f32 %v6362, %v6405
  %6407 = vmatmul.bf16.gmra.mxu0 %v3485
  %v6408 = vpop.f32.mrf.mxu0
  %v6409 = vadd.f32 %v6365, %v6408
  %v6410 = vpop.f32.mrf.mxu0
  %v6411 = vadd.f32 %v6367, %v6410
  %6412 = vmatmul.bf16.gmra.mxu0 %v3501
  %v6413 = vpop.f32.mrf.mxu0
  %v6414 = vadd.f32 %v6370, %v6413
  %v6415 = vpop.f32.mrf.mxu0
  %v6416 = vadd.f32 %v6372, %v6415
  %6417 = vmatmul.bf16.gmra.mxu0 %v3517
  %v6418 = vpop.f32.mrf.mxu0
  %v6419 = vadd.f32 %v6375, %v6418
  %v6420 = vpop.f32.mrf.mxu0
  %v6421 = vadd.f32 %v6377, %v6420
  %6422 = vmatmul.bf16.gmra.mxu0 %v3533
  %v6423 = vpop.f32.mrf.mxu0
  %v6424 = vadd.f32 %v6380, %v6423
  %v6425 = vpop.f32.mrf.mxu0
  %v6426 = vadd.f32 %v6382, %v6425
  %6427 = vmatmul.bf16.gmra.mxu0 %v3567
  %v6428 = vpop.f32.mrf.mxu0
  %v6429 = vadd.f32 %v6385, %v6428
  %v6430 = vpop.f32.mrf.mxu0
  %v6431 = vadd.f32 %v6387, %v6430
  %6432 = vdwg.mxu0
  %6433 = vmatpush.bf16.msra.mxu0 %v6246
  %6434 = vmatpush.bf16.msra.mxu0 %v6242
  %6435 = vmatpush.bf16.msra.mxu0 %v6238
  %6436 = vmatpush.bf16.msra.mxu0 %v6234
  %6437 = vmatpush.bf16.msra.mxu0 %v6230
  %6438 = vmatpush.bf16.msra.mxu0 %v6226
  %6439 = vmatpush.bf16.msra.mxu0 %v6222
  %6440 = vmatpush.bf16.msra.mxu0 %v6218
  %6441 = vmatmul.bf16.gmra.mxu0 %v3441
  %v6442 = vpop.f32.mrf.mxu0
  %v6443 = vadd.f32 0.0, %v6442
  %v6444 = vpop.f32.mrf.mxu0
  %v6445 = vadd.f32 0.0, %v6444
  %6446 = vmatmul.bf16.gmra.mxu0 %v3461
  %v6447 = vpop.f32.mrf.mxu0
  %v6448 = vadd.f32 0.0, %v6447
  %v6449 = vpop.f32.mrf.mxu0
  %v6450 = vadd.f32 0.0, %v6449
  %6451 = vmatmul.bf16.gmra.mxu0 %v3477
  %v6452 = vpop.f32.mrf.mxu0
  %v6453 = vadd.f32 0.0, %v6452
  %v6454 = vpop.f32.mrf.mxu0
  %v6455 = vadd.f32 0.0, %v6454
  %6456 = vmatmul.bf16.gmra.mxu0 %v3493
  %v6457 = vpop.f32.mrf.mxu0
  %v6458 = vadd.f32 0.0, %v6457
  %v6459 = vpop.f32.mrf.mxu0
  %v6460 = vadd.f32 0.0, %v6459
  %6461 = vmatmul.bf16.gmra.mxu0 %v3509
  %v6462 = vpop.f32.mrf.mxu0
  %v6463 = vadd.f32 0.0, %v6462
  %v6464 = vpop.f32.mrf.mxu0
  %v6465 = vadd.f32 0.0, %v6464
  %6466 = vmatmul.bf16.gmra.mxu0 %v3525
  %v6467 = vpop.f32.mrf.mxu0
  %v6468 = vadd.f32 0.0, %v6467
  %v6469 = vpop.f32.mrf.mxu0
  %v6470 = vadd.f32 0.0, %v6469
  %6471 = vmatmul.bf16.gmra.mxu0 %v3566
  %v6472 = vpop.f32.mrf.mxu0
  %v6473 = vadd.f32 0.0, %v6472
  %v6474 = vpop.f32.mrf.mxu0
  %v6475 = vadd.f32 0.0, %v6474
  %6476 = vdwg.mxu0
  %6477 = vmatpush.bf16.msra.mxu0 %v6278
  %6478 = vmatpush.bf16.msra.mxu0 %v6274
  %6479 = vmatpush.bf16.msra.mxu0 %v6270
  %6480 = vmatpush.bf16.msra.mxu0 %v6266
  %6481 = vmatpush.bf16.msra.mxu0 %v6262
  %6482 = vmatpush.bf16.msra.mxu0 %v6258
  %6483 = vmatpush.bf16.msra.mxu0 %v6254
  %6484 = vmatpush.bf16.msra.mxu0 %v6250
  %6485 = vmatmul.bf16.gmra.mxu0 %v3453
  %v6486 = vpop.f32.mrf.mxu0
  %v6487 = vadd.f32 %v6443, %v6486
  %v6488 = vpop.f32.mrf.mxu0
  %v6489 = vadd.f32 %v6445, %v6488
  %6490 = vmatmul.bf16.gmra.mxu0 %v3469
  %v6491 = vpop.f32.mrf.mxu0
  %v6492 = vadd.f32 %v6448, %v6491
  %v6493 = vpop.f32.mrf.mxu0
  %v6494 = vadd.f32 %v6450, %v6493
  %6495 = vmatmul.bf16.gmra.mxu0 %v3485
  %v6496 = vpop.f32.mrf.mxu0
  %v6497 = vadd.f32 %v6453, %v6496
  %v6498 = vpop.f32.mrf.mxu0
  %v6499 = vadd.f32 %v6455, %v6498
  %6500 = vmatmul.bf16.gmra.mxu0 %v3501
  %v6501 = vpop.f32.mrf.mxu0
  %v6502 = vadd.f32 %v6458, %v6501
  %v6503 = vpop.f32.mrf.mxu0
  %v6504 = vadd.f32 %v6460, %v6503
  %6505 = vmatmul.bf16.gmra.mxu0 %v3517
  %v6506 = vpop.f32.mrf.mxu0
  %v6507 = vadd.f32 %v6463, %v6506
  %v6508 = vpop.f32.mrf.mxu0
  %v6509 = vadd.f32 %v6465, %v6508
  %6510 = vmatmul.bf16.gmra.mxu0 %v3533
  %v6511 = vpop.f32.mrf.mxu0
  %v6512 = vadd.f32 %v6468, %v6511
  %v6513 = vpop.f32.mrf.mxu0
  %v6514 = vadd.f32 %v6470, %v6513
  %6515 = vmatmul.bf16.gmra.mxu0 %v3567
  %v6516 = vpop.f32.mrf.mxu0
  %v6517 = vadd.f32 %v6473, %v6516
  %v6518 = vpop.f32.mrf.mxu0
  %v6519 = vadd.f32 %v6475, %v6518
  %6520 = vdwg.mxu0
  %6521 = vmatpush.bf16.msra.mxu0 %v6247
  %6522 = vmatpush.bf16.msra.mxu0 %v6243
  %6523 = vmatpush.bf16.msra.mxu0 %v6239
  %6524 = vmatpush.bf16.msra.mxu0 %v6235
  %6525 = vmatpush.bf16.msra.mxu0 %v6231
  %6526 = vmatpush.bf16.msra.mxu0 %v6227
  %6527 = vmatpush.bf16.msra.mxu0 %v6223
  %6528 = vmatpush.bf16.msra.mxu0 %v6219
  %6529 = vmatmul.bf16.gmra.mxu0 %v3441
  %v6530 = vpop.f32.mrf.mxu0
  %v6531 = vadd.f32 0.0, %v6530
  %v6532 = vpop.f32.mrf.mxu0
  %v6533 = vadd.f32 0.0, %v6532
  %6534 = vmatmul.bf16.gmra.mxu0 %v3461
  %v6535 = vpop.f32.mrf.mxu0
  %v6536 = vadd.f32 0.0, %v6535
  %v6537 = vpop.f32.mrf.mxu0
  %v6538 = vadd.f32 0.0, %v6537
  %6539 = vmatmul.bf16.gmra.mxu0 %v3477
  %v6540 = vpop.f32.mrf.mxu0
  %v6541 = vadd.f32 0.0, %v6540
  %v6542 = vpop.f32.mrf.mxu0
  %v6543 = vadd.f32 0.0, %v6542
  %6544 = vmatmul.bf16.gmra.mxu0 %v3493
  %v6545 = vpop.f32.mrf.mxu0
  %v6546 = vadd.f32 0.0, %v6545
  %v6547 = vpop.f32.mrf.mxu0
  %v6548 = vadd.f32 0.0, %v6547
  %6549 = vmatmul.bf16.gmra.mxu0 %v3509
  %v6550 = vpop.f32.mrf.mxu0
  %v6551 = vadd.f32 0.0, %v6550
  %v6552 = vpop.f32.mrf.mxu0
  %v6553 = vadd.f32 0.0, %v6552
  %6554 = vmatmul.bf16.gmra.mxu0 %v3525
  %v6555 = vpop.f32.mrf.mxu0
  %v6556 = vadd.f32 0.0, %v6555
  %v6557 = vpop.f32.mrf.mxu0
  %v6558 = vadd.f32 0.0, %v6557
  %6559 = vmatmul.bf16.gmra.mxu0 %v3566
  %v6560 = vpop.f32.mrf.mxu0
  %v6561 = vadd.f32 0.0, %v6560
  %v6562 = vpop.f32.mrf.mxu0
  %v6563 = vadd.f32 0.0, %v6562
  %6564 = vdwg.mxu0
  %6565 = vmatpush.bf16.msra.mxu0 %v6279
  %6566 = vmatpush.bf16.msra.mxu0 %v6275
  %6567 = vmatpush.bf16.msra.mxu0 %v6271
  %6568 = vmatpush.bf16.msra.mxu0 %v6267
  %6569 = vmatpush.bf16.msra.mxu0 %v6263
  %6570 = vmatpush.bf16.msra.mxu0 %v6259
  %6571 = vmatpush.bf16.msra.mxu0 %v6255
  %6572 = vmatpush.bf16.msra.mxu0 %v6251
  %6573 = vmatmul.bf16.gmra.mxu0 %v3453
  %v6574 = vpop.f32.mrf.mxu0
  %v6575 = vadd.f32 %v6531, %v6574
  %v6576 = vpop.f32.mrf.mxu0
  %v6577 = vadd.f32 %v6533, %v6576
  %6578 = vmatmul.bf16.gmra.mxu0 %v3469
  %v6579 = vpop.f32.mrf.mxu0
  %v6580 = vadd.f32 %v6536, %v6579
  %v6581 = vpop.f32.mrf.mxu0
  %v6582 = vadd.f32 %v6538, %v6581
  %6583 = vmatmul.bf16.gmra.mxu0 %v3485
  %v6584 = vpop.f32.mrf.mxu0
  %v6585 = vadd.f32 %v6541, %v6584
  %v6586 = vpop.f32.mrf.mxu0
  %v6587 = vadd.f32 %v6543, %v6586
  %6588 = vmatmul.bf16.gmra.mxu0 %v3501
  %v6589 = vpop.f32.mrf.mxu0
  %v6590 = vadd.f32 %v6546, %v6589
  %v6591 = vpop.f32.mrf.mxu0
  %v6592 = vadd.f32 %v6548, %v6591
  %6593 = vmatmul.bf16.gmra.mxu0 %v3517
  %v6594 = vpop.f32.mrf.mxu0
  %v6595 = vadd.f32 %v6551, %v6594
  %v6596 = vpop.f32.mrf.mxu0
  %v6597 = vadd.f32 %v6553, %v6596
  %6598 = vmatmul.bf16.gmra.mxu0 %v3533
  %v6599 = vpop.f32.mrf.mxu0
  %v6600 = vadd.f32 %v6556, %v6599
  %v6601 = vpop.f32.mrf.mxu0
  %v6602 = vadd.f32 %v6558, %v6601
  %6603 = vmatmul.bf16.gmra.mxu0 %v3567
  %v6604 = vpop.f32.mrf.mxu0
  %v6605 = vadd.f32 %v6561, %v6604
  %v6606 = vpop.f32.mrf.mxu0
  %v6607 = vadd.f32 %v6563, %v6606
  %6608 = vdwg.mxu0
  %6609 = vmatpush.bf16.msra.mxu0 %v6248
  %6610 = vmatpush.bf16.msra.mxu0 %v6244
  %6611 = vmatpush.bf16.msra.mxu0 %v6240
  %6612 = vmatpush.bf16.msra.mxu0 %v6236
  %6613 = vmatpush.bf16.msra.mxu0 %v6232
  %6614 = vmatpush.bf16.msra.mxu0 %v6228
  %6615 = vmatpush.bf16.msra.mxu0 %v6224
  %6616 = vmatpush.bf16.msra.mxu0 %v6220
  %6617 = vmatmul.bf16.gmra.mxu0 %v3441
  %v6618 = vpop.f32.mrf.mxu0
  %v6619 = vadd.f32 0.0, %v6618
  %v6620 = vpop.f32.mrf.mxu0
  %v6621 = vadd.f32 0.0, %v6620
  %6622 = vmatmul.bf16.gmra.mxu0 %v3461
  %v6623 = vpop.f32.mrf.mxu0
  %v6624 = vadd.f32 0.0, %v6623
  %v6625 = vpop.f32.mrf.mxu0
  %v6626 = vadd.f32 0.0, %v6625
  %6627 = vmatmul.bf16.gmra.mxu0 %v3477
  %v6628 = vpop.f32.mrf.mxu0
  %v6629 = vadd.f32 0.0, %v6628
  %v6630 = vpop.f32.mrf.mxu0
  %v6631 = vadd.f32 0.0, %v6630
  %6632 = vmatmul.bf16.gmra.mxu0 %v3493
  %v6633 = vpop.f32.mrf.mxu0
  %v6634 = vadd.f32 0.0, %v6633
  %v6635 = vpop.f32.mrf.mxu0
  %v6636 = vadd.f32 0.0, %v6635
  %6637 = vmatmul.bf16.gmra.mxu0 %v3509
  %v6638 = vpop.f32.mrf.mxu0
  %v6639 = vadd.f32 0.0, %v6638
  %v6640 = vpop.f32.mrf.mxu0
  %v6641 = vadd.f32 0.0, %v6640
  %6642 = vmatmul.bf16.gmra.mxu0 %v3525
  %v6643 = vpop.f32.mrf.mxu0
  %v6644 = vadd.f32 0.0, %v6643
  %v6645 = vpop.f32.mrf.mxu0
  %v6646 = vadd.f32 0.0, %v6645
  %6647 = vmatmul.bf16.gmra.mxu0 %v3566
  %v6648 = vpop.f32.mrf.mxu0
  %v6649 = vadd.f32 0.0, %v6648
  %v6650 = vpop.f32.mrf.mxu0
  %v6651 = vadd.f32 0.0, %v6650
  %6652 = vdwg.mxu0
  %6653 = vmatpush.bf16.msra.mxu0 %v6280
  %6654 = vmatpush.bf16.msra.mxu0 %v6276
  %6655 = vmatpush.bf16.msra.mxu0 %v6272
  %6656 = vmatpush.bf16.msra.mxu0 %v6268
  %6657 = vmatpush.bf16.msra.mxu0 %v6264
  %6658 = vmatpush.bf16.msra.mxu0 %v6260
  %6659 = vmatpush.bf16.msra.mxu0 %v6256
  %6660 = vmatpush.bf16.msra.mxu0 %v6252
  %6661 = vmatmul.bf16.gmra.mxu0 %v3453
  %v6662 = vpop.f32.mrf.mxu0
  %v6663 = vadd.f32 %v6619, %v6662
  %v6664 = vpop.f32.mrf.mxu0
  %v6665 = vadd.f32 %v6621, %v6664
  %6666 = vmatmul.bf16.gmra.mxu0 %v3469
  %v6667 = vpop.f32.mrf.mxu0
  %v6668 = vadd.f32 %v6624, %v6667
  %v6669 = vpop.f32.mrf.mxu0
  %v6670 = vadd.f32 %v6626, %v6669
  %6671 = vmatmul.bf16.gmra.mxu0 %v3485
  %v6672 = vpop.f32.mrf.mxu0
  %v6673 = vadd.f32 %v6629, %v6672
  %v6674 = vpop.f32.mrf.mxu0
  %v6675 = vadd.f32 %v6631, %v6674
  %6676 = vmatmul.bf16.gmra.mxu0 %v3501
  %v6677 = vpop.f32.mrf.mxu0
  %v6678 = vadd.f32 %v6634, %v6677
  %v6679 = vpop.f32.mrf.mxu0
  %v6680 = vadd.f32 %v6636, %v6679
  %6681 = vmatmul.bf16.gmra.mxu0 %v3517
  %v6682 = vpop.f32.mrf.mxu0
  %v6683 = vadd.f32 %v6639, %v6682
  %v6684 = vpop.f32.mrf.mxu0
  %v6685 = vadd.f32 %v6641, %v6684
  %6686 = vmatmul.bf16.gmra.mxu0 %v3533
  %v6687 = vpop.f32.mrf.mxu0
  %v6688 = vadd.f32 %v6644, %v6687
  %v6689 = vpop.f32.mrf.mxu0
  %v6690 = vadd.f32 %v6646, %v6689
  %6691 = vmatmul.bf16.gmra.mxu0 %v3567
  %v6692 = vpop.f32.mrf.mxu0
  %v6693 = vadd.f32 %v6649, %v6692
  %v6694 = vpop.f32.mrf.mxu0
  %v6695 = vadd.f32 %v6651, %v6694
  %6696 = vdwg.mxu0
  %v6697 = vadd.f32 %v5904, %v6399
  %v6698 = vadd.f32 %v5905, %v6487
  %v6699 = vadd.f32 %v5906, %v6575
  %v6700 = vadd.f32 %v5907, %v6663
  %v6701 = vadd.f32 %v5908, %v6401
  %v6702 = vadd.f32 %v5909, %v6489
  %v6703 = vadd.f32 %v5910, %v6577
  %v6704 = vadd.f32 %v5911, %v6665
  %v6705 = vadd.f32 %v5912, %v6404
  %v6706 = vadd.f32 %v5913, %v6492
  %v6707 = vadd.f32 %v5914, %v6580
  %v6708 = vadd.f32 %v5915, %v6668
  %v6709 = vadd.f32 %v5916, %v6406
  %v6710 = vadd.f32 %v5917, %v6494
  %v6711 = vadd.f32 %v5918, %v6582
  %v6712 = vadd.f32 %v5919, %v6670
  %v6713 = vadd.f32 %v5920, %v6409
  %v6714 = vadd.f32 %v5921, %v6497
  %v6715 = vadd.f32 %v5922, %v6585
  %v6716 = vadd.f32 %v5923, %v6673
  %v6717 = vadd.f32 %v5924, %v6411
  %v6718 = vadd.f32 %v5925, %v6499
  %v6719 = vadd.f32 %v5926, %v6587
  %v6720 = vadd.f32 %v5927, %v6675
  %v6721 = vadd.f32 %v5928, %v6414
  %v6722 = vadd.f32 %v5929, %v6502
  %v6723 = vadd.f32 %v5930, %v6590
  %v6724 = vadd.f32 %v5931, %v6678
  %v6725 = vadd.f32 %v5932, %v6416
  %v6726 = vadd.f32 %v5933, %v6504
  %v6727 = vadd.f32 %v5934, %v6592
  %v6728 = vadd.f32 %v5935, %v6680
  %v6729 = vadd.f32 %v5936, %v6419
  %v6730 = vadd.f32 %v5937, %v6507
  %v6731 = vadd.f32 %v5938, %v6595
  %v6732 = vadd.f32 %v5939, %v6683
  %v6733 = vadd.f32 %v5940, %v6421
  %v6734 = vadd.f32 %v5941, %v6509
  %v6735 = vadd.f32 %v5942, %v6597
  %v6736 = vadd.f32 %v5943, %v6685
  %v6737 = vadd.f32 %v5944, %v6424
  %v6738 = vadd.f32 %v5945, %v6512
  %v6739 = vadd.f32 %v5946, %v6600
  %v6740 = vadd.f32 %v5947, %v6688
  %v6741 = vadd.f32 %v5948, %v6426
  %v6742 = vadd.f32 %v5949, %v6514
  %v6743 = vadd.f32 %v5950, %v6602
  %v6744 = vadd.f32 %v5951, %v6690
  %v6745 = vadd.f32 %v5952, %v6429
  %v6746 = vadd.f32 %v5953, %v6517
  %v6747 = vadd.f32 %v5954, %v6605
  %v6748 = vadd.f32 %v5955, %v6693
  %v6749 = vadd.f32 %v5956, %v6431
  %v6750 = vadd.f32 %v5957, %v6519
  %v6751 = vadd.f32 %v5958, %v6607
  %v6752 = vadd.f32 %v5959, %v6695
  %s6753 = scalar_lea.vmem %s2, 2048
  %v6754 = vld [vmem:[%s6753] sm:$0xff]
  %v6755 = vld [vmem:[%s6753 + $0x8] sm:$0xff]
  %v6756 = vld [vmem:[%s6753 + $0x10] sm:$0xff]
  %v6757 = vld [vmem:[%s6753 + $0x18] sm:$0xff]
  %v6758 = vld [vmem:[%s6753 + $0x20] sm:$0xff]
  %v6759 = vld [vmem:[%s6753 + $0x28] sm:$0xff]
  %v6760 = vld [vmem:[%s6753 + $0x30] sm:$0xff]
  %v6761 = vld [vmem:[%s6753 + $0x38] sm:$0xff]
  %v6762 = vld [vmem:[%s6753 + $0x40] sm:$0xff]
  %v6763 = vld [vmem:[%s6753 + $0x48] sm:$0xff]
  %v6764 = vld [vmem:[%s6753 + $0x50] sm:$0xff]
  %v6765 = vld [vmem:[%s6753 + $0x58] sm:$0xff]
  %v6766 = vld [vmem:[%s6753 + $0x60] sm:$0xff]
  %v6767 = vld [vmem:[%s6753 + $0x68] sm:$0xff]
  %v6768 = vld [vmem:[%s6753 + $0x70] sm:$0xff]
  %v6769 = vld [vmem:[%s6753 + $0x78] sm:$0xff]
  %v6770 = vld [vmem:[%s6753 + $0x80] sm:$0xff]
  %v6771 = vld [vmem:[%s6753 + $0x88] sm:$0xff]
  %v6772 = vld [vmem:[%s6753 + $0x90] sm:$0xff]
  %v6773 = vld [vmem:[%s6753 + $0x98] sm:$0xff]
  %v6774 = vld [vmem:[%s6753 + $0xa0] sm:$0xff]
  %v6775 = vld [vmem:[%s6753 + $0xa8] sm:$0xff]
  %v6776 = vld [vmem:[%s6753 + $0xb0] sm:$0xff]
  %v6777 = vld [vmem:[%s6753 + $0xb8] sm:$0xff]
  %v6778 = vld [vmem:[%s6753 + $0xc0] sm:$0xff]
  %v6779 = vld [vmem:[%s6753 + $0xc8] sm:$0xff]
  %v6780 = vld [vmem:[%s6753 + $0xd0] sm:$0xff]
  %v6781 = vld [vmem:[%s6753 + $0xd8] sm:$0xff]
  %v6782 = vld [vmem:[%s6753 + $0xe0] sm:$0xff]
  %v6783 = vld [vmem:[%s6753 + $0xe8] sm:$0xff]
  %v6784 = vld [vmem:[%s6753 + $0xf0] sm:$0xff]
  %v6785 = vld [vmem:[%s6753 + $0xf8] sm:$0xff]
  %v6786 = vld [vmem:[%s6753 + $0x100] sm:$0xff]
  %v6787 = vld [vmem:[%s6753 + $0x108] sm:$0xff]
  %v6788 = vld [vmem:[%s6753 + $0x110] sm:$0xff]
  %v6789 = vld [vmem:[%s6753 + $0x118] sm:$0xff]
  %v6790 = vld [vmem:[%s6753 + $0x120] sm:$0xff]
  %v6791 = vld [vmem:[%s6753 + $0x128] sm:$0xff]
  %v6792 = vld [vmem:[%s6753 + $0x130] sm:$0xff]
  %v6793 = vld [vmem:[%s6753 + $0x138] sm:$0xff]
  %v6794 = vld [vmem:[%s6753 + $0x140] sm:$0xff]
  %v6795 = vld [vmem:[%s6753 + $0x148] sm:$0xff]
  %v6796 = vld [vmem:[%s6753 + $0x150] sm:$0xff]
  %v6797 = vld [vmem:[%s6753 + $0x158] sm:$0xff]
  %v6798 = vld [vmem:[%s6753 + $0x160] sm:$0xff]
  %v6799 = vld [vmem:[%s6753 + $0x168] sm:$0xff]
  %v6800 = vld [vmem:[%s6753 + $0x170] sm:$0xff]
  %v6801 = vld [vmem:[%s6753 + $0x178] sm:$0xff]
  %v6802 = vld [vmem:[%s6753 + $0x180] sm:$0xff]
  %v6803 = vld [vmem:[%s6753 + $0x188] sm:$0xff]
  %v6804 = vld [vmem:[%s6753 + $0x190] sm:$0xff]
  %v6805 = vld [vmem:[%s6753 + $0x198] sm:$0xff]
  %v6806 = vld [vmem:[%s6753 + $0x1a0] sm:$0xff]
  %v6807 = vld [vmem:[%s6753 + $0x1a8] sm:$0xff]
  %v6808 = vld [vmem:[%s6753 + $0x1b0] sm:$0xff]
  %v6809 = vld [vmem:[%s6753 + $0x1b8] sm:$0xff]
  %v6810 = vld [vmem:[%s6753 + $0x1c0] sm:$0xff]
  %v6811 = vld [vmem:[%s6753 + $0x1c8] sm:$0xff]
  %v6812 = vld [vmem:[%s6753 + $0x1d0] sm:$0xff]
  %v6813 = vld [vmem:[%s6753 + $0x1d8] sm:$0xff]
  %v6814 = vld [vmem:[%s6753 + $0x1e0] sm:$0xff]
  %v6815 = vld [vmem:[%s6753 + $0x1e8] sm:$0xff]
  %v6816 = vld [vmem:[%s6753 + $0x1f0] sm:$0xff]
  %v6817 = vld [vmem:[%s6753 + $0x1f8] sm:$0xff]
  %v6882 = vunpack.c.l.b16 %v6754
  %v6883 = vunpack.c.h.b16 %v6754
  %v6884 = vunpack.c.l.b16 %v6755
  %v6885 = vunpack.c.h.b16 %v6755
  %v6886 = vunpack.c.l.b16 %v6756
  %v6887 = vunpack.c.h.b16 %v6756
  %v6888 = vunpack.c.l.b16 %v6757
  %v6889 = vunpack.c.h.b16 %v6757
  %v6890 = vunpack.c.l.b16 %v6758
  %v6891 = vunpack.c.h.b16 %v6758
  %v6892 = vunpack.c.l.b16 %v6759
  %v6893 = vunpack.c.h.b16 %v6759
  %v6894 = vunpack.c.l.b16 %v6760
  %v6895 = vunpack.c.h.b16 %v6760
  %v6896 = vunpack.c.l.b16 %v6761
  %v6897 = vunpack.c.h.b16 %v6761
  %v6898 = vunpack.c.l.b16 %v6762
  %v6899 = vunpack.c.h.b16 %v6762
  %v6900 = vunpack.c.l.b16 %v6763
  %v6901 = vunpack.c.h.b16 %v6763
  %v6902 = vunpack.c.l.b16 %v6764
  %v6903 = vunpack.c.h.b16 %v6764
  %v6904 = vunpack.c.l.b16 %v6765
  %v6905 = vunpack.c.h.b16 %v6765
  %v6906 = vunpack.c.l.b16 %v6766
  %v6907 = vunpack.c.h.b16 %v6766
  %v6908 = vunpack.c.l.b16 %v6767
  %v6909 = vunpack.c.h.b16 %v6767
  %v6910 = vunpack.c.l.b16 %v6768
  %v6911 = vunpack.c.h.b16 %v6768
  %v6912 = vunpack.c.l.b16 %v6769
  %v6913 = vunpack.c.h.b16 %v6769
  %v6914 = vunpack.c.l.b16 %v6770
  %v6915 = vunpack.c.h.b16 %v6770
  %v6916 = vunpack.c.l.b16 %v6771
  %v6917 = vunpack.c.h.b16 %v6771
  %v6918 = vunpack.c.l.b16 %v6772
  %v6919 = vunpack.c.h.b16 %v6772
  %v6920 = vunpack.c.l.b16 %v6773
  %v6921 = vunpack.c.h.b16 %v6773
  %v6922 = vunpack.c.l.b16 %v6774
  %v6923 = vunpack.c.h.b16 %v6774
  %v6924 = vunpack.c.l.b16 %v6775
  %v6925 = vunpack.c.h.b16 %v6775
  %v6926 = vunpack.c.l.b16 %v6776
  %v6927 = vunpack.c.h.b16 %v6776
  %v6928 = vunpack.c.l.b16 %v6777
  %v6929 = vunpack.c.h.b16 %v6777
  %v6930 = vunpack.c.l.b16 %v6778
  %v6931 = vunpack.c.h.b16 %v6778
  %v6932 = vunpack.c.l.b16 %v6779
  %v6933 = vunpack.c.h.b16 %v6779
  %v6934 = vunpack.c.l.b16 %v6780
  %v6935 = vunpack.c.h.b16 %v6780
  %v6936 = vunpack.c.l.b16 %v6781
  %v6937 = vunpack.c.h.b16 %v6781
  %v6938 = vunpack.c.l.b16 %v6782
  %v6939 = vunpack.c.h.b16 %v6782
  %v6940 = vunpack.c.l.b16 %v6783
  %v6941 = vunpack.c.h.b16 %v6783
  %v6942 = vunpack.c.l.b16 %v6784
  %v6943 = vunpack.c.h.b16 %v6784
  %v6944 = vunpack.c.l.b16 %v6785
  %v6945 = vunpack.c.h.b16 %v6785
  %v6946 = vunpack.c.l.b16 %v6786
  %v6947 = vunpack.c.h.b16 %v6786
  %v6948 = vunpack.c.l.b16 %v6787
  %v6949 = vunpack.c.h.b16 %v6787
  %v6950 = vunpack.c.l.b16 %v6788
  %v6951 = vunpack.c.h.b16 %v6788
  %v6952 = vunpack.c.l.b16 %v6789
  %v6953 = vunpack.c.h.b16 %v6789
  %v6954 = vunpack.c.l.b16 %v6790
  %v6955 = vunpack.c.h.b16 %v6790
  %v6956 = vunpack.c.l.b16 %v6791
  %v6957 = vunpack.c.h.b16 %v6791
  %v6958 = vunpack.c.l.b16 %v6792
  %v6959 = vunpack.c.h.b16 %v6792
  %v6960 = vunpack.c.l.b16 %v6793
  %v6961 = vunpack.c.h.b16 %v6793
  %v6962 = vunpack.c.l.b16 %v6794
  %v6963 = vunpack.c.h.b16 %v6794
  %v6964 = vunpack.c.l.b16 %v6795
  %v6965 = vunpack.c.h.b16 %v6795
  %v6966 = vunpack.c.l.b16 %v6796
  %v6967 = vunpack.c.h.b16 %v6796
  %v6968 = vunpack.c.l.b16 %v6797
  %v6969 = vunpack.c.h.b16 %v6797
  %v6970 = vunpack.c.l.b16 %v6798
  %v6971 = vunpack.c.h.b16 %v6798
  %v6972 = vunpack.c.l.b16 %v6799
  %v6973 = vunpack.c.h.b16 %v6799
  %v6974 = vunpack.c.l.b16 %v6800
  %v6975 = vunpack.c.h.b16 %v6800
  %v6976 = vunpack.c.l.b16 %v6801
  %v6977 = vunpack.c.h.b16 %v6801
  %v6978 = vunpack.c.l.b16 %v6802
  %v6979 = vunpack.c.h.b16 %v6802
  %v6980 = vunpack.c.l.b16 %v6803
  %v6981 = vunpack.c.h.b16 %v6803
  %v6982 = vunpack.c.l.b16 %v6804
  %v6983 = vunpack.c.h.b16 %v6804
  %v6984 = vunpack.c.l.b16 %v6805
  %v6985 = vunpack.c.h.b16 %v6805
  %v6986 = vunpack.c.l.b16 %v6806
  %v6987 = vunpack.c.h.b16 %v6806
  %v6988 = vunpack.c.l.b16 %v6807
  %v6989 = vunpack.c.h.b16 %v6807
  %v6990 = vunpack.c.l.b16 %v6808
  %v6991 = vunpack.c.h.b16 %v6808
  %v6992 = vunpack.c.l.b16 %v6809
  %v6993 = vunpack.c.h.b16 %v6809
  %v6994 = vunpack.c.l.b16 %v6810
  %v6995 = vunpack.c.h.b16 %v6810
  %v6996 = vunpack.c.l.b16 %v6811
  %v6997 = vunpack.c.h.b16 %v6811
  %v6998 = vunpack.c.l.b16 %v6812
  %v6999 = vunpack.c.h.b16 %v6812
  %v7000 = vunpack.c.l.b16 %v6813
  %v7001 = vunpack.c.h.b16 %v6813
  %v7002 = vunpack.c.l.b16 %v6814
  %v7003 = vunpack.c.h.b16 %v6814
  %v7004 = vunpack.c.l.b16 %v6815
  %v7005 = vunpack.c.h.b16 %v6815
  %v7006 = vunpack.c.l.b16 %v6816
  %v7007 = vunpack.c.h.b16 %v6816
  %v7008 = vunpack.c.l.b16 %v6817
  %v7009 = vunpack.c.h.b16 %v6817
  %v7010 = vpack.c.b16 %v6886, %v6882
  %v7011 = vpack.c.b16 %v6887, %v6883
  %v7012 = vpack.c.b16 %v6888, %v6884
  %v7013 = vpack.c.b16 %v6889, %v6885
  %v7014 = vpack.c.b16 %v6894, %v6890
  %v7015 = vpack.c.b16 %v6895, %v6891
  %v7016 = vpack.c.b16 %v6896, %v6892
  %v7017 = vpack.c.b16 %v6897, %v6893
  %v7018 = vpack.c.b16 %v6902, %v6898
  %v7019 = vpack.c.b16 %v6903, %v6899
  %v7020 = vpack.c.b16 %v6904, %v6900
  %v7021 = vpack.c.b16 %v6905, %v6901
  %v7022 = vpack.c.b16 %v6910, %v6906
  %v7023 = vpack.c.b16 %v6911, %v6907
  %v7024 = vpack.c.b16 %v6912, %v6908
  %v7025 = vpack.c.b16 %v6913, %v6909
  %v7026 = vpack.c.b16 %v6918, %v6914
  %v7027 = vpack.c.b16 %v6919, %v6915
  %v7028 = vpack.c.b16 %v6920, %v6916
  %v7029 = vpack.c.b16 %v6921, %v6917
  %v7030 = vpack.c.b16 %v6926, %v6922
  %v7031 = vpack.c.b16 %v6927, %v6923
  %v7032 = vpack.c.b16 %v6928, %v6924
  %v7033 = vpack.c.b16 %v6929, %v6925
  %v7034 = vpack.c.b16 %v6934, %v6930
  %v7035 = vpack.c.b16 %v6935, %v6931
  %v7036 = vpack.c.b16 %v6936, %v6932
  %v7037 = vpack.c.b16 %v6937, %v6933
  %v7038 = vpack.c.b16 %v6942, %v6938
  %v7039 = vpack.c.b16 %v6943, %v6939
  %v7040 = vpack.c.b16 %v6944, %v6940
  %v7041 = vpack.c.b16 %v6945, %v6941
  %v7042 = vpack.c.b16 %v6950, %v6946
  %v7043 = vpack.c.b16 %v6951, %v6947
  %v7044 = vpack.c.b16 %v6952, %v6948
  %v7045 = vpack.c.b16 %v6953, %v6949
  %v7046 = vpack.c.b16 %v6958, %v6954
  %v7047 = vpack.c.b16 %v6959, %v6955
  %v7048 = vpack.c.b16 %v6960, %v6956
  %v7049 = vpack.c.b16 %v6961, %v6957
  %v7050 = vpack.c.b16 %v6966, %v6962
  %v7051 = vpack.c.b16 %v6967, %v6963
  %v7052 = vpack.c.b16 %v6968, %v6964
  %v7053 = vpack.c.b16 %v6969, %v6965
  %v7054 = vpack.c.b16 %v6974, %v6970
  %v7055 = vpack.c.b16 %v6975, %v6971
  %v7056 = vpack.c.b16 %v6976, %v6972
  %v7057 = vpack.c.b16 %v6977, %v6973
  %v7058 = vpack.c.b16 %v6982, %v6978
  %v7059 = vpack.c.b16 %v6983, %v6979
  %v7060 = vpack.c.b16 %v6984, %v6980
  %v7061 = vpack.c.b16 %v6985, %v6981
  %v7062 = vpack.c.b16 %v6990, %v6986
  %v7063 = vpack.c.b16 %v6991, %v6987
  %v7064 = vpack.c.b16 %v6992, %v6988
  %v7065 = vpack.c.b16 %v6993, %v6989
  %v7066 = vpack.c.b16 %v6998, %v6994
  %v7067 = vpack.c.b16 %v6999, %v6995
  %v7068 = vpack.c.b16 %v7000, %v6996
  %v7069 = vpack.c.b16 %v7001, %v6997
  %v7070 = vpack.c.b16 %v7006, %v7002
  %v7071 = vpack.c.b16 %v7007, %v7003
  %v7072 = vpack.c.b16 %v7008, %v7004
  %v7073 = vpack.c.b16 %v7009, %v7005
  %7138 = vmatpush.bf16.msra.mxu0 %v7038
  %7139 = vmatpush.bf16.msra.mxu0 %v7034
  %7140 = vmatpush.bf16.msra.mxu0 %v7030
  %7141 = vmatpush.bf16.msra.mxu0 %v7026
  %7142 = vmatpush.bf16.msra.mxu0 %v7022
  %7143 = vmatpush.bf16.msra.mxu0 %v7018
  %7144 = vmatpush.bf16.msra.mxu0 %v7014
  %7145 = vmatpush.bf16.msra.mxu0 %v7010
  %7146 = vmatmul.bf16.gmra.mxu0 %v3571
  %v7147 = vpop.f32.mrf.mxu0
  %v7148 = vadd.f32 0.0, %v7147
  %v7149 = vpop.f32.mrf.mxu0
  %v7150 = vadd.f32 0.0, %v7149
  %7151 = vmatmul.bf16.gmra.mxu0 %v3576
  %v7152 = vpop.f32.mrf.mxu0
  %v7153 = vadd.f32 0.0, %v7152
  %v7154 = vpop.f32.mrf.mxu0
  %v7155 = vadd.f32 0.0, %v7154
  %7156 = vmatmul.bf16.gmra.mxu0 %v3580
  %v7157 = vpop.f32.mrf.mxu0
  %v7158 = vadd.f32 0.0, %v7157
  %v7159 = vpop.f32.mrf.mxu0
  %v7160 = vadd.f32 0.0, %v7159
  %7161 = vmatmul.bf16.gmra.mxu0 %v3584
  %v7162 = vpop.f32.mrf.mxu0
  %v7163 = vadd.f32 0.0, %v7162
  %v7164 = vpop.f32.mrf.mxu0
  %v7165 = vadd.f32 0.0, %v7164
  %7166 = vmatmul.bf16.gmra.mxu0 %v3588
  %v7167 = vpop.f32.mrf.mxu0
  %v7168 = vadd.f32 0.0, %v7167
  %v7169 = vpop.f32.mrf.mxu0
  %v7170 = vadd.f32 0.0, %v7169
  %7171 = vmatmul.bf16.gmra.mxu0 %v3592
  %v7172 = vpop.f32.mrf.mxu0
  %v7173 = vadd.f32 0.0, %v7172
  %v7174 = vpop.f32.mrf.mxu0
  %v7175 = vadd.f32 0.0, %v7174
  %7176 = vmatmul.bf16.gmra.mxu0 %v3612
  %v7177 = vpop.f32.mrf.mxu0
  %v7178 = vadd.f32 0.0, %v7177
  %v7179 = vpop.f32.mrf.mxu0
  %v7180 = vadd.f32 0.0, %v7179
  %7181 = vdwg.mxu0
  %7182 = vmatpush.bf16.msra.mxu0 %v7070
  %7183 = vmatpush.bf16.msra.mxu0 %v7066
  %7184 = vmatpush.bf16.msra.mxu0 %v7062
  %7185 = vmatpush.bf16.msra.mxu0 %v7058
  %7186 = vmatpush.bf16.msra.mxu0 %v7054
  %7187 = vmatpush.bf16.msra.mxu0 %v7050
  %7188 = vmatpush.bf16.msra.mxu0 %v7046
  %7189 = vmatpush.bf16.msra.mxu0 %v7042
  %7190 = vmatmul.bf16.gmra.mxu0 %v3574
  %v7191 = vpop.f32.mrf.mxu0
  %v7192 = vadd.f32 %v7148, %v7191
  %v7193 = vpop.f32.mrf.mxu0
  %v7194 = vadd.f32 %v7150, %v7193
  %7195 = vmatmul.bf16.gmra.mxu0 %v3578
  %v7196 = vpop.f32.mrf.mxu0
  %v7197 = vadd.f32 %v7153, %v7196
  %v7198 = vpop.f32.mrf.mxu0
  %v7199 = vadd.f32 %v7155, %v7198
  %7200 = vmatmul.bf16.gmra.mxu0 %v3582
  %v7201 = vpop.f32.mrf.mxu0
  %v7202 = vadd.f32 %v7158, %v7201
  %v7203 = vpop.f32.mrf.mxu0
  %v7204 = vadd.f32 %v7160, %v7203
  %7205 = vmatmul.bf16.gmra.mxu0 %v3586
  %v7206 = vpop.f32.mrf.mxu0
  %v7207 = vadd.f32 %v7163, %v7206
  %v7208 = vpop.f32.mrf.mxu0
  %v7209 = vadd.f32 %v7165, %v7208
  %7210 = vmatmul.bf16.gmra.mxu0 %v3590
  %v7211 = vpop.f32.mrf.mxu0
  %v7212 = vadd.f32 %v7168, %v7211
  %v7213 = vpop.f32.mrf.mxu0
  %v7214 = vadd.f32 %v7170, %v7213
  %7215 = vmatmul.bf16.gmra.mxu0 %v3594
  %v7216 = vpop.f32.mrf.mxu0
  %v7217 = vadd.f32 %v7173, %v7216
  %v7218 = vpop.f32.mrf.mxu0
  %v7219 = vadd.f32 %v7175, %v7218
  %7220 = vmatmul.bf16.gmra.mxu0 %v3616
  %v7221 = vpop.f32.mrf.mxu0
  %v7222 = vadd.f32 %v7178, %v7221
  %v7223 = vpop.f32.mrf.mxu0
  %v7224 = vadd.f32 %v7180, %v7223
  %7225 = vdwg.mxu0
  %7226 = vmatpush.bf16.msra.mxu0 %v7039
  %7227 = vmatpush.bf16.msra.mxu0 %v7035
  %7228 = vmatpush.bf16.msra.mxu0 %v7031
  %7229 = vmatpush.bf16.msra.mxu0 %v7027
  %7230 = vmatpush.bf16.msra.mxu0 %v7023
  %7231 = vmatpush.bf16.msra.mxu0 %v7019
  %7232 = vmatpush.bf16.msra.mxu0 %v7015
  %7233 = vmatpush.bf16.msra.mxu0 %v7011
  %7234 = vmatmul.bf16.gmra.mxu0 %v3571
  %v7235 = vpop.f32.mrf.mxu0
  %v7236 = vadd.f32 0.0, %v7235
  %v7237 = vpop.f32.mrf.mxu0
  %v7238 = vadd.f32 0.0, %v7237
  %7239 = vmatmul.bf16.gmra.mxu0 %v3576
  %v7240 = vpop.f32.mrf.mxu0
  %v7241 = vadd.f32 0.0, %v7240
  %v7242 = vpop.f32.mrf.mxu0
  %v7243 = vadd.f32 0.0, %v7242
  %7244 = vmatmul.bf16.gmra.mxu0 %v3580
  %v7245 = vpop.f32.mrf.mxu0
  %v7246 = vadd.f32 0.0, %v7245
  %v7247 = vpop.f32.mrf.mxu0
  %v7248 = vadd.f32 0.0, %v7247
  %7249 = vmatmul.bf16.gmra.mxu0 %v3584
  %v7250 = vpop.f32.mrf.mxu0
  %v7251 = vadd.f32 0.0, %v7250
  %v7252 = vpop.f32.mrf.mxu0
  %v7253 = vadd.f32 0.0, %v7252
  %7254 = vmatmul.bf16.gmra.mxu0 %v3588
  %v7255 = vpop.f32.mrf.mxu0
  %v7256 = vadd.f32 0.0, %v7255
  %v7257 = vpop.f32.mrf.mxu0
  %v7258 = vadd.f32 0.0, %v7257
  %7259 = vmatmul.bf16.gmra.mxu0 %v3592
  %v7260 = vpop.f32.mrf.mxu0
  %v7261 = vadd.f32 0.0, %v7260
  %v7262 = vpop.f32.mrf.mxu0
  %v7263 = vadd.f32 0.0, %v7262
  %7264 = vmatmul.bf16.gmra.mxu0 %v3612
  %v7265 = vpop.f32.mrf.mxu0
  %v7266 = vadd.f32 0.0, %v7265
  %v7267 = vpop.f32.mrf.mxu0
  %v7268 = vadd.f32 0.0, %v7267
  %7269 = vdwg.mxu0
  %7270 = vmatpush.bf16.msra.mxu0 %v7071
  %7271 = vmatpush.bf16.msra.mxu0 %v7067
  %7272 = vmatpush.bf16.msra.mxu0 %v7063
  %7273 = vmatpush.bf16.msra.mxu0 %v7059
  %7274 = vmatpush.bf16.msra.mxu0 %v7055
  %7275 = vmatpush.bf16.msra.mxu0 %v7051
  %7276 = vmatpush.bf16.msra.mxu0 %v7047
  %7277 = vmatpush.bf16.msra.mxu0 %v7043
  %7278 = vmatmul.bf16.gmra.mxu0 %v3574
  %v7279 = vpop.f32.mrf.mxu0
  %v7280 = vadd.f32 %v7236, %v7279
  %v7281 = vpop.f32.mrf.mxu0
  %v7282 = vadd.f32 %v7238, %v7281
  %7283 = vmatmul.bf16.gmra.mxu0 %v3578
  %v7284 = vpop.f32.mrf.mxu0
  %v7285 = vadd.f32 %v7241, %v7284
  %v7286 = vpop.f32.mrf.mxu0
  %v7287 = vadd.f32 %v7243, %v7286
  %7288 = vmatmul.bf16.gmra.mxu0 %v3582
  %v7289 = vpop.f32.mrf.mxu0
  %v7290 = vadd.f32 %v7246, %v7289
  %v7291 = vpop.f32.mrf.mxu0
  %v7292 = vadd.f32 %v7248, %v7291
  %7293 = vmatmul.bf16.gmra.mxu0 %v3586
  %v7294 = vpop.f32.mrf.mxu0
  %v7295 = vadd.f32 %v7251, %v7294
  %v7296 = vpop.f32.mrf.mxu0
  %v7297 = vadd.f32 %v7253, %v7296
  %7298 = vmatmul.bf16.gmra.mxu0 %v3590
  %v7299 = vpop.f32.mrf.mxu0
  %v7300 = vadd.f32 %v7256, %v7299
  %v7301 = vpop.f32.mrf.mxu0
  %v7302 = vadd.f32 %v7258, %v7301
  %7303 = vmatmul.bf16.gmra.mxu0 %v3594
  %v7304 = vpop.f32.mrf.mxu0
  %v7305 = vadd.f32 %v7261, %v7304
  %v7306 = vpop.f32.mrf.mxu0
  %v7307 = vadd.f32 %v7263, %v7306
  %7308 = vmatmul.bf16.gmra.mxu0 %v3616
  %v7309 = vpop.f32.mrf.mxu0
  %v7310 = vadd.f32 %v7266, %v7309
  %v7311 = vpop.f32.mrf.mxu0
  %v7312 = vadd.f32 %v7268, %v7311
  %7313 = vdwg.mxu0
  %7314 = vmatpush.bf16.msra.mxu0 %v7040
  %7315 = vmatpush.bf16.msra.mxu0 %v7036
  %7316 = vmatpush.bf16.msra.mxu0 %v7032
  %7317 = vmatpush.bf16.msra.mxu0 %v7028
  %7318 = vmatpush.bf16.msra.mxu0 %v7024
  %7319 = vmatpush.bf16.msra.mxu0 %v7020
  %7320 = vmatpush.bf16.msra.mxu0 %v7016
  %7321 = vmatpush.bf16.msra.mxu0 %v7012
  %7322 = vmatmul.bf16.gmra.mxu0 %v3571
  %v7323 = vpop.f32.mrf.mxu0
  %v7324 = vadd.f32 0.0, %v7323
  %v7325 = vpop.f32.mrf.mxu0
  %v7326 = vadd.f32 0.0, %v7325
  %7327 = vmatmul.bf16.gmra.mxu0 %v3576
  %v7328 = vpop.f32.mrf.mxu0
  %v7329 = vadd.f32 0.0, %v7328
  %v7330 = vpop.f32.mrf.mxu0
  %v7331 = vadd.f32 0.0, %v7330
  %7332 = vmatmul.bf16.gmra.mxu0 %v3580
  %v7333 = vpop.f32.mrf.mxu0
  %v7334 = vadd.f32 0.0, %v7333
  %v7335 = vpop.f32.mrf.mxu0
  %v7336 = vadd.f32 0.0, %v7335
  %7337 = vmatmul.bf16.gmra.mxu0 %v3584
  %v7338 = vpop.f32.mrf.mxu0
  %v7339 = vadd.f32 0.0, %v7338
  %v7340 = vpop.f32.mrf.mxu0
  %v7341 = vadd.f32 0.0, %v7340
  %7342 = vmatmul.bf16.gmra.mxu0 %v3588
  %v7343 = vpop.f32.mrf.mxu0
  %v7344 = vadd.f32 0.0, %v7343
  %v7345 = vpop.f32.mrf.mxu0
  %v7346 = vadd.f32 0.0, %v7345
  %7347 = vmatmul.bf16.gmra.mxu0 %v3592
  %v7348 = vpop.f32.mrf.mxu0
  %v7349 = vadd.f32 0.0, %v7348
  %v7350 = vpop.f32.mrf.mxu0
  %v7351 = vadd.f32 0.0, %v7350
  %7352 = vmatmul.bf16.gmra.mxu0 %v3612
  %v7353 = vpop.f32.mrf.mxu0
  %v7354 = vadd.f32 0.0, %v7353
  %v7355 = vpop.f32.mrf.mxu0
  %v7356 = vadd.f32 0.0, %v7355
  %7357 = vdwg.mxu0
  %7358 = vmatpush.bf16.msra.mxu0 %v7072
  %7359 = vmatpush.bf16.msra.mxu0 %v7068
  %7360 = vmatpush.bf16.msra.mxu0 %v7064
  %7361 = vmatpush.bf16.msra.mxu0 %v7060
  %7362 = vmatpush.bf16.msra.mxu0 %v7056
  %7363 = vmatpush.bf16.msra.mxu0 %v7052
  %7364 = vmatpush.bf16.msra.mxu0 %v7048
  %7365 = vmatpush.bf16.msra.mxu0 %v7044
  %7366 = vmatmul.bf16.gmra.mxu0 %v3574
  %v7367 = vpop.f32.mrf.mxu0
  %v7368 = vadd.f32 %v7324, %v7367
  %v7369 = vpop.f32.mrf.mxu0
  %v7370 = vadd.f32 %v7326, %v7369
  %7371 = vmatmul.bf16.gmra.mxu0 %v3578
  %v7372 = vpop.f32.mrf.mxu0
  %v7373 = vadd.f32 %v7329, %v7372
  %v7374 = vpop.f32.mrf.mxu0
  %v7375 = vadd.f32 %v7331, %v7374
  %7376 = vmatmul.bf16.gmra.mxu0 %v3582
  %v7377 = vpop.f32.mrf.mxu0
  %v7378 = vadd.f32 %v7334, %v7377
  %v7379 = vpop.f32.mrf.mxu0
  %v7380 = vadd.f32 %v7336, %v7379
  %7381 = vmatmul.bf16.gmra.mxu0 %v3586
  %v7382 = vpop.f32.mrf.mxu0
  %v7383 = vadd.f32 %v7339, %v7382
  %v7384 = vpop.f32.mrf.mxu0
  %v7385 = vadd.f32 %v7341, %v7384
  %7386 = vmatmul.bf16.gmra.mxu0 %v3590
  %v7387 = vpop.f32.mrf.mxu0
  %v7388 = vadd.f32 %v7344, %v7387
  %v7389 = vpop.f32.mrf.mxu0
  %v7390 = vadd.f32 %v7346, %v7389
  %7391 = vmatmul.bf16.gmra.mxu0 %v3594
  %v7392 = vpop.f32.mrf.mxu0
  %v7393 = vadd.f32 %v7349, %v7392
  %v7394 = vpop.f32.mrf.mxu0
  %v7395 = vadd.f32 %v7351, %v7394
  %7396 = vmatmul.bf16.gmra.mxu0 %v3616
  %v7397 = vpop.f32.mrf.mxu0
  %v7398 = vadd.f32 %v7354, %v7397
  %v7399 = vpop.f32.mrf.mxu0
  %v7400 = vadd.f32 %v7356, %v7399
  %7401 = vdwg.mxu0
  %7402 = vmatpush.bf16.msra.mxu0 %v7041
  %7403 = vmatpush.bf16.msra.mxu0 %v7037
  %7404 = vmatpush.bf16.msra.mxu0 %v7033
  %7405 = vmatpush.bf16.msra.mxu0 %v7029
  %7406 = vmatpush.bf16.msra.mxu0 %v7025
  %7407 = vmatpush.bf16.msra.mxu0 %v7021
  %7408 = vmatpush.bf16.msra.mxu0 %v7017
  %7409 = vmatpush.bf16.msra.mxu0 %v7013
  %7410 = vmatmul.bf16.gmra.mxu0 %v3571
  %v7411 = vpop.f32.mrf.mxu0
  %v7412 = vadd.f32 0.0, %v7411
  %v7413 = vpop.f32.mrf.mxu0
  %v7414 = vadd.f32 0.0, %v7413
  %7415 = vmatmul.bf16.gmra.mxu0 %v3576
  %v7416 = vpop.f32.mrf.mxu0
  %v7417 = vadd.f32 0.0, %v7416
  %v7418 = vpop.f32.mrf.mxu0
  %v7419 = vadd.f32 0.0, %v7418
  %7420 = vmatmul.bf16.gmra.mxu0 %v3580
  %v7421 = vpop.f32.mrf.mxu0
  %v7422 = vadd.f32 0.0, %v7421
  %v7423 = vpop.f32.mrf.mxu0
  %v7424 = vadd.f32 0.0, %v7423
  %7425 = vmatmul.bf16.gmra.mxu0 %v3584
  %v7426 = vpop.f32.mrf.mxu0
  %v7427 = vadd.f32 0.0, %v7426
  %v7428 = vpop.f32.mrf.mxu0
  %v7429 = vadd.f32 0.0, %v7428
  %7430 = vmatmul.bf16.gmra.mxu0 %v3588
  %v7431 = vpop.f32.mrf.mxu0
  %v7432 = vadd.f32 0.0, %v7431
  %v7433 = vpop.f32.mrf.mxu0
  %v7434 = vadd.f32 0.0, %v7433
  %7435 = vmatmul.bf16.gmra.mxu0 %v3592
  %v7436 = vpop.f32.mrf.mxu0
  %v7437 = vadd.f32 0.0, %v7436
  %v7438 = vpop.f32.mrf.mxu0
  %v7439 = vadd.f32 0.0, %v7438
  %7440 = vmatmul.bf16.gmra.mxu0 %v3612
  %v7441 = vpop.f32.mrf.mxu0
  %v7442 = vadd.f32 0.0, %v7441
  %v7443 = vpop.f32.mrf.mxu0
  %v7444 = vadd.f32 0.0, %v7443
  %7445 = vdwg.mxu0
  %7446 = vmatpush.bf16.msra.mxu0 %v7073
  %7447 = vmatpush.bf16.msra.mxu0 %v7069
  %7448 = vmatpush.bf16.msra.mxu0 %v7065
  %7449 = vmatpush.bf16.msra.mxu0 %v7061
  %7450 = vmatpush.bf16.msra.mxu0 %v7057
  %7451 = vmatpush.bf16.msra.mxu0 %v7053
  %7452 = vmatpush.bf16.msra.mxu0 %v7049
  %7453 = vmatpush.bf16.msra.mxu0 %v7045
  %7454 = vmatmul.bf16.gmra.mxu0 %v3574
  %v7455 = vpop.f32.mrf.mxu0
  %v7456 = vadd.f32 %v7412, %v7455
  %v7457 = vpop.f32.mrf.mxu0
  %v7458 = vadd.f32 %v7414, %v7457
  %7459 = vmatmul.bf16.gmra.mxu0 %v3578
  %v7460 = vpop.f32.mrf.mxu0
  %v7461 = vadd.f32 %v7417, %v7460
  %v7462 = vpop.f32.mrf.mxu0
  %v7463 = vadd.f32 %v7419, %v7462
  %7464 = vmatmul.bf16.gmra.mxu0 %v3582
  %v7465 = vpop.f32.mrf.mxu0
  %v7466 = vadd.f32 %v7422, %v7465
  %v7467 = vpop.f32.mrf.mxu0
  %v7468 = vadd.f32 %v7424, %v7467
  %7469 = vmatmul.bf16.gmra.mxu0 %v3586
  %v7470 = vpop.f32.mrf.mxu0
  %v7471 = vadd.f32 %v7427, %v7470
  %v7472 = vpop.f32.mrf.mxu0
  %v7473 = vadd.f32 %v7429, %v7472
  %7474 = vmatmul.bf16.gmra.mxu0 %v3590
  %v7475 = vpop.f32.mrf.mxu0
  %v7476 = vadd.f32 %v7432, %v7475
  %v7477 = vpop.f32.mrf.mxu0
  %v7478 = vadd.f32 %v7434, %v7477
  %7479 = vmatmul.bf16.gmra.mxu0 %v3594
  %v7480 = vpop.f32.mrf.mxu0
  %v7481 = vadd.f32 %v7437, %v7480
  %v7482 = vpop.f32.mrf.mxu0
  %v7483 = vadd.f32 %v7439, %v7482
  %7484 = vmatmul.bf16.gmra.mxu0 %v3616
  %v7485 = vpop.f32.mrf.mxu0
  %v7486 = vadd.f32 %v7442, %v7485
  %v7487 = vpop.f32.mrf.mxu0
  %v7488 = vadd.f32 %v7444, %v7487
  %7489 = vdwg.mxu0
  %v7490 = vadd.f32 %v6697, %v7192
  %v7491 = vadd.f32 %v6698, %v7280
  %v7492 = vadd.f32 %v6699, %v7368
  %v7493 = vadd.f32 %v6700, %v7456
  %v7494 = vadd.f32 %v6701, %v7194
  %v7495 = vadd.f32 %v6702, %v7282
  %v7496 = vadd.f32 %v6703, %v7370
  %v7497 = vadd.f32 %v6704, %v7458
  %v7498 = vadd.f32 %v6705, %v7197
  %v7499 = vadd.f32 %v6706, %v7285
  %v7500 = vadd.f32 %v6707, %v7373
  %v7501 = vadd.f32 %v6708, %v7461
  %v7502 = vadd.f32 %v6709, %v7199
  %v7503 = vadd.f32 %v6710, %v7287
  %v7504 = vadd.f32 %v6711, %v7375
  %v7505 = vadd.f32 %v6712, %v7463
  %v7506 = vadd.f32 %v6713, %v7202
  %v7507 = vadd.f32 %v6714, %v7290
  %v7508 = vadd.f32 %v6715, %v7378
  %v7509 = vadd.f32 %v6716, %v7466
  %v7510 = vadd.f32 %v6717, %v7204
  %v7511 = vadd.f32 %v6718, %v7292
  %v7512 = vadd.f32 %v6719, %v7380
  %v7513 = vadd.f32 %v6720, %v7468
  %v7514 = vadd.f32 %v6721, %v7207
  %v7515 = vadd.f32 %v6722, %v7295
  %v7516 = vadd.f32 %v6723, %v7383
  %v7517 = vadd.f32 %v6724, %v7471
  %v7518 = vadd.f32 %v6725, %v7209
  %v7519 = vadd.f32 %v6726, %v7297
  %v7520 = vadd.f32 %v6727, %v7385
  %v7521 = vadd.f32 %v6728, %v7473
  %v7522 = vadd.f32 %v6729, %v7212
  %v7523 = vadd.f32 %v6730, %v7300
  %v7524 = vadd.f32 %v6731, %v7388
  %v7525 = vadd.f32 %v6732, %v7476
  %v7526 = vadd.f32 %v6733, %v7214
  %v7527 = vadd.f32 %v6734, %v7302
  %v7528 = vadd.f32 %v6735, %v7390
  %v7529 = vadd.f32 %v6736, %v7478
  %v7530 = vadd.f32 %v6737, %v7217
  %v7531 = vadd.f32 %v6738, %v7305
  %v7532 = vadd.f32 %v6739, %v7393
  %v7533 = vadd.f32 %v6740, %v7481
  %v7534 = vadd.f32 %v6741, %v7219
  %v7535 = vadd.f32 %v6742, %v7307
  %v7536 = vadd.f32 %v6743, %v7395
  %v7537 = vadd.f32 %v6744, %v7483
  %v7538 = vadd.f32 %v6745, %v7222
  %v7539 = vadd.f32 %v6746, %v7310
  %v7540 = vadd.f32 %v6747, %v7398
  %v7541 = vadd.f32 %v6748, %v7486
  %v7542 = vadd.f32 %v6749, %v7224
  %v7543 = vadd.f32 %v6750, %v7312
  %v7544 = vadd.f32 %v6751, %v7400
  %v7545 = vadd.f32 %v6752, %v7488
  %v7546 = vmax.f32 %v7490, %v7492
  %v7547 = vmax.f32 %v7491, %v7493
  %v7548 = vmax.f32 %v7494, %v7496
  %v7549 = vmax.f32 %v7495, %v7497
  %v7550 = vmax.f32 %v7498, %v7500
  %v7551 = vmax.f32 %v7499, %v7501
  %v7552 = vmax.f32 %v7502, %v7504
  %v7553 = vmax.f32 %v7503, %v7505
  %v7554 = vmax.f32 %v7506, %v7508
  %v7555 = vmax.f32 %v7507, %v7509
  %v7556 = vmax.f32 %v7510, %v7512
  %v7557 = vmax.f32 %v7511, %v7513
  %v7558 = vmax.f32 %v7514, %v7516
  %v7559 = vmax.f32 %v7515, %v7517
  %v7560 = vmax.f32 %v7518, %v7520
  %v7561 = vmax.f32 %v7519, %v7521
  %v7562 = vmax.f32 %v7522, %v7524
  %v7563 = vmax.f32 %v7523, %v7525
  %v7564 = vmax.f32 %v7526, %v7528
  %v7565 = vmax.f32 %v7527, %v7529
  %v7566 = vmax.f32 %v7530, %v7532
  %v7567 = vmax.f32 %v7531, %v7533
  %v7568 = vmax.f32 %v7534, %v7536
  %v7569 = vmax.f32 %v7535, %v7537
  %v7570 = vmax.f32 %v7538, %v7540
  %v7571 = vmax.f32 %v7539, %v7541
  %v7572 = vmax.f32 %v7542, %v7544
  %v7573 = vmax.f32 %v7543, %v7545
  %7574 = vmatpush.bf16.msra.mxu0 %v4029
  %7575 = vmatpush.bf16.msra.mxu0 %v4025
  %7576 = vmatpush.bf16.msra.mxu0 %v4021
  %7577 = vmatpush.bf16.msra.mxu0 %v4017
  %7578 = vmatpush.bf16.msra.mxu0 %v4013
  %7579 = vmatpush.bf16.msra.mxu0 %v4009
  %7580 = vmatpush.bf16.msra.mxu0 %v4005
  %7581 = vmatpush.bf16.msra.mxu0 %v4001
  %7582 = vmatmul.bf16.gmra.mxu0 %v3247
  %v7583 = vpop.f32.mrf.mxu0
  %v7584 = vadd.f32 0.0, %v7583
  %v7585 = vpop.f32.mrf.mxu0
  %v7586 = vadd.f32 0.0, %v7585
  %7587 = vmatmul.bf16.gmra.mxu0 %v3267
  %v7588 = vpop.f32.mrf.mxu0
  %v7589 = vadd.f32 0.0, %v7588
  %v7590 = vpop.f32.mrf.mxu0
  %v7591 = vadd.f32 0.0, %v7590
  %7592 = vmatmul.bf16.gmra.mxu0 %v3283
  %v7593 = vpop.f32.mrf.mxu0
  %v7594 = vadd.f32 0.0, %v7593
  %v7595 = vpop.f32.mrf.mxu0
  %v7596 = vadd.f32 0.0, %v7595
  %7597 = vmatmul.bf16.gmra.mxu0 %v3299
  %v7598 = vpop.f32.mrf.mxu0
  %v7599 = vadd.f32 0.0, %v7598
  %v7600 = vpop.f32.mrf.mxu0
  %v7601 = vadd.f32 0.0, %v7600
  %7602 = vmatmul.bf16.gmra.mxu0 %v3315
  %v7603 = vpop.f32.mrf.mxu0
  %v7604 = vadd.f32 0.0, %v7603
  %v7605 = vpop.f32.mrf.mxu0
  %v7606 = vadd.f32 0.0, %v7605
  %7607 = vmatmul.bf16.gmra.mxu0 %v3331
  %v7608 = vpop.f32.mrf.mxu0
  %v7609 = vadd.f32 0.0, %v7608
  %v7610 = vpop.f32.mrf.mxu0
  %v7611 = vadd.f32 0.0, %v7610
  %7612 = vmatmul.bf16.gmra.mxu0 %v3372
  %v7613 = vpop.f32.mrf.mxu0
  %v7614 = vadd.f32 0.0, %v7613
  %v7615 = vpop.f32.mrf.mxu0
  %v7616 = vadd.f32 0.0, %v7615
  %7617 = vdwg.mxu0
  %7618 = vmatpush.bf16.msra.mxu0 %v4061
  %7619 = vmatpush.bf16.msra.mxu0 %v4057
  %7620 = vmatpush.bf16.msra.mxu0 %v4053
  %7621 = vmatpush.bf16.msra.mxu0 %v4049
  %7622 = vmatpush.bf16.msra.mxu0 %v4045
  %7623 = vmatpush.bf16.msra.mxu0 %v4041
  %7624 = vmatpush.bf16.msra.mxu0 %v4037
  %7625 = vmatpush.bf16.msra.mxu0 %v4033
  %7626 = vmatmul.bf16.gmra.mxu0 %v3259
  %v7627 = vpop.f32.mrf.mxu0
  %v7628 = vadd.f32 %v7584, %v7627
  %v7629 = vpop.f32.mrf.mxu0
  %v7630 = vadd.f32 %v7586, %v7629
  %7631 = vmatmul.bf16.gmra.mxu0 %v3275
  %v7632 = vpop.f32.mrf.mxu0
  %v7633 = vadd.f32 %v7589, %v7632
  %v7634 = vpop.f32.mrf.mxu0
  %v7635 = vadd.f32 %v7591, %v7634
  %7636 = vmatmul.bf16.gmra.mxu0 %v3291
  %v7637 = vpop.f32.mrf.mxu0
  %v7638 = vadd.f32 %v7594, %v7637
  %v7639 = vpop.f32.mrf.mxu0
  %v7640 = vadd.f32 %v7596, %v7639
  %7641 = vmatmul.bf16.gmra.mxu0 %v3307
  %v7642 = vpop.f32.mrf.mxu0
  %v7643 = vadd.f32 %v7599, %v7642
  %v7644 = vpop.f32.mrf.mxu0
  %v7645 = vadd.f32 %v7601, %v7644
  %7646 = vmatmul.bf16.gmra.mxu0 %v3323
  %v7647 = vpop.f32.mrf.mxu0
  %v7648 = vadd.f32 %v7604, %v7647
  %v7649 = vpop.f32.mrf.mxu0
  %v7650 = vadd.f32 %v7606, %v7649
  %7651 = vmatmul.bf16.gmra.mxu0 %v3339
  %v7652 = vpop.f32.mrf.mxu0
  %v7653 = vadd.f32 %v7609, %v7652
  %v7654 = vpop.f32.mrf.mxu0
  %v7655 = vadd.f32 %v7611, %v7654
  %7656 = vmatmul.bf16.gmra.mxu0 %v3373
  %v7657 = vpop.f32.mrf.mxu0
  %v7658 = vadd.f32 %v7614, %v7657
  %v7659 = vpop.f32.mrf.mxu0
  %v7660 = vadd.f32 %v7616, %v7659
  %7661 = vdwg.mxu0
  %7662 = vmatpush.bf16.msra.mxu0 %v4030
  %7663 = vmatpush.bf16.msra.mxu0 %v4026
  %7664 = vmatpush.bf16.msra.mxu0 %v4022
  %7665 = vmatpush.bf16.msra.mxu0 %v4018
  %7666 = vmatpush.bf16.msra.mxu0 %v4014
  %7667 = vmatpush.bf16.msra.mxu0 %v4010
  %7668 = vmatpush.bf16.msra.mxu0 %v4006
  %7669 = vmatpush.bf16.msra.mxu0 %v4002
  %7670 = vmatmul.bf16.gmra.mxu0 %v3247
  %v7671 = vpop.f32.mrf.mxu0
  %v7672 = vadd.f32 0.0, %v7671
  %v7673 = vpop.f32.mrf.mxu0
  %v7674 = vadd.f32 0.0, %v7673
  %7675 = vmatmul.bf16.gmra.mxu0 %v3267
  %v7676 = vpop.f32.mrf.mxu0
  %v7677 = vadd.f32 0.0, %v7676
  %v7678 = vpop.f32.mrf.mxu0
  %v7679 = vadd.f32 0.0, %v7678
  %7680 = vmatmul.bf16.gmra.mxu0 %v3283
  %v7681 = vpop.f32.mrf.mxu0
  %v7682 = vadd.f32 0.0, %v7681
  %v7683 = vpop.f32.mrf.mxu0
  %v7684 = vadd.f32 0.0, %v7683
  %7685 = vmatmul.bf16.gmra.mxu0 %v3299
  %v7686 = vpop.f32.mrf.mxu0
  %v7687 = vadd.f32 0.0, %v7686
  %v7688 = vpop.f32.mrf.mxu0
  %v7689 = vadd.f32 0.0, %v7688
  %7690 = vmatmul.bf16.gmra.mxu0 %v3315
  %v7691 = vpop.f32.mrf.mxu0
  %v7692 = vadd.f32 0.0, %v7691
  %v7693 = vpop.f32.mrf.mxu0
  %v7694 = vadd.f32 0.0, %v7693
  %7695 = vmatmul.bf16.gmra.mxu0 %v3331
  %v7696 = vpop.f32.mrf.mxu0
  %v7697 = vadd.f32 0.0, %v7696
  %v7698 = vpop.f32.mrf.mxu0
  %v7699 = vadd.f32 0.0, %v7698
  %7700 = vmatmul.bf16.gmra.mxu0 %v3372
  %v7701 = vpop.f32.mrf.mxu0
  %v7702 = vadd.f32 0.0, %v7701
  %v7703 = vpop.f32.mrf.mxu0
  %v7704 = vadd.f32 0.0, %v7703
  %7705 = vdwg.mxu0
  %7706 = vmatpush.bf16.msra.mxu0 %v4062
  %7707 = vmatpush.bf16.msra.mxu0 %v4058
  %7708 = vmatpush.bf16.msra.mxu0 %v4054
  %7709 = vmatpush.bf16.msra.mxu0 %v4050
  %7710 = vmatpush.bf16.msra.mxu0 %v4046
  %7711 = vmatpush.bf16.msra.mxu0 %v4042
  %7712 = vmatpush.bf16.msra.mxu0 %v4038
  %7713 = vmatpush.bf16.msra.mxu0 %v4034
  %7714 = vmatmul.bf16.gmra.mxu0 %v3259
  %v7715 = vpop.f32.mrf.mxu0
  %v7716 = vadd.f32 %v7672, %v7715
  %v7717 = vpop.f32.mrf.mxu0
  %v7718 = vadd.f32 %v7674, %v7717
  %7719 = vmatmul.bf16.gmra.mxu0 %v3275
  %v7720 = vpop.f32.mrf.mxu0
  %v7721 = vadd.f32 %v7677, %v7720
  %v7722 = vpop.f32.mrf.mxu0
  %v7723 = vadd.f32 %v7679, %v7722
  %7724 = vmatmul.bf16.gmra.mxu0 %v3291
  %v7725 = vpop.f32.mrf.mxu0
  %v7726 = vadd.f32 %v7682, %v7725
  %v7727 = vpop.f32.mrf.mxu0
  %v7728 = vadd.f32 %v7684, %v7727
  %7729 = vmatmul.bf16.gmra.mxu0 %v3307
  %v7730 = vpop.f32.mrf.mxu0
  %v7731 = vadd.f32 %v7687, %v7730
  %v7732 = vpop.f32.mrf.mxu0
  %v7733 = vadd.f32 %v7689, %v7732
  %7734 = vmatmul.bf16.gmra.mxu0 %v3323
  %v7735 = vpop.f32.mrf.mxu0
  %v7736 = vadd.f32 %v7692, %v7735
  %v7737 = vpop.f32.mrf.mxu0
  %v7738 = vadd.f32 %v7694, %v7737
  %7739 = vmatmul.bf16.gmra.mxu0 %v3339
  %v7740 = vpop.f32.mrf.mxu0
  %v7741 = vadd.f32 %v7697, %v7740
  %v7742 = vpop.f32.mrf.mxu0
  %v7743 = vadd.f32 %v7699, %v7742
  %7744 = vmatmul.bf16.gmra.mxu0 %v3373
  %v7745 = vpop.f32.mrf.mxu0
  %v7746 = vadd.f32 %v7702, %v7745
  %v7747 = vpop.f32.mrf.mxu0
  %v7748 = vadd.f32 %v7704, %v7747
  %7749 = vdwg.mxu0
  %7750 = vmatpush.bf16.msra.mxu0 %v4031
  %7751 = vmatpush.bf16.msra.mxu0 %v4027
  %7752 = vmatpush.bf16.msra.mxu0 %v4023
  %7753 = vmatpush.bf16.msra.mxu0 %v4019
  %7754 = vmatpush.bf16.msra.mxu0 %v4015
  %7755 = vmatpush.bf16.msra.mxu0 %v4011
  %7756 = vmatpush.bf16.msra.mxu0 %v4007
  %7757 = vmatpush.bf16.msra.mxu0 %v4003
  %7758 = vmatmul.bf16.gmra.mxu0 %v3247
  %v7759 = vpop.f32.mrf.mxu0
  %v7760 = vadd.f32 0.0, %v7759
  %v7761 = vpop.f32.mrf.mxu0
  %v7762 = vadd.f32 0.0, %v7761
  %7763 = vmatmul.bf16.gmra.mxu0 %v3267
  %v7764 = vpop.f32.mrf.mxu0
  %v7765 = vadd.f32 0.0, %v7764
  %v7766 = vpop.f32.mrf.mxu0
  %v7767 = vadd.f32 0.0, %v7766
  %7768 = vmatmul.bf16.gmra.mxu0 %v3283
  %v7769 = vpop.f32.mrf.mxu0
  %v7770 = vadd.f32 0.0, %v7769
  %v7771 = vpop.f32.mrf.mxu0
  %v7772 = vadd.f32 0.0, %v7771
  %7773 = vmatmul.bf16.gmra.mxu0 %v3299
  %v7774 = vpop.f32.mrf.mxu0
  %v7775 = vadd.f32 0.0, %v7774
  %v7776 = vpop.f32.mrf.mxu0
  %v7777 = vadd.f32 0.0, %v7776
  %7778 = vmatmul.bf16.gmra.mxu0 %v3315
  %v7779 = vpop.f32.mrf.mxu0
  %v7780 = vadd.f32 0.0, %v7779
  %v7781 = vpop.f32.mrf.mxu0
  %v7782 = vadd.f32 0.0, %v7781
  %7783 = vmatmul.bf16.gmra.mxu0 %v3331
  %v7784 = vpop.f32.mrf.mxu0
  %v7785 = vadd.f32 0.0, %v7784
  %v7786 = vpop.f32.mrf.mxu0
  %v7787 = vadd.f32 0.0, %v7786
  %7788 = vmatmul.bf16.gmra.mxu0 %v3372
  %v7789 = vpop.f32.mrf.mxu0
  %v7790 = vadd.f32 0.0, %v7789
  %v7791 = vpop.f32.mrf.mxu0
  %v7792 = vadd.f32 0.0, %v7791
  %7793 = vdwg.mxu0
  %7794 = vmatpush.bf16.msra.mxu0 %v4063
  %7795 = vmatpush.bf16.msra.mxu0 %v4059
  %7796 = vmatpush.bf16.msra.mxu0 %v4055
  %7797 = vmatpush.bf16.msra.mxu0 %v4051
  %7798 = vmatpush.bf16.msra.mxu0 %v4047
  %7799 = vmatpush.bf16.msra.mxu0 %v4043
  %7800 = vmatpush.bf16.msra.mxu0 %v4039
  %7801 = vmatpush.bf16.msra.mxu0 %v4035
  %7802 = vmatmul.bf16.gmra.mxu0 %v3259
  %v7803 = vpop.f32.mrf.mxu0
  %v7804 = vadd.f32 %v7760, %v7803
  %v7805 = vpop.f32.mrf.mxu0
  %v7806 = vadd.f32 %v7762, %v7805
  %7807 = vmatmul.bf16.gmra.mxu0 %v3275
  %v7808 = vpop.f32.mrf.mxu0
  %v7809 = vadd.f32 %v7765, %v7808
  %v7810 = vpop.f32.mrf.mxu0
  %v7811 = vadd.f32 %v7767, %v7810
  %7812 = vmatmul.bf16.gmra.mxu0 %v3291
  %v7813 = vpop.f32.mrf.mxu0
  %v7814 = vadd.f32 %v7770, %v7813
  %v7815 = vpop.f32.mrf.mxu0
  %v7816 = vadd.f32 %v7772, %v7815
  %7817 = vmatmul.bf16.gmra.mxu0 %v3307
  %v7818 = vpop.f32.mrf.mxu0
  %v7819 = vadd.f32 %v7775, %v7818
  %v7820 = vpop.f32.mrf.mxu0
  %v7821 = vadd.f32 %v7777, %v7820
  %7822 = vmatmul.bf16.gmra.mxu0 %v3323
  %v7823 = vpop.f32.mrf.mxu0
  %v7824 = vadd.f32 %v7780, %v7823
  %v7825 = vpop.f32.mrf.mxu0
  %v7826 = vadd.f32 %v7782, %v7825
  %7827 = vmatmul.bf16.gmra.mxu0 %v3339
  %v7828 = vpop.f32.mrf.mxu0
  %v7829 = vadd.f32 %v7785, %v7828
  %v7830 = vpop.f32.mrf.mxu0
  %v7831 = vadd.f32 %v7787, %v7830
  %7832 = vmatmul.bf16.gmra.mxu0 %v3373
  %v7833 = vpop.f32.mrf.mxu0
  %v7834 = vadd.f32 %v7790, %v7833
  %v7835 = vpop.f32.mrf.mxu0
  %v7836 = vadd.f32 %v7792, %v7835
  %7837 = vdwg.mxu0
  %7838 = vmatpush.bf16.msra.mxu0 %v4032
  %7839 = vmatpush.bf16.msra.mxu0 %v4028
  %7840 = vmatpush.bf16.msra.mxu0 %v4024
  %7841 = vmatpush.bf16.msra.mxu0 %v4020
  %7842 = vmatpush.bf16.msra.mxu0 %v4016
  %7843 = vmatpush.bf16.msra.mxu0 %v4012
  %7844 = vmatpush.bf16.msra.mxu0 %v4008
  %7845 = vmatpush.bf16.msra.mxu0 %v4004
  %7846 = vmatmul.bf16.gmra.mxu0 %v3247
  %v7847 = vpop.f32.mrf.mxu0
  %v7848 = vadd.f32 0.0, %v7847
  %v7849 = vpop.f32.mrf.mxu0
  %v7850 = vadd.f32 0.0, %v7849
  %7851 = vmatmul.bf16.gmra.mxu0 %v3267
  %v7852 = vpop.f32.mrf.mxu0
  %v7853 = vadd.f32 0.0, %v7852
  %v7854 = vpop.f32.mrf.mxu0
  %v7855 = vadd.f32 0.0, %v7854
  %7856 = vmatmul.bf16.gmra.mxu0 %v3283
  %v7857 = vpop.f32.mrf.mxu0
  %v7858 = vadd.f32 0.0, %v7857
  %v7859 = vpop.f32.mrf.mxu0
  %v7860 = vadd.f32 0.0, %v7859
  %7861 = vmatmul.bf16.gmra.mxu0 %v3299
  %v7862 = vpop.f32.mrf.mxu0
  %v7863 = vadd.f32 0.0, %v7862
  %v7864 = vpop.f32.mrf.mxu0
  %v7865 = vadd.f32 0.0, %v7864
  %7866 = vmatmul.bf16.gmra.mxu0 %v3315
  %v7867 = vpop.f32.mrf.mxu0
  %v7868 = vadd.f32 0.0, %v7867
  %v7869 = vpop.f32.mrf.mxu0
  %v7870 = vadd.f32 0.0, %v7869
  %7871 = vmatmul.bf16.gmra.mxu0 %v3331
  %v7872 = vpop.f32.mrf.mxu0
  %v7873 = vadd.f32 0.0, %v7872
  %v7874 = vpop.f32.mrf.mxu0
  %v7875 = vadd.f32 0.0, %v7874
  %7876 = vmatmul.bf16.gmra.mxu0 %v3372
  %v7877 = vpop.f32.mrf.mxu0
  %v7878 = vadd.f32 0.0, %v7877
  %v7879 = vpop.f32.mrf.mxu0
  %v7880 = vadd.f32 0.0, %v7879
  %7881 = vdwg.mxu0
  %7882 = vmatpush.bf16.msra.mxu0 %v4064
  %7883 = vmatpush.bf16.msra.mxu0 %v4060
  %7884 = vmatpush.bf16.msra.mxu0 %v4056
  %7885 = vmatpush.bf16.msra.mxu0 %v4052
  %7886 = vmatpush.bf16.msra.mxu0 %v4048
  %7887 = vmatpush.bf16.msra.mxu0 %v4044
  %7888 = vmatpush.bf16.msra.mxu0 %v4040
  %7889 = vmatpush.bf16.msra.mxu0 %v4036
  %7890 = vmatmul.bf16.gmra.mxu0 %v3259
  %v7891 = vpop.f32.mrf.mxu0
  %v7892 = vadd.f32 %v7848, %v7891
  %v7893 = vpop.f32.mrf.mxu0
  %v7894 = vadd.f32 %v7850, %v7893
  %7895 = vmatmul.bf16.gmra.mxu0 %v3275
  %v7896 = vpop.f32.mrf.mxu0
  %v7897 = vadd.f32 %v7853, %v7896
  %v7898 = vpop.f32.mrf.mxu0
  %v7899 = vadd.f32 %v7855, %v7898
  %7900 = vmatmul.bf16.gmra.mxu0 %v3291
  %v7901 = vpop.f32.mrf.mxu0
  %v7902 = vadd.f32 %v7858, %v7901
  %v7903 = vpop.f32.mrf.mxu0
  %v7904 = vadd.f32 %v7860, %v7903
  %7905 = vmatmul.bf16.gmra.mxu0 %v3307
  %v7906 = vpop.f32.mrf.mxu0
  %v7907 = vadd.f32 %v7863, %v7906
  %v7908 = vpop.f32.mrf.mxu0
  %v7909 = vadd.f32 %v7865, %v7908
  %7910 = vmatmul.bf16.gmra.mxu0 %v3323
  %v7911 = vpop.f32.mrf.mxu0
  %v7912 = vadd.f32 %v7868, %v7911
  %v7913 = vpop.f32.mrf.mxu0
  %v7914 = vadd.f32 %v7870, %v7913
  %7915 = vmatmul.bf16.gmra.mxu0 %v3339
  %v7916 = vpop.f32.mrf.mxu0
  %v7917 = vadd.f32 %v7873, %v7916
  %v7918 = vpop.f32.mrf.mxu0
  %v7919 = vadd.f32 %v7875, %v7918
  %7920 = vmatmul.bf16.gmra.mxu0 %v3373
  %v7921 = vpop.f32.mrf.mxu0
  %v7922 = vadd.f32 %v7878, %v7921
  %v7923 = vpop.f32.mrf.mxu0
  %v7924 = vadd.f32 %v7880, %v7923
  %7925 = vdwg.mxu0
  %7926 = vmatpush.bf16.msra.mxu0 %v4715
  %7927 = vmatpush.bf16.msra.mxu0 %v4711
  %7928 = vmatpush.bf16.msra.mxu0 %v4707
  %7929 = vmatpush.bf16.msra.mxu0 %v4703
  %7930 = vmatpush.bf16.msra.mxu0 %v4699
  %7931 = vmatpush.bf16.msra.mxu0 %v4695
  %7932 = vmatpush.bf16.msra.mxu0 %v4691
  %7933 = vmatpush.bf16.msra.mxu0 %v4687
  %7934 = vmatmul.bf16.gmra.mxu0 %v3416
  %v7935 = vpop.f32.mrf.mxu0
  %v7936 = vadd.f32 %v7628, %v7935
  %v7937 = vpop.f32.mrf.mxu0
  %v7938 = vadd.f32 %v7630, %v7937
  %7939 = vmatmul.bf16.gmra.mxu0 %v3418
  %v7940 = vpop.f32.mrf.mxu0
  %v7941 = vadd.f32 %v7633, %v7940
  %v7942 = vpop.f32.mrf.mxu0
  %v7943 = vadd.f32 %v7635, %v7942
  %7944 = vmatmul.bf16.gmra.mxu0 %v3420
  %v7945 = vpop.f32.mrf.mxu0
  %v7946 = vadd.f32 %v7638, %v7945
  %v7947 = vpop.f32.mrf.mxu0
  %v7948 = vadd.f32 %v7640, %v7947
  %7949 = vmatmul.bf16.gmra.mxu0 %v3422
  %v7950 = vpop.f32.mrf.mxu0
  %v7951 = vadd.f32 %v7643, %v7950
  %v7952 = vpop.f32.mrf.mxu0
  %v7953 = vadd.f32 %v7645, %v7952
  %7954 = vmatmul.bf16.gmra.mxu0 %v3424
  %v7955 = vpop.f32.mrf.mxu0
  %v7956 = vadd.f32 %v7648, %v7955
  %v7957 = vpop.f32.mrf.mxu0
  %v7958 = vadd.f32 %v7650, %v7957
  %7959 = vmatmul.bf16.gmra.mxu0 %v3426
  %v7960 = vpop.f32.mrf.mxu0
  %v7961 = vadd.f32 %v7653, %v7960
  %v7962 = vpop.f32.mrf.mxu0
  %v7963 = vadd.f32 %v7655, %v7962
  %7964 = vmatmul.bf16.gmra.mxu0 %v3428
  %v7965 = vpop.f32.mrf.mxu0
  %v7966 = vadd.f32 %v7658, %v7965
  %v7967 = vpop.f32.mrf.mxu0
  %v7968 = vadd.f32 %v7660, %v7967
  %7969 = vdwg.mxu0
  %7970 = vmatpush.bf16.msra.mxu0 %v4747
  %7971 = vmatpush.bf16.msra.mxu0 %v4743
  %7972 = vmatpush.bf16.msra.mxu0 %v4739
  %7973 = vmatpush.bf16.msra.mxu0 %v4735
  %7974 = vmatpush.bf16.msra.mxu0 %v4731
  %7975 = vmatpush.bf16.msra.mxu0 %v4727
  %7976 = vmatpush.bf16.msra.mxu0 %v4723
  %7977 = vmatpush.bf16.msra.mxu0 %v4719
  %7978 = vmatmul.bf16.gmra.mxu0 %v3417
  %v7979 = vpop.f32.mrf.mxu0
  %v7980 = vadd.f32 %v7936, %v7979
  %v7981 = vpop.f32.mrf.mxu0
  %v7982 = vadd.f32 %v7938, %v7981
  %7983 = vmatmul.bf16.gmra.mxu0 %v3419
  %v7984 = vpop.f32.mrf.mxu0
  %v7985 = vadd.f32 %v7941, %v7984
  %v7986 = vpop.f32.mrf.mxu0
  %v7987 = vadd.f32 %v7943, %v7986
  %7988 = vmatmul.bf16.gmra.mxu0 %v3421
  %v7989 = vpop.f32.mrf.mxu0
  %v7990 = vadd.f32 %v7946, %v7989
  %v7991 = vpop.f32.mrf.mxu0
  %v7992 = vadd.f32 %v7948, %v7991
  %7993 = vmatmul.bf16.gmra.mxu0 %v3423
  %v7994 = vpop.f32.mrf.mxu0
  %v7995 = vadd.f32 %v7951, %v7994
  %v7996 = vpop.f32.mrf.mxu0
  %v7997 = vadd.f32 %v7953, %v7996
  %7998 = vmatmul.bf16.gmra.mxu0 %v3425
  %v7999 = vpop.f32.mrf.mxu0
  %v8000 = vadd.f32 %v7956, %v7999
  %v8001 = vpop.f32.mrf.mxu0
  %v8002 = vadd.f32 %v7958, %v8001
  %8003 = vmatmul.bf16.gmra.mxu0 %v3427
  %v8004 = vpop.f32.mrf.mxu0
  %v8005 = vadd.f32 %v7961, %v8004
  %v8006 = vpop.f32.mrf.mxu0
  %v8007 = vadd.f32 %v7963, %v8006
  %8008 = vmatmul.bf16.gmra.mxu0 %v3429
  %v8009 = vpop.f32.mrf.mxu0
  %v8010 = vadd.f32 %v7966, %v8009
  %v8011 = vpop.f32.mrf.mxu0
  %v8012 = vadd.f32 %v7968, %v8011
  %8013 = vdwg.mxu0
  %8014 = vmatpush.bf16.msra.mxu0 %v4716
  %8015 = vmatpush.bf16.msra.mxu0 %v4712
  %8016 = vmatpush.bf16.msra.mxu0 %v4708
  %8017 = vmatpush.bf16.msra.mxu0 %v4704
  %8018 = vmatpush.bf16.msra.mxu0 %v4700
  %8019 = vmatpush.bf16.msra.mxu0 %v4696
  %8020 = vmatpush.bf16.msra.mxu0 %v4692
  %8021 = vmatpush.bf16.msra.mxu0 %v4688
  %8022 = vmatmul.bf16.gmra.mxu0 %v3416
  %v8023 = vpop.f32.mrf.mxu0
  %v8024 = vadd.f32 %v7716, %v8023
  %v8025 = vpop.f32.mrf.mxu0
  %v8026 = vadd.f32 %v7718, %v8025
  %8027 = vmatmul.bf16.gmra.mxu0 %v3418
  %v8028 = vpop.f32.mrf.mxu0
  %v8029 = vadd.f32 %v7721, %v8028
  %v8030 = vpop.f32.mrf.mxu0
  %v8031 = vadd.f32 %v7723, %v8030
  %8032 = vmatmul.bf16.gmra.mxu0 %v3420
  %v8033 = vpop.f32.mrf.mxu0
  %v8034 = vadd.f32 %v7726, %v8033
  %v8035 = vpop.f32.mrf.mxu0
  %v8036 = vadd.f32 %v7728, %v8035
  %8037 = vmatmul.bf16.gmra.mxu0 %v3422
  %v8038 = vpop.f32.mrf.mxu0
  %v8039 = vadd.f32 %v7731, %v8038
  %v8040 = vpop.f32.mrf.mxu0
  %v8041 = vadd.f32 %v7733, %v8040
  %8042 = vmatmul.bf16.gmra.mxu0 %v3424
  %v8043 = vpop.f32.mrf.mxu0
  %v8044 = vadd.f32 %v7736, %v8043
  %v8045 = vpop.f32.mrf.mxu0
  %v8046 = vadd.f32 %v7738, %v8045
  %8047 = vmatmul.bf16.gmra.mxu0 %v3426
  %v8048 = vpop.f32.mrf.mxu0
  %v8049 = vadd.f32 %v7741, %v8048
  %v8050 = vpop.f32.mrf.mxu0
  %v8051 = vadd.f32 %v7743, %v8050
  %8052 = vmatmul.bf16.gmra.mxu0 %v3428
  %v8053 = vpop.f32.mrf.mxu0
  %v8054 = vadd.f32 %v7746, %v8053
  %v8055 = vpop.f32.mrf.mxu0
  %v8056 = vadd.f32 %v7748, %v8055
  %8057 = vdwg.mxu0
  %8058 = vmatpush.bf16.msra.mxu0 %v4748
  %8059 = vmatpush.bf16.msra.mxu0 %v4744
  %8060 = vmatpush.bf16.msra.mxu0 %v4740
  %8061 = vmatpush.bf16.msra.mxu0 %v4736
  %8062 = vmatpush.bf16.msra.mxu0 %v4732
  %8063 = vmatpush.bf16.msra.mxu0 %v4728
  %8064 = vmatpush.bf16.msra.mxu0 %v4724
  %8065 = vmatpush.bf16.msra.mxu0 %v4720
  %8066 = vmatmul.bf16.gmra.mxu0 %v3417
  %v8067 = vpop.f32.mrf.mxu0
  %v8068 = vadd.f32 %v8024, %v8067
  %v8069 = vpop.f32.mrf.mxu0
  %v8070 = vadd.f32 %v8026, %v8069
  %8071 = vmatmul.bf16.gmra.mxu0 %v3419
  %v8072 = vpop.f32.mrf.mxu0
  %v8073 = vadd.f32 %v8029, %v8072
  %v8074 = vpop.f32.mrf.mxu0
  %v8075 = vadd.f32 %v8031, %v8074
  %8076 = vmatmul.bf16.gmra.mxu0 %v3421
  %v8077 = vpop.f32.mrf.mxu0
  %v8078 = vadd.f32 %v8034, %v8077
  %v8079 = vpop.f32.mrf.mxu0
  %v8080 = vadd.f32 %v8036, %v8079
  %8081 = vmatmul.bf16.gmra.mxu0 %v3423
  %v8082 = vpop.f32.mrf.mxu0
  %v8083 = vadd.f32 %v8039, %v8082
  %v8084 = vpop.f32.mrf.mxu0
  %v8085 = vadd.f32 %v8041, %v8084
  %8086 = vmatmul.bf16.gmra.mxu0 %v3425
  %v8087 = vpop.f32.mrf.mxu0
  %v8088 = vadd.f32 %v8044, %v8087
  %v8089 = vpop.f32.mrf.mxu0
  %v8090 = vadd.f32 %v8046, %v8089
  %8091 = vmatmul.bf16.gmra.mxu0 %v3427
  %v8092 = vpop.f32.mrf.mxu0
  %v8093 = vadd.f32 %v8049, %v8092
  %v8094 = vpop.f32.mrf.mxu0
  %v8095 = vadd.f32 %v8051, %v8094
  %8096 = vmatmul.bf16.gmra.mxu0 %v3429
  %v8097 = vpop.f32.mrf.mxu0
  %v8098 = vadd.f32 %v8054, %v8097
  %v8099 = vpop.f32.mrf.mxu0
  %v8100 = vadd.f32 %v8056, %v8099
  %8101 = vdwg.mxu0
  %8102 = vmatpush.bf16.msra.mxu0 %v4717
  %8103 = vmatpush.bf16.msra.mxu0 %v4713
  %8104 = vmatpush.bf16.msra.mxu0 %v4709
  %8105 = vmatpush.bf16.msra.mxu0 %v4705
  %8106 = vmatpush.bf16.msra.mxu0 %v4701
  %8107 = vmatpush.bf16.msra.mxu0 %v4697
  %8108 = vmatpush.bf16.msra.mxu0 %v4693
  %8109 = vmatpush.bf16.msra.mxu0 %v4689
  %8110 = vmatmul.bf16.gmra.mxu0 %v3416
  %v8111 = vpop.f32.mrf.mxu0
  %v8112 = vadd.f32 %v7804, %v8111
  %v8113 = vpop.f32.mrf.mxu0
  %v8114 = vadd.f32 %v7806, %v8113
  %8115 = vmatmul.bf16.gmra.mxu0 %v3418
  %v8116 = vpop.f32.mrf.mxu0
  %v8117 = vadd.f32 %v7809, %v8116
  %v8118 = vpop.f32.mrf.mxu0
  %v8119 = vadd.f32 %v7811, %v8118
  %8120 = vmatmul.bf16.gmra.mxu0 %v3420
  %v8121 = vpop.f32.mrf.mxu0
  %v8122 = vadd.f32 %v7814, %v8121
  %v8123 = vpop.f32.mrf.mxu0
  %v8124 = vadd.f32 %v7816, %v8123
  %8125 = vmatmul.bf16.gmra.mxu0 %v3422
  %v8126 = vpop.f32.mrf.mxu0
  %v8127 = vadd.f32 %v7819, %v8126
  %v8128 = vpop.f32.mrf.mxu0
  %v8129 = vadd.f32 %v7821, %v8128
  %8130 = vmatmul.bf16.gmra.mxu0 %v3424
  %v8131 = vpop.f32.mrf.mxu0
  %v8132 = vadd.f32 %v7824, %v8131
  %v8133 = vpop.f32.mrf.mxu0
  %v8134 = vadd.f32 %v7826, %v8133
  %8135 = vmatmul.bf16.gmra.mxu0 %v3426
  %v8136 = vpop.f32.mrf.mxu0
  %v8137 = vadd.f32 %v7829, %v8136
  %v8138 = vpop.f32.mrf.mxu0
  %v8139 = vadd.f32 %v7831, %v8138
  %8140 = vmatmul.bf16.gmra.mxu0 %v3428
  %v8141 = vpop.f32.mrf.mxu0
  %v8142 = vadd.f32 %v7834, %v8141
  %v8143 = vpop.f32.mrf.mxu0
  %v8144 = vadd.f32 %v7836, %v8143
  %8145 = vdwg.mxu0
  %8146 = vmatpush.bf16.msra.mxu0 %v4749
  %8147 = vmatpush.bf16.msra.mxu0 %v4745
  %8148 = vmatpush.bf16.msra.mxu0 %v4741
  %8149 = vmatpush.bf16.msra.mxu0 %v4737
  %8150 = vmatpush.bf16.msra.mxu0 %v4733
  %8151 = vmatpush.bf16.msra.mxu0 %v4729
  %8152 = vmatpush.bf16.msra.mxu0 %v4725
  %8153 = vmatpush.bf16.msra.mxu0 %v4721
  %8154 = vmatmul.bf16.gmra.mxu0 %v3417
  %v8155 = vpop.f32.mrf.mxu0
  %v8156 = vadd.f32 %v8112, %v8155
  %v8157 = vpop.f32.mrf.mxu0
  %v8158 = vadd.f32 %v8114, %v8157
  %8159 = vmatmul.bf16.gmra.mxu0 %v3419
  %v8160 = vpop.f32.mrf.mxu0
  %v8161 = vadd.f32 %v8117, %v8160
  %v8162 = vpop.f32.mrf.mxu0
  %v8163 = vadd.f32 %v8119, %v8162
  %8164 = vmatmul.bf16.gmra.mxu0 %v3421
  %v8165 = vpop.f32.mrf.mxu0
  %v8166 = vadd.f32 %v8122, %v8165
  %v8167 = vpop.f32.mrf.mxu0
  %v8168 = vadd.f32 %v8124, %v8167
  %8169 = vmatmul.bf16.gmra.mxu0 %v3423
  %v8170 = vpop.f32.mrf.mxu0
  %v8171 = vadd.f32 %v8127, %v8170
  %v8172 = vpop.f32.mrf.mxu0
  %v8173 = vadd.f32 %v8129, %v8172
  %8174 = vmatmul.bf16.gmra.mxu0 %v3425
  %v8175 = vpop.f32.mrf.mxu0
  %v8176 = vadd.f32 %v8132, %v8175
  %v8177 = vpop.f32.mrf.mxu0
  %v8178 = vadd.f32 %v8134, %v8177
  %8179 = vmatmul.bf16.gmra.mxu0 %v3427
  %v8180 = vpop.f32.mrf.mxu0
  %v8181 = vadd.f32 %v8137, %v8180
  %v8182 = vpop.f32.mrf.mxu0
  %v8183 = vadd.f32 %v8139, %v8182
  %8184 = vmatmul.bf16.gmra.mxu0 %v3429
  %v8185 = vpop.f32.mrf.mxu0
  %v8186 = vadd.f32 %v8142, %v8185
  %v8187 = vpop.f32.mrf.mxu0
  %v8188 = vadd.f32 %v8144, %v8187
  %8189 = vdwg.mxu0
  %8190 = vmatpush.bf16.msra.mxu0 %v4718
  %8191 = vmatpush.bf16.msra.mxu0 %v4714
  %8192 = vmatpush.bf16.msra.mxu0 %v4710
  %8193 = vmatpush.bf16.msra.mxu0 %v4706
  %8194 = vmatpush.bf16.msra.mxu0 %v4702
  %8195 = vmatpush.bf16.msra.mxu0 %v4698
  %8196 = vmatpush.bf16.msra.mxu0 %v4694
  %8197 = vmatpush.bf16.msra.mxu0 %v4690
  %8198 = vmatmul.bf16.gmra.mxu0 %v3416
  %v8199 = vpop.f32.mrf.mxu0
  %v8200 = vadd.f32 %v7892, %v8199
  %v8201 = vpop.f32.mrf.mxu0
  %v8202 = vadd.f32 %v7894, %v8201
  %8203 = vmatmul.bf16.gmra.mxu0 %v3418
  %v8204 = vpop.f32.mrf.mxu0
  %v8205 = vadd.f32 %v7897, %v8204
  %v8206 = vpop.f32.mrf.mxu0
  %v8207 = vadd.f32 %v7899, %v8206
  %8208 = vmatmul.bf16.gmra.mxu0 %v3420
  %v8209 = vpop.f32.mrf.mxu0
  %v8210 = vadd.f32 %v7902, %v8209
  %v8211 = vpop.f32.mrf.mxu0
  %v8212 = vadd.f32 %v7904, %v8211
  %8213 = vmatmul.bf16.gmra.mxu0 %v3422
  %v8214 = vpop.f32.mrf.mxu0
  %v8215 = vadd.f32 %v7907, %v8214
  %v8216 = vpop.f32.mrf.mxu0
  %v8217 = vadd.f32 %v7909, %v8216
  %8218 = vmatmul.bf16.gmra.mxu0 %v3424
  %v8219 = vpop.f32.mrf.mxu0
  %v8220 = vadd.f32 %v7912, %v8219
  %v8221 = vpop.f32.mrf.mxu0
  %v8222 = vadd.f32 %v7914, %v8221
  %8223 = vmatmul.bf16.gmra.mxu0 %v3426
  %v8224 = vpop.f32.mrf.mxu0
  %v8225 = vadd.f32 %v7917, %v8224
  %v8226 = vpop.f32.mrf.mxu0
  %v8227 = vadd.f32 %v7919, %v8226
  %8228 = vmatmul.bf16.gmra.mxu0 %v3428
  %v8229 = vpop.f32.mrf.mxu0
  %v8230 = vadd.f32 %v7922, %v8229
  %v8231 = vpop.f32.mrf.mxu0
  %v8232 = vadd.f32 %v7924, %v8231
  %8233 = vdwg.mxu0
  %8234 = vmatpush.bf16.msra.mxu0 %v4750
  %8235 = vmatpush.bf16.msra.mxu0 %v4746
  %8236 = vmatpush.bf16.msra.mxu0 %v4742
  %8237 = vmatpush.bf16.msra.mxu0 %v4738
  %8238 = vmatpush.bf16.msra.mxu0 %v4734
  %8239 = vmatpush.bf16.msra.mxu0 %v4730
  %8240 = vmatpush.bf16.msra.mxu0 %v4726
  %8241 = vmatpush.bf16.msra.mxu0 %v4722
  %8242 = vmatmul.bf16.gmra.mxu0 %v3417
  %v8243 = vpop.f32.mrf.mxu0
  %v8244 = vadd.f32 %v8200, %v8243
  %v8245 = vpop.f32.mrf.mxu0
  %v8246 = vadd.f32 %v8202, %v8245
  %8247 = vmatmul.bf16.gmra.mxu0 %v3419
  %v8248 = vpop.f32.mrf.mxu0
  %v8249 = vadd.f32 %v8205, %v8248
  %v8250 = vpop.f32.mrf.mxu0
  %v8251 = vadd.f32 %v8207, %v8250
  %8252 = vmatmul.bf16.gmra.mxu0 %v3421
  %v8253 = vpop.f32.mrf.mxu0
  %v8254 = vadd.f32 %v8210, %v8253
  %v8255 = vpop.f32.mrf.mxu0
  %v8256 = vadd.f32 %v8212, %v8255
  %8257 = vmatmul.bf16.gmra.mxu0 %v3423
  %v8258 = vpop.f32.mrf.mxu0
  %v8259 = vadd.f32 %v8215, %v8258
  %v8260 = vpop.f32.mrf.mxu0
  %v8261 = vadd.f32 %v8217, %v8260
  %8262 = vmatmul.bf16.gmra.mxu0 %v3425
  %v8263 = vpop.f32.mrf.mxu0
  %v8264 = vadd.f32 %v8220, %v8263
  %v8265 = vpop.f32.mrf.mxu0
  %v8266 = vadd.f32 %v8222, %v8265
  %8267 = vmatmul.bf16.gmra.mxu0 %v3427
  %v8268 = vpop.f32.mrf.mxu0
  %v8269 = vadd.f32 %v8225, %v8268
  %v8270 = vpop.f32.mrf.mxu0
  %v8271 = vadd.f32 %v8227, %v8270
  %8272 = vmatmul.bf16.gmra.mxu0 %v3429
  %v8273 = vpop.f32.mrf.mxu0
  %v8274 = vadd.f32 %v8230, %v8273
  %v8275 = vpop.f32.mrf.mxu0
  %v8276 = vadd.f32 %v8232, %v8275
  %8277 = vdwg.mxu0
  %8278 = vmatpush.bf16.msra.mxu0 %v5452
  %8279 = vmatpush.bf16.msra.mxu0 %v5448
  %8280 = vmatpush.bf16.msra.mxu0 %v5444
  %8281 = vmatpush.bf16.msra.mxu0 %v5440
  %8282 = vmatpush.bf16.msra.mxu0 %v5436
  %8283 = vmatpush.bf16.msra.mxu0 %v5432
  %8284 = vmatpush.bf16.msra.mxu0 %v5428
  %8285 = vmatpush.bf16.msra.mxu0 %v5424
  %8286 = vmatmul.bf16.gmra.mxu0 %v3441
  %v8287 = vpop.f32.mrf.mxu0
  %v8288 = vadd.f32 0.0, %v8287
  %v8289 = vpop.f32.mrf.mxu0
  %v8290 = vadd.f32 0.0, %v8289
  %8291 = vmatmul.bf16.gmra.mxu0 %v3461
  %v8292 = vpop.f32.mrf.mxu0
  %v8293 = vadd.f32 0.0, %v8292
  %v8294 = vpop.f32.mrf.mxu0
  %v8295 = vadd.f32 0.0, %v8294
  %8296 = vmatmul.bf16.gmra.mxu0 %v3477
  %v8297 = vpop.f32.mrf.mxu0
  %v8298 = vadd.f32 0.0, %v8297
  %v8299 = vpop.f32.mrf.mxu0
  %v8300 = vadd.f32 0.0, %v8299
  %8301 = vmatmul.bf16.gmra.mxu0 %v3493
  %v8302 = vpop.f32.mrf.mxu0
  %v8303 = vadd.f32 0.0, %v8302
  %v8304 = vpop.f32.mrf.mxu0
  %v8305 = vadd.f32 0.0, %v8304
  %8306 = vmatmul.bf16.gmra.mxu0 %v3509
  %v8307 = vpop.f32.mrf.mxu0
  %v8308 = vadd.f32 0.0, %v8307
  %v8309 = vpop.f32.mrf.mxu0
  %v8310 = vadd.f32 0.0, %v8309
  %8311 = vmatmul.bf16.gmra.mxu0 %v3525
  %v8312 = vpop.f32.mrf.mxu0
  %v8313 = vadd.f32 0.0, %v8312
  %v8314 = vpop.f32.mrf.mxu0
  %v8315 = vadd.f32 0.0, %v8314
  %8316 = vmatmul.bf16.gmra.mxu0 %v3566
  %v8317 = vpop.f32.mrf.mxu0
  %v8318 = vadd.f32 0.0, %v8317
  %v8319 = vpop.f32.mrf.mxu0
  %v8320 = vadd.f32 0.0, %v8319
  %8321 = vdwg.mxu0
  %8322 = vmatpush.bf16.msra.mxu0 %v5484
  %8323 = vmatpush.bf16.msra.mxu0 %v5480
  %8324 = vmatpush.bf16.msra.mxu0 %v5476
  %8325 = vmatpush.bf16.msra.mxu0 %v5472
  %8326 = vmatpush.bf16.msra.mxu0 %v5468
  %8327 = vmatpush.bf16.msra.mxu0 %v5464
  %8328 = vmatpush.bf16.msra.mxu0 %v5460
  %8329 = vmatpush.bf16.msra.mxu0 %v5456
  %8330 = vmatmul.bf16.gmra.mxu0 %v3453
  %v8331 = vpop.f32.mrf.mxu0
  %v8332 = vadd.f32 %v8288, %v8331
  %v8333 = vpop.f32.mrf.mxu0
  %v8334 = vadd.f32 %v8290, %v8333
  %8335 = vmatmul.bf16.gmra.mxu0 %v3469
  %v8336 = vpop.f32.mrf.mxu0
  %v8337 = vadd.f32 %v8293, %v8336
  %v8338 = vpop.f32.mrf.mxu0
  %v8339 = vadd.f32 %v8295, %v8338
  %8340 = vmatmul.bf16.gmra.mxu0 %v3485
  %v8341 = vpop.f32.mrf.mxu0
  %v8342 = vadd.f32 %v8298, %v8341
  %v8343 = vpop.f32.mrf.mxu0
  %v8344 = vadd.f32 %v8300, %v8343
  %8345 = vmatmul.bf16.gmra.mxu0 %v3501
  %v8346 = vpop.f32.mrf.mxu0
  %v8347 = vadd.f32 %v8303, %v8346
  %v8348 = vpop.f32.mrf.mxu0
  %v8349 = vadd.f32 %v8305, %v8348
  %8350 = vmatmul.bf16.gmra.mxu0 %v3517
  %v8351 = vpop.f32.mrf.mxu0
  %v8352 = vadd.f32 %v8308, %v8351
  %v8353 = vpop.f32.mrf.mxu0
  %v8354 = vadd.f32 %v8310, %v8353
  %8355 = vmatmul.bf16.gmra.mxu0 %v3533
  %v8356 = vpop.f32.mrf.mxu0
  %v8357 = vadd.f32 %v8313, %v8356
  %v8358 = vpop.f32.mrf.mxu0
  %v8359 = vadd.f32 %v8315, %v8358
  %8360 = vmatmul.bf16.gmra.mxu0 %v3567
  %v8361 = vpop.f32.mrf.mxu0
  %v8362 = vadd.f32 %v8318, %v8361
  %v8363 = vpop.f32.mrf.mxu0
  %v8364 = vadd.f32 %v8320, %v8363
  %8365 = vdwg.mxu0
  %8366 = vmatpush.bf16.msra.mxu0 %v5453
  %8367 = vmatpush.bf16.msra.mxu0 %v5449
  %8368 = vmatpush.bf16.msra.mxu0 %v5445
  %8369 = vmatpush.bf16.msra.mxu0 %v5441
  %8370 = vmatpush.bf16.msra.mxu0 %v5437
  %8371 = vmatpush.bf16.msra.mxu0 %v5433
  %8372 = vmatpush.bf16.msra.mxu0 %v5429
  %8373 = vmatpush.bf16.msra.mxu0 %v5425
  %8374 = vmatmul.bf16.gmra.mxu0 %v3441
  %v8375 = vpop.f32.mrf.mxu0
  %v8376 = vadd.f32 0.0, %v8375
  %v8377 = vpop.f32.mrf.mxu0
  %v8378 = vadd.f32 0.0, %v8377
  %8379 = vmatmul.bf16.gmra.mxu0 %v3461
  %v8380 = vpop.f32.mrf.mxu0
  %v8381 = vadd.f32 0.0, %v8380
  %v8382 = vpop.f32.mrf.mxu0
  %v8383 = vadd.f32 0.0, %v8382
  %8384 = vmatmul.bf16.gmra.mxu0 %v3477
  %v8385 = vpop.f32.mrf.mxu0
  %v8386 = vadd.f32 0.0, %v8385
  %v8387 = vpop.f32.mrf.mxu0
  %v8388 = vadd.f32 0.0, %v8387
  %8389 = vmatmul.bf16.gmra.mxu0 %v3493
  %v8390 = vpop.f32.mrf.mxu0
  %v8391 = vadd.f32 0.0, %v8390
  %v8392 = vpop.f32.mrf.mxu0
  %v8393 = vadd.f32 0.0, %v8392
  %8394 = vmatmul.bf16.gmra.mxu0 %v3509
  %v8395 = vpop.f32.mrf.mxu0
  %v8396 = vadd.f32 0.0, %v8395
  %v8397 = vpop.f32.mrf.mxu0
  %v8398 = vadd.f32 0.0, %v8397
  %8399 = vmatmul.bf16.gmra.mxu0 %v3525
  %v8400 = vpop.f32.mrf.mxu0
  %v8401 = vadd.f32 0.0, %v8400
  %v8402 = vpop.f32.mrf.mxu0
  %v8403 = vadd.f32 0.0, %v8402
  %8404 = vmatmul.bf16.gmra.mxu0 %v3566
  %v8405 = vpop.f32.mrf.mxu0
  %v8406 = vadd.f32 0.0, %v8405
  %v8407 = vpop.f32.mrf.mxu0
  %v8408 = vadd.f32 0.0, %v8407
  %8409 = vdwg.mxu0
  %8410 = vmatpush.bf16.msra.mxu0 %v5485
  %8411 = vmatpush.bf16.msra.mxu0 %v5481
  %8412 = vmatpush.bf16.msra.mxu0 %v5477
  %8413 = vmatpush.bf16.msra.mxu0 %v5473
  %8414 = vmatpush.bf16.msra.mxu0 %v5469
  %8415 = vmatpush.bf16.msra.mxu0 %v5465
  %8416 = vmatpush.bf16.msra.mxu0 %v5461
  %8417 = vmatpush.bf16.msra.mxu0 %v5457
  %8418 = vmatmul.bf16.gmra.mxu0 %v3453
  %v8419 = vpop.f32.mrf.mxu0
  %v8420 = vadd.f32 %v8376, %v8419
  %v8421 = vpop.f32.mrf.mxu0
  %v8422 = vadd.f32 %v8378, %v8421
  %8423 = vmatmul.bf16.gmra.mxu0 %v3469
  %v8424 = vpop.f32.mrf.mxu0
  %v8425 = vadd.f32 %v8381, %v8424
  %v8426 = vpop.f32.mrf.mxu0
  %v8427 = vadd.f32 %v8383, %v8426
  %8428 = vmatmul.bf16.gmra.mxu0 %v3485
  %v8429 = vpop.f32.mrf.mxu0
  %v8430 = vadd.f32 %v8386, %v8429
  %v8431 = vpop.f32.mrf.mxu0
  %v8432 = vadd.f32 %v8388, %v8431
  %8433 = vmatmul.bf16.gmra.mxu0 %v3501
  %v8434 = vpop.f32.mrf.mxu0
  %v8435 = vadd.f32 %v8391, %v8434
  %v8436 = vpop.f32.mrf.mxu0
  %v8437 = vadd.f32 %v8393, %v8436
  %8438 = vmatmul.bf16.gmra.mxu0 %v3517
  %v8439 = vpop.f32.mrf.mxu0
  %v8440 = vadd.f32 %v8396, %v8439
  %v8441 = vpop.f32.mrf.mxu0
  %v8442 = vadd.f32 %v8398, %v8441
  %8443 = vmatmul.bf16.gmra.mxu0 %v3533
  %v8444 = vpop.f32.mrf.mxu0
  %v8445 = vadd.f32 %v8401, %v8444
  %v8446 = vpop.f32.mrf.mxu0
  %v8447 = vadd.f32 %v8403, %v8446
  %8448 = vmatmul.bf16.gmra.mxu0 %v3567
  %v8449 = vpop.f32.mrf.mxu0
  %v8450 = vadd.f32 %v8406, %v8449
  %v8451 = vpop.f32.mrf.mxu0
  %v8452 = vadd.f32 %v8408, %v8451
  %8453 = vdwg.mxu0
  %8454 = vmatpush.bf16.msra.mxu0 %v5454
  %8455 = vmatpush.bf16.msra.mxu0 %v5450
  %8456 = vmatpush.bf16.msra.mxu0 %v5446
  %8457 = vmatpush.bf16.msra.mxu0 %v5442
  %8458 = vmatpush.bf16.msra.mxu0 %v5438
  %8459 = vmatpush.bf16.msra.mxu0 %v5434
  %8460 = vmatpush.bf16.msra.mxu0 %v5430
  %8461 = vmatpush.bf16.msra.mxu0 %v5426
  %8462 = vmatmul.bf16.gmra.mxu0 %v3441
  %v8463 = vpop.f32.mrf.mxu0
  %v8464 = vadd.f32 0.0, %v8463
  %v8465 = vpop.f32.mrf.mxu0
  %v8466 = vadd.f32 0.0, %v8465
  %8467 = vmatmul.bf16.gmra.mxu0 %v3461
  %v8468 = vpop.f32.mrf.mxu0
  %v8469 = vadd.f32 0.0, %v8468
  %v8470 = vpop.f32.mrf.mxu0
  %v8471 = vadd.f32 0.0, %v8470
  %8472 = vmatmul.bf16.gmra.mxu0 %v3477
  %v8473 = vpop.f32.mrf.mxu0
  %v8474 = vadd.f32 0.0, %v8473
  %v8475 = vpop.f32.mrf.mxu0
  %v8476 = vadd.f32 0.0, %v8475
  %8477 = vmatmul.bf16.gmra.mxu0 %v3493
  %v8478 = vpop.f32.mrf.mxu0
  %v8479 = vadd.f32 0.0, %v8478
  %v8480 = vpop.f32.mrf.mxu0
  %v8481 = vadd.f32 0.0, %v8480
  %8482 = vmatmul.bf16.gmra.mxu0 %v3509
  %v8483 = vpop.f32.mrf.mxu0
  %v8484 = vadd.f32 0.0, %v8483
  %v8485 = vpop.f32.mrf.mxu0
  %v8486 = vadd.f32 0.0, %v8485
  %8487 = vmatmul.bf16.gmra.mxu0 %v3525
  %v8488 = vpop.f32.mrf.mxu0
  %v8489 = vadd.f32 0.0, %v8488
  %v8490 = vpop.f32.mrf.mxu0
  %v8491 = vadd.f32 0.0, %v8490
  %8492 = vmatmul.bf16.gmra.mxu0 %v3566
  %v8493 = vpop.f32.mrf.mxu0
  %v8494 = vadd.f32 0.0, %v8493
  %v8495 = vpop.f32.mrf.mxu0
  %v8496 = vadd.f32 0.0, %v8495
  %8497 = vdwg.mxu0
  %8498 = vmatpush.bf16.msra.mxu0 %v5486
  %8499 = vmatpush.bf16.msra.mxu0 %v5482
  %8500 = vmatpush.bf16.msra.mxu0 %v5478
  %8501 = vmatpush.bf16.msra.mxu0 %v5474
  %8502 = vmatpush.bf16.msra.mxu0 %v5470
  %8503 = vmatpush.bf16.msra.mxu0 %v5466
  %8504 = vmatpush.bf16.msra.mxu0 %v5462
  %8505 = vmatpush.bf16.msra.mxu0 %v5458
  %8506 = vmatmul.bf16.gmra.mxu0 %v3453
  %v8507 = vpop.f32.mrf.mxu0
  %v8508 = vadd.f32 %v8464, %v8507
  %v8509 = vpop.f32.mrf.mxu0
  %v8510 = vadd.f32 %v8466, %v8509
  %8511 = vmatmul.bf16.gmra.mxu0 %v3469
  %v8512 = vpop.f32.mrf.mxu0
  %v8513 = vadd.f32 %v8469, %v8512
  %v8514 = vpop.f32.mrf.mxu0
  %v8515 = vadd.f32 %v8471, %v8514
  %8516 = vmatmul.bf16.gmra.mxu0 %v3485
  %v8517 = vpop.f32.mrf.mxu0
  %v8518 = vadd.f32 %v8474, %v8517
  %v8519 = vpop.f32.mrf.mxu0
  %v8520 = vadd.f32 %v8476, %v8519
  %8521 = vmatmul.bf16.gmra.mxu0 %v3501
  %v8522 = vpop.f32.mrf.mxu0
  %v8523 = vadd.f32 %v8479, %v8522
  %v8524 = vpop.f32.mrf.mxu0
  %v8525 = vadd.f32 %v8481, %v8524
  %8526 = vmatmul.bf16.gmra.mxu0 %v3517
  %v8527 = vpop.f32.mrf.mxu0
  %v8528 = vadd.f32 %v8484, %v8527
  %v8529 = vpop.f32.mrf.mxu0
  %v8530 = vadd.f32 %v8486, %v8529
  %8531 = vmatmul.bf16.gmra.mxu0 %v3533
  %v8532 = vpop.f32.mrf.mxu0
  %v8533 = vadd.f32 %v8489, %v8532
  %v8534 = vpop.f32.mrf.mxu0
  %v8535 = vadd.f32 %v8491, %v8534
  %8536 = vmatmul.bf16.gmra.mxu0 %v3567
  %v8537 = vpop.f32.mrf.mxu0
  %v8538 = vadd.f32 %v8494, %v8537
  %v8539 = vpop.f32.mrf.mxu0
  %v8540 = vadd.f32 %v8496, %v8539
  %8541 = vdwg.mxu0
  %8542 = vmatpush.bf16.msra.mxu0 %v5455
  %8543 = vmatpush.bf16.msra.mxu0 %v5451
  %8544 = vmatpush.bf16.msra.mxu0 %v5447
  %8545 = vmatpush.bf16.msra.mxu0 %v5443
  %8546 = vmatpush.bf16.msra.mxu0 %v5439
  %8547 = vmatpush.bf16.msra.mxu0 %v5435
  %8548 = vmatpush.bf16.msra.mxu0 %v5431
  %8549 = vmatpush.bf16.msra.mxu0 %v5427
  %8550 = vmatmul.bf16.gmra.mxu0 %v3441
  %v8551 = vpop.f32.mrf.mxu0
  %v8552 = vadd.f32 0.0, %v8551
  %v8553 = vpop.f32.mrf.mxu0
  %v8554 = vadd.f32 0.0, %v8553
  %8555 = vmatmul.bf16.gmra.mxu0 %v3461
  %v8556 = vpop.f32.mrf.mxu0
  %v8557 = vadd.f32 0.0, %v8556
  %v8558 = vpop.f32.mrf.mxu0
  %v8559 = vadd.f32 0.0, %v8558
  %8560 = vmatmul.bf16.gmra.mxu0 %v3477
  %v8561 = vpop.f32.mrf.mxu0
  %v8562 = vadd.f32 0.0, %v8561
  %v8563 = vpop.f32.mrf.mxu0
  %v8564 = vadd.f32 0.0, %v8563
  %8565 = vmatmul.bf16.gmra.mxu0 %v3493
  %v8566 = vpop.f32.mrf.mxu0
  %v8567 = vadd.f32 0.0, %v8566
  %v8568 = vpop.f32.mrf.mxu0
  %v8569 = vadd.f32 0.0, %v8568
  %8570 = vmatmul.bf16.gmra.mxu0 %v3509
  %v8571 = vpop.f32.mrf.mxu0
  %v8572 = vadd.f32 0.0, %v8571
  %v8573 = vpop.f32.mrf.mxu0
  %v8574 = vadd.f32 0.0, %v8573
  %8575 = vmatmul.bf16.gmra.mxu0 %v3525
  %v8576 = vpop.f32.mrf.mxu0
  %v8577 = vadd.f32 0.0, %v8576
  %v8578 = vpop.f32.mrf.mxu0
  %v8579 = vadd.f32 0.0, %v8578
  %8580 = vmatmul.bf16.gmra.mxu0 %v3566
  %v8581 = vpop.f32.mrf.mxu0
  %v8582 = vadd.f32 0.0, %v8581
  %v8583 = vpop.f32.mrf.mxu0
  %v8584 = vadd.f32 0.0, %v8583
  %8585 = vdwg.mxu0
  %8586 = vmatpush.bf16.msra.mxu0 %v5487
  %8587 = vmatpush.bf16.msra.mxu0 %v5483
  %8588 = vmatpush.bf16.msra.mxu0 %v5479
  %8589 = vmatpush.bf16.msra.mxu0 %v5475
  %8590 = vmatpush.bf16.msra.mxu0 %v5471
  %8591 = vmatpush.bf16.msra.mxu0 %v5467
  %8592 = vmatpush.bf16.msra.mxu0 %v5463
  %8593 = vmatpush.bf16.msra.mxu0 %v5459
  %8594 = vmatmul.bf16.gmra.mxu0 %v3453
  %v8595 = vpop.f32.mrf.mxu0
  %v8596 = vadd.f32 %v8552, %v8595
  %v8597 = vpop.f32.mrf.mxu0
  %v8598 = vadd.f32 %v8554, %v8597
  %8599 = vmatmul.bf16.gmra.mxu0 %v3469
  %v8600 = vpop.f32.mrf.mxu0
  %v8601 = vadd.f32 %v8557, %v8600
  %v8602 = vpop.f32.mrf.mxu0
  %v8603 = vadd.f32 %v8559, %v8602
  %8604 = vmatmul.bf16.gmra.mxu0 %v3485
  %v8605 = vpop.f32.mrf.mxu0
  %v8606 = vadd.f32 %v8562, %v8605
  %v8607 = vpop.f32.mrf.mxu0
  %v8608 = vadd.f32 %v8564, %v8607
  %8609 = vmatmul.bf16.gmra.mxu0 %v3501
  %v8610 = vpop.f32.mrf.mxu0
  %v8611 = vadd.f32 %v8567, %v8610
  %v8612 = vpop.f32.mrf.mxu0
  %v8613 = vadd.f32 %v8569, %v8612
  %8614 = vmatmul.bf16.gmra.mxu0 %v3517
  %v8615 = vpop.f32.mrf.mxu0
  %v8616 = vadd.f32 %v8572, %v8615
  %v8617 = vpop.f32.mrf.mxu0
  %v8618 = vadd.f32 %v8574, %v8617
  %8619 = vmatmul.bf16.gmra.mxu0 %v3533
  %v8620 = vpop.f32.mrf.mxu0
  %v8621 = vadd.f32 %v8577, %v8620
  %v8622 = vpop.f32.mrf.mxu0
  %v8623 = vadd.f32 %v8579, %v8622
  %8624 = vmatmul.bf16.gmra.mxu0 %v3567
  %v8625 = vpop.f32.mrf.mxu0
  %v8626 = vadd.f32 %v8582, %v8625
  %v8627 = vpop.f32.mrf.mxu0
  %v8628 = vadd.f32 %v8584, %v8627
  %8629 = vdwg.mxu0
  %v8630 = vadd.f32 %v7980, %v8332
  %v8631 = vadd.f32 %v8068, %v8420
  %v8632 = vadd.f32 %v8156, %v8508
  %v8633 = vadd.f32 %v8244, %v8596
  %v8634 = vadd.f32 %v7982, %v8334
  %v8635 = vadd.f32 %v8070, %v8422
  %v8636 = vadd.f32 %v8158, %v8510
  %v8637 = vadd.f32 %v8246, %v8598
  %v8638 = vadd.f32 %v7985, %v8337
  %v8639 = vadd.f32 %v8073, %v8425
  %v8640 = vadd.f32 %v8161, %v8513
  %v8641 = vadd.f32 %v8249, %v8601
  %v8642 = vadd.f32 %v7987, %v8339
  %v8643 = vadd.f32 %v8075, %v8427
  %v8644 = vadd.f32 %v8163, %v8515
  %v8645 = vadd.f32 %v8251, %v8603
  %v8646 = vadd.f32 %v7990, %v8342
  %v8647 = vadd.f32 %v8078, %v8430
  %v8648 = vadd.f32 %v8166, %v8518
  %v8649 = vadd.f32 %v8254, %v8606
  %v8650 = vadd.f32 %v7992, %v8344
  %v8651 = vadd.f32 %v8080, %v8432
  %v8652 = vadd.f32 %v8168, %v8520
  %v8653 = vadd.f32 %v8256, %v8608
  %v8654 = vadd.f32 %v7995, %v8347
  %v8655 = vadd.f32 %v8083, %v8435
  %v8656 = vadd.f32 %v8171, %v8523
  %v8657 = vadd.f32 %v8259, %v8611
  %v8658 = vadd.f32 %v7997, %v8349
  %v8659 = vadd.f32 %v8085, %v8437
  %v8660 = vadd.f32 %v8173, %v8525
  %v8661 = vadd.f32 %v8261, %v8613
  %v8662 = vadd.f32 %v8000, %v8352
  %v8663 = vadd.f32 %v8088, %v8440
  %v8664 = vadd.f32 %v8176, %v8528
  %v8665 = vadd.f32 %v8264, %v8616
  %v8666 = vadd.f32 %v8002, %v8354
  %v8667 = vadd.f32 %v8090, %v8442
  %v8668 = vadd.f32 %v8178, %v8530
  %v8669 = vadd.f32 %v8266, %v8618
  %v8670 = vadd.f32 %v8005, %v8357
  %v8671 = vadd.f32 %v8093, %v8445
  %v8672 = vadd.f32 %v8181, %v8533
  %v8673 = vadd.f32 %v8269, %v8621
  %v8674 = vadd.f32 %v8007, %v8359
  %v8675 = vadd.f32 %v8095, %v8447
  %v8676 = vadd.f32 %v8183, %v8535
  %v8677 = vadd.f32 %v8271, %v8623
  %v8678 = vadd.f32 %v8010, %v8362
  %v8679 = vadd.f32 %v8098, %v8450
  %v8680 = vadd.f32 %v8186, %v8538
  %v8681 = vadd.f32 %v8274, %v8626
  %v8682 = vadd.f32 %v8012, %v8364
  %v8683 = vadd.f32 %v8100, %v8452
  %v8684 = vadd.f32 %v8188, %v8540
  %v8685 = vadd.f32 %v8276, %v8628
  %8686 = vmatpush.bf16.msra.mxu0 %v6245
  %8687 = vmatpush.bf16.msra.mxu0 %v6241
  %8688 = vmatpush.bf16.msra.mxu0 %v6237
  %8689 = vmatpush.bf16.msra.mxu0 %v6233
  %8690 = vmatpush.bf16.msra.mxu0 %v6229
  %8691 = vmatpush.bf16.msra.mxu0 %v6225
  %8692 = vmatpush.bf16.msra.mxu0 %v6221
  %8693 = vmatpush.bf16.msra.mxu0 %v6217
  %8694 = vmatmul.bf16.gmra.mxu0 %v3571
  %v8695 = vpop.f32.mrf.mxu0
  %v8696 = vadd.f32 0.0, %v8695
  %v8697 = vpop.f32.mrf.mxu0
  %v8698 = vadd.f32 0.0, %v8697
  %8699 = vmatmul.bf16.gmra.mxu0 %v3576
  %v8700 = vpop.f32.mrf.mxu0
  %v8701 = vadd.f32 0.0, %v8700
  %v8702 = vpop.f32.mrf.mxu0
  %v8703 = vadd.f32 0.0, %v8702
  %8704 = vmatmul.bf16.gmra.mxu0 %v3580
  %v8705 = vpop.f32.mrf.mxu0
  %v8706 = vadd.f32 0.0, %v8705
  %v8707 = vpop.f32.mrf.mxu0
  %v8708 = vadd.f32 0.0, %v8707
  %8709 = vmatmul.bf16.gmra.mxu0 %v3584
  %v8710 = vpop.f32.mrf.mxu0
  %v8711 = vadd.f32 0.0, %v8710
  %v8712 = vpop.f32.mrf.mxu0
  %v8713 = vadd.f32 0.0, %v8712
  %8714 = vmatmul.bf16.gmra.mxu0 %v3588
  %v8715 = vpop.f32.mrf.mxu0
  %v8716 = vadd.f32 0.0, %v8715
  %v8717 = vpop.f32.mrf.mxu0
  %v8718 = vadd.f32 0.0, %v8717
  %8719 = vmatmul.bf16.gmra.mxu0 %v3592
  %v8720 = vpop.f32.mrf.mxu0
  %v8721 = vadd.f32 0.0, %v8720
  %v8722 = vpop.f32.mrf.mxu0
  %v8723 = vadd.f32 0.0, %v8722
  %8724 = vmatmul.bf16.gmra.mxu0 %v3612
  %v8725 = vpop.f32.mrf.mxu0
  %v8726 = vadd.f32 0.0, %v8725
  %v8727 = vpop.f32.mrf.mxu0
  %v8728 = vadd.f32 0.0, %v8727
  %8729 = vdwg.mxu0
  %8730 = vmatpush.bf16.msra.mxu0 %v6277
  %8731 = vmatpush.bf16.msra.mxu0 %v6273
  %8732 = vmatpush.bf16.msra.mxu0 %v6269
  %8733 = vmatpush.bf16.msra.mxu0 %v6265
  %8734 = vmatpush.bf16.msra.mxu0 %v6261
  %8735 = vmatpush.bf16.msra.mxu0 %v6257
  %8736 = vmatpush.bf16.msra.mxu0 %v6253
  %8737 = vmatpush.bf16.msra.mxu0 %v6249
  %8738 = vmatmul.bf16.gmra.mxu0 %v3574
  %v8739 = vpop.f32.mrf.mxu0
  %v8740 = vadd.f32 %v8696, %v8739
  %v8741 = vpop.f32.mrf.mxu0
  %v8742 = vadd.f32 %v8698, %v8741
  %8743 = vmatmul.bf16.gmra.mxu0 %v3578
  %v8744 = vpop.f32.mrf.mxu0
  %v8745 = vadd.f32 %v8701, %v8744
  %v8746 = vpop.f32.mrf.mxu0
  %v8747 = vadd.f32 %v8703, %v8746
  %8748 = vmatmul.bf16.gmra.mxu0 %v3582
  %v8749 = vpop.f32.mrf.mxu0
  %v8750 = vadd.f32 %v8706, %v8749
  %v8751 = vpop.f32.mrf.mxu0
  %v8752 = vadd.f32 %v8708, %v8751
  %8753 = vmatmul.bf16.gmra.mxu0 %v3586
  %v8754 = vpop.f32.mrf.mxu0
  %v8755 = vadd.f32 %v8711, %v8754
  %v8756 = vpop.f32.mrf.mxu0
  %v8757 = vadd.f32 %v8713, %v8756
  %8758 = vmatmul.bf16.gmra.mxu0 %v3590
  %v8759 = vpop.f32.mrf.mxu0
  %v8760 = vadd.f32 %v8716, %v8759
  %v8761 = vpop.f32.mrf.mxu0
  %v8762 = vadd.f32 %v8718, %v8761
  %8763 = vmatmul.bf16.gmra.mxu0 %v3594
  %v8764 = vpop.f32.mrf.mxu0
  %v8765 = vadd.f32 %v8721, %v8764
  %v8766 = vpop.f32.mrf.mxu0
  %v8767 = vadd.f32 %v8723, %v8766
  %8768 = vmatmul.bf16.gmra.mxu0 %v3616
  %v8769 = vpop.f32.mrf.mxu0
  %v8770 = vadd.f32 %v8726, %v8769
  %v8771 = vpop.f32.mrf.mxu0
  %v8772 = vadd.f32 %v8728, %v8771
  %8773 = vdwg.mxu0
  %8774 = vmatpush.bf16.msra.mxu0 %v6246
  %8775 = vmatpush.bf16.msra.mxu0 %v6242
  %8776 = vmatpush.bf16.msra.mxu0 %v6238
  %8777 = vmatpush.bf16.msra.mxu0 %v6234
  %8778 = vmatpush.bf16.msra.mxu0 %v6230
  %8779 = vmatpush.bf16.msra.mxu0 %v6226
  %8780 = vmatpush.bf16.msra.mxu0 %v6222
  %8781 = vmatpush.bf16.msra.mxu0 %v6218
  %8782 = vmatmul.bf16.gmra.mxu0 %v3571
  %v8783 = vpop.f32.mrf.mxu0
  %v8784 = vadd.f32 0.0, %v8783
  %v8785 = vpop.f32.mrf.mxu0
  %v8786 = vadd.f32 0.0, %v8785
  %8787 = vmatmul.bf16.gmra.mxu0 %v3576
  %v8788 = vpop.f32.mrf.mxu0
  %v8789 = vadd.f32 0.0, %v8788
  %v8790 = vpop.f32.mrf.mxu0
  %v8791 = vadd.f32 0.0, %v8790
  %8792 = vmatmul.bf16.gmra.mxu0 %v3580
  %v8793 = vpop.f32.mrf.mxu0
  %v8794 = vadd.f32 0.0, %v8793
  %v8795 = vpop.f32.mrf.mxu0
  %v8796 = vadd.f32 0.0, %v8795
  %8797 = vmatmul.bf16.gmra.mxu0 %v3584
  %v8798 = vpop.f32.mrf.mxu0
  %v8799 = vadd.f32 0.0, %v8798
  %v8800 = vpop.f32.mrf.mxu0
  %v8801 = vadd.f32 0.0, %v8800
  %8802 = vmatmul.bf16.gmra.mxu0 %v3588
  %v8803 = vpop.f32.mrf.mxu0
  %v8804 = vadd.f32 0.0, %v8803
  %v8805 = vpop.f32.mrf.mxu0
  %v8806 = vadd.f32 0.0, %v8805
  %8807 = vmatmul.bf16.gmra.mxu0 %v3592
  %v8808 = vpop.f32.mrf.mxu0
  %v8809 = vadd.f32 0.0, %v8808
  %v8810 = vpop.f32.mrf.mxu0
  %v8811 = vadd.f32 0.0, %v8810
  %8812 = vmatmul.bf16.gmra.mxu0 %v3612
  %v8813 = vpop.f32.mrf.mxu0
  %v8814 = vadd.f32 0.0, %v8813
  %v8815 = vpop.f32.mrf.mxu0
  %v8816 = vadd.f32 0.0, %v8815
  %8817 = vdwg.mxu0
  %8818 = vmatpush.bf16.msra.mxu0 %v6278
  %8819 = vmatpush.bf16.msra.mxu0 %v6274
  %8820 = vmatpush.bf16.msra.mxu0 %v6270
  %8821 = vmatpush.bf16.msra.mxu0 %v6266
  %8822 = vmatpush.bf16.msra.mxu0 %v6262
  %8823 = vmatpush.bf16.msra.mxu0 %v6258
  %8824 = vmatpush.bf16.msra.mxu0 %v6254
  %8825 = vmatpush.bf16.msra.mxu0 %v6250
  %8826 = vmatmul.bf16.gmra.mxu0 %v3574
  %v8827 = vpop.f32.mrf.mxu0
  %v8828 = vadd.f32 %v8784, %v8827
  %v8829 = vpop.f32.mrf.mxu0
  %v8830 = vadd.f32 %v8786, %v8829
  %8831 = vmatmul.bf16.gmra.mxu0 %v3578
  %v8832 = vpop.f32.mrf.mxu0
  %v8833 = vadd.f32 %v8789, %v8832
  %v8834 = vpop.f32.mrf.mxu0
  %v8835 = vadd.f32 %v8791, %v8834
  %8836 = vmatmul.bf16.gmra.mxu0 %v3582
  %v8837 = vpop.f32.mrf.mxu0
  %v8838 = vadd.f32 %v8794, %v8837
  %v8839 = vpop.f32.mrf.mxu0
  %v8840 = vadd.f32 %v8796, %v8839
  %8841 = vmatmul.bf16.gmra.mxu0 %v3586
  %v8842 = vpop.f32.mrf.mxu0
  %v8843 = vadd.f32 %v8799, %v8842
  %v8844 = vpop.f32.mrf.mxu0
  %v8845 = vadd.f32 %v8801, %v8844
  %8846 = vmatmul.bf16.gmra.mxu0 %v3590
  %v8847 = vpop.f32.mrf.mxu0
  %v8848 = vadd.f32 %v8804, %v8847
  %v8849 = vpop.f32.mrf.mxu0
  %v8850 = vadd.f32 %v8806, %v8849
  %8851 = vmatmul.bf16.gmra.mxu0 %v3594
  %v8852 = vpop.f32.mrf.mxu0
  %v8853 = vadd.f32 %v8809, %v8852
  %v8854 = vpop.f32.mrf.mxu0
  %v8855 = vadd.f32 %v8811, %v8854
  %8856 = vmatmul.bf16.gmra.mxu0 %v3616
  %v8857 = vpop.f32.mrf.mxu0
  %v8858 = vadd.f32 %v8814, %v8857
  %v8859 = vpop.f32.mrf.mxu0
  %v8860 = vadd.f32 %v8816, %v8859
  %8861 = vdwg.mxu0
  %8862 = vmatpush.bf16.msra.mxu0 %v6247
  %8863 = vmatpush.bf16.msra.mxu0 %v6243
  %8864 = vmatpush.bf16.msra.mxu0 %v6239
  %8865 = vmatpush.bf16.msra.mxu0 %v6235
  %8866 = vmatpush.bf16.msra.mxu0 %v6231
  %8867 = vmatpush.bf16.msra.mxu0 %v6227
  %8868 = vmatpush.bf16.msra.mxu0 %v6223
  %8869 = vmatpush.bf16.msra.mxu0 %v6219
  %8870 = vmatmul.bf16.gmra.mxu0 %v3571
  %v8871 = vpop.f32.mrf.mxu0
  %v8872 = vadd.f32 0.0, %v8871
  %v8873 = vpop.f32.mrf.mxu0
  %v8874 = vadd.f32 0.0, %v8873
  %8875 = vmatmul.bf16.gmra.mxu0 %v3576
  %v8876 = vpop.f32.mrf.mxu0
  %v8877 = vadd.f32 0.0, %v8876
  %v8878 = vpop.f32.mrf.mxu0
  %v8879 = vadd.f32 0.0, %v8878
  %8880 = vmatmul.bf16.gmra.mxu0 %v3580
  %v8881 = vpop.f32.mrf.mxu0
  %v8882 = vadd.f32 0.0, %v8881
  %v8883 = vpop.f32.mrf.mxu0
  %v8884 = vadd.f32 0.0, %v8883
  %8885 = vmatmul.bf16.gmra.mxu0 %v3584
  %v8886 = vpop.f32.mrf.mxu0
  %v8887 = vadd.f32 0.0, %v8886
  %v8888 = vpop.f32.mrf.mxu0
  %v8889 = vadd.f32 0.0, %v8888
  %8890 = vmatmul.bf16.gmra.mxu0 %v3588
  %v8891 = vpop.f32.mrf.mxu0
  %v8892 = vadd.f32 0.0, %v8891
  %v8893 = vpop.f32.mrf.mxu0
  %v8894 = vadd.f32 0.0, %v8893
  %8895 = vmatmul.bf16.gmra.mxu0 %v3592
  %v8896 = vpop.f32.mrf.mxu0
  %v8897 = vadd.f32 0.0, %v8896
  %v8898 = vpop.f32.mrf.mxu0
  %v8899 = vadd.f32 0.0, %v8898
  %8900 = vmatmul.bf16.gmra.mxu0 %v3612
  %v8901 = vpop.f32.mrf.mxu0
  %v8902 = vadd.f32 0.0, %v8901
  %v8903 = vpop.f32.mrf.mxu0
  %v8904 = vadd.f32 0.0, %v8903
  %8905 = vdwg.mxu0
  %8906 = vmatpush.bf16.msra.mxu0 %v6279
  %8907 = vmatpush.bf16.msra.mxu0 %v6275
  %8908 = vmatpush.bf16.msra.mxu0 %v6271
  %8909 = vmatpush.bf16.msra.mxu0 %v6267
  %8910 = vmatpush.bf16.msra.mxu0 %v6263
  %8911 = vmatpush.bf16.msra.mxu0 %v6259
  %8912 = vmatpush.bf16.msra.mxu0 %v6255
  %8913 = vmatpush.bf16.msra.mxu0 %v6251
  %8914 = vmatmul.bf16.gmra.mxu0 %v3574
  %v8915 = vpop.f32.mrf.mxu0
  %v8916 = vadd.f32 %v8872, %v8915
  %v8917 = vpop.f32.mrf.mxu0
  %v8918 = vadd.f32 %v8874, %v8917
  %8919 = vmatmul.bf16.gmra.mxu0 %v3578
  %v8920 = vpop.f32.mrf.mxu0
  %v8921 = vadd.f32 %v8877, %v8920
  %v8922 = vpop.f32.mrf.mxu0
  %v8923 = vadd.f32 %v8879, %v8922
  %8924 = vmatmul.bf16.gmra.mxu0 %v3582
  %v8925 = vpop.f32.mrf.mxu0
  %v8926 = vadd.f32 %v8882, %v8925
  %v8927 = vpop.f32.mrf.mxu0
  %v8928 = vadd.f32 %v8884, %v8927
  %8929 = vmatmul.bf16.gmra.mxu0 %v3586
  %v8930 = vpop.f32.mrf.mxu0
  %v8931 = vadd.f32 %v8887, %v8930
  %v8932 = vpop.f32.mrf.mxu0
  %v8933 = vadd.f32 %v8889, %v8932
  %8934 = vmatmul.bf16.gmra.mxu0 %v3590
  %v8935 = vpop.f32.mrf.mxu0
  %v8936 = vadd.f32 %v8892, %v8935
  %v8937 = vpop.f32.mrf.mxu0
  %v8938 = vadd.f32 %v8894, %v8937
  %8939 = vmatmul.bf16.gmra.mxu0 %v3594
  %v8940 = vpop.f32.mrf.mxu0
  %v8941 = vadd.f32 %v8897, %v8940
  %v8942 = vpop.f32.mrf.mxu0
  %v8943 = vadd.f32 %v8899, %v8942
  %8944 = vmatmul.bf16.gmra.mxu0 %v3616
  %v8945 = vpop.f32.mrf.mxu0
  %v8946 = vadd.f32 %v8902, %v8945
  %v8947 = vpop.f32.mrf.mxu0
  %v8948 = vadd.f32 %v8904, %v8947
  %8949 = vdwg.mxu0
  %8950 = vmatpush.bf16.msra.mxu0 %v6248
  %8951 = vmatpush.bf16.msra.mxu0 %v6244
  %8952 = vmatpush.bf16.msra.mxu0 %v6240
  %8953 = vmatpush.bf16.msra.mxu0 %v6236
  %8954 = vmatpush.bf16.msra.mxu0 %v6232
  %8955 = vmatpush.bf16.msra.mxu0 %v6228
  %8956 = vmatpush.bf16.msra.mxu0 %v6224
  %8957 = vmatpush.bf16.msra.mxu0 %v6220
  %8958 = vmatmul.bf16.gmra.mxu0 %v3571
  %v8959 = vpop.f32.mrf.mxu0
  %v8960 = vadd.f32 0.0, %v8959
  %v8961 = vpop.f32.mrf.mxu0
  %v8962 = vadd.f32 0.0, %v8961
  %8963 = vmatmul.bf16.gmra.mxu0 %v3576
  %v8964 = vpop.f32.mrf.mxu0
  %v8965 = vadd.f32 0.0, %v8964
  %v8966 = vpop.f32.mrf.mxu0
  %v8967 = vadd.f32 0.0, %v8966
  %8968 = vmatmul.bf16.gmra.mxu0 %v3580
  %v8969 = vpop.f32.mrf.mxu0
  %v8970 = vadd.f32 0.0, %v8969
  %v8971 = vpop.f32.mrf.mxu0
  %v8972 = vadd.f32 0.0, %v8971
  %8973 = vmatmul.bf16.gmra.mxu0 %v3584
  %v8974 = vpop.f32.mrf.mxu0
  %v8975 = vadd.f32 0.0, %v8974
  %v8976 = vpop.f32.mrf.mxu0
  %v8977 = vadd.f32 0.0, %v8976
  %8978 = vmatmul.bf16.gmra.mxu0 %v3588
  %v8979 = vpop.f32.mrf.mxu0
  %v8980 = vadd.f32 0.0, %v8979
  %v8981 = vpop.f32.mrf.mxu0
  %v8982 = vadd.f32 0.0, %v8981
  %8983 = vmatmul.bf16.gmra.mxu0 %v3592
  %v8984 = vpop.f32.mrf.mxu0
  %v8985 = vadd.f32 0.0, %v8984
  %v8986 = vpop.f32.mrf.mxu0
  %v8987 = vadd.f32 0.0, %v8986
  %8988 = vmatmul.bf16.gmra.mxu0 %v3612
  %v8989 = vpop.f32.mrf.mxu0
  %v8990 = vadd.f32 0.0, %v8989
  %v8991 = vpop.f32.mrf.mxu0
  %v8992 = vadd.f32 0.0, %v8991
  %8993 = vdwg.mxu0
  %8994 = vmatpush.bf16.msra.mxu0 %v6280
  %8995 = vmatpush.bf16.msra.mxu0 %v6276
  %8996 = vmatpush.bf16.msra.mxu0 %v6272
  %8997 = vmatpush.bf16.msra.mxu0 %v6268
  %8998 = vmatpush.bf16.msra.mxu0 %v6264
  %8999 = vmatpush.bf16.msra.mxu0 %v6260
  %9000 = vmatpush.bf16.msra.mxu0 %v6256
  %9001 = vmatpush.bf16.msra.mxu0 %v6252
  %9002 = vmatmul.bf16.gmra.mxu0 %v3574
  %v9003 = vpop.f32.mrf.mxu0
  %v9004 = vadd.f32 %v8960, %v9003
  %v9005 = vpop.f32.mrf.mxu0
  %v9006 = vadd.f32 %v8962, %v9005
  %9007 = vmatmul.bf16.gmra.mxu0 %v3578
  %v9008 = vpop.f32.mrf.mxu0
  %v9009 = vadd.f32 %v8965, %v9008
  %v9010 = vpop.f32.mrf.mxu0
  %v9011 = vadd.f32 %v8967, %v9010
  %9012 = vmatmul.bf16.gmra.mxu0 %v3582
  %v9013 = vpop.f32.mrf.mxu0
  %v9014 = vadd.f32 %v8970, %v9013
  %v9015 = vpop.f32.mrf.mxu0
  %v9016 = vadd.f32 %v8972, %v9015
  %9017 = vmatmul.bf16.gmra.mxu0 %v3586
  %v9018 = vpop.f32.mrf.mxu0
  %v9019 = vadd.f32 %v8975, %v9018
  %v9020 = vpop.f32.mrf.mxu0
  %v9021 = vadd.f32 %v8977, %v9020
  %9022 = vmatmul.bf16.gmra.mxu0 %v3590
  %v9023 = vpop.f32.mrf.mxu0
  %v9024 = vadd.f32 %v8980, %v9023
  %v9025 = vpop.f32.mrf.mxu0
  %v9026 = vadd.f32 %v8982, %v9025
  %9027 = vmatmul.bf16.gmra.mxu0 %v3594
  %v9028 = vpop.f32.mrf.mxu0
  %v9029 = vadd.f32 %v8985, %v9028
  %v9030 = vpop.f32.mrf.mxu0
  %v9031 = vadd.f32 %v8987, %v9030
  %9032 = vmatmul.bf16.gmra.mxu0 %v3616
  %v9033 = vpop.f32.mrf.mxu0
  %v9034 = vadd.f32 %v8990, %v9033
  %v9035 = vpop.f32.mrf.mxu0
  %v9036 = vadd.f32 %v8992, %v9035
  %9037 = vdwg.mxu0
  %v9038 = vadd.f32 %v8630, %v8740
  %v9039 = vadd.f32 %v8631, %v8828
  %v9040 = vadd.f32 %v8632, %v8916
  %v9041 = vadd.f32 %v8633, %v9004
  %v9042 = vadd.f32 %v8634, %v8742
  %v9043 = vadd.f32 %v8635, %v8830
  %v9044 = vadd.f32 %v8636, %v8918
  %v9045 = vadd.f32 %v8637, %v9006
  %v9046 = vadd.f32 %v8638, %v8745
  %v9047 = vadd.f32 %v8639, %v8833
  %v9048 = vadd.f32 %v8640, %v8921
  %v9049 = vadd.f32 %v8641, %v9009
  %v9050 = vadd.f32 %v8642, %v8747
  %v9051 = vadd.f32 %v8643, %v8835
  %v9052 = vadd.f32 %v8644, %v8923
  %v9053 = vadd.f32 %v8645, %v9011
  %v9054 = vadd.f32 %v8646, %v8750
  %v9055 = vadd.f32 %v8647, %v8838
  %v9056 = vadd.f32 %v8648, %v8926
  %v9057 = vadd.f32 %v8649, %v9014
  %v9058 = vadd.f32 %v8650, %v8752
  %v9059 = vadd.f32 %v8651, %v8840
  %v9060 = vadd.f32 %v8652, %v8928
  %v9061 = vadd.f32 %v8653, %v9016
  %v9062 = vadd.f32 %v8654, %v8755
  %v9063 = vadd.f32 %v8655, %v8843
  %v9064 = vadd.f32 %v8656, %v8931
  %v9065 = vadd.f32 %v8657, %v9019
  %v9066 = vadd.f32 %v8658, %v8757
  %v9067 = vadd.f32 %v8659, %v8845
  %v9068 = vadd.f32 %v8660, %v8933
  %v9069 = vadd.f32 %v8661, %v9021
  %v9070 = vadd.f32 %v8662, %v8760
  %v9071 = vadd.f32 %v8663, %v8848
  %v9072 = vadd.f32 %v8664, %v8936
  %v9073 = vadd.f32 %v8665, %v9024
  %v9074 = vadd.f32 %v8666, %v8762
  %v9075 = vadd.f32 %v8667, %v8850
  %v9076 = vadd.f32 %v8668, %v8938
  %v9077 = vadd.f32 %v8669, %v9026
  %v9078 = vadd.f32 %v8670, %v8765
  %v9079 = vadd.f32 %v8671, %v8853
  %v9080 = vadd.f32 %v8672, %v8941
  %v9081 = vadd.f32 %v8673, %v9029
  %v9082 = vadd.f32 %v8674, %v8767
  %v9083 = vadd.f32 %v8675, %v8855
  %v9084 = vadd.f32 %v8676, %v8943
  %v9085 = vadd.f32 %v8677, %v9031
  %v9086 = vadd.f32 %v8678, %v8770
  %v9087 = vadd.f32 %v8679, %v8858
  %v9088 = vadd.f32 %v8680, %v8946
  %v9089 = vadd.f32 %v8681, %v9034
  %v9090 = vadd.f32 %v8682, %v8772
  %v9091 = vadd.f32 %v8683, %v8860
  %v9092 = vadd.f32 %v8684, %v8948
  %v9093 = vadd.f32 %v8685, %v9036
  %9094 = vmatpush.bf16.msra.mxu0 %v7038
  %9095 = vmatpush.bf16.msra.mxu0 %v7034
  %9096 = vmatpush.bf16.msra.mxu0 %v7030
  %9097 = vmatpush.bf16.msra.mxu0 %v7026
  %9098 = vmatpush.bf16.msra.mxu0 %v7022
  %9099 = vmatpush.bf16.msra.mxu0 %v7018
  %9100 = vmatpush.bf16.msra.mxu0 %v7014
  %9101 = vmatpush.bf16.msra.mxu0 %v7010
  %9102 = vmatmul.bf16.gmra.mxu0 %v3620
  %v9103 = vpop.f32.mrf.mxu0
  %v9104 = vadd.f32 0.0, %v9103
  %v9105 = vpop.f32.mrf.mxu0
  %v9106 = vadd.f32 0.0, %v9105
  %9107 = vmatmul.bf16.gmra.mxu0 %v3625
  %v9108 = vpop.f32.mrf.mxu0
  %v9109 = vadd.f32 0.0, %v9108
  %v9110 = vpop.f32.mrf.mxu0
  %v9111 = vadd.f32 0.0, %v9110
  %9112 = vmatmul.bf16.gmra.mxu0 %v3629
  %v9113 = vpop.f32.mrf.mxu0
  %v9114 = vadd.f32 0.0, %v9113
  %v9115 = vpop.f32.mrf.mxu0
  %v9116 = vadd.f32 0.0, %v9115
  %9117 = vmatmul.bf16.gmra.mxu0 %v3633
  %v9118 = vpop.f32.mrf.mxu0
  %v9119 = vadd.f32 0.0, %v9118
  %v9120 = vpop.f32.mrf.mxu0
  %v9121 = vadd.f32 0.0, %v9120
  %9122 = vmatmul.bf16.gmra.mxu0 %v3637
  %v9123 = vpop.f32.mrf.mxu0
  %v9124 = vadd.f32 0.0, %v9123
  %v9125 = vpop.f32.mrf.mxu0
  %v9126 = vadd.f32 0.0, %v9125
  %9127 = vmatmul.bf16.gmra.mxu0 %v3641
  %v9128 = vpop.f32.mrf.mxu0
  %v9129 = vadd.f32 0.0, %v9128
  %v9130 = vpop.f32.mrf.mxu0
  %v9131 = vadd.f32 0.0, %v9130
  %9132 = vmatmul.bf16.gmra.mxu0 %v3660
  %v9133 = vpop.f32.mrf.mxu0
  %v9134 = vadd.f32 0.0, %v9133
  %v9135 = vpop.f32.mrf.mxu0
  %v9136 = vadd.f32 0.0, %v9135
  %9137 = vdwg.mxu0
  %9138 = vmatpush.bf16.msra.mxu0 %v7070
  %9139 = vmatpush.bf16.msra.mxu0 %v7066
  %9140 = vmatpush.bf16.msra.mxu0 %v7062
  %9141 = vmatpush.bf16.msra.mxu0 %v7058
  %9142 = vmatpush.bf16.msra.mxu0 %v7054
  %9143 = vmatpush.bf16.msra.mxu0 %v7050
  %9144 = vmatpush.bf16.msra.mxu0 %v7046
  %9145 = vmatpush.bf16.msra.mxu0 %v7042
  %9146 = vmatmul.bf16.gmra.mxu0 %v3623
  %v9147 = vpop.f32.mrf.mxu0
  %v9148 = vadd.f32 %v9104, %v9147
  %v9149 = vpop.f32.mrf.mxu0
  %v9150 = vadd.f32 %v9106, %v9149
  %9151 = vmatmul.bf16.gmra.mxu0 %v3627
  %v9152 = vpop.f32.mrf.mxu0
  %v9153 = vadd.f32 %v9109, %v9152
  %v9154 = vpop.f32.mrf.mxu0
  %v9155 = vadd.f32 %v9111, %v9154
  %9156 = vmatmul.bf16.gmra.mxu0 %v3631
  %v9157 = vpop.f32.mrf.mxu0
  %v9158 = vadd.f32 %v9114, %v9157
  %v9159 = vpop.f32.mrf.mxu0
  %v9160 = vadd.f32 %v9116, %v9159
  %9161 = vmatmul.bf16.gmra.mxu0 %v3635
  %v9162 = vpop.f32.mrf.mxu0
  %v9163 = vadd.f32 %v9119, %v9162
  %v9164 = vpop.f32.mrf.mxu0
  %v9165 = vadd.f32 %v9121, %v9164
  %9166 = vmatmul.bf16.gmra.mxu0 %v3639
  %v9167 = vpop.f32.mrf.mxu0
  %v9168 = vadd.f32 %v9124, %v9167
  %v9169 = vpop.f32.mrf.mxu0
  %v9170 = vadd.f32 %v9126, %v9169
  %9171 = vmatmul.bf16.gmra.mxu0 %v3643
  %v9172 = vpop.f32.mrf.mxu0
  %v9173 = vadd.f32 %v9129, %v9172
  %v9174 = vpop.f32.mrf.mxu0
  %v9175 = vadd.f32 %v9131, %v9174
  %9176 = vmatmul.bf16.gmra.mxu0 %v3664
  %v9177 = vpop.f32.mrf.mxu0
  %v9178 = vadd.f32 %v9134, %v9177
  %v9179 = vpop.f32.mrf.mxu0
  %v9180 = vadd.f32 %v9136, %v9179
  %9181 = vdwg.mxu0
  %9182 = vmatpush.bf16.msra.mxu0 %v7039
  %9183 = vmatpush.bf16.msra.mxu0 %v7035
  %9184 = vmatpush.bf16.msra.mxu0 %v7031
  %9185 = vmatpush.bf16.msra.mxu0 %v7027
  %9186 = vmatpush.bf16.msra.mxu0 %v7023
  %9187 = vmatpush.bf16.msra.mxu0 %v7019
  %9188 = vmatpush.bf16.msra.mxu0 %v7015
  %9189 = vmatpush.bf16.msra.mxu0 %v7011
  %9190 = vmatmul.bf16.gmra.mxu0 %v3620
  %v9191 = vpop.f32.mrf.mxu0
  %v9192 = vadd.f32 0.0, %v9191
  %v9193 = vpop.f32.mrf.mxu0
  %v9194 = vadd.f32 0.0, %v9193
  %9195 = vmatmul.bf16.gmra.mxu0 %v3625
  %v9196 = vpop.f32.mrf.mxu0
  %v9197 = vadd.f32 0.0, %v9196
  %v9198 = vpop.f32.mrf.mxu0
  %v9199 = vadd.f32 0.0, %v9198
  %9200 = vmatmul.bf16.gmra.mxu0 %v3629
  %v9201 = vpop.f32.mrf.mxu0
  %v9202 = vadd.f32 0.0, %v9201
  %v9203 = vpop.f32.mrf.mxu0
  %v9204 = vadd.f32 0.0, %v9203
  %9205 = vmatmul.bf16.gmra.mxu0 %v3633
  %v9206 = vpop.f32.mrf.mxu0
  %v9207 = vadd.f32 0.0, %v9206
  %v9208 = vpop.f32.mrf.mxu0
  %v9209 = vadd.f32 0.0, %v9208
  %9210 = vmatmul.bf16.gmra.mxu0 %v3637
  %v9211 = vpop.f32.mrf.mxu0
  %v9212 = vadd.f32 0.0, %v9211
  %v9213 = vpop.f32.mrf.mxu0
  %v9214 = vadd.f32 0.0, %v9213
  %9215 = vmatmul.bf16.gmra.mxu0 %v3641
  %v9216 = vpop.f32.mrf.mxu0
  %v9217 = vadd.f32 0.0, %v9216
  %v9218 = vpop.f32.mrf.mxu0
  %v9219 = vadd.f32 0.0, %v9218
  %9220 = vmatmul.bf16.gmra.mxu0 %v3660
  %v9221 = vpop.f32.mrf.mxu0
  %v9222 = vadd.f32 0.0, %v9221
  %v9223 = vpop.f32.mrf.mxu0
  %v9224 = vadd.f32 0.0, %v9223
  %9225 = vdwg.mxu0
  %9226 = vmatpush.bf16.msra.mxu0 %v7071
  %9227 = vmatpush.bf16.msra.mxu0 %v7067
  %9228 = vmatpush.bf16.msra.mxu0 %v7063
  %9229 = vmatpush.bf16.msra.mxu0 %v7059
  %9230 = vmatpush.bf16.msra.mxu0 %v7055
  %9231 = vmatpush.bf16.msra.mxu0 %v7051
  %9232 = vmatpush.bf16.msra.mxu0 %v7047
  %9233 = vmatpush.bf16.msra.mxu0 %v7043
  %9234 = vmatmul.bf16.gmra.mxu0 %v3623
  %v9235 = vpop.f32.mrf.mxu0
  %v9236 = vadd.f32 %v9192, %v9235
  %v9237 = vpop.f32.mrf.mxu0
  %v9238 = vadd.f32 %v9194, %v9237
  %9239 = vmatmul.bf16.gmra.mxu0 %v3627
  %v9240 = vpop.f32.mrf.mxu0
  %v9241 = vadd.f32 %v9197, %v9240
  %v9242 = vpop.f32.mrf.mxu0
  %v9243 = vadd.f32 %v9199, %v9242
  %9244 = vmatmul.bf16.gmra.mxu0 %v3631
  %v9245 = vpop.f32.mrf.mxu0
  %v9246 = vadd.f32 %v9202, %v9245
  %v9247 = vpop.f32.mrf.mxu0
  %v9248 = vadd.f32 %v9204, %v9247
  %9249 = vmatmul.bf16.gmra.mxu0 %v3635
  %v9250 = vpop.f32.mrf.mxu0
  %v9251 = vadd.f32 %v9207, %v9250
  %v9252 = vpop.f32.mrf.mxu0
  %v9253 = vadd.f32 %v9209, %v9252
  %9254 = vmatmul.bf16.gmra.mxu0 %v3639
  %v9255 = vpop.f32.mrf.mxu0
  %v9256 = vadd.f32 %v9212, %v9255
  %v9257 = vpop.f32.mrf.mxu0
  %v9258 = vadd.f32 %v9214, %v9257
  %9259 = vmatmul.bf16.gmra.mxu0 %v3643
  %v9260 = vpop.f32.mrf.mxu0
  %v9261 = vadd.f32 %v9217, %v9260
  %v9262 = vpop.f32.mrf.mxu0
  %v9263 = vadd.f32 %v9219, %v9262
  %9264 = vmatmul.bf16.gmra.mxu0 %v3664
  %v9265 = vpop.f32.mrf.mxu0
  %v9266 = vadd.f32 %v9222, %v9265
  %v9267 = vpop.f32.mrf.mxu0
  %v9268 = vadd.f32 %v9224, %v9267
  %9269 = vdwg.mxu0
  %9270 = vmatpush.bf16.msra.mxu0 %v7040
  %9271 = vmatpush.bf16.msra.mxu0 %v7036
  %9272 = vmatpush.bf16.msra.mxu0 %v7032
  %9273 = vmatpush.bf16.msra.mxu0 %v7028
  %9274 = vmatpush.bf16.msra.mxu0 %v7024
  %9275 = vmatpush.bf16.msra.mxu0 %v7020
  %9276 = vmatpush.bf16.msra.mxu0 %v7016
  %9277 = vmatpush.bf16.msra.mxu0 %v7012
  %9278 = vmatmul.bf16.gmra.mxu0 %v3620
  %v9279 = vpop.f32.mrf.mxu0
  %v9280 = vadd.f32 0.0, %v9279
  %v9281 = vpop.f32.mrf.mxu0
  %v9282 = vadd.f32 0.0, %v9281
  %9283 = vmatmul.bf16.gmra.mxu0 %v3625
  %v9284 = vpop.f32.mrf.mxu0
  %v9285 = vadd.f32 0.0, %v9284
  %v9286 = vpop.f32.mrf.mxu0
  %v9287 = vadd.f32 0.0, %v9286
  %9288 = vmatmul.bf16.gmra.mxu0 %v3629
  %v9289 = vpop.f32.mrf.mxu0
  %v9290 = vadd.f32 0.0, %v9289
  %v9291 = vpop.f32.mrf.mxu0
  %v9292 = vadd.f32 0.0, %v9291
  %9293 = vmatmul.bf16.gmra.mxu0 %v3633
  %v9294 = vpop.f32.mrf.mxu0
  %v9295 = vadd.f32 0.0, %v9294
  %v9296 = vpop.f32.mrf.mxu0
  %v9297 = vadd.f32 0.0, %v9296
  %9298 = vmatmul.bf16.gmra.mxu0 %v3637
  %v9299 = vpop.f32.mrf.mxu0
  %v9300 = vadd.f32 0.0, %v9299
  %v9301 = vpop.f32.mrf.mxu0
  %v9302 = vadd.f32 0.0, %v9301
  %9303 = vmatmul.bf16.gmra.mxu0 %v3641
  %v9304 = vpop.f32.mrf.mxu0
  %v9305 = vadd.f32 0.0, %v9304
  %v9306 = vpop.f32.mrf.mxu0
  %v9307 = vadd.f32 0.0, %v9306
  %9308 = vmatmul.bf16.gmra.mxu0 %v3660
  %v9309 = vpop.f32.mrf.mxu0
  %v9310 = vadd.f32 0.0, %v9309
  %v9311 = vpop.f32.mrf.mxu0
  %v9312 = vadd.f32 0.0, %v9311
  %9313 = vdwg.mxu0
  %9314 = vmatpush.bf16.msra.mxu0 %v7072
  %9315 = vmatpush.bf16.msra.mxu0 %v7068
  %9316 = vmatpush.bf16.msra.mxu0 %v7064
  %9317 = vmatpush.bf16.msra.mxu0 %v7060
  %9318 = vmatpush.bf16.msra.mxu0 %v7056
  %9319 = vmatpush.bf16.msra.mxu0 %v7052
  %9320 = vmatpush.bf16.msra.mxu0 %v7048
  %9321 = vmatpush.bf16.msra.mxu0 %v7044
  %9322 = vmatmul.bf16.gmra.mxu0 %v3623
  %v9323 = vpop.f32.mrf.mxu0
  %v9324 = vadd.f32 %v9280, %v9323
  %v9325 = vpop.f32.mrf.mxu0
  %v9326 = vadd.f32 %v9282, %v9325
  %9327 = vmatmul.bf16.gmra.mxu0 %v3627
  %v9328 = vpop.f32.mrf.mxu0
  %v9329 = vadd.f32 %v9285, %v9328
  %v9330 = vpop.f32.mrf.mxu0
  %v9331 = vadd.f32 %v9287, %v9330
  %9332 = vmatmul.bf16.gmra.mxu0 %v3631
  %v9333 = vpop.f32.mrf.mxu0
  %v9334 = vadd.f32 %v9290, %v9333
  %v9335 = vpop.f32.mrf.mxu0
  %v9336 = vadd.f32 %v9292, %v9335
  %9337 = vmatmul.bf16.gmra.mxu0 %v3635
  %v9338 = vpop.f32.mrf.mxu0
  %v9339 = vadd.f32 %v9295, %v9338
  %v9340 = vpop.f32.mrf.mxu0
  %v9341 = vadd.f32 %v9297, %v9340
  %9342 = vmatmul.bf16.gmra.mxu0 %v3639
  %v9343 = vpop.f32.mrf.mxu0
  %v9344 = vadd.f32 %v9300, %v9343
  %v9345 = vpop.f32.mrf.mxu0
  %v9346 = vadd.f32 %v9302, %v9345
  %9347 = vmatmul.bf16.gmra.mxu0 %v3643
  %v9348 = vpop.f32.mrf.mxu0
  %v9349 = vadd.f32 %v9305, %v9348
  %v9350 = vpop.f32.mrf.mxu0
  %v9351 = vadd.f32 %v9307, %v9350
  %9352 = vmatmul.bf16.gmra.mxu0 %v3664
  %v9353 = vpop.f32.mrf.mxu0
  %v9354 = vadd.f32 %v9310, %v9353
  %v9355 = vpop.f32.mrf.mxu0
  %v9356 = vadd.f32 %v9312, %v9355
  %9357 = vdwg.mxu0
  %9358 = vmatpush.bf16.msra.mxu0 %v7041
  %9359 = vmatpush.bf16.msra.mxu0 %v7037
  %9360 = vmatpush.bf16.msra.mxu0 %v7033
  %9361 = vmatpush.bf16.msra.mxu0 %v7029
  %9362 = vmatpush.bf16.msra.mxu0 %v7025
  %9363 = vmatpush.bf16.msra.mxu0 %v7021
  %9364 = vmatpush.bf16.msra.mxu0 %v7017
  %9365 = vmatpush.bf16.msra.mxu0 %v7013
  %9366 = vmatmul.bf16.gmra.mxu0 %v3620
  %v9367 = vpop.f32.mrf.mxu0
  %v9368 = vadd.f32 0.0, %v9367
  %v9369 = vpop.f32.mrf.mxu0
  %v9370 = vadd.f32 0.0, %v9369
  %9371 = vmatmul.bf16.gmra.mxu0 %v3625
  %v9372 = vpop.f32.mrf.mxu0
  %v9373 = vadd.f32 0.0, %v9372
  %v9374 = vpop.f32.mrf.mxu0
  %v9375 = vadd.f32 0.0, %v9374
  %9376 = vmatmul.bf16.gmra.mxu0 %v3629
  %v9377 = vpop.f32.mrf.mxu0
  %v9378 = vadd.f32 0.0, %v9377
  %v9379 = vpop.f32.mrf.mxu0
  %v9380 = vadd.f32 0.0, %v9379
  %9381 = vmatmul.bf16.gmra.mxu0 %v3633
  %v9382 = vpop.f32.mrf.mxu0
  %v9383 = vadd.f32 0.0, %v9382
  %v9384 = vpop.f32.mrf.mxu0
  %v9385 = vadd.f32 0.0, %v9384
  %9386 = vmatmul.bf16.gmra.mxu0 %v3637
  %v9387 = vpop.f32.mrf.mxu0
  %v9388 = vadd.f32 0.0, %v9387
  %v9389 = vpop.f32.mrf.mxu0
  %v9390 = vadd.f32 0.0, %v9389
  %9391 = vmatmul.bf16.gmra.mxu0 %v3641
  %v9392 = vpop.f32.mrf.mxu0
  %v9393 = vadd.f32 0.0, %v9392
  %v9394 = vpop.f32.mrf.mxu0
  %v9395 = vadd.f32 0.0, %v9394
  %9396 = vmatmul.bf16.gmra.mxu0 %v3660
  %v9397 = vpop.f32.mrf.mxu0
  %v9398 = vadd.f32 0.0, %v9397
  %v9399 = vpop.f32.mrf.mxu0
  %v9400 = vadd.f32 0.0, %v9399
  %9401 = vdwg.mxu0
  %9402 = vmatpush.bf16.msra.mxu0 %v7073
  %9403 = vmatpush.bf16.msra.mxu0 %v7069
  %9404 = vmatpush.bf16.msra.mxu0 %v7065
  %9405 = vmatpush.bf16.msra.mxu0 %v7061
  %9406 = vmatpush.bf16.msra.mxu0 %v7057
  %9407 = vmatpush.bf16.msra.mxu0 %v7053
  %9408 = vmatpush.bf16.msra.mxu0 %v7049
  %9409 = vmatpush.bf16.msra.mxu0 %v7045
  %9410 = vmatmul.bf16.gmra.mxu0 %v3623
  %v9411 = vpop.f32.mrf.mxu0
  %v9412 = vadd.f32 %v9368, %v9411
  %v9413 = vpop.f32.mrf.mxu0
  %v9414 = vadd.f32 %v9370, %v9413
  %9415 = vmatmul.bf16.gmra.mxu0 %v3627
  %v9416 = vpop.f32.mrf.mxu0
  %v9417 = vadd.f32 %v9373, %v9416
  %v9418 = vpop.f32.mrf.mxu0
  %v9419 = vadd.f32 %v9375, %v9418
  %9420 = vmatmul.bf16.gmra.mxu0 %v3631
  %v9421 = vpop.f32.mrf.mxu0
  %v9422 = vadd.f32 %v9378, %v9421
  %v9423 = vpop.f32.mrf.mxu0
  %v9424 = vadd.f32 %v9380, %v9423
  %9425 = vmatmul.bf16.gmra.mxu0 %v3635
  %v9426 = vpop.f32.mrf.mxu0
  %v9427 = vadd.f32 %v9383, %v9426
  %v9428 = vpop.f32.mrf.mxu0
  %v9429 = vadd.f32 %v9385, %v9428
  %9430 = vmatmul.bf16.gmra.mxu0 %v3639
  %v9431 = vpop.f32.mrf.mxu0
  %v9432 = vadd.f32 %v9388, %v9431
  %v9433 = vpop.f32.mrf.mxu0
  %v9434 = vadd.f32 %v9390, %v9433
  %9435 = vmatmul.bf16.gmra.mxu0 %v3643
  %v9436 = vpop.f32.mrf.mxu0
  %v9437 = vadd.f32 %v9393, %v9436
  %v9438 = vpop.f32.mrf.mxu0
  %v9439 = vadd.f32 %v9395, %v9438
  %9440 = vmatmul.bf16.gmra.mxu0 %v3664
  %v9441 = vpop.f32.mrf.mxu0
  %v9442 = vadd.f32 %v9398, %v9441
  %v9443 = vpop.f32.mrf.mxu0
  %v9444 = vadd.f32 %v9400, %v9443
  %9445 = vdwg.mxu0
  %v9446 = vadd.f32 %v9038, %v9148
  %v9447 = vadd.f32 %v9039, %v9236
  %v9448 = vadd.f32 %v9040, %v9324
  %v9449 = vadd.f32 %v9041, %v9412
  %v9450 = vadd.f32 %v9042, %v9150
  %v9451 = vadd.f32 %v9043, %v9238
  %v9452 = vadd.f32 %v9044, %v9326
  %v9453 = vadd.f32 %v9045, %v9414
  %v9454 = vadd.f32 %v9046, %v9153
  %v9455 = vadd.f32 %v9047, %v9241
  %v9456 = vadd.f32 %v9048, %v9329
  %v9457 = vadd.f32 %v9049, %v9417
  %v9458 = vadd.f32 %v9050, %v9155
  %v9459 = vadd.f32 %v9051, %v9243
  %v9460 = vadd.f32 %v9052, %v9331
  %v9461 = vadd.f32 %v9053, %v9419
  %v9462 = vadd.f32 %v9054, %v9158
  %v9463 = vadd.f32 %v9055, %v9246
  %v9464 = vadd.f32 %v9056, %v9334
  %v9465 = vadd.f32 %v9057, %v9422
  %v9466 = vadd.f32 %v9058, %v9160
  %v9467 = vadd.f32 %v9059, %v9248
  %v9468 = vadd.f32 %v9060, %v9336
  %v9469 = vadd.f32 %v9061, %v9424
  %v9470 = vadd.f32 %v9062, %v9163
  %v9471 = vadd.f32 %v9063, %v9251
  %v9472 = vadd.f32 %v9064, %v9339
  %v9473 = vadd.f32 %v9065, %v9427
  %v9474 = vadd.f32 %v9066, %v9165
  %v9475 = vadd.f32 %v9067, %v9253
  %v9476 = vadd.f32 %v9068, %v9341
  %v9477 = vadd.f32 %v9069, %v9429
  %v9478 = vadd.f32 %v9070, %v9168
  %v9479 = vadd.f32 %v9071, %v9256
  %v9480 = vadd.f32 %v9072, %v9344
  %v9481 = vadd.f32 %v9073, %v9432
  %v9482 = vadd.f32 %v9074, %v9170
  %v9483 = vadd.f32 %v9075, %v9258
  %v9484 = vadd.f32 %v9076, %v9346
  %v9485 = vadd.f32 %v9077, %v9434
  %v9486 = vadd.f32 %v9078, %v9173
  %v9487 = vadd.f32 %v9079, %v9261
  %v9488 = vadd.f32 %v9080, %v9349
  %v9489 = vadd.f32 %v9081, %v9437
  %v9490 = vadd.f32 %v9082, %v9175
  %v9491 = vadd.f32 %v9083, %v9263
  %v9492 = vadd.f32 %v9084, %v9351
  %v9493 = vadd.f32 %v9085, %v9439
  %v9494 = vadd.f32 %v9086, %v9178
  %v9495 = vadd.f32 %v9087, %v9266
  %v9496 = vadd.f32 %v9088, %v9354
  %v9497 = vadd.f32 %v9089, %v9442
  %v9498 = vadd.f32 %v9090, %v9180
  %v9499 = vadd.f32 %v9091, %v9268
  %v9500 = vadd.f32 %v9092, %v9356
  %v9501 = vadd.f32 %v9093, %v9444
  %v9502 = vmax.f32 %v9446, %v9448
  %v9503 = vmax.f32 %v9447, %v9449
  %v9504 = vmax.f32 %v9450, %v9452
  %v9505 = vmax.f32 %v9451, %v9453
  %v9506 = vmax.f32 %v9454, %v9456
  %v9507 = vmax.f32 %v9455, %v9457
  %v9508 = vmax.f32 %v9458, %v9460
  %v9509 = vmax.f32 %v9459, %v9461
  %v9510 = vmax.f32 %v9462, %v9464
  %v9511 = vmax.f32 %v9463, %v9465
  %v9512 = vmax.f32 %v9466, %v9468
  %v9513 = vmax.f32 %v9467, %v9469
  %v9514 = vmax.f32 %v9470, %v9472
  %v9515 = vmax.f32 %v9471, %v9473
  %v9516 = vmax.f32 %v9474, %v9476
  %v9517 = vmax.f32 %v9475, %v9477
  %v9518 = vmax.f32 %v9478, %v9480
  %v9519 = vmax.f32 %v9479, %v9481
  %v9520 = vmax.f32 %v9482, %v9484
  %v9521 = vmax.f32 %v9483, %v9485
  %v9522 = vmax.f32 %v9486, %v9488
  %v9523 = vmax.f32 %v9487, %v9489
  %v9524 = vmax.f32 %v9490, %v9492
  %v9525 = vmax.f32 %v9491, %v9493
  %v9526 = vmax.f32 %v9494, %v9496
  %v9527 = vmax.f32 %v9495, %v9497
  %v9528 = vmax.f32 %v9498, %v9500
  %v9529 = vmax.f32 %v9499, %v9501
  %v9530 = vmax.f32 %v7546, %v9502
  %v9531 = vmax.f32 %v7547, %v9503
  %v9532 = vmax.f32 %v7548, %v9504
  %v9533 = vmax.f32 %v7549, %v9505
  %v9534 = vmax.f32 %v7550, %v9506
  %v9535 = vmax.f32 %v7551, %v9507
  %v9536 = vmax.f32 %v7552, %v9508
  %v9537 = vmax.f32 %v7553, %v9509
  %v9538 = vmax.f32 %v7554, %v9510
  %v9539 = vmax.f32 %v7555, %v9511
  %v9540 = vmax.f32 %v7556, %v9512
  %v9541 = vmax.f32 %v7557, %v9513
  %v9542 = vmax.f32 %v7558, %v9514
  %v9543 = vmax.f32 %v7559, %v9515
  %v9544 = vmax.f32 %v7560, %v9516
  %v9545 = vmax.f32 %v7561, %v9517
  %v9546 = vmax.f32 %v7562, %v9518
  %v9547 = vmax.f32 %v7563, %v9519
  %v9548 = vmax.f32 %v7564, %v9520
  %v9549 = vmax.f32 %v7565, %v9521
  %v9550 = vmax.f32 %v7566, %v9522
  %v9551 = vmax.f32 %v7567, %v9523
  %v9552 = vmax.f32 %v7568, %v9524
  %v9553 = vmax.f32 %v7569, %v9525
  %v9554 = vmax.f32 %v7570, %v9526
  %v9555 = vmax.f32 %v7571, %v9527
  %v9556 = vmax.f32 %v7572, %v9528
  %v9557 = vmax.f32 %v7573, %v9529
  %v9558 = vmax.f32 %v9530, 0.0
  %v9559 = vmax.f32 %v9531, 0.0
  %v9560 = vmax.f32 %v9532, 0.0
  %v9561 = vmax.f32 %v9533, 0.0
  %v9562 = vmax.f32 %v9534, 0.0
  %v9563 = vmax.f32 %v9535, 0.0
  %v9564 = vmax.f32 %v9536, 0.0
  %v9565 = vmax.f32 %v9537, 0.0
  %v9566 = vmax.f32 %v9538, 0.0
  %v9567 = vmax.f32 %v9539, 0.0
  %v9568 = vmax.f32 %v9540, 0.0
  %v9569 = vmax.f32 %v9541, 0.0
  %v9570 = vmax.f32 %v9542, 0.0
  %v9571 = vmax.f32 %v9543, 0.0
  %v9572 = vmax.f32 %v9544, 0.0
  %v9573 = vmax.f32 %v9545, 0.0
  %v9574 = vmax.f32 %v9546, 0.0
  %v9575 = vmax.f32 %v9547, 0.0
  %v9576 = vmax.f32 %v9548, 0.0
  %v9577 = vmax.f32 %v9549, 0.0
  %v9578 = vmax.f32 %v9550, 0.0
  %v9579 = vmax.f32 %v9551, 0.0
  %v9580 = vmax.f32 %v9552, 0.0
  %v9581 = vmax.f32 %v9553, 0.0
  %v9582 = vmax.f32 %v9554, 0.0
  %v9583 = vmax.f32 %v9555, 0.0
  %v9584 = vmax.f32 %v9556, 0.0
  %v9585 = vmax.f32 %v9557, 0.0
  %v9586 = vpack.c.bf16 %v9559, %v9558
  %v9587 = vpack.c.bf16 %v9561, %v9560
  %v9588 = vpack.c.bf16 %v9563, %v9562
  %v9589 = vpack.c.bf16 %v9565, %v9564
  %v9590 = vpack.c.bf16 %v9567, %v9566
  %v9591 = vpack.c.bf16 %v9569, %v9568
  %v9592 = vpack.c.bf16 %v9571, %v9570
  %v9593 = vpack.c.bf16 %v9573, %v9572
  %v9594 = vpack.c.bf16 %v9575, %v9574
  %v9595 = vpack.c.bf16 %v9577, %v9576
  %v9596 = vpack.c.bf16 %v9579, %v9578
  %v9597 = vpack.c.bf16 %v9581, %v9580
  %v9598 = vpack.c.bf16 %v9583, %v9582
  %v9599 = vpack.c.bf16 %v9585, %v9584
  %v9600 = vld [vmem:[%s3] sm:$0xff]
  %v9601 = vld [vmem:[%s3 + $0x8] sm:$0xff]
  %v9602 = vld [vmem:[%s3 + $0x10] sm:$0xff]
  %v9603 = vld [vmem:[%s3 + $0x18] sm:$0xff]
  %v9604 = vld [vmem:[%s3 + $0x20] sm:$0xff]
  %v9605 = vld [vmem:[%s3 + $0x28] sm:$0xff]
  %v9606 = vld [vmem:[%s3 + $0x30] sm:$0xff]
  %v9607 = vld [vmem:[%s3 + $0x38] sm:$0xff]
  %v9608 = vld [vmem:[%s3 + $0x40] sm:$0xff]
  %v9609 = vld [vmem:[%s3 + $0x48] sm:$0xff]
  %v9610 = vld [vmem:[%s3 + $0x50] sm:$0xff]
  %v9611 = vld [vmem:[%s3 + $0x58] sm:$0xff]
  %v9612 = vld [vmem:[%s3 + $0x60] sm:$0xff]
  %v9613 = vld [vmem:[%s3 + $0x68] sm:$0xff]
  %v9614 = vld [vmem:[%s3 + $0x70] sm:$0xff]
  %v9615 = vld [vmem:[%s3 + $0x78] sm:$0xff]
  %v9616 = vld [vmem:[%s3 + $0x80] sm:$0xff]
  %v9617 = vld [vmem:[%s3 + $0x88] sm:$0xff]
  %v9618 = vld [vmem:[%s3 + $0x90] sm:$0xff]
  %v9619 = vld [vmem:[%s3 + $0x98] sm:$0xff]
  %v9620 = vld [vmem:[%s3 + $0xa0] sm:$0xff]
  %v9621 = vld [vmem:[%s3 + $0xa8] sm:$0xff]
  %v9622 = vld [vmem:[%s3 + $0xb0] sm:$0xff]
  %v9623 = vld [vmem:[%s3 + $0xb8] sm:$0xff]
  %v9624 = vld [vmem:[%s3 + $0xc0] sm:$0xff]
  %v9625 = vld [vmem:[%s3 + $0xc8] sm:$0xff]
  %v9626 = vld [vmem:[%s3 + $0xd0] sm:$0xff]
  %v9627 = vld [vmem:[%s3 + $0xd8] sm:$0xff]
  %v9628 = vld [vmem:[%s3 + $0xe0] sm:$0xff]
  %v9629 = vld [vmem:[%s3 + $0xe8] sm:$0xff]
  %v9630 = vld [vmem:[%s3 + $0xf0] sm:$0xff]
  %v9631 = vld [vmem:[%s3 + $0xf8] sm:$0xff]
  %v9632 = vld [vmem:[%s3 + $0x100] sm:$0xff]
  %v9633 = vld [vmem:[%s3 + $0x108] sm:$0xff]
  %v9634 = vld [vmem:[%s3 + $0x110] sm:$0xff]
  %v9635 = vld [vmem:[%s3 + $0x118] sm:$0xff]
  %v9636 = vld [vmem:[%s3 + $0x120] sm:$0xff]
  %v9637 = vld [vmem:[%s3 + $0x128] sm:$0xff]
  %v9638 = vld [vmem:[%s3 + $0x130] sm:$0xff]
  %v9639 = vld [vmem:[%s3 + $0x138] sm:$0xff]
  %v9640 = vld [vmem:[%s3 + $0x140] sm:$0xff]
  %v9641 = vld [vmem:[%s3 + $0x148] sm:$0xff]
  %v9642 = vld [vmem:[%s3 + $0x150] sm:$0xff]
  %v9643 = vld [vmem:[%s3 + $0x158] sm:$0xff]
  %v9644 = vld [vmem:[%s3 + $0x160] sm:$0xff]
  %v9645 = vld [vmem:[%s3 + $0x168] sm:$0xff]
  %v9646 = vld [vmem:[%s3 + $0x170] sm:$0xff]
  %v9647 = vld [vmem:[%s3 + $0x178] sm:$0xff]
  %v9648 = vld [vmem:[%s3 + $0x180] sm:$0xff]
  %v9649 = vld [vmem:[%s3 + $0x188] sm:$0xff]
  %v9650 = vld [vmem:[%s3 + $0x190] sm:$0xff]
  %v9651 = vld [vmem:[%s3 + $0x198] sm:$0xff]
  %v9652 = vld [vmem:[%s3 + $0x1a0] sm:$0xff]
  %v9653 = vld [vmem:[%s3 + $0x1a8] sm:$0xff]
  %v9654 = vld [vmem:[%s3 + $0x1b0] sm:$0xff]
  %v9655 = vld [vmem:[%s3 + $0x1b8] sm:$0xff]
  %v9656 = vld [vmem:[%s3 + $0x1c0] sm:$0xff]
  %v9657 = vld [vmem:[%s3 + $0x1c8] sm:$0xff]
  %v9658 = vld [vmem:[%s3 + $0x1d0] sm:$0xff]
  %v9659 = vld [vmem:[%s3 + $0x1d8] sm:$0xff]
  %v9660 = vld [vmem:[%s3 + $0x1e0] sm:$0xff]
  %v9661 = vld [vmem:[%s3 + $0x1e8] sm:$0xff]
  %v9662 = vld [vmem:[%s3 + $0x1f0] sm:$0xff]
  %v9663 = vld [vmem:[%s3 + $0x1f8] sm:$0xff]
  %v9678 = vunpack.c.l.b16 %v9586
  %v9679 = vunpack.c.h.b16 %v9586
  %v9680 = vunpack.c.l.b16 %v9587
  %v9681 = vunpack.c.h.b16 %v9587
  %v9682 = vunpack.c.l.b16 %v9588
  %v9683 = vunpack.c.h.b16 %v9588
  %v9684 = vunpack.c.l.b16 %v9589
  %v9685 = vunpack.c.h.b16 %v9589
  %v9686 = vunpack.c.l.b16 %v9590
  %v9687 = vunpack.c.h.b16 %v9590
  %v9688 = vunpack.c.l.b16 %v9591
  %v9689 = vunpack.c.h.b16 %v9591
  %v9690 = vunpack.c.l.b16 %v9592
  %v9691 = vunpack.c.h.b16 %v9592
  %v9692 = vunpack.c.l.b16 %v9593
  %v9693 = vunpack.c.h.b16 %v9593
  %v9694 = vunpack.c.l.b16 %v9594
  %v9695 = vunpack.c.h.b16 %v9594
  %v9696 = vunpack.c.l.b16 %v9595
  %v9697 = vunpack.c.h.b16 %v9595
  %v9698 = vunpack.c.l.b16 %v9596
  %v9699 = vunpack.c.h.b16 %v9596
  %v9700 = vunpack.c.l.b16 %v9597
  %v9701 = vunpack.c.h.b16 %v9597
  %v9702 = vunpack.c.l.b16 %v9598
  %v9703 = vunpack.c.h.b16 %v9598
  %v9704 = vunpack.c.l.b16 %v9599
  %v9705 = vunpack.c.h.b16 %v9599
  %v9706 = vpack.c.b16 %v9680, %v9678
  %v9707 = vpack.c.b16 %v9681, %v9679
  %v9708 = vpack.c.b16 %v9684, %v9682
  %v9709 = vpack.c.b16 %v9685, %v9683
  %v9710 = vpack.c.b16 %v9688, %v9686
  %v9711 = vpack.c.b16 %v9689, %v9687
  %v9712 = vpack.c.b16 %v9692, %v9690
  %v9713 = vpack.c.b16 %v9693, %v9691
  %v9714 = vpack.c.b16 %v9696, %v9694
  %v9715 = vpack.c.b16 %v9697, %v9695
  %v9716 = vpack.c.b16 %v9700, %v9698
  %v9717 = vpack.c.b16 %v9701, %v9699
  %v9718 = vpack.c.b16 %v9704, %v9702
  %v9719 = vpack.c.b16 %v9705, %v9703
  %v9721 = vshrl.u32 %v9706, 16
  %v9723 = vshll.u32 %v9706, 16
  %v9725 = vrot.slane %v9723, 1
  %v9726 = vor.u32 %v9721, %v9725
  %v9728 = vshll.u32 %v9708, 16
  %v9730 = vrot.slane %v9728, 1
  %v9731 = vsel %vm73, %v9726, %v9730
  %v9733 = vshrl.u32 %v9707, 16
  %v9735 = vshll.u32 %v9707, 16
  %v9737 = vrot.slane %v9735, 1
  %v9738 = vor.u32 %v9733, %v9737
  %v9740 = vshll.u32 %v9709, 16
  %v9742 = vrot.slane %v9740, 1
  %v9743 = vsel %vm73, %v9738, %v9742
  %v9744 = vshrl.u32 %v9708, 16
  %v9746 = vor.u32 %v9744, %v9730
  %v9748 = vshll.u32 %v9710, 16
  %v9750 = vrot.slane %v9748, 1
  %v9751 = vsel %vm73, %v9746, %v9750
  %v9752 = vshrl.u32 %v9709, 16
  %v9754 = vor.u32 %v9752, %v9742
  %v9756 = vshll.u32 %v9711, 16
  %v9758 = vrot.slane %v9756, 1
  %v9759 = vsel %vm73, %v9754, %v9758
  %v9760 = vshrl.u32 %v9710, 16
  %v9762 = vor.u32 %v9760, %v9750
  %v9764 = vshll.u32 %v9712, 16
  %v9766 = vrot.slane %v9764, 1
  %v9767 = vsel %vm73, %v9762, %v9766
  %v9768 = vshrl.u32 %v9711, 16
  %v9770 = vor.u32 %v9768, %v9758
  %v9772 = vshll.u32 %v9713, 16
  %v9774 = vrot.slane %v9772, 1
  %v9775 = vsel %vm73, %v9770, %v9774
  %v9776 = vshrl.u32 %v9712, 16
  %v9778 = vor.u32 %v9776, %v9766
  %v9780 = vshll.u32 %v9714, 16
  %v9782 = vrot.slane %v9780, 1
  %v9783 = vsel %vm73, %v9778, %v9782
  %v9784 = vshrl.u32 %v9713, 16
  %v9786 = vor.u32 %v9784, %v9774
  %v9788 = vshll.u32 %v9715, 16
  %v9790 = vrot.slane %v9788, 1
  %v9791 = vsel %vm73, %v9786, %v9790
  %v9792 = vshrl.u32 %v9714, 16
  %v9794 = vor.u32 %v9792, %v9782
  %v9796 = vshll.u32 %v9716, 16
  %v9798 = vrot.slane %v9796, 1
  %v9799 = vsel %vm73, %v9794, %v9798
  %v9800 = vshrl.u32 %v9715, 16
  %v9802 = vor.u32 %v9800, %v9790
  %v9804 = vshll.u32 %v9717, 16
  %v9806 = vrot.slane %v9804, 1
  %v9807 = vsel %vm73, %v9802, %v9806
  %v9808 = vshrl.u32 %v9716, 16
  %v9810 = vor.u32 %v9808, %v9798
  %v9812 = vshll.u32 %v9718, 16
  %v9814 = vrot.slane %v9812, 1
  %v9815 = vsel %vm73, %v9810, %v9814
  %v9816 = vshrl.u32 %v9717, 16
  %v9818 = vor.u32 %v9816, %v9806
  %v9820 = vshll.u32 %v9719, 16
  %v9822 = vrot.slane %v9820, 1
  %v9823 = vsel %vm73, %v9818, %v9822
  %v9824 = vshrl.u32 %v9718, 16
  %v9826 = vor.u32 %v9824, %v9814
  %v9827 = vshrl.u32 %v9719, 16
  %v9829 = vor.u32 %v9827, %v9822
  %v9844 = vpack.c.b16 %v9678, %v9678
  %v9845 = vpack.c.b16 %v9679, %v9679
  %v9847 = vshll.u32 %v9844, 16
  %v9849 = vrot.slane %v9847, 1
  %v9851 = vshll.u32 %v9845, 16
  %v9853 = vrot.slane %v9851, 1
  %v9856 = vsel %vm137, %v9826, %v9849
  %v9857 = vsel %vm137, %v9829, %v9853
  %s9858 = scalar_lea.vmem %s3, 512
  %v9859 = vld [vmem:[%s9858] sm:$0xff]
  %v9860 = vld [vmem:[%s9858 + $0x8] sm:$0xff]
  %v9861 = vld [vmem:[%s9858 + $0x10] sm:$0xff]
  %v9862 = vld [vmem:[%s9858 + $0x18] sm:$0xff]
  %v9863 = vld [vmem:[%s9858 + $0x20] sm:$0xff]
  %v9864 = vld [vmem:[%s9858 + $0x28] sm:$0xff]
  %v9865 = vld [vmem:[%s9858 + $0x30] sm:$0xff]
  %v9866 = vld [vmem:[%s9858 + $0x38] sm:$0xff]
  %v9867 = vld [vmem:[%s9858 + $0x40] sm:$0xff]
  %v9868 = vld [vmem:[%s9858 + $0x48] sm:$0xff]
  %v9869 = vld [vmem:[%s9858 + $0x50] sm:$0xff]
  %v9870 = vld [vmem:[%s9858 + $0x58] sm:$0xff]
  %v9871 = vld [vmem:[%s9858 + $0x60] sm:$0xff]
  %v9872 = vld [vmem:[%s9858 + $0x68] sm:$0xff]
  %v9873 = vld [vmem:[%s9858 + $0x70] sm:$0xff]
  %v9874 = vld [vmem:[%s9858 + $0x78] sm:$0xff]
  %v9875 = vld [vmem:[%s9858 + $0x80] sm:$0xff]
  %v9876 = vld [vmem:[%s9858 + $0x88] sm:$0xff]
  %v9877 = vld [vmem:[%s9858 + $0x90] sm:$0xff]
  %v9878 = vld [vmem:[%s9858 + $0x98] sm:$0xff]
  %v9879 = vld [vmem:[%s9858 + $0xa0] sm:$0xff]
  %v9880 = vld [vmem:[%s9858 + $0xa8] sm:$0xff]
  %v9881 = vld [vmem:[%s9858 + $0xb0] sm:$0xff]
  %v9882 = vld [vmem:[%s9858 + $0xb8] sm:$0xff]
  %v9883 = vld [vmem:[%s9858 + $0xc0] sm:$0xff]
  %v9884 = vld [vmem:[%s9858 + $0xc8] sm:$0xff]
  %v9885 = vld [vmem:[%s9858 + $0xd0] sm:$0xff]
  %v9886 = vld [vmem:[%s9858 + $0xd8] sm:$0xff]
  %v9887 = vld [vmem:[%s9858 + $0xe0] sm:$0xff]
  %v9888 = vld [vmem:[%s9858 + $0xe8] sm:$0xff]
  %v9889 = vld [vmem:[%s9858 + $0xf0] sm:$0xff]
  %v9890 = vld [vmem:[%s9858 + $0xf8] sm:$0xff]
  %v9891 = vld [vmem:[%s9858 + $0x100] sm:$0xff]
  %v9892 = vld [vmem:[%s9858 + $0x108] sm:$0xff]
  %v9893 = vld [vmem:[%s9858 + $0x110] sm:$0xff]
  %v9894 = vld [vmem:[%s9858 + $0x118] sm:$0xff]
  %v9895 = vld [vmem:[%s9858 + $0x120] sm:$0xff]
  %v9896 = vld [vmem:[%s9858 + $0x128] sm:$0xff]
  %v9897 = vld [vmem:[%s9858 + $0x130] sm:$0xff]
  %v9898 = vld [vmem:[%s9858 + $0x138] sm:$0xff]
  %v9899 = vld [vmem:[%s9858 + $0x140] sm:$0xff]
  %v9900 = vld [vmem:[%s9858 + $0x148] sm:$0xff]
  %v9901 = vld [vmem:[%s9858 + $0x150] sm:$0xff]
  %v9902 = vld [vmem:[%s9858 + $0x158] sm:$0xff]
  %v9903 = vld [vmem:[%s9858 + $0x160] sm:$0xff]
  %v9904 = vld [vmem:[%s9858 + $0x168] sm:$0xff]
  %v9905 = vld [vmem:[%s9858 + $0x170] sm:$0xff]
  %v9906 = vld [vmem:[%s9858 + $0x178] sm:$0xff]
  %v9907 = vld [vmem:[%s9858 + $0x180] sm:$0xff]
  %v9908 = vld [vmem:[%s9858 + $0x188] sm:$0xff]
  %v9909 = vld [vmem:[%s9858 + $0x190] sm:$0xff]
  %v9910 = vld [vmem:[%s9858 + $0x198] sm:$0xff]
  %v9911 = vld [vmem:[%s9858 + $0x1a0] sm:$0xff]
  %v9912 = vld [vmem:[%s9858 + $0x1a8] sm:$0xff]
  %v9913 = vld [vmem:[%s9858 + $0x1b0] sm:$0xff]
  %v9914 = vld [vmem:[%s9858 + $0x1b8] sm:$0xff]
  %v9915 = vld [vmem:[%s9858 + $0x1c0] sm:$0xff]
  %v9916 = vld [vmem:[%s9858 + $0x1c8] sm:$0xff]
  %v9917 = vld [vmem:[%s9858 + $0x1d0] sm:$0xff]
  %v9918 = vld [vmem:[%s9858 + $0x1d8] sm:$0xff]
  %v9919 = vld [vmem:[%s9858 + $0x1e0] sm:$0xff]
  %v9920 = vld [vmem:[%s9858 + $0x1e8] sm:$0xff]
  %v9921 = vld [vmem:[%s9858 + $0x1f0] sm:$0xff]
  %v9922 = vld [vmem:[%s9858 + $0x1f8] sm:$0xff]
  %v9987 = vunpack.c.l.b16 %v9859
  %v9988 = vunpack.c.h.b16 %v9859
  %v9989 = vunpack.c.l.b16 %v9860
  %v9990 = vunpack.c.h.b16 %v9860
  %v9991 = vunpack.c.l.b16 %v9861
  %v9992 = vunpack.c.h.b16 %v9861
  %v9993 = vunpack.c.l.b16 %v9862
  %v9994 = vunpack.c.h.b16 %v9862
  %v9995 = vunpack.c.l.b16 %v9863
  %v9996 = vunpack.c.h.b16 %v9863
  %v9997 = vunpack.c.l.b16 %v9864
  %v9998 = vunpack.c.h.b16 %v9864
  %v9999 = vunpack.c.l.b16 %v9865
  %v10000 = vunpack.c.h.b16 %v9865
  %v10001 = vunpack.c.l.b16 %v9866
  %v10002 = vunpack.c.h.b16 %v9866
  %v10003 = vunpack.c.l.b16 %v9867
  %v10004 = vunpack.c.h.b16 %v9867
  %v10005 = vunpack.c.l.b16 %v9868
  %v10006 = vunpack.c.h.b16 %v9868
  %v10007 = vunpack.c.l.b16 %v9869
  %v10008 = vunpack.c.h.b16 %v9869
  %v10009 = vunpack.c.l.b16 %v9870
  %v10010 = vunpack.c.h.b16 %v9870
  %v10011 = vunpack.c.l.b16 %v9871
  %v10012 = vunpack.c.h.b16 %v9871
  %v10013 = vunpack.c.l.b16 %v9872
  %v10014 = vunpack.c.h.b16 %v9872
  %v10015 = vunpack.c.l.b16 %v9873
  %v10016 = vunpack.c.h.b16 %v9873
  %v10017 = vunpack.c.l.b16 %v9874
  %v10018 = vunpack.c.h.b16 %v9874
  %v10019 = vunpack.c.l.b16 %v9875
  %v10020 = vunpack.c.h.b16 %v9875
  %v10021 = vunpack.c.l.b16 %v9876
  %v10022 = vunpack.c.h.b16 %v9876
  %v10023 = vunpack.c.l.b16 %v9877
  %v10024 = vunpack.c.h.b16 %v9877
  %v10025 = vunpack.c.l.b16 %v9878
  %v10026 = vunpack.c.h.b16 %v9878
  %v10027 = vunpack.c.l.b16 %v9879
  %v10028 = vunpack.c.h.b16 %v9879
  %v10029 = vunpack.c.l.b16 %v9880
  %v10030 = vunpack.c.h.b16 %v9880
  %v10031 = vunpack.c.l.b16 %v9881
  %v10032 = vunpack.c.h.b16 %v9881
  %v10033 = vunpack.c.l.b16 %v9882
  %v10034 = vunpack.c.h.b16 %v9882
  %v10035 = vunpack.c.l.b16 %v9883
  %v10036 = vunpack.c.h.b16 %v9883
  %v10037 = vunpack.c.l.b16 %v9884
  %v10038 = vunpack.c.h.b16 %v9884
  %v10039 = vunpack.c.l.b16 %v9885
  %v10040 = vunpack.c.h.b16 %v9885
  %v10041 = vunpack.c.l.b16 %v9886
  %v10042 = vunpack.c.h.b16 %v9886
  %v10043 = vunpack.c.l.b16 %v9887
  %v10044 = vunpack.c.h.b16 %v9887
  %v10045 = vunpack.c.l.b16 %v9888
  %v10046 = vunpack.c.h.b16 %v9888
  %v10047 = vunpack.c.l.b16 %v9889
  %v10048 = vunpack.c.h.b16 %v9889
  %v10049 = vunpack.c.l.b16 %v9890
  %v10050 = vunpack.c.h.b16 %v9890
  %v10051 = vunpack.c.l.b16 %v9891
  %v10052 = vunpack.c.h.b16 %v9891
  %v10053 = vunpack.c.l.b16 %v9892
  %v10054 = vunpack.c.h.b16 %v9892
  %v10055 = vunpack.c.l.b16 %v9893
  %v10056 = vunpack.c.h.b16 %v9893
  %v10057 = vunpack.c.l.b16 %v9894
  %v10058 = vunpack.c.h.b16 %v9894
  %v10059 = vunpack.c.l.b16 %v9895
  %v10060 = vunpack.c.h.b16 %v9895
  %v10061 = vunpack.c.l.b16 %v9896
  %v10062 = vunpack.c.h.b16 %v9896
  %v10063 = vunpack.c.l.b16 %v9897
  %v10064 = vunpack.c.h.b16 %v9897
  %v10065 = vunpack.c.l.b16 %v9898
  %v10066 = vunpack.c.h.b16 %v9898
  %v10067 = vunpack.c.l.b16 %v9899
  %v10068 = vunpack.c.h.b16 %v9899
  %v10069 = vunpack.c.l.b16 %v9900
  %v10070 = vunpack.c.h.b16 %v9900
  %v10071 = vunpack.c.l.b16 %v9901
  %v10072 = vunpack.c.h.b16 %v9901
  %v10073 = vunpack.c.l.b16 %v9902
  %v10074 = vunpack.c.h.b16 %v9902
  %v10075 = vunpack.c.l.b16 %v9903
  %v10076 = vunpack.c.h.b16 %v9903
  %v10077 = vunpack.c.l.b16 %v9904
  %v10078 = vunpack.c.h.b16 %v9904
  %v10079 = vunpack.c.l.b16 %v9905
  %v10080 = vunpack.c.h.b16 %v9905
  %v10081 = vunpack.c.l.b16 %v9906
  %v10082 = vunpack.c.h.b16 %v9906
  %v10083 = vunpack.c.l.b16 %v9907
  %v10084 = vunpack.c.h.b16 %v9907
  %v10085 = vunpack.c.l.b16 %v9908
  %v10086 = vunpack.c.h.b16 %v9908
  %v10087 = vunpack.c.l.b16 %v9909
  %v10088 = vunpack.c.h.b16 %v9909
  %v10089 = vunpack.c.l.b16 %v9910
  %v10090 = vunpack.c.h.b16 %v9910
  %v10091 = vunpack.c.l.b16 %v9911
  %v10092 = vunpack.c.h.b16 %v9911
  %v10093 = vunpack.c.l.b16 %v9912
  %v10094 = vunpack.c.h.b16 %v9912
  %v10095 = vunpack.c.l.b16 %v9913
  %v10096 = vunpack.c.h.b16 %v9913
  %v10097 = vunpack.c.l.b16 %v9914
  %v10098 = vunpack.c.h.b16 %v9914
  %v10099 = vunpack.c.l.b16 %v9915
  %v10100 = vunpack.c.h.b16 %v9915
  %v10101 = vunpack.c.l.b16 %v9916
  %v10102 = vunpack.c.h.b16 %v9916
  %v10103 = vunpack.c.l.b16 %v9917
  %v10104 = vunpack.c.h.b16 %v9917
  %v10105 = vunpack.c.l.b16 %v9918
  %v10106 = vunpack.c.h.b16 %v9918
  %v10107 = vunpack.c.l.b16 %v9919
  %v10108 = vunpack.c.h.b16 %v9919
  %v10109 = vunpack.c.l.b16 %v9920
  %v10110 = vunpack.c.h.b16 %v9920
  %v10111 = vunpack.c.l.b16 %v9921
  %v10112 = vunpack.c.h.b16 %v9921
  %v10113 = vunpack.c.l.b16 %v9922
  %v10114 = vunpack.c.h.b16 %v9922
  %v10115 = vpack.c.b16 %v9991, %v9987
  %v10116 = vpack.c.b16 %v9992, %v9988
  %v10117 = vpack.c.b16 %v9993, %v9989
  %v10118 = vpack.c.b16 %v9994, %v9990
  %v10119 = vpack.c.b16 %v9999, %v9995
  %v10120 = vpack.c.b16 %v10000, %v9996
  %v10121 = vpack.c.b16 %v10001, %v9997
  %v10122 = vpack.c.b16 %v10002, %v9998
  %v10123 = vpack.c.b16 %v10007, %v10003
  %v10124 = vpack.c.b16 %v10008, %v10004
  %v10125 = vpack.c.b16 %v10009, %v10005
  %v10126 = vpack.c.b16 %v10010, %v10006
  %v10127 = vpack.c.b16 %v10015, %v10011
  %v10128 = vpack.c.b16 %v10016, %v10012
  %v10129 = vpack.c.b16 %v10017, %v10013
  %v10130 = vpack.c.b16 %v10018, %v10014
  %v10131 = vpack.c.b16 %v10023, %v10019
  %v10132 = vpack.c.b16 %v10024, %v10020
  %v10133 = vpack.c.b16 %v10025, %v10021
  %v10134 = vpack.c.b16 %v10026, %v10022
  %v10135 = vpack.c.b16 %v10031, %v10027
  %v10136 = vpack.c.b16 %v10032, %v10028
  %v10137 = vpack.c.b16 %v10033, %v10029
  %v10138 = vpack.c.b16 %v10034, %v10030
  %v10139 = vpack.c.b16 %v10039, %v10035
  %v10140 = vpack.c.b16 %v10040, %v10036
  %v10141 = vpack.c.b16 %v10041, %v10037
  %v10142 = vpack.c.b16 %v10042, %v10038
  %v10143 = vpack.c.b16 %v10047, %v10043
  %v10144 = vpack.c.b16 %v10048, %v10044
  %v10145 = vpack.c.b16 %v10049, %v10045
  %v10146 = vpack.c.b16 %v10050, %v10046
  %v10147 = vpack.c.b16 %v10055, %v10051
  %v10148 = vpack.c.b16 %v10056, %v10052
  %v10149 = vpack.c.b16 %v10057, %v10053
  %v10150 = vpack.c.b16 %v10058, %v10054
  %v10151 = vpack.c.b16 %v10063, %v10059
  %v10152 = vpack.c.b16 %v10064, %v10060
  %v10153 = vpack.c.b16 %v10065, %v10061
  %v10154 = vpack.c.b16 %v10066, %v10062
  %v10155 = vpack.c.b16 %v10071, %v10067
  %v10156 = vpack.c.b16 %v10072, %v10068
  %v10157 = vpack.c.b16 %v10073, %v10069
  %v10158 = vpack.c.b16 %v10074, %v10070
  %v10159 = vpack.c.b16 %v10079, %v10075
  %v10160 = vpack.c.b16 %v10080, %v10076
  %v10161 = vpack.c.b16 %v10081, %v10077
  %v10162 = vpack.c.b16 %v10082, %v10078
  %v10163 = vpack.c.b16 %v10087, %v10083
  %v10164 = vpack.c.b16 %v10088, %v10084
  %v10165 = vpack.c.b16 %v10089, %v10085
  %v10166 = vpack.c.b16 %v10090, %v10086
  %v10167 = vpack.c.b16 %v10095, %v10091
  %v10168 = vpack.c.b16 %v10096, %v10092
  %v10169 = vpack.c.b16 %v10097, %v10093
  %v10170 = vpack.c.b16 %v10098, %v10094
  %v10171 = vpack.c.b16 %v10103, %v10099
  %v10172 = vpack.c.b16 %v10104, %v10100
  %v10173 = vpack.c.b16 %v10105, %v10101
  %v10174 = vpack.c.b16 %v10106, %v10102
  %v10175 = vpack.c.b16 %v10111, %v10107
  %v10176 = vpack.c.b16 %v10112, %v10108
  %v10177 = vpack.c.b16 %v10113, %v10109
  %v10178 = vpack.c.b16 %v10114, %v10110
  %10243 = vmatpush.bf16.msra.mxu0 %v10143
  %10244 = vmatpush.bf16.msra.mxu0 %v10139
  %10245 = vmatpush.bf16.msra.mxu0 %v10135
  %10246 = vmatpush.bf16.msra.mxu0 %v10131
  %10247 = vmatpush.bf16.msra.mxu0 %v10127
  %10248 = vmatpush.bf16.msra.mxu0 %v10123
  %10249 = vmatpush.bf16.msra.mxu0 %v10119
  %10250 = vmatpush.bf16.msra.mxu0 %v10115
  %10251 = vmatmul.bf16.gmra.mxu0 %v9731
  %v10252 = vpop.f32.mrf.mxu0
  %v10253 = vadd.f32 0.0, %v10252
  %v10254 = vpop.f32.mrf.mxu0
  %v10255 = vadd.f32 0.0, %v10254
  %10256 = vmatmul.bf16.gmra.mxu0 %v9751
  %v10257 = vpop.f32.mrf.mxu0
  %v10258 = vadd.f32 0.0, %v10257
  %v10259 = vpop.f32.mrf.mxu0
  %v10260 = vadd.f32 0.0, %v10259
  %10261 = vmatmul.bf16.gmra.mxu0 %v9767
  %v10262 = vpop.f32.mrf.mxu0
  %v10263 = vadd.f32 0.0, %v10262
  %v10264 = vpop.f32.mrf.mxu0
  %v10265 = vadd.f32 0.0, %v10264
  %10266 = vmatmul.bf16.gmra.mxu0 %v9783
  %v10267 = vpop.f32.mrf.mxu0
  %v10268 = vadd.f32 0.0, %v10267
  %v10269 = vpop.f32.mrf.mxu0
  %v10270 = vadd.f32 0.0, %v10269
  %10271 = vmatmul.bf16.gmra.mxu0 %v9799
  %v10272 = vpop.f32.mrf.mxu0
  %v10273 = vadd.f32 0.0, %v10272
  %v10274 = vpop.f32.mrf.mxu0
  %v10275 = vadd.f32 0.0, %v10274
  %10276 = vmatmul.bf16.gmra.mxu0 %v9815
  %v10277 = vpop.f32.mrf.mxu0
  %v10278 = vadd.f32 0.0, %v10277
  %v10279 = vpop.f32.mrf.mxu0
  %v10280 = vadd.f32 0.0, %v10279
  %10281 = vmatmul.bf16.gmra.mxu0 %v9856
  %v10282 = vpop.f32.mrf.mxu0
  %v10283 = vadd.f32 0.0, %v10282
  %v10284 = vpop.f32.mrf.mxu0
  %v10285 = vadd.f32 0.0, %v10284
  %10286 = vdwg.mxu0
  %10287 = vmatpush.bf16.msra.mxu0 %v10175
  %10288 = vmatpush.bf16.msra.mxu0 %v10171
  %10289 = vmatpush.bf16.msra.mxu0 %v10167
  %10290 = vmatpush.bf16.msra.mxu0 %v10163
  %10291 = vmatpush.bf16.msra.mxu0 %v10159
  %10292 = vmatpush.bf16.msra.mxu0 %v10155
  %10293 = vmatpush.bf16.msra.mxu0 %v10151
  %10294 = vmatpush.bf16.msra.mxu0 %v10147
  %10295 = vmatmul.bf16.gmra.mxu0 %v9743
  %v10296 = vpop.f32.mrf.mxu0
  %v10297 = vadd.f32 %v10253, %v10296
  %v10298 = vpop.f32.mrf.mxu0
  %v10299 = vadd.f32 %v10255, %v10298
  %10300 = vmatmul.bf16.gmra.mxu0 %v9759
  %v10301 = vpop.f32.mrf.mxu0
  %v10302 = vadd.f32 %v10258, %v10301
  %v10303 = vpop.f32.mrf.mxu0
  %v10304 = vadd.f32 %v10260, %v10303
  %10305 = vmatmul.bf16.gmra.mxu0 %v9775
  %v10306 = vpop.f32.mrf.mxu0
  %v10307 = vadd.f32 %v10263, %v10306
  %v10308 = vpop.f32.mrf.mxu0
  %v10309 = vadd.f32 %v10265, %v10308
  %10310 = vmatmul.bf16.gmra.mxu0 %v9791
  %v10311 = vpop.f32.mrf.mxu0
  %v10312 = vadd.f32 %v10268, %v10311
  %v10313 = vpop.f32.mrf.mxu0
  %v10314 = vadd.f32 %v10270, %v10313
  %10315 = vmatmul.bf16.gmra.mxu0 %v9807
  %v10316 = vpop.f32.mrf.mxu0
  %v10317 = vadd.f32 %v10273, %v10316
  %v10318 = vpop.f32.mrf.mxu0
  %v10319 = vadd.f32 %v10275, %v10318
  %10320 = vmatmul.bf16.gmra.mxu0 %v9823
  %v10321 = vpop.f32.mrf.mxu0
  %v10322 = vadd.f32 %v10278, %v10321
  %v10323 = vpop.f32.mrf.mxu0
  %v10324 = vadd.f32 %v10280, %v10323
  %10325 = vmatmul.bf16.gmra.mxu0 %v9857
  %v10326 = vpop.f32.mrf.mxu0
  %v10327 = vadd.f32 %v10283, %v10326
  %v10328 = vpop.f32.mrf.mxu0
  %v10329 = vadd.f32 %v10285, %v10328
  %10330 = vdwg.mxu0
  %10331 = vmatpush.bf16.msra.mxu0 %v10144
  %10332 = vmatpush.bf16.msra.mxu0 %v10140
  %10333 = vmatpush.bf16.msra.mxu0 %v10136
  %10334 = vmatpush.bf16.msra.mxu0 %v10132
  %10335 = vmatpush.bf16.msra.mxu0 %v10128
  %10336 = vmatpush.bf16.msra.mxu0 %v10124
  %10337 = vmatpush.bf16.msra.mxu0 %v10120
  %10338 = vmatpush.bf16.msra.mxu0 %v10116
  %10339 = vmatmul.bf16.gmra.mxu0 %v9731
  %v10340 = vpop.f32.mrf.mxu0
  %v10341 = vadd.f32 0.0, %v10340
  %v10342 = vpop.f32.mrf.mxu0
  %v10343 = vadd.f32 0.0, %v10342
  %10344 = vmatmul.bf16.gmra.mxu0 %v9751
  %v10345 = vpop.f32.mrf.mxu0
  %v10346 = vadd.f32 0.0, %v10345
  %v10347 = vpop.f32.mrf.mxu0
  %v10348 = vadd.f32 0.0, %v10347
  %10349 = vmatmul.bf16.gmra.mxu0 %v9767
  %v10350 = vpop.f32.mrf.mxu0
  %v10351 = vadd.f32 0.0, %v10350
  %v10352 = vpop.f32.mrf.mxu0
  %v10353 = vadd.f32 0.0, %v10352
  %10354 = vmatmul.bf16.gmra.mxu0 %v9783
  %v10355 = vpop.f32.mrf.mxu0
  %v10356 = vadd.f32 0.0, %v10355
  %v10357 = vpop.f32.mrf.mxu0
  %v10358 = vadd.f32 0.0, %v10357
  %10359 = vmatmul.bf16.gmra.mxu0 %v9799
  %v10360 = vpop.f32.mrf.mxu0
  %v10361 = vadd.f32 0.0, %v10360
  %v10362 = vpop.f32.mrf.mxu0
  %v10363 = vadd.f32 0.0, %v10362
  %10364 = vmatmul.bf16.gmra.mxu0 %v9815
  %v10365 = vpop.f32.mrf.mxu0
  %v10366 = vadd.f32 0.0, %v10365
  %v10367 = vpop.f32.mrf.mxu0
  %v10368 = vadd.f32 0.0, %v10367
  %10369 = vmatmul.bf16.gmra.mxu0 %v9856
  %v10370 = vpop.f32.mrf.mxu0
  %v10371 = vadd.f32 0.0, %v10370
  %v10372 = vpop.f32.mrf.mxu0
  %v10373 = vadd.f32 0.0, %v10372
  %10374 = vdwg.mxu0
  %10375 = vmatpush.bf16.msra.mxu0 %v10176
  %10376 = vmatpush.bf16.msra.mxu0 %v10172
  %10377 = vmatpush.bf16.msra.mxu0 %v10168
  %10378 = vmatpush.bf16.msra.mxu0 %v10164
  %10379 = vmatpush.bf16.msra.mxu0 %v10160
  %10380 = vmatpush.bf16.msra.mxu0 %v10156
  %10381 = vmatpush.bf16.msra.mxu0 %v10152
  %10382 = vmatpush.bf16.msra.mxu0 %v10148
  %10383 = vmatmul.bf16.gmra.mxu0 %v9743
  %v10384 = vpop.f32.mrf.mxu0
  %v10385 = vadd.f32 %v10341, %v10384
  %v10386 = vpop.f32.mrf.mxu0
  %v10387 = vadd.f32 %v10343, %v10386
  %10388 = vmatmul.bf16.gmra.mxu0 %v9759
  %v10389 = vpop.f32.mrf.mxu0
  %v10390 = vadd.f32 %v10346, %v10389
  %v10391 = vpop.f32.mrf.mxu0
  %v10392 = vadd.f32 %v10348, %v10391
  %10393 = vmatmul.bf16.gmra.mxu0 %v9775
  %v10394 = vpop.f32.mrf.mxu0
  %v10395 = vadd.f32 %v10351, %v10394
  %v10396 = vpop.f32.mrf.mxu0
  %v10397 = vadd.f32 %v10353, %v10396
  %10398 = vmatmul.bf16.gmra.mxu0 %v9791
  %v10399 = vpop.f32.mrf.mxu0
  %v10400 = vadd.f32 %v10356, %v10399
  %v10401 = vpop.f32.mrf.mxu0
  %v10402 = vadd.f32 %v10358, %v10401
  %10403 = vmatmul.bf16.gmra.mxu0 %v9807
  %v10404 = vpop.f32.mrf.mxu0
  %v10405 = vadd.f32 %v10361, %v10404
  %v10406 = vpop.f32.mrf.mxu0
  %v10407 = vadd.f32 %v10363, %v10406
  %10408 = vmatmul.bf16.gmra.mxu0 %v9823
  %v10409 = vpop.f32.mrf.mxu0
  %v10410 = vadd.f32 %v10366, %v10409
  %v10411 = vpop.f32.mrf.mxu0
  %v10412 = vadd.f32 %v10368, %v10411
  %10413 = vmatmul.bf16.gmra.mxu0 %v9857
  %v10414 = vpop.f32.mrf.mxu0
  %v10415 = vadd.f32 %v10371, %v10414
  %v10416 = vpop.f32.mrf.mxu0
  %v10417 = vadd.f32 %v10373, %v10416
  %10418 = vdwg.mxu0
  %10419 = vmatpush.bf16.msra.mxu0 %v10145
  %10420 = vmatpush.bf16.msra.mxu0 %v10141
  %10421 = vmatpush.bf16.msra.mxu0 %v10137
  %10422 = vmatpush.bf16.msra.mxu0 %v10133
  %10423 = vmatpush.bf16.msra.mxu0 %v10129
  %10424 = vmatpush.bf16.msra.mxu0 %v10125
  %10425 = vmatpush.bf16.msra.mxu0 %v10121
  %10426 = vmatpush.bf16.msra.mxu0 %v10117
  %10427 = vmatmul.bf16.gmra.mxu0 %v9731
  %v10428 = vpop.f32.mrf.mxu0
  %v10429 = vadd.f32 0.0, %v10428
  %v10430 = vpop.f32.mrf.mxu0
  %v10431 = vadd.f32 0.0, %v10430
  %10432 = vmatmul.bf16.gmra.mxu0 %v9751
  %v10433 = vpop.f32.mrf.mxu0
  %v10434 = vadd.f32 0.0, %v10433
  %v10435 = vpop.f32.mrf.mxu0
  %v10436 = vadd.f32 0.0, %v10435
  %10437 = vmatmul.bf16.gmra.mxu0 %v9767
  %v10438 = vpop.f32.mrf.mxu0
  %v10439 = vadd.f32 0.0, %v10438
  %v10440 = vpop.f32.mrf.mxu0
  %v10441 = vadd.f32 0.0, %v10440
  %10442 = vmatmul.bf16.gmra.mxu0 %v9783
  %v10443 = vpop.f32.mrf.mxu0
  %v10444 = vadd.f32 0.0, %v10443
  %v10445 = vpop.f32.mrf.mxu0
  %v10446 = vadd.f32 0.0, %v10445
  %10447 = vmatmul.bf16.gmra.mxu0 %v9799
  %v10448 = vpop.f32.mrf.mxu0
  %v10449 = vadd.f32 0.0, %v10448
  %v10450 = vpop.f32.mrf.mxu0
  %v10451 = vadd.f32 0.0, %v10450
  %10452 = vmatmul.bf16.gmra.mxu0 %v9815
  %v10453 = vpop.f32.mrf.mxu0
  %v10454 = vadd.f32 0.0, %v10453
  %v10455 = vpop.f32.mrf.mxu0
  %v10456 = vadd.f32 0.0, %v10455
  %10457 = vmatmul.bf16.gmra.mxu0 %v9856
  %v10458 = vpop.f32.mrf.mxu0
  %v10459 = vadd.f32 0.0, %v10458
  %v10460 = vpop.f32.mrf.mxu0
  %v10461 = vadd.f32 0.0, %v10460
  %10462 = vdwg.mxu0
  %10463 = vmatpush.bf16.msra.mxu0 %v10177
  %10464 = vmatpush.bf16.msra.mxu0 %v10173
  %10465 = vmatpush.bf16.msra.mxu0 %v10169
  %10466 = vmatpush.bf16.msra.mxu0 %v10165
  %10467 = vmatpush.bf16.msra.mxu0 %v10161
  %10468 = vmatpush.bf16.msra.mxu0 %v10157
  %10469 = vmatpush.bf16.msra.mxu0 %v10153
  %10470 = vmatpush.bf16.msra.mxu0 %v10149
  %10471 = vmatmul.bf16.gmra.mxu0 %v9743
  %v10472 = vpop.f32.mrf.mxu0
  %v10473 = vadd.f32 %v10429, %v10472
  %v10474 = vpop.f32.mrf.mxu0
  %v10475 = vadd.f32 %v10431, %v10474
  %10476 = vmatmul.bf16.gmra.mxu0 %v9759
  %v10477 = vpop.f32.mrf.mxu0
  %v10478 = vadd.f32 %v10434, %v10477
  %v10479 = vpop.f32.mrf.mxu0
  %v10480 = vadd.f32 %v10436, %v10479
  %10481 = vmatmul.bf16.gmra.mxu0 %v9775
  %v10482 = vpop.f32.mrf.mxu0
  %v10483 = vadd.f32 %v10439, %v10482
  %v10484 = vpop.f32.mrf.mxu0
  %v10485 = vadd.f32 %v10441, %v10484
  %10486 = vmatmul.bf16.gmra.mxu0 %v9791
  %v10487 = vpop.f32.mrf.mxu0
  %v10488 = vadd.f32 %v10444, %v10487
  %v10489 = vpop.f32.mrf.mxu0
  %v10490 = vadd.f32 %v10446, %v10489
  %10491 = vmatmul.bf16.gmra.mxu0 %v9807
  %v10492 = vpop.f32.mrf.mxu0
  %v10493 = vadd.f32 %v10449, %v10492
  %v10494 = vpop.f32.mrf.mxu0
  %v10495 = vadd.f32 %v10451, %v10494
  %10496 = vmatmul.bf16.gmra.mxu0 %v9823
  %v10497 = vpop.f32.mrf.mxu0
  %v10498 = vadd.f32 %v10454, %v10497
  %v10499 = vpop.f32.mrf.mxu0
  %v10500 = vadd.f32 %v10456, %v10499
  %10501 = vmatmul.bf16.gmra.mxu0 %v9857
  %v10502 = vpop.f32.mrf.mxu0
  %v10503 = vadd.f32 %v10459, %v10502
  %v10504 = vpop.f32.mrf.mxu0
  %v10505 = vadd.f32 %v10461, %v10504
  %10506 = vdwg.mxu0
  %10507 = vmatpush.bf16.msra.mxu0 %v10146
  %10508 = vmatpush.bf16.msra.mxu0 %v10142
  %10509 = vmatpush.bf16.msra.mxu0 %v10138
  %10510 = vmatpush.bf16.msra.mxu0 %v10134
  %10511 = vmatpush.bf16.msra.mxu0 %v10130
  %10512 = vmatpush.bf16.msra.mxu0 %v10126
  %10513 = vmatpush.bf16.msra.mxu0 %v10122
  %10514 = vmatpush.bf16.msra.mxu0 %v10118
  %10515 = vmatmul.bf16.gmra.mxu0 %v9731
  %v10516 = vpop.f32.mrf.mxu0
  %v10517 = vadd.f32 0.0, %v10516
  %v10518 = vpop.f32.mrf.mxu0
  %v10519 = vadd.f32 0.0, %v10518
  %10520 = vmatmul.bf16.gmra.mxu0 %v9751
  %v10521 = vpop.f32.mrf.mxu0
  %v10522 = vadd.f32 0.0, %v10521
  %v10523 = vpop.f32.mrf.mxu0
  %v10524 = vadd.f32 0.0, %v10523
  %10525 = vmatmul.bf16.gmra.mxu0 %v9767
  %v10526 = vpop.f32.mrf.mxu0
  %v10527 = vadd.f32 0.0, %v10526
  %v10528 = vpop.f32.mrf.mxu0
  %v10529 = vadd.f32 0.0, %v10528
  %10530 = vmatmul.bf16.gmra.mxu0 %v9783
  %v10531 = vpop.f32.mrf.mxu0
  %v10532 = vadd.f32 0.0, %v10531
  %v10533 = vpop.f32.mrf.mxu0
  %v10534 = vadd.f32 0.0, %v10533
  %10535 = vmatmul.bf16.gmra.mxu0 %v9799
  %v10536 = vpop.f32.mrf.mxu0
  %v10537 = vadd.f32 0.0, %v10536
  %v10538 = vpop.f32.mrf.mxu0
  %v10539 = vadd.f32 0.0, %v10538
  %10540 = vmatmul.bf16.gmra.mxu0 %v9815
  %v10541 = vpop.f32.mrf.mxu0
  %v10542 = vadd.f32 0.0, %v10541
  %v10543 = vpop.f32.mrf.mxu0
  %v10544 = vadd.f32 0.0, %v10543
  %10545 = vmatmul.bf16.gmra.mxu0 %v9856
  %v10546 = vpop.f32.mrf.mxu0
  %v10547 = vadd.f32 0.0, %v10546
  %v10548 = vpop.f32.mrf.mxu0
  %v10549 = vadd.f32 0.0, %v10548
  %10550 = vdwg.mxu0
  %10551 = vmatpush.bf16.msra.mxu0 %v10178
  %10552 = vmatpush.bf16.msra.mxu0 %v10174
  %10553 = vmatpush.bf16.msra.mxu0 %v10170
  %10554 = vmatpush.bf16.msra.mxu0 %v10166
  %10555 = vmatpush.bf16.msra.mxu0 %v10162
  %10556 = vmatpush.bf16.msra.mxu0 %v10158
  %10557 = vmatpush.bf16.msra.mxu0 %v10154
  %10558 = vmatpush.bf16.msra.mxu0 %v10150
  %10559 = vmatmul.bf16.gmra.mxu0 %v9743
  %v10560 = vpop.f32.mrf.mxu0
  %v10561 = vadd.f32 %v10517, %v10560
  %v10562 = vpop.f32.mrf.mxu0
  %v10563 = vadd.f32 %v10519, %v10562
  %10564 = vmatmul.bf16.gmra.mxu0 %v9759
  %v10565 = vpop.f32.mrf.mxu0
  %v10566 = vadd.f32 %v10522, %v10565
  %v10567 = vpop.f32.mrf.mxu0
  %v10568 = vadd.f32 %v10524, %v10567
  %10569 = vmatmul.bf16.gmra.mxu0 %v9775
  %v10570 = vpop.f32.mrf.mxu0
  %v10571 = vadd.f32 %v10527, %v10570
  %v10572 = vpop.f32.mrf.mxu0
  %v10573 = vadd.f32 %v10529, %v10572
  %10574 = vmatmul.bf16.gmra.mxu0 %v9791
  %v10575 = vpop.f32.mrf.mxu0
  %v10576 = vadd.f32 %v10532, %v10575
  %v10577 = vpop.f32.mrf.mxu0
  %v10578 = vadd.f32 %v10534, %v10577
  %10579 = vmatmul.bf16.gmra.mxu0 %v9807
  %v10580 = vpop.f32.mrf.mxu0
  %v10581 = vadd.f32 %v10537, %v10580
  %v10582 = vpop.f32.mrf.mxu0
  %v10583 = vadd.f32 %v10539, %v10582
  %10584 = vmatmul.bf16.gmra.mxu0 %v9823
  %v10585 = vpop.f32.mrf.mxu0
  %v10586 = vadd.f32 %v10542, %v10585
  %v10587 = vpop.f32.mrf.mxu0
  %v10588 = vadd.f32 %v10544, %v10587
  %10589 = vmatmul.bf16.gmra.mxu0 %v9857
  %v10590 = vpop.f32.mrf.mxu0
  %v10591 = vadd.f32 %v10547, %v10590
  %v10592 = vpop.f32.mrf.mxu0
  %v10593 = vadd.f32 %v10549, %v10592
  %10594 = vdwg.mxu0
  %v10673 = vunpack.c.l.b16 %v9600
  %v10674 = vunpack.c.h.b16 %v9600
  %v10675 = vunpack.c.l.b16 %v9601
  %v10676 = vunpack.c.h.b16 %v9601
  %v10677 = vunpack.c.l.b16 %v9602
  %v10678 = vunpack.c.h.b16 %v9602
  %v10679 = vunpack.c.l.b16 %v9603
  %v10680 = vunpack.c.h.b16 %v9603
  %v10681 = vunpack.c.l.b16 %v9604
  %v10682 = vunpack.c.h.b16 %v9604
  %v10683 = vunpack.c.l.b16 %v9605
  %v10684 = vunpack.c.h.b16 %v9605
  %v10685 = vunpack.c.l.b16 %v9606
  %v10686 = vunpack.c.h.b16 %v9606
  %v10687 = vunpack.c.l.b16 %v9607
  %v10688 = vunpack.c.h.b16 %v9607
  %v10689 = vunpack.c.l.b16 %v9608
  %v10690 = vunpack.c.h.b16 %v9608
  %v10691 = vunpack.c.l.b16 %v9609
  %v10692 = vunpack.c.h.b16 %v9609
  %v10693 = vunpack.c.l.b16 %v9610
  %v10694 = vunpack.c.h.b16 %v9610
  %v10695 = vunpack.c.l.b16 %v9611
  %v10696 = vunpack.c.h.b16 %v9611
  %v10697 = vunpack.c.l.b16 %v9612
  %v10698 = vunpack.c.h.b16 %v9612
  %v10699 = vunpack.c.l.b16 %v9613
  %v10700 = vunpack.c.h.b16 %v9613
  %v10701 = vunpack.c.l.b16 %v9614
  %v10702 = vunpack.c.h.b16 %v9614
  %v10703 = vunpack.c.l.b16 %v9615
  %v10704 = vunpack.c.h.b16 %v9615
  %v10705 = vunpack.c.l.b16 %v9616
  %v10706 = vunpack.c.h.b16 %v9616
  %v10707 = vunpack.c.l.b16 %v9617
  %v10708 = vunpack.c.h.b16 %v9617
  %v10709 = vunpack.c.l.b16 %v9618
  %v10710 = vunpack.c.h.b16 %v9618
  %v10711 = vunpack.c.l.b16 %v9619
  %v10712 = vunpack.c.h.b16 %v9619
  %v10713 = vunpack.c.l.b16 %v9620
  %v10714 = vunpack.c.h.b16 %v9620
  %v10715 = vunpack.c.l.b16 %v9621
  %v10716 = vunpack.c.h.b16 %v9621
  %v10717 = vunpack.c.l.b16 %v9622
  %v10718 = vunpack.c.h.b16 %v9622
  %v10719 = vunpack.c.l.b16 %v9623
  %v10720 = vunpack.c.h.b16 %v9623
  %v10721 = vunpack.c.l.b16 %v9624
  %v10722 = vunpack.c.h.b16 %v9624
  %v10723 = vunpack.c.l.b16 %v9625
  %v10724 = vunpack.c.h.b16 %v9625
  %v10725 = vunpack.c.l.b16 %v9626
  %v10726 = vunpack.c.h.b16 %v9626
  %v10727 = vunpack.c.l.b16 %v9627
  %v10728 = vunpack.c.h.b16 %v9627
  %v10729 = vunpack.c.l.b16 %v9628
  %v10730 = vunpack.c.h.b16 %v9628
  %v10731 = vunpack.c.l.b16 %v9629
  %v10732 = vunpack.c.h.b16 %v9629
  %v10733 = vunpack.c.l.b16 %v9630
  %v10734 = vunpack.c.h.b16 %v9630
  %v10735 = vunpack.c.l.b16 %v9631
  %v10736 = vunpack.c.h.b16 %v9631
  %v10737 = vunpack.c.l.b16 %v9632
  %v10738 = vunpack.c.h.b16 %v9632
  %v10739 = vunpack.c.l.b16 %v9633
  %v10740 = vunpack.c.h.b16 %v9633
  %v10741 = vunpack.c.l.b16 %v9634
  %v10742 = vunpack.c.h.b16 %v9634
  %v10743 = vunpack.c.l.b16 %v9635
  %v10744 = vunpack.c.h.b16 %v9635
  %v10745 = vunpack.c.l.b16 %v9636
  %v10746 = vunpack.c.h.b16 %v9636
  %v10747 = vunpack.c.l.b16 %v9637
  %v10748 = vunpack.c.h.b16 %v9637
  %v10749 = vunpack.c.l.b16 %v9638
  %v10750 = vunpack.c.h.b16 %v9638
  %v10751 = vunpack.c.l.b16 %v9639
  %v10752 = vunpack.c.h.b16 %v9639
  %v10753 = vunpack.c.l.b16 %v9640
  %v10754 = vunpack.c.h.b16 %v9640
  %v10755 = vunpack.c.l.b16 %v9641
  %v10756 = vunpack.c.h.b16 %v9641
  %v10757 = vunpack.c.l.b16 %v9642
  %v10758 = vunpack.c.h.b16 %v9642
  %v10759 = vunpack.c.l.b16 %v9643
  %v10760 = vunpack.c.h.b16 %v9643
  %v10761 = vunpack.c.l.b16 %v9644
  %v10762 = vunpack.c.h.b16 %v9644
  %v10763 = vunpack.c.l.b16 %v9645
  %v10764 = vunpack.c.h.b16 %v9645
  %v10765 = vunpack.c.l.b16 %v9646
  %v10766 = vunpack.c.h.b16 %v9646
  %v10767 = vunpack.c.l.b16 %v9647
  %v10768 = vunpack.c.h.b16 %v9647
  %v10769 = vunpack.c.l.b16 %v9648
  %v10770 = vunpack.c.h.b16 %v9648
  %v10771 = vunpack.c.l.b16 %v9649
  %v10772 = vunpack.c.h.b16 %v9649
  %v10773 = vunpack.c.l.b16 %v9650
  %v10774 = vunpack.c.h.b16 %v9650
  %v10775 = vunpack.c.l.b16 %v9651
  %v10776 = vunpack.c.h.b16 %v9651
  %v10777 = vunpack.c.l.b16 %v9652
  %v10778 = vunpack.c.h.b16 %v9652
  %v10779 = vunpack.c.l.b16 %v9653
  %v10780 = vunpack.c.h.b16 %v9653
  %v10781 = vunpack.c.l.b16 %v9654
  %v10782 = vunpack.c.h.b16 %v9654
  %v10783 = vunpack.c.l.b16 %v9655
  %v10784 = vunpack.c.h.b16 %v9655
  %v10785 = vunpack.c.l.b16 %v9656
  %v10786 = vunpack.c.h.b16 %v9656
  %v10787 = vunpack.c.l.b16 %v9657
  %v10788 = vunpack.c.h.b16 %v9657
  %v10789 = vunpack.c.l.b16 %v9658
  %v10790 = vunpack.c.h.b16 %v9658
  %v10791 = vunpack.c.l.b16 %v9659
  %v10792 = vunpack.c.h.b16 %v9659
  %v10793 = vunpack.c.l.b16 %v9660
  %v10794 = vunpack.c.h.b16 %v9660
  %v10795 = vunpack.c.l.b16 %v9661
  %v10796 = vunpack.c.h.b16 %v9661
  %v10797 = vunpack.c.l.b16 %v9662
  %v10798 = vunpack.c.h.b16 %v9662
  %v10799 = vunpack.c.l.b16 %v9663
  %v10800 = vunpack.c.h.b16 %v9663
  %v10801 = vpack.c.b16 %v10677, %v10673
  %v10802 = vpack.c.b16 %v10678, %v10674
  %v10803 = vpack.c.b16 %v10679, %v10675
  %v10804 = vpack.c.b16 %v10680, %v10676
  %v10805 = vpack.c.b16 %v10685, %v10681
  %v10806 = vpack.c.b16 %v10686, %v10682
  %v10807 = vpack.c.b16 %v10687, %v10683
  %v10808 = vpack.c.b16 %v10688, %v10684
  %v10809 = vpack.c.b16 %v10693, %v10689
  %v10810 = vpack.c.b16 %v10694, %v10690
  %v10811 = vpack.c.b16 %v10695, %v10691
  %v10812 = vpack.c.b16 %v10696, %v10692
  %v10813 = vpack.c.b16 %v10701, %v10697
  %v10814 = vpack.c.b16 %v10702, %v10698
  %v10815 = vpack.c.b16 %v10703, %v10699
  %v10816 = vpack.c.b16 %v10704, %v10700
  %v10817 = vpack.c.b16 %v10709, %v10705
  %v10818 = vpack.c.b16 %v10710, %v10706
  %v10819 = vpack.c.b16 %v10711, %v10707
  %v10820 = vpack.c.b16 %v10712, %v10708
  %v10821 = vpack.c.b16 %v10717, %v10713
  %v10822 = vpack.c.b16 %v10718, %v10714
  %v10823 = vpack.c.b16 %v10719, %v10715
  %v10824 = vpack.c.b16 %v10720, %v10716
  %v10825 = vpack.c.b16 %v10725, %v10721
  %v10826 = vpack.c.b16 %v10726, %v10722
  %v10827 = vpack.c.b16 %v10727, %v10723
  %v10828 = vpack.c.b16 %v10728, %v10724
  %v10829 = vpack.c.b16 %v10733, %v10729
  %v10830 = vpack.c.b16 %v10734, %v10730
  %v10831 = vpack.c.b16 %v10735, %v10731
  %v10832 = vpack.c.b16 %v10736, %v10732
  %v10833 = vpack.c.b16 %v10741, %v10737
  %v10834 = vpack.c.b16 %v10742, %v10738
  %v10835 = vpack.c.b16 %v10743, %v10739
  %v10836 = vpack.c.b16 %v10744, %v10740
  %v10837 = vpack.c.b16 %v10749, %v10745
  %v10838 = vpack.c.b16 %v10750, %v10746
  %v10839 = vpack.c.b16 %v10751, %v10747
  %v10840 = vpack.c.b16 %v10752, %v10748
  %v10841 = vpack.c.b16 %v10757, %v10753
  %v10842 = vpack.c.b16 %v10758, %v10754
  %v10843 = vpack.c.b16 %v10759, %v10755
  %v10844 = vpack.c.b16 %v10760, %v10756
  %v10845 = vpack.c.b16 %v10765, %v10761
  %v10846 = vpack.c.b16 %v10766, %v10762
  %v10847 = vpack.c.b16 %v10767, %v10763
  %v10848 = vpack.c.b16 %v10768, %v10764
  %v10849 = vpack.c.b16 %v10773, %v10769
  %v10850 = vpack.c.b16 %v10774, %v10770
  %v10851 = vpack.c.b16 %v10775, %v10771
  %v10852 = vpack.c.b16 %v10776, %v10772
  %v10853 = vpack.c.b16 %v10781, %v10777
  %v10854 = vpack.c.b16 %v10782, %v10778
  %v10855 = vpack.c.b16 %v10783, %v10779
  %v10856 = vpack.c.b16 %v10784, %v10780
  %v10857 = vpack.c.b16 %v10789, %v10785
  %v10858 = vpack.c.b16 %v10790, %v10786
  %v10859 = vpack.c.b16 %v10791, %v10787
  %v10860 = vpack.c.b16 %v10792, %v10788
  %v10861 = vpack.c.b16 %v10797, %v10793
  %v10862 = vpack.c.b16 %v10798, %v10794
  %v10863 = vpack.c.b16 %v10799, %v10795
  %v10864 = vpack.c.b16 %v10800, %v10796
  %10929 = vmatpush.bf16.msra.mxu0 %v10829
  %10930 = vmatpush.bf16.msra.mxu0 %v10825
  %10931 = vmatpush.bf16.msra.mxu0 %v10821
  %10932 = vmatpush.bf16.msra.mxu0 %v10817
  %10933 = vmatpush.bf16.msra.mxu0 %v10813
  %10934 = vmatpush.bf16.msra.mxu0 %v10809
  %10935 = vmatpush.bf16.msra.mxu0 %v10805
  %10936 = vmatpush.bf16.msra.mxu0 %v10801
  %10937 = vmatmul.bf16.gmra.mxu0 %v9706
  %v10938 = vpop.f32.mrf.mxu0
  %v10939 = vadd.f32 %v10297, %v10938
  %v10940 = vpop.f32.mrf.mxu0
  %v10941 = vadd.f32 %v10299, %v10940
  %10942 = vmatmul.bf16.gmra.mxu0 %v9708
  %v10943 = vpop.f32.mrf.mxu0
  %v10944 = vadd.f32 %v10302, %v10943
  %v10945 = vpop.f32.mrf.mxu0
  %v10946 = vadd.f32 %v10304, %v10945
  %10947 = vmatmul.bf16.gmra.mxu0 %v9710
  %v10948 = vpop.f32.mrf.mxu0
  %v10949 = vadd.f32 %v10307, %v10948
  %v10950 = vpop.f32.mrf.mxu0
  %v10951 = vadd.f32 %v10309, %v10950
  %10952 = vmatmul.bf16.gmra.mxu0 %v9712
  %v10953 = vpop.f32.mrf.mxu0
  %v10954 = vadd.f32 %v10312, %v10953
  %v10955 = vpop.f32.mrf.mxu0
  %v10956 = vadd.f32 %v10314, %v10955
  %10957 = vmatmul.bf16.gmra.mxu0 %v9714
  %v10958 = vpop.f32.mrf.mxu0
  %v10959 = vadd.f32 %v10317, %v10958
  %v10960 = vpop.f32.mrf.mxu0
  %v10961 = vadd.f32 %v10319, %v10960
  %10962 = vmatmul.bf16.gmra.mxu0 %v9716
  %v10963 = vpop.f32.mrf.mxu0
  %v10964 = vadd.f32 %v10322, %v10963
  %v10965 = vpop.f32.mrf.mxu0
  %v10966 = vadd.f32 %v10324, %v10965
  %10967 = vmatmul.bf16.gmra.mxu0 %v9718
  %v10968 = vpop.f32.mrf.mxu0
  %v10969 = vadd.f32 %v10327, %v10968
  %v10970 = vpop.f32.mrf.mxu0
  %v10971 = vadd.f32 %v10329, %v10970
  %10972 = vdwg.mxu0
  %10973 = vmatpush.bf16.msra.mxu0 %v10861
  %10974 = vmatpush.bf16.msra.mxu0 %v10857
  %10975 = vmatpush.bf16.msra.mxu0 %v10853
  %10976 = vmatpush.bf16.msra.mxu0 %v10849
  %10977 = vmatpush.bf16.msra.mxu0 %v10845
  %10978 = vmatpush.bf16.msra.mxu0 %v10841
  %10979 = vmatpush.bf16.msra.mxu0 %v10837
  %10980 = vmatpush.bf16.msra.mxu0 %v10833
  %10981 = vmatmul.bf16.gmra.mxu0 %v9707
  %v10982 = vpop.f32.mrf.mxu0
  %v10983 = vadd.f32 %v10939, %v10982
  %v10984 = vpop.f32.mrf.mxu0
  %v10985 = vadd.f32 %v10941, %v10984
  %10986 = vmatmul.bf16.gmra.mxu0 %v9709
  %v10987 = vpop.f32.mrf.mxu0
  %v10988 = vadd.f32 %v10944, %v10987
  %v10989 = vpop.f32.mrf.mxu0
  %v10990 = vadd.f32 %v10946, %v10989
  %10991 = vmatmul.bf16.gmra.mxu0 %v9711
  %v10992 = vpop.f32.mrf.mxu0
  %v10993 = vadd.f32 %v10949, %v10992
  %v10994 = vpop.f32.mrf.mxu0
  %v10995 = vadd.f32 %v10951, %v10994
  %10996 = vmatmul.bf16.gmra.mxu0 %v9713
  %v10997 = vpop.f32.mrf.mxu0
  %v10998 = vadd.f32 %v10954, %v10997
  %v10999 = vpop.f32.mrf.mxu0
  %v11000 = vadd.f32 %v10956, %v10999
  %11001 = vmatmul.bf16.gmra.mxu0 %v9715
  %v11002 = vpop.f32.mrf.mxu0
  %v11003 = vadd.f32 %v10959, %v11002
  %v11004 = vpop.f32.mrf.mxu0
  %v11005 = vadd.f32 %v10961, %v11004
  %11006 = vmatmul.bf16.gmra.mxu0 %v9717
  %v11007 = vpop.f32.mrf.mxu0
  %v11008 = vadd.f32 %v10964, %v11007
  %v11009 = vpop.f32.mrf.mxu0
  %v11010 = vadd.f32 %v10966, %v11009
  %11011 = vmatmul.bf16.gmra.mxu0 %v9719
  %v11012 = vpop.f32.mrf.mxu0
  %v11013 = vadd.f32 %v10969, %v11012
  %v11014 = vpop.f32.mrf.mxu0
  %v11015 = vadd.f32 %v10971, %v11014
  %11016 = vdwg.mxu0
  %11017 = vmatpush.bf16.msra.mxu0 %v10830
  %11018 = vmatpush.bf16.msra.mxu0 %v10826
  %11019 = vmatpush.bf16.msra.mxu0 %v10822
  %11020 = vmatpush.bf16.msra.mxu0 %v10818
  %11021 = vmatpush.bf16.msra.mxu0 %v10814
  %11022 = vmatpush.bf16.msra.mxu0 %v10810
  %11023 = vmatpush.bf16.msra.mxu0 %v10806
  %11024 = vmatpush.bf16.msra.mxu0 %v10802
  %11025 = vmatmul.bf16.gmra.mxu0 %v9706
  %v11026 = vpop.f32.mrf.mxu0
  %v11027 = vadd.f32 %v10385, %v11026
  %v11028 = vpop.f32.mrf.mxu0
  %v11029 = vadd.f32 %v10387, %v11028
  %11030 = vmatmul.bf16.gmra.mxu0 %v9708
  %v11031 = vpop.f32.mrf.mxu0
  %v11032 = vadd.f32 %v10390, %v11031
  %v11033 = vpop.f32.mrf.mxu0
  %v11034 = vadd.f32 %v10392, %v11033
  %11035 = vmatmul.bf16.gmra.mxu0 %v9710
  %v11036 = vpop.f32.mrf.mxu0
  %v11037 = vadd.f32 %v10395, %v11036
  %v11038 = vpop.f32.mrf.mxu0
  %v11039 = vadd.f32 %v10397, %v11038
  %11040 = vmatmul.bf16.gmra.mxu0 %v9712
  %v11041 = vpop.f32.mrf.mxu0
  %v11042 = vadd.f32 %v10400, %v11041
  %v11043 = vpop.f32.mrf.mxu0
  %v11044 = vadd.f32 %v10402, %v11043
  %11045 = vmatmul.bf16.gmra.mxu0 %v9714
  %v11046 = vpop.f32.mrf.mxu0
  %v11047 = vadd.f32 %v10405, %v11046
  %v11048 = vpop.f32.mrf.mxu0
  %v11049 = vadd.f32 %v10407, %v11048
  %11050 = vmatmul.bf16.gmra.mxu0 %v9716
  %v11051 = vpop.f32.mrf.mxu0
  %v11052 = vadd.f32 %v10410, %v11051
  %v11053 = vpop.f32.mrf.mxu0
  %v11054 = vadd.f32 %v10412, %v11053
  %11055 = vmatmul.bf16.gmra.mxu0 %v9718
  %v11056 = vpop.f32.mrf.mxu0
  %v11057 = vadd.f32 %v10415, %v11056
  %v11058 = vpop.f32.mrf.mxu0
  %v11059 = vadd.f32 %v10417, %v11058
  %11060 = vdwg.mxu0
  %11061 = vmatpush.bf16.msra.mxu0 %v10862
  %11062 = vmatpush.bf16.msra.mxu0 %v10858
  %11063 = vmatpush.bf16.msra.mxu0 %v10854
  %11064 = vmatpush.bf16.msra.mxu0 %v10850
  %11065 = vmatpush.bf16.msra.mxu0 %v10846
  %11066 = vmatpush.bf16.msra.mxu0 %v10842
  %11067 = vmatpush.bf16.msra.mxu0 %v10838
  %11068 = vmatpush.bf16.msra.mxu0 %v10834
  %11069 = vmatmul.bf16.gmra.mxu0 %v9707
  %v11070 = vpop.f32.mrf.mxu0
  %v11071 = vadd.f32 %v11027, %v11070
  %v11072 = vpop.f32.mrf.mxu0
  %v11073 = vadd.f32 %v11029, %v11072
  %11074 = vmatmul.bf16.gmra.mxu0 %v9709
  %v11075 = vpop.f32.mrf.mxu0
  %v11076 = vadd.f32 %v11032, %v11075
  %v11077 = vpop.f32.mrf.mxu0
  %v11078 = vadd.f32 %v11034, %v11077
  %11079 = vmatmul.bf16.gmra.mxu0 %v9711
  %v11080 = vpop.f32.mrf.mxu0
  %v11081 = vadd.f32 %v11037, %v11080
  %v11082 = vpop.f32.mrf.mxu0
  %v11083 = vadd.f32 %v11039, %v11082
  %11084 = vmatmul.bf16.gmra.mxu0 %v9713
  %v11085 = vpop.f32.mrf.mxu0
  %v11086 = vadd.f32 %v11042, %v11085
  %v11087 = vpop.f32.mrf.mxu0
  %v11088 = vadd.f32 %v11044, %v11087
  %11089 = vmatmul.bf16.gmra.mxu0 %v9715
  %v11090 = vpop.f32.mrf.mxu0
  %v11091 = vadd.f32 %v11047, %v11090
  %v11092 = vpop.f32.mrf.mxu0
  %v11093 = vadd.f32 %v11049, %v11092
  %11094 = vmatmul.bf16.gmra.mxu0 %v9717
  %v11095 = vpop.f32.mrf.mxu0
  %v11096 = vadd.f32 %v11052, %v11095
  %v11097 = vpop.f32.mrf.mxu0
  %v11098 = vadd.f32 %v11054, %v11097
  %11099 = vmatmul.bf16.gmra.mxu0 %v9719
  %v11100 = vpop.f32.mrf.mxu0
  %v11101 = vadd.f32 %v11057, %v11100
  %v11102 = vpop.f32.mrf.mxu0
  %v11103 = vadd.f32 %v11059, %v11102
  %11104 = vdwg.mxu0
  %11105 = vmatpush.bf16.msra.mxu0 %v10831
  %11106 = vmatpush.bf16.msra.mxu0 %v10827
  %11107 = vmatpush.bf16.msra.mxu0 %v10823
  %11108 = vmatpush.bf16.msra.mxu0 %v10819
  %11109 = vmatpush.bf16.msra.mxu0 %v10815
  %11110 = vmatpush.bf16.msra.mxu0 %v10811
  %11111 = vmatpush.bf16.msra.mxu0 %v10807
  %11112 = vmatpush.bf16.msra.mxu0 %v10803
  %11113 = vmatmul.bf16.gmra.mxu0 %v9706
  %v11114 = vpop.f32.mrf.mxu0
  %v11115 = vadd.f32 %v10473, %v11114
  %v11116 = vpop.f32.mrf.mxu0
  %v11117 = vadd.f32 %v10475, %v11116
  %11118 = vmatmul.bf16.gmra.mxu0 %v9708
  %v11119 = vpop.f32.mrf.mxu0
  %v11120 = vadd.f32 %v10478, %v11119
  %v11121 = vpop.f32.mrf.mxu0
  %v11122 = vadd.f32 %v10480, %v11121
  %11123 = vmatmul.bf16.gmra.mxu0 %v9710
  %v11124 = vpop.f32.mrf.mxu0
  %v11125 = vadd.f32 %v10483, %v11124
  %v11126 = vpop.f32.mrf.mxu0
  %v11127 = vadd.f32 %v10485, %v11126
  %11128 = vmatmul.bf16.gmra.mxu0 %v9712
  %v11129 = vpop.f32.mrf.mxu0
  %v11130 = vadd.f32 %v10488, %v11129
  %v11131 = vpop.f32.mrf.mxu0
  %v11132 = vadd.f32 %v10490, %v11131
  %11133 = vmatmul.bf16.gmra.mxu0 %v9714
  %v11134 = vpop.f32.mrf.mxu0
  %v11135 = vadd.f32 %v10493, %v11134
  %v11136 = vpop.f32.mrf.mxu0
  %v11137 = vadd.f32 %v10495, %v11136
  %11138 = vmatmul.bf16.gmra.mxu0 %v9716
  %v11139 = vpop.f32.mrf.mxu0
  %v11140 = vadd.f32 %v10498, %v11139
  %v11141 = vpop.f32.mrf.mxu0
  %v11142 = vadd.f32 %v10500, %v11141
  %11143 = vmatmul.bf16.gmra.mxu0 %v9718
  %v11144 = vpop.f32.mrf.mxu0
  %v11145 = vadd.f32 %v10503, %v11144
  %v11146 = vpop.f32.mrf.mxu0
  %v11147 = vadd.f32 %v10505, %v11146
  %11148 = vdwg.mxu0
  %11149 = vmatpush.bf16.msra.mxu0 %v10863
  %11150 = vmatpush.bf16.msra.mxu0 %v10859
  %11151 = vmatpush.bf16.msra.mxu0 %v10855
  %11152 = vmatpush.bf16.msra.mxu0 %v10851
  %11153 = vmatpush.bf16.msra.mxu0 %v10847
  %11154 = vmatpush.bf16.msra.mxu0 %v10843
  %11155 = vmatpush.bf16.msra.mxu0 %v10839
  %11156 = vmatpush.bf16.msra.mxu0 %v10835
  %11157 = vmatmul.bf16.gmra.mxu0 %v9707
  %v11158 = vpop.f32.mrf.mxu0
  %v11159 = vadd.f32 %v11115, %v11158
  %v11160 = vpop.f32.mrf.mxu0
  %v11161 = vadd.f32 %v11117, %v11160
  %11162 = vmatmul.bf16.gmra.mxu0 %v9709
  %v11163 = vpop.f32.mrf.mxu0
  %v11164 = vadd.f32 %v11120, %v11163
  %v11165 = vpop.f32.mrf.mxu0
  %v11166 = vadd.f32 %v11122, %v11165
  %11167 = vmatmul.bf16.gmra.mxu0 %v9711
  %v11168 = vpop.f32.mrf.mxu0
  %v11169 = vadd.f32 %v11125, %v11168
  %v11170 = vpop.f32.mrf.mxu0
  %v11171 = vadd.f32 %v11127, %v11170
  %11172 = vmatmul.bf16.gmra.mxu0 %v9713
  %v11173 = vpop.f32.mrf.mxu0
  %v11174 = vadd.f32 %v11130, %v11173
  %v11175 = vpop.f32.mrf.mxu0
  %v11176 = vadd.f32 %v11132, %v11175
  %11177 = vmatmul.bf16.gmra.mxu0 %v9715
  %v11178 = vpop.f32.mrf.mxu0
  %v11179 = vadd.f32 %v11135, %v11178
  %v11180 = vpop.f32.mrf.mxu0
  %v11181 = vadd.f32 %v11137, %v11180
  %11182 = vmatmul.bf16.gmra.mxu0 %v9717
  %v11183 = vpop.f32.mrf.mxu0
  %v11184 = vadd.f32 %v11140, %v11183
  %v11185 = vpop.f32.mrf.mxu0
  %v11186 = vadd.f32 %v11142, %v11185
  %11187 = vmatmul.bf16.gmra.mxu0 %v9719
  %v11188 = vpop.f32.mrf.mxu0
  %v11189 = vadd.f32 %v11145, %v11188
  %v11190 = vpop.f32.mrf.mxu0
  %v11191 = vadd.f32 %v11147, %v11190
  %11192 = vdwg.mxu0
  %11193 = vmatpush.bf16.msra.mxu0 %v10832
  %11194 = vmatpush.bf16.msra.mxu0 %v10828
  %11195 = vmatpush.bf16.msra.mxu0 %v10824
  %11196 = vmatpush.bf16.msra.mxu0 %v10820
  %11197 = vmatpush.bf16.msra.mxu0 %v10816
  %11198 = vmatpush.bf16.msra.mxu0 %v10812
  %11199 = vmatpush.bf16.msra.mxu0 %v10808
  %11200 = vmatpush.bf16.msra.mxu0 %v10804
  %11201 = vmatmul.bf16.gmra.mxu0 %v9706
  %v11202 = vpop.f32.mrf.mxu0
  %v11203 = vadd.f32 %v10561, %v11202
  %v11204 = vpop.f32.mrf.mxu0
  %v11205 = vadd.f32 %v10563, %v11204
  %11206 = vmatmul.bf16.gmra.mxu0 %v9708
  %v11207 = vpop.f32.mrf.mxu0
  %v11208 = vadd.f32 %v10566, %v11207
  %v11209 = vpop.f32.mrf.mxu0
  %v11210 = vadd.f32 %v10568, %v11209
  %11211 = vmatmul.bf16.gmra.mxu0 %v9710
  %v11212 = vpop.f32.mrf.mxu0
  %v11213 = vadd.f32 %v10571, %v11212
  %v11214 = vpop.f32.mrf.mxu0
  %v11215 = vadd.f32 %v10573, %v11214
  %11216 = vmatmul.bf16.gmra.mxu0 %v9712
  %v11217 = vpop.f32.mrf.mxu0
  %v11218 = vadd.f32 %v10576, %v11217
  %v11219 = vpop.f32.mrf.mxu0
  %v11220 = vadd.f32 %v10578, %v11219
  %11221 = vmatmul.bf16.gmra.mxu0 %v9714
  %v11222 = vpop.f32.mrf.mxu0
  %v11223 = vadd.f32 %v10581, %v11222
  %v11224 = vpop.f32.mrf.mxu0
  %v11225 = vadd.f32 %v10583, %v11224
  %11226 = vmatmul.bf16.gmra.mxu0 %v9716
  %v11227 = vpop.f32.mrf.mxu0
  %v11228 = vadd.f32 %v10586, %v11227
  %v11229 = vpop.f32.mrf.mxu0
  %v11230 = vadd.f32 %v10588, %v11229
  %11231 = vmatmul.bf16.gmra.mxu0 %v9718
  %v11232 = vpop.f32.mrf.mxu0
  %v11233 = vadd.f32 %v10591, %v11232
  %v11234 = vpop.f32.mrf.mxu0
  %v11235 = vadd.f32 %v10593, %v11234
  %11236 = vdwg.mxu0
  %11237 = vmatpush.bf16.msra.mxu0 %v10864
  %11238 = vmatpush.bf16.msra.mxu0 %v10860
  %11239 = vmatpush.bf16.msra.mxu0 %v10856
  %11240 = vmatpush.bf16.msra.mxu0 %v10852
  %11241 = vmatpush.bf16.msra.mxu0 %v10848
  %11242 = vmatpush.bf16.msra.mxu0 %v10844
  %11243 = vmatpush.bf16.msra.mxu0 %v10840
  %11244 = vmatpush.bf16.msra.mxu0 %v10836
  %11245 = vmatmul.bf16.gmra.mxu0 %v9707
  %v11246 = vpop.f32.mrf.mxu0
  %v11247 = vadd.f32 %v11203, %v11246
  %v11248 = vpop.f32.mrf.mxu0
  %v11249 = vadd.f32 %v11205, %v11248
  %11250 = vmatmul.bf16.gmra.mxu0 %v9709
  %v11251 = vpop.f32.mrf.mxu0
  %v11252 = vadd.f32 %v11208, %v11251
  %v11253 = vpop.f32.mrf.mxu0
  %v11254 = vadd.f32 %v11210, %v11253
  %11255 = vmatmul.bf16.gmra.mxu0 %v9711
  %v11256 = vpop.f32.mrf.mxu0
  %v11257 = vadd.f32 %v11213, %v11256
  %v11258 = vpop.f32.mrf.mxu0
  %v11259 = vadd.f32 %v11215, %v11258
  %11260 = vmatmul.bf16.gmra.mxu0 %v9713
  %v11261 = vpop.f32.mrf.mxu0
  %v11262 = vadd.f32 %v11218, %v11261
  %v11263 = vpop.f32.mrf.mxu0
  %v11264 = vadd.f32 %v11220, %v11263
  %11265 = vmatmul.bf16.gmra.mxu0 %v9715
  %v11266 = vpop.f32.mrf.mxu0
  %v11267 = vadd.f32 %v11223, %v11266
  %v11268 = vpop.f32.mrf.mxu0
  %v11269 = vadd.f32 %v11225, %v11268
  %11270 = vmatmul.bf16.gmra.mxu0 %v9717
  %v11271 = vpop.f32.mrf.mxu0
  %v11272 = vadd.f32 %v11228, %v11271
  %v11273 = vpop.f32.mrf.mxu0
  %v11274 = vadd.f32 %v11230, %v11273
  %11275 = vmatmul.bf16.gmra.mxu0 %v9719
  %v11276 = vpop.f32.mrf.mxu0
  %v11277 = vadd.f32 %v11233, %v11276
  %v11278 = vpop.f32.mrf.mxu0
  %v11279 = vadd.f32 %v11235, %v11278
  %11280 = vdwg.mxu0
  %v11281 = vrot.slane %v9706, 1
  %v11282 = vrot.slane %v9708, 1
  %v11283 = vsel %vm3568, %v11281, %v11282
  %v11284 = vrot.slane %v9707, 1
  %v11285 = vrot.slane %v9709, 1
  %v11286 = vsel %vm3568, %v11284, %v11285
  %v11287 = vrot.slane %v9710, 1
  %v11288 = vsel %vm3568, %v11282, %v11287
  %v11289 = vrot.slane %v9711, 1
  %v11290 = vsel %vm3568, %v11285, %v11289
  %v11291 = vrot.slane %v9712, 1
  %v11292 = vsel %vm3568, %v11287, %v11291
  %v11293 = vrot.slane %v9713, 1
  %v11294 = vsel %vm3568, %v11289, %v11293
  %v11295 = vrot.slane %v9714, 1
  %v11296 = vsel %vm3568, %v11291, %v11295
  %v11297 = vrot.slane %v9715, 1
  %v11298 = vsel %vm3568, %v11293, %v11297
  %v11299 = vrot.slane %v9716, 1
  %v11300 = vsel %vm3568, %v11295, %v11299
  %v11301 = vrot.slane %v9717, 1
  %v11302 = vsel %vm3568, %v11297, %v11301
  %v11303 = vrot.slane %v9718, 1
  %v11304 = vsel %vm3568, %v11299, %v11303
  %v11305 = vrot.slane %v9719, 1
  %v11306 = vsel %vm3568, %v11301, %v11305
  %v11319 = vrot.slane %v9844, 1
  %v11320 = vrot.slane %v9845, 1
  %v11323 = vsel %vm3609, %v11303, %v11319
  %v11327 = vsel %vm3609, %v11305, %v11320
  %s11329 = scalar_lea.vmem %s3, 1024
  %v11330 = vld [vmem:[%s11329] sm:$0xff]
  %v11331 = vld [vmem:[%s11329 + $0x8] sm:$0xff]
  %v11332 = vld [vmem:[%s11329 + $0x10] sm:$0xff]
  %v11333 = vld [vmem:[%s11329 + $0x18] sm:$0xff]
  %v11334 = vld [vmem:[%s11329 + $0x20] sm:$0xff]
  %v11335 = vld [vmem:[%s11329 + $0x28] sm:$0xff]
  %v11336 = vld [vmem:[%s11329 + $0x30] sm:$0xff]
  %v11337 = vld [vmem:[%s11329 + $0x38] sm:$0xff]
  %v11338 = vld [vmem:[%s11329 + $0x40] sm:$0xff]
  %v11339 = vld [vmem:[%s11329 + $0x48] sm:$0xff]
  %v11340 = vld [vmem:[%s11329 + $0x50] sm:$0xff]
  %v11341 = vld [vmem:[%s11329 + $0x58] sm:$0xff]
  %v11342 = vld [vmem:[%s11329 + $0x60] sm:$0xff]
  %v11343 = vld [vmem:[%s11329 + $0x68] sm:$0xff]
  %v11344 = vld [vmem:[%s11329 + $0x70] sm:$0xff]
  %v11345 = vld [vmem:[%s11329 + $0x78] sm:$0xff]
  %v11346 = vld [vmem:[%s11329 + $0x80] sm:$0xff]
  %v11347 = vld [vmem:[%s11329 + $0x88] sm:$0xff]
  %v11348 = vld [vmem:[%s11329 + $0x90] sm:$0xff]
  %v11349 = vld [vmem:[%s11329 + $0x98] sm:$0xff]
  %v11350 = vld [vmem:[%s11329 + $0xa0] sm:$0xff]
  %v11351 = vld [vmem:[%s11329 + $0xa8] sm:$0xff]
  %v11352 = vld [vmem:[%s11329 + $0xb0] sm:$0xff]
  %v11353 = vld [vmem:[%s11329 + $0xb8] sm:$0xff]
  %v11354 = vld [vmem:[%s11329 + $0xc0] sm:$0xff]
  %v11355 = vld [vmem:[%s11329 + $0xc8] sm:$0xff]
  %v11356 = vld [vmem:[%s11329 + $0xd0] sm:$0xff]
  %v11357 = vld [vmem:[%s11329 + $0xd8] sm:$0xff]
  %v11358 = vld [vmem:[%s11329 + $0xe0] sm:$0xff]
  %v11359 = vld [vmem:[%s11329 + $0xe8] sm:$0xff]
  %v11360 = vld [vmem:[%s11329 + $0xf0] sm:$0xff]
  %v11361 = vld [vmem:[%s11329 + $0xf8] sm:$0xff]
  %v11362 = vld [vmem:[%s11329 + $0x100] sm:$0xff]
  %v11363 = vld [vmem:[%s11329 + $0x108] sm:$0xff]
  %v11364 = vld [vmem:[%s11329 + $0x110] sm:$0xff]
  %v11365 = vld [vmem:[%s11329 + $0x118] sm:$0xff]
  %v11366 = vld [vmem:[%s11329 + $0x120] sm:$0xff]
  %v11367 = vld [vmem:[%s11329 + $0x128] sm:$0xff]
  %v11368 = vld [vmem:[%s11329 + $0x130] sm:$0xff]
  %v11369 = vld [vmem:[%s11329 + $0x138] sm:$0xff]
  %v11370 = vld [vmem:[%s11329 + $0x140] sm:$0xff]
  %v11371 = vld [vmem:[%s11329 + $0x148] sm:$0xff]
  %v11372 = vld [vmem:[%s11329 + $0x150] sm:$0xff]
  %v11373 = vld [vmem:[%s11329 + $0x158] sm:$0xff]
  %v11374 = vld [vmem:[%s11329 + $0x160] sm:$0xff]
  %v11375 = vld [vmem:[%s11329 + $0x168] sm:$0xff]
  %v11376 = vld [vmem:[%s11329 + $0x170] sm:$0xff]
  %v11377 = vld [vmem:[%s11329 + $0x178] sm:$0xff]
  %v11378 = vld [vmem:[%s11329 + $0x180] sm:$0xff]
  %v11379 = vld [vmem:[%s11329 + $0x188] sm:$0xff]
  %v11380 = vld [vmem:[%s11329 + $0x190] sm:$0xff]
  %v11381 = vld [vmem:[%s11329 + $0x198] sm:$0xff]
  %v11382 = vld [vmem:[%s11329 + $0x1a0] sm:$0xff]
  %v11383 = vld [vmem:[%s11329 + $0x1a8] sm:$0xff]
  %v11384 = vld [vmem:[%s11329 + $0x1b0] sm:$0xff]
  %v11385 = vld [vmem:[%s11329 + $0x1b8] sm:$0xff]
  %v11386 = vld [vmem:[%s11329 + $0x1c0] sm:$0xff]
  %v11387 = vld [vmem:[%s11329 + $0x1c8] sm:$0xff]
  %v11388 = vld [vmem:[%s11329 + $0x1d0] sm:$0xff]
  %v11389 = vld [vmem:[%s11329 + $0x1d8] sm:$0xff]
  %v11390 = vld [vmem:[%s11329 + $0x1e0] sm:$0xff]
  %v11391 = vld [vmem:[%s11329 + $0x1e8] sm:$0xff]
  %v11392 = vld [vmem:[%s11329 + $0x1f0] sm:$0xff]
  %v11393 = vld [vmem:[%s11329 + $0x1f8] sm:$0xff]
  %v11458 = vunpack.c.l.b16 %v11330
  %v11459 = vunpack.c.h.b16 %v11330
  %v11460 = vunpack.c.l.b16 %v11331
  %v11461 = vunpack.c.h.b16 %v11331
  %v11462 = vunpack.c.l.b16 %v11332
  %v11463 = vunpack.c.h.b16 %v11332
  %v11464 = vunpack.c.l.b16 %v11333
  %v11465 = vunpack.c.h.b16 %v11333
  %v11466 = vunpack.c.l.b16 %v11334
  %v11467 = vunpack.c.h.b16 %v11334
  %v11468 = vunpack.c.l.b16 %v11335
  %v11469 = vunpack.c.h.b16 %v11335
  %v11470 = vunpack.c.l.b16 %v11336
  %v11471 = vunpack.c.h.b16 %v11336
  %v11472 = vunpack.c.l.b16 %v11337
  %v11473 = vunpack.c.h.b16 %v11337
  %v11474 = vunpack.c.l.b16 %v11338
  %v11475 = vunpack.c.h.b16 %v11338
  %v11476 = vunpack.c.l.b16 %v11339
  %v11477 = vunpack.c.h.b16 %v11339
  %v11478 = vunpack.c.l.b16 %v11340
  %v11479 = vunpack.c.h.b16 %v11340
  %v11480 = vunpack.c.l.b16 %v11341
  %v11481 = vunpack.c.h.b16 %v11341
  %v11482 = vunpack.c.l.b16 %v11342
  %v11483 = vunpack.c.h.b16 %v11342
  %v11484 = vunpack.c.l.b16 %v11343
  %v11485 = vunpack.c.h.b16 %v11343
  %v11486 = vunpack.c.l.b16 %v11344
  %v11487 = vunpack.c.h.b16 %v11344
  %v11488 = vunpack.c.l.b16 %v11345
  %v11489 = vunpack.c.h.b16 %v11345
  %v11490 = vunpack.c.l.b16 %v11346
  %v11491 = vunpack.c.h.b16 %v11346
  %v11492 = vunpack.c.l.b16 %v11347
  %v11493 = vunpack.c.h.b16 %v11347
  %v11494 = vunpack.c.l.b16 %v11348
  %v11495 = vunpack.c.h.b16 %v11348
  %v11496 = vunpack.c.l.b16 %v11349
  %v11497 = vunpack.c.h.b16 %v11349
  %v11498 = vunpack.c.l.b16 %v11350
  %v11499 = vunpack.c.h.b16 %v11350
  %v11500 = vunpack.c.l.b16 %v11351
  %v11501 = vunpack.c.h.b16 %v11351
  %v11502 = vunpack.c.l.b16 %v11352
  %v11503 = vunpack.c.h.b16 %v11352
  %v11504 = vunpack.c.l.b16 %v11353
  %v11505 = vunpack.c.h.b16 %v11353
  %v11506 = vunpack.c.l.b16 %v11354
  %v11507 = vunpack.c.h.b16 %v11354
  %v11508 = vunpack.c.l.b16 %v11355
  %v11509 = vunpack.c.h.b16 %v11355
  %v11510 = vunpack.c.l.b16 %v11356
  %v11511 = vunpack.c.h.b16 %v11356
  %v11512 = vunpack.c.l.b16 %v11357
  %v11513 = vunpack.c.h.b16 %v11357
  %v11514 = vunpack.c.l.b16 %v11358
  %v11515 = vunpack.c.h.b16 %v11358
  %v11516 = vunpack.c.l.b16 %v11359
  %v11517 = vunpack.c.h.b16 %v11359
  %v11518 = vunpack.c.l.b16 %v11360
  %v11519 = vunpack.c.h.b16 %v11360
  %v11520 = vunpack.c.l.b16 %v11361
  %v11521 = vunpack.c.h.b16 %v11361
  %v11522 = vunpack.c.l.b16 %v11362
  %v11523 = vunpack.c.h.b16 %v11362
  %v11524 = vunpack.c.l.b16 %v11363
  %v11525 = vunpack.c.h.b16 %v11363
  %v11526 = vunpack.c.l.b16 %v11364
  %v11527 = vunpack.c.h.b16 %v11364
  %v11528 = vunpack.c.l.b16 %v11365
  %v11529 = vunpack.c.h.b16 %v11365
  %v11530 = vunpack.c.l.b16 %v11366
  %v11531 = vunpack.c.h.b16 %v11366
  %v11532 = vunpack.c.l.b16 %v11367
  %v11533 = vunpack.c.h.b16 %v11367
  %v11534 = vunpack.c.l.b16 %v11368
  %v11535 = vunpack.c.h.b16 %v11368
  %v11536 = vunpack.c.l.b16 %v11369
  %v11537 = vunpack.c.h.b16 %v11369
  %v11538 = vunpack.c.l.b16 %v11370
  %v11539 = vunpack.c.h.b16 %v11370
  %v11540 = vunpack.c.l.b16 %v11371
  %v11541 = vunpack.c.h.b16 %v11371
  %v11542 = vunpack.c.l.b16 %v11372
  %v11543 = vunpack.c.h.b16 %v11372
  %v11544 = vunpack.c.l.b16 %v11373
  %v11545 = vunpack.c.h.b16 %v11373
  %v11546 = vunpack.c.l.b16 %v11374
  %v11547 = vunpack.c.h.b16 %v11374
  %v11548 = vunpack.c.l.b16 %v11375
  %v11549 = vunpack.c.h.b16 %v11375
  %v11550 = vunpack.c.l.b16 %v11376
  %v11551 = vunpack.c.h.b16 %v11376
  %v11552 = vunpack.c.l.b16 %v11377
  %v11553 = vunpack.c.h.b16 %v11377
  %v11554 = vunpack.c.l.b16 %v11378
  %v11555 = vunpack.c.h.b16 %v11378
  %v11556 = vunpack.c.l.b16 %v11379
  %v11557 = vunpack.c.h.b16 %v11379
  %v11558 = vunpack.c.l.b16 %v11380
  %v11559 = vunpack.c.h.b16 %v11380
  %v11560 = vunpack.c.l.b16 %v11381
  %v11561 = vunpack.c.h.b16 %v11381
  %v11562 = vunpack.c.l.b16 %v11382
  %v11563 = vunpack.c.h.b16 %v11382
  %v11564 = vunpack.c.l.b16 %v11383
  %v11565 = vunpack.c.h.b16 %v11383
  %v11566 = vunpack.c.l.b16 %v11384
  %v11567 = vunpack.c.h.b16 %v11384
  %v11568 = vunpack.c.l.b16 %v11385
  %v11569 = vunpack.c.h.b16 %v11385
  %v11570 = vunpack.c.l.b16 %v11386
  %v11571 = vunpack.c.h.b16 %v11386
  %v11572 = vunpack.c.l.b16 %v11387
  %v11573 = vunpack.c.h.b16 %v11387
  %v11574 = vunpack.c.l.b16 %v11388
  %v11575 = vunpack.c.h.b16 %v11388
  %v11576 = vunpack.c.l.b16 %v11389
  %v11577 = vunpack.c.h.b16 %v11389
  %v11578 = vunpack.c.l.b16 %v11390
  %v11579 = vunpack.c.h.b16 %v11390
  %v11580 = vunpack.c.l.b16 %v11391
  %v11581 = vunpack.c.h.b16 %v11391
  %v11582 = vunpack.c.l.b16 %v11392
  %v11583 = vunpack.c.h.b16 %v11392
  %v11584 = vunpack.c.l.b16 %v11393
  %v11585 = vunpack.c.h.b16 %v11393
  %v11586 = vpack.c.b16 %v11462, %v11458
  %v11587 = vpack.c.b16 %v11463, %v11459
  %v11588 = vpack.c.b16 %v11464, %v11460
  %v11589 = vpack.c.b16 %v11465, %v11461
  %v11590 = vpack.c.b16 %v11470, %v11466
  %v11591 = vpack.c.b16 %v11471, %v11467
  %v11592 = vpack.c.b16 %v11472, %v11468
  %v11593 = vpack.c.b16 %v11473, %v11469
  %v11594 = vpack.c.b16 %v11478, %v11474
  %v11595 = vpack.c.b16 %v11479, %v11475
  %v11596 = vpack.c.b16 %v11480, %v11476
  %v11597 = vpack.c.b16 %v11481, %v11477
  %v11598 = vpack.c.b16 %v11486, %v11482
  %v11599 = vpack.c.b16 %v11487, %v11483
  %v11600 = vpack.c.b16 %v11488, %v11484
  %v11601 = vpack.c.b16 %v11489, %v11485
  %v11602 = vpack.c.b16 %v11494, %v11490
  %v11603 = vpack.c.b16 %v11495, %v11491
  %v11604 = vpack.c.b16 %v11496, %v11492
  %v11605 = vpack.c.b16 %v11497, %v11493
  %v11606 = vpack.c.b16 %v11502, %v11498
  %v11607 = vpack.c.b16 %v11503, %v11499
  %v11608 = vpack.c.b16 %v11504, %v11500
  %v11609 = vpack.c.b16 %v11505, %v11501
  %v11610 = vpack.c.b16 %v11510, %v11506
  %v11611 = vpack.c.b16 %v11511, %v11507
  %v11612 = vpack.c.b16 %v11512, %v11508
  %v11613 = vpack.c.b16 %v11513, %v11509
  %v11614 = vpack.c.b16 %v11518, %v11514
  %v11615 = vpack.c.b16 %v11519, %v11515
  %v11616 = vpack.c.b16 %v11520, %v11516
  %v11617 = vpack.c.b16 %v11521, %v11517
  %v11618 = vpack.c.b16 %v11526, %v11522
  %v11619 = vpack.c.b16 %v11527, %v11523
  %v11620 = vpack.c.b16 %v11528, %v11524
  %v11621 = vpack.c.b16 %v11529, %v11525
  %v11622 = vpack.c.b16 %v11534, %v11530
  %v11623 = vpack.c.b16 %v11535, %v11531
  %v11624 = vpack.c.b16 %v11536, %v11532
  %v11625 = vpack.c.b16 %v11537, %v11533
  %v11626 = vpack.c.b16 %v11542, %v11538
  %v11627 = vpack.c.b16 %v11543, %v11539
  %v11628 = vpack.c.b16 %v11544, %v11540
  %v11629 = vpack.c.b16 %v11545, %v11541
  %v11630 = vpack.c.b16 %v11550, %v11546
  %v11631 = vpack.c.b16 %v11551, %v11547
  %v11632 = vpack.c.b16 %v11552, %v11548
  %v11633 = vpack.c.b16 %v11553, %v11549
  %v11634 = vpack.c.b16 %v11558, %v11554
  %v11635 = vpack.c.b16 %v11559, %v11555
  %v11636 = vpack.c.b16 %v11560, %v11556
  %v11637 = vpack.c.b16 %v11561, %v11557
  %v11638 = vpack.c.b16 %v11566, %v11562
  %v11639 = vpack.c.b16 %v11567, %v11563
  %v11640 = vpack.c.b16 %v11568, %v11564
  %v11641 = vpack.c.b16 %v11569, %v11565
  %v11642 = vpack.c.b16 %v11574, %v11570
  %v11643 = vpack.c.b16 %v11575, %v11571
  %v11644 = vpack.c.b16 %v11576, %v11572
  %v11645 = vpack.c.b16 %v11577, %v11573
  %v11646 = vpack.c.b16 %v11582, %v11578
  %v11647 = vpack.c.b16 %v11583, %v11579
  %v11648 = vpack.c.b16 %v11584, %v11580
  %v11649 = vpack.c.b16 %v11585, %v11581
  %11714 = vmatpush.bf16.msra.mxu0 %v11614
  %11715 = vmatpush.bf16.msra.mxu0 %v11610
  %11716 = vmatpush.bf16.msra.mxu0 %v11606
  %11717 = vmatpush.bf16.msra.mxu0 %v11602
  %11718 = vmatpush.bf16.msra.mxu0 %v11598
  %11719 = vmatpush.bf16.msra.mxu0 %v11594
  %11720 = vmatpush.bf16.msra.mxu0 %v11590
  %11721 = vmatpush.bf16.msra.mxu0 %v11586
  %11722 = vmatmul.bf16.gmra.mxu0 %v11283
  %v11723 = vpop.f32.mrf.mxu0
  %v11724 = vadd.f32 0.0, %v11723
  %v11725 = vpop.f32.mrf.mxu0
  %v11726 = vadd.f32 0.0, %v11725
  %11727 = vmatmul.bf16.gmra.mxu0 %v11288
  %v11728 = vpop.f32.mrf.mxu0
  %v11729 = vadd.f32 0.0, %v11728
  %v11730 = vpop.f32.mrf.mxu0
  %v11731 = vadd.f32 0.0, %v11730
  %11732 = vmatmul.bf16.gmra.mxu0 %v11292
  %v11733 = vpop.f32.mrf.mxu0
  %v11734 = vadd.f32 0.0, %v11733
  %v11735 = vpop.f32.mrf.mxu0
  %v11736 = vadd.f32 0.0, %v11735
  %11737 = vmatmul.bf16.gmra.mxu0 %v11296
  %v11738 = vpop.f32.mrf.mxu0
  %v11739 = vadd.f32 0.0, %v11738
  %v11740 = vpop.f32.mrf.mxu0
  %v11741 = vadd.f32 0.0, %v11740
  %11742 = vmatmul.bf16.gmra.mxu0 %v11300
  %v11743 = vpop.f32.mrf.mxu0
  %v11744 = vadd.f32 0.0, %v11743
  %v11745 = vpop.f32.mrf.mxu0
  %v11746 = vadd.f32 0.0, %v11745
  %11747 = vmatmul.bf16.gmra.mxu0 %v11304
  %v11748 = vpop.f32.mrf.mxu0
  %v11749 = vadd.f32 0.0, %v11748
  %v11750 = vpop.f32.mrf.mxu0
  %v11751 = vadd.f32 0.0, %v11750
  %11752 = vmatmul.bf16.gmra.mxu0 %v11323
  %v11753 = vpop.f32.mrf.mxu0
  %v11754 = vadd.f32 0.0, %v11753
  %v11755 = vpop.f32.mrf.mxu0
  %v11756 = vadd.f32 0.0, %v11755
  %11757 = vdwg.mxu0
  %11758 = vmatpush.bf16.msra.mxu0 %v11646
  %11759 = vmatpush.bf16.msra.mxu0 %v11642
  %11760 = vmatpush.bf16.msra.mxu0 %v11638
  %11761 = vmatpush.bf16.msra.mxu0 %v11634
  %11762 = vmatpush.bf16.msra.mxu0 %v11630
  %11763 = vmatpush.bf16.msra.mxu0 %v11626
  %11764 = vmatpush.bf16.msra.mxu0 %v11622
  %11765 = vmatpush.bf16.msra.mxu0 %v11618
  %11766 = vmatmul.bf16.gmra.mxu0 %v11286
  %v11767 = vpop.f32.mrf.mxu0
  %v11768 = vadd.f32 %v11724, %v11767
  %v11769 = vpop.f32.mrf.mxu0
  %v11770 = vadd.f32 %v11726, %v11769
  %11771 = vmatmul.bf16.gmra.mxu0 %v11290
  %v11772 = vpop.f32.mrf.mxu0
  %v11773 = vadd.f32 %v11729, %v11772
  %v11774 = vpop.f32.mrf.mxu0
  %v11775 = vadd.f32 %v11731, %v11774
  %11776 = vmatmul.bf16.gmra.mxu0 %v11294
  %v11777 = vpop.f32.mrf.mxu0
  %v11778 = vadd.f32 %v11734, %v11777
  %v11779 = vpop.f32.mrf.mxu0
  %v11780 = vadd.f32 %v11736, %v11779
  %11781 = vmatmul.bf16.gmra.mxu0 %v11298
  %v11782 = vpop.f32.mrf.mxu0
  %v11783 = vadd.f32 %v11739, %v11782
  %v11784 = vpop.f32.mrf.mxu0
  %v11785 = vadd.f32 %v11741, %v11784
  %11786 = vmatmul.bf16.gmra.mxu0 %v11302
  %v11787 = vpop.f32.mrf.mxu0
  %v11788 = vadd.f32 %v11744, %v11787
  %v11789 = vpop.f32.mrf.mxu0
  %v11790 = vadd.f32 %v11746, %v11789
  %11791 = vmatmul.bf16.gmra.mxu0 %v11306
  %v11792 = vpop.f32.mrf.mxu0
  %v11793 = vadd.f32 %v11749, %v11792
  %v11794 = vpop.f32.mrf.mxu0
  %v11795 = vadd.f32 %v11751, %v11794
  %11796 = vmatmul.bf16.gmra.mxu0 %v11327
  %v11797 = vpop.f32.mrf.mxu0
  %v11798 = vadd.f32 %v11754, %v11797
  %v11799 = vpop.f32.mrf.mxu0
  %v11800 = vadd.f32 %v11756, %v11799
  %11801 = vdwg.mxu0
  %11802 = vmatpush.bf16.msra.mxu0 %v11615
  %11803 = vmatpush.bf16.msra.mxu0 %v11611
  %11804 = vmatpush.bf16.msra.mxu0 %v11607
  %11805 = vmatpush.bf16.msra.mxu0 %v11603
  %11806 = vmatpush.bf16.msra.mxu0 %v11599
  %11807 = vmatpush.bf16.msra.mxu0 %v11595
  %11808 = vmatpush.bf16.msra.mxu0 %v11591
  %11809 = vmatpush.bf16.msra.mxu0 %v11587
  %11810 = vmatmul.bf16.gmra.mxu0 %v11283
  %v11811 = vpop.f32.mrf.mxu0
  %v11812 = vadd.f32 0.0, %v11811
  %v11813 = vpop.f32.mrf.mxu0
  %v11814 = vadd.f32 0.0, %v11813
  %11815 = vmatmul.bf16.gmra.mxu0 %v11288
  %v11816 = vpop.f32.mrf.mxu0
  %v11817 = vadd.f32 0.0, %v11816
  %v11818 = vpop.f32.mrf.mxu0
  %v11819 = vadd.f32 0.0, %v11818
  %11820 = vmatmul.bf16.gmra.mxu0 %v11292
  %v11821 = vpop.f32.mrf.mxu0
  %v11822 = vadd.f32 0.0, %v11821
  %v11823 = vpop.f32.mrf.mxu0
  %v11824 = vadd.f32 0.0, %v11823
  %11825 = vmatmul.bf16.gmra.mxu0 %v11296
  %v11826 = vpop.f32.mrf.mxu0
  %v11827 = vadd.f32 0.0, %v11826
  %v11828 = vpop.f32.mrf.mxu0
  %v11829 = vadd.f32 0.0, %v11828
  %11830 = vmatmul.bf16.gmra.mxu0 %v11300
  %v11831 = vpop.f32.mrf.mxu0
  %v11832 = vadd.f32 0.0, %v11831
  %v11833 = vpop.f32.mrf.mxu0
  %v11834 = vadd.f32 0.0, %v11833
  %11835 = vmatmul.bf16.gmra.mxu0 %v11304
  %v11836 = vpop.f32.mrf.mxu0
  %v11837 = vadd.f32 0.0, %v11836
  %v11838 = vpop.f32.mrf.mxu0
  %v11839 = vadd.f32 0.0, %v11838
  %11840 = vmatmul.bf16.gmra.mxu0 %v11323
  %v11841 = vpop.f32.mrf.mxu0
  %v11842 = vadd.f32 0.0, %v11841
  %v11843 = vpop.f32.mrf.mxu0
  %v11844 = vadd.f32 0.0, %v11843
  %11845 = vdwg.mxu0
  %11846 = vmatpush.bf16.msra.mxu0 %v11647
  %11847 = vmatpush.bf16.msra.mxu0 %v11643
  %11848 = vmatpush.bf16.msra.mxu0 %v11639
  %11849 = vmatpush.bf16.msra.mxu0 %v11635
  %11850 = vmatpush.bf16.msra.mxu0 %v11631
  %11851 = vmatpush.bf16.msra.mxu0 %v11627
  %11852 = vmatpush.bf16.msra.mxu0 %v11623
  %11853 = vmatpush.bf16.msra.mxu0 %v11619
  %11854 = vmatmul.bf16.gmra.mxu0 %v11286
  %v11855 = vpop.f32.mrf.mxu0
  %v11856 = vadd.f32 %v11812, %v11855
  %v11857 = vpop.f32.mrf.mxu0
  %v11858 = vadd.f32 %v11814, %v11857
  %11859 = vmatmul.bf16.gmra.mxu0 %v11290
  %v11860 = vpop.f32.mrf.mxu0
  %v11861 = vadd.f32 %v11817, %v11860
  %v11862 = vpop.f32.mrf.mxu0
  %v11863 = vadd.f32 %v11819, %v11862
  %11864 = vmatmul.bf16.gmra.mxu0 %v11294
  %v11865 = vpop.f32.mrf.mxu0
  %v11866 = vadd.f32 %v11822, %v11865
  %v11867 = vpop.f32.mrf.mxu0
  %v11868 = vadd.f32 %v11824, %v11867
  %11869 = vmatmul.bf16.gmra.mxu0 %v11298
  %v11870 = vpop.f32.mrf.mxu0
  %v11871 = vadd.f32 %v11827, %v11870
  %v11872 = vpop.f32.mrf.mxu0
  %v11873 = vadd.f32 %v11829, %v11872
  %11874 = vmatmul.bf16.gmra.mxu0 %v11302
  %v11875 = vpop.f32.mrf.mxu0
  %v11876 = vadd.f32 %v11832, %v11875
  %v11877 = vpop.f32.mrf.mxu0
  %v11878 = vadd.f32 %v11834, %v11877
  %11879 = vmatmul.bf16.gmra.mxu0 %v11306
  %v11880 = vpop.f32.mrf.mxu0
  %v11881 = vadd.f32 %v11837, %v11880
  %v11882 = vpop.f32.mrf.mxu0
  %v11883 = vadd.f32 %v11839, %v11882
  %11884 = vmatmul.bf16.gmra.mxu0 %v11327
  %v11885 = vpop.f32.mrf.mxu0
  %v11886 = vadd.f32 %v11842, %v11885
  %v11887 = vpop.f32.mrf.mxu0
  %v11888 = vadd.f32 %v11844, %v11887
  %11889 = vdwg.mxu0
  %11890 = vmatpush.bf16.msra.mxu0 %v11616
  %11891 = vmatpush.bf16.msra.mxu0 %v11612
  %11892 = vmatpush.bf16.msra.mxu0 %v11608
  %11893 = vmatpush.bf16.msra.mxu0 %v11604
  %11894 = vmatpush.bf16.msra.mxu0 %v11600
  %11895 = vmatpush.bf16.msra.mxu0 %v11596
  %11896 = vmatpush.bf16.msra.mxu0 %v11592
  %11897 = vmatpush.bf16.msra.mxu0 %v11588
  %11898 = vmatmul.bf16.gmra.mxu0 %v11283
  %v11899 = vpop.f32.mrf.mxu0
  %v11900 = vadd.f32 0.0, %v11899
  %v11901 = vpop.f32.mrf.mxu0
  %v11902 = vadd.f32 0.0, %v11901
  %11903 = vmatmul.bf16.gmra.mxu0 %v11288
  %v11904 = vpop.f32.mrf.mxu0
  %v11905 = vadd.f32 0.0, %v11904
  %v11906 = vpop.f32.mrf.mxu0
  %v11907 = vadd.f32 0.0, %v11906
  %11908 = vmatmul.bf16.gmra.mxu0 %v11292
  %v11909 = vpop.f32.mrf.mxu0
  %v11910 = vadd.f32 0.0, %v11909
  %v11911 = vpop.f32.mrf.mxu0
  %v11912 = vadd.f32 0.0, %v11911
  %11913 = vmatmul.bf16.gmra.mxu0 %v11296
  %v11914 = vpop.f32.mrf.mxu0
  %v11915 = vadd.f32 0.0, %v11914
  %v11916 = vpop.f32.mrf.mxu0
  %v11917 = vadd.f32 0.0, %v11916
  %11918 = vmatmul.bf16.gmra.mxu0 %v11300
  %v11919 = vpop.f32.mrf.mxu0
  %v11920 = vadd.f32 0.0, %v11919
  %v11921 = vpop.f32.mrf.mxu0
  %v11922 = vadd.f32 0.0, %v11921
  %11923 = vmatmul.bf16.gmra.mxu0 %v11304
  %v11924 = vpop.f32.mrf.mxu0
  %v11925 = vadd.f32 0.0, %v11924
  %v11926 = vpop.f32.mrf.mxu0
  %v11927 = vadd.f32 0.0, %v11926
  %11928 = vmatmul.bf16.gmra.mxu0 %v11323
  %v11929 = vpop.f32.mrf.mxu0
  %v11930 = vadd.f32 0.0, %v11929
  %v11931 = vpop.f32.mrf.mxu0
  %v11932 = vadd.f32 0.0, %v11931
  %11933 = vdwg.mxu0
  %11934 = vmatpush.bf16.msra.mxu0 %v11648
  %11935 = vmatpush.bf16.msra.mxu0 %v11644
  %11936 = vmatpush.bf16.msra.mxu0 %v11640
  %11937 = vmatpush.bf16.msra.mxu0 %v11636
  %11938 = vmatpush.bf16.msra.mxu0 %v11632
  %11939 = vmatpush.bf16.msra.mxu0 %v11628
  %11940 = vmatpush.bf16.msra.mxu0 %v11624
  %11941 = vmatpush.bf16.msra.mxu0 %v11620
  %11942 = vmatmul.bf16.gmra.mxu0 %v11286
  %v11943 = vpop.f32.mrf.mxu0
  %v11944 = vadd.f32 %v11900, %v11943
  %v11945 = vpop.f32.mrf.mxu0
  %v11946 = vadd.f32 %v11902, %v11945
  %11947 = vmatmul.bf16.gmra.mxu0 %v11290
  %v11948 = vpop.f32.mrf.mxu0
  %v11949 = vadd.f32 %v11905, %v11948
  %v11950 = vpop.f32.mrf.mxu0
  %v11951 = vadd.f32 %v11907, %v11950
  %11952 = vmatmul.bf16.gmra.mxu0 %v11294
  %v11953 = vpop.f32.mrf.mxu0
  %v11954 = vadd.f32 %v11910, %v11953
  %v11955 = vpop.f32.mrf.mxu0
  %v11956 = vadd.f32 %v11912, %v11955
  %11957 = vmatmul.bf16.gmra.mxu0 %v11298
  %v11958 = vpop.f32.mrf.mxu0
  %v11959 = vadd.f32 %v11915, %v11958
  %v11960 = vpop.f32.mrf.mxu0
  %v11961 = vadd.f32 %v11917, %v11960
  %11962 = vmatmul.bf16.gmra.mxu0 %v11302
  %v11963 = vpop.f32.mrf.mxu0
  %v11964 = vadd.f32 %v11920, %v11963
  %v11965 = vpop.f32.mrf.mxu0
  %v11966 = vadd.f32 %v11922, %v11965
  %11967 = vmatmul.bf16.gmra.mxu0 %v11306
  %v11968 = vpop.f32.mrf.mxu0
  %v11969 = vadd.f32 %v11925, %v11968
  %v11970 = vpop.f32.mrf.mxu0
  %v11971 = vadd.f32 %v11927, %v11970
  %11972 = vmatmul.bf16.gmra.mxu0 %v11327
  %v11973 = vpop.f32.mrf.mxu0
  %v11974 = vadd.f32 %v11930, %v11973
  %v11975 = vpop.f32.mrf.mxu0
  %v11976 = vadd.f32 %v11932, %v11975
  %11977 = vdwg.mxu0
  %11978 = vmatpush.bf16.msra.mxu0 %v11617
  %11979 = vmatpush.bf16.msra.mxu0 %v11613
  %11980 = vmatpush.bf16.msra.mxu0 %v11609
  %11981 = vmatpush.bf16.msra.mxu0 %v11605
  %11982 = vmatpush.bf16.msra.mxu0 %v11601
  %11983 = vmatpush.bf16.msra.mxu0 %v11597
  %11984 = vmatpush.bf16.msra.mxu0 %v11593
  %11985 = vmatpush.bf16.msra.mxu0 %v11589
  %11986 = vmatmul.bf16.gmra.mxu0 %v11283
  %v11987 = vpop.f32.mrf.mxu0
  %v11988 = vadd.f32 0.0, %v11987
  %v11989 = vpop.f32.mrf.mxu0
  %v11990 = vadd.f32 0.0, %v11989
  %11991 = vmatmul.bf16.gmra.mxu0 %v11288
  %v11992 = vpop.f32.mrf.mxu0
  %v11993 = vadd.f32 0.0, %v11992
  %v11994 = vpop.f32.mrf.mxu0
  %v11995 = vadd.f32 0.0, %v11994
  %11996 = vmatmul.bf16.gmra.mxu0 %v11292
  %v11997 = vpop.f32.mrf.mxu0
  %v11998 = vadd.f32 0.0, %v11997
  %v11999 = vpop.f32.mrf.mxu0
  %v12000 = vadd.f32 0.0, %v11999
  %12001 = vmatmul.bf16.gmra.mxu0 %v11296
  %v12002 = vpop.f32.mrf.mxu0
  %v12003 = vadd.f32 0.0, %v12002
  %v12004 = vpop.f32.mrf.mxu0
  %v12005 = vadd.f32 0.0, %v12004
  %12006 = vmatmul.bf16.gmra.mxu0 %v11300
  %v12007 = vpop.f32.mrf.mxu0
  %v12008 = vadd.f32 0.0, %v12007
  %v12009 = vpop.f32.mrf.mxu0
  %v12010 = vadd.f32 0.0, %v12009
  %12011 = vmatmul.bf16.gmra.mxu0 %v11304
  %v12012 = vpop.f32.mrf.mxu0
  %v12013 = vadd.f32 0.0, %v12012
  %v12014 = vpop.f32.mrf.mxu0
  %v12015 = vadd.f32 0.0, %v12014
  %12016 = vmatmul.bf16.gmra.mxu0 %v11323
  %v12017 = vpop.f32.mrf.mxu0
  %v12018 = vadd.f32 0.0, %v12017
  %v12019 = vpop.f32.mrf.mxu0
  %v12020 = vadd.f32 0.0, %v12019
  %12021 = vdwg.mxu0
  %12022 = vmatpush.bf16.msra.mxu0 %v11649
  %12023 = vmatpush.bf16.msra.mxu0 %v11645
  %12024 = vmatpush.bf16.msra.mxu0 %v11641
  %12025 = vmatpush.bf16.msra.mxu0 %v11637
  %12026 = vmatpush.bf16.msra.mxu0 %v11633
  %12027 = vmatpush.bf16.msra.mxu0 %v11629
  %12028 = vmatpush.bf16.msra.mxu0 %v11625
  %12029 = vmatpush.bf16.msra.mxu0 %v11621
  %12030 = vmatmul.bf16.gmra.mxu0 %v11286
  %v12031 = vpop.f32.mrf.mxu0
  %v12032 = vadd.f32 %v11988, %v12031
  %v12033 = vpop.f32.mrf.mxu0
  %v12034 = vadd.f32 %v11990, %v12033
  %12035 = vmatmul.bf16.gmra.mxu0 %v11290
  %v12036 = vpop.f32.mrf.mxu0
  %v12037 = vadd.f32 %v11993, %v12036
  %v12038 = vpop.f32.mrf.mxu0
  %v12039 = vadd.f32 %v11995, %v12038
  %12040 = vmatmul.bf16.gmra.mxu0 %v11294
  %v12041 = vpop.f32.mrf.mxu0
  %v12042 = vadd.f32 %v11998, %v12041
  %v12043 = vpop.f32.mrf.mxu0
  %v12044 = vadd.f32 %v12000, %v12043
  %12045 = vmatmul.bf16.gmra.mxu0 %v11298
  %v12046 = vpop.f32.mrf.mxu0
  %v12047 = vadd.f32 %v12003, %v12046
  %v12048 = vpop.f32.mrf.mxu0
  %v12049 = vadd.f32 %v12005, %v12048
  %12050 = vmatmul.bf16.gmra.mxu0 %v11302
  %v12051 = vpop.f32.mrf.mxu0
  %v12052 = vadd.f32 %v12008, %v12051
  %v12053 = vpop.f32.mrf.mxu0
  %v12054 = vadd.f32 %v12010, %v12053
  %12055 = vmatmul.bf16.gmra.mxu0 %v11306
  %v12056 = vpop.f32.mrf.mxu0
  %v12057 = vadd.f32 %v12013, %v12056
  %v12058 = vpop.f32.mrf.mxu0
  %v12059 = vadd.f32 %v12015, %v12058
  %12060 = vmatmul.bf16.gmra.mxu0 %v11327
  %v12061 = vpop.f32.mrf.mxu0
  %v12062 = vadd.f32 %v12018, %v12061
  %v12063 = vpop.f32.mrf.mxu0
  %v12064 = vadd.f32 %v12020, %v12063
  %12065 = vdwg.mxu0
  %v12066 = vadd.f32 %v10983, %v11768
  %v12067 = vadd.f32 %v11071, %v11856
  %v12068 = vadd.f32 %v11159, %v11944
  %v12069 = vadd.f32 %v11247, %v12032
  %v12070 = vadd.f32 %v10985, %v11770
  %v12071 = vadd.f32 %v11073, %v11858
  %v12072 = vadd.f32 %v11161, %v11946
  %v12073 = vadd.f32 %v11249, %v12034
  %v12074 = vadd.f32 %v10988, %v11773
  %v12075 = vadd.f32 %v11076, %v11861
  %v12076 = vadd.f32 %v11164, %v11949
  %v12077 = vadd.f32 %v11252, %v12037
  %v12078 = vadd.f32 %v10990, %v11775
  %v12079 = vadd.f32 %v11078, %v11863
  %v12080 = vadd.f32 %v11166, %v11951
  %v12081 = vadd.f32 %v11254, %v12039
  %v12082 = vadd.f32 %v10993, %v11778
  %v12083 = vadd.f32 %v11081, %v11866
  %v12084 = vadd.f32 %v11169, %v11954
  %v12085 = vadd.f32 %v11257, %v12042
  %v12086 = vadd.f32 %v10995, %v11780
  %v12087 = vadd.f32 %v11083, %v11868
  %v12088 = vadd.f32 %v11171, %v11956
  %v12089 = vadd.f32 %v11259, %v12044
  %v12090 = vadd.f32 %v10998, %v11783
  %v12091 = vadd.f32 %v11086, %v11871
  %v12092 = vadd.f32 %v11174, %v11959
  %v12093 = vadd.f32 %v11262, %v12047
  %v12094 = vadd.f32 %v11000, %v11785
  %v12095 = vadd.f32 %v11088, %v11873
  %v12096 = vadd.f32 %v11176, %v11961
  %v12097 = vadd.f32 %v11264, %v12049
  %v12098 = vadd.f32 %v11003, %v11788
  %v12099 = vadd.f32 %v11091, %v11876
  %v12100 = vadd.f32 %v11179, %v11964
  %v12101 = vadd.f32 %v11267, %v12052
  %v12102 = vadd.f32 %v11005, %v11790
  %v12103 = vadd.f32 %v11093, %v11878
  %v12104 = vadd.f32 %v11181, %v11966
  %v12105 = vadd.f32 %v11269, %v12054
  %v12106 = vadd.f32 %v11008, %v11793
  %v12107 = vadd.f32 %v11096, %v11881
  %v12108 = vadd.f32 %v11184, %v11969
  %v12109 = vadd.f32 %v11272, %v12057
  %v12110 = vadd.f32 %v11010, %v11795
  %v12111 = vadd.f32 %v11098, %v11883
  %v12112 = vadd.f32 %v11186, %v11971
  %v12113 = vadd.f32 %v11274, %v12059
  %v12114 = vadd.f32 %v11013, %v11798
  %v12115 = vadd.f32 %v11101, %v11886
  %v12116 = vadd.f32 %v11189, %v11974
  %v12117 = vadd.f32 %v11277, %v12062
  %v12118 = vadd.f32 %v11015, %v11800
  %v12119 = vadd.f32 %v11103, %v11888
  %v12120 = vadd.f32 %v11191, %v11976
  %v12121 = vadd.f32 %v11279, %v12064
  %vm12122 = vsmask.f32 6400
  %v12123 = vrot.slane %v9721, 1
  %v12124 = vrot.slane %v9723, 2
  %v12125 = vor.u32 %v12123, %v12124
  %v12126 = vrot.slane %v9744, 1
  %v12127 = vrot.slane %v9728, 2
  %v12128 = vor.u32 %v12126, %v12127
  %v12129 = vsel %vm12122, %v12125, %v12128
  %v12130 = vrot.slane %v9733, 1
  %v12131 = vrot.slane %v9735, 2
  %v12132 = vor.u32 %v12130, %v12131
  %v12133 = vrot.slane %v9752, 1
  %v12134 = vrot.slane %v9740, 2
  %v12135 = vor.u32 %v12133, %v12134
  %v12136 = vsel %vm12122, %v12132, %v12135
  %v12137 = vrot.slane %v9760, 1
  %v12138 = vrot.slane %v9748, 2
  %v12139 = vor.u32 %v12137, %v12138
  %v12140 = vsel %vm12122, %v12128, %v12139
  %v12141 = vrot.slane %v9768, 1
  %v12142 = vrot.slane %v9756, 2
  %v12143 = vor.u32 %v12141, %v12142
  %v12144 = vsel %vm12122, %v12135, %v12143
  %v12145 = vrot.slane %v9776, 1
  %v12146 = vrot.slane %v9764, 2
  %v12147 = vor.u32 %v12145, %v12146
  %v12148 = vsel %vm12122, %v12139, %v12147
  %v12149 = vrot.slane %v9784, 1
  %v12150 = vrot.slane %v9772, 2
  %v12151 = vor.u32 %v12149, %v12150
  %v12152 = vsel %vm12122, %v12143, %v12151
  %v12153 = vrot.slane %v9792, 1
  %v12154 = vrot.slane %v9780, 2
  %v12155 = vor.u32 %v12153, %v12154
  %v12156 = vsel %vm12122, %v12147, %v12155
  %v12157 = vrot.slane %v9800, 1
  %v12158 = vrot.slane %v9788, 2
  %v12159 = vor.u32 %v12157, %v12158
  %v12160 = vsel %vm12122, %v12151, %v12159
  %v12161 = vrot.slane %v9808, 1
  %v12162 = vrot.slane %v9796, 2
  %v12163 = vor.u32 %v12161, %v12162
  %v12164 = vsel %vm12122, %v12155, %v12163
  %v12165 = vrot.slane %v9816, 1
  %v12166 = vrot.slane %v9804, 2
  %v12167 = vor.u32 %v12165, %v12166
  %v12168 = vsel %vm12122, %v12159, %v12167
  %v12169 = vrot.slane %v9824, 1
  %v12170 = vrot.slane %v9812, 2
  %v12171 = vor.u32 %v12169, %v12170
  %v12172 = vsel %vm12122, %v12163, %v12171
  %v12173 = vrot.slane %v9827, 1
  %v12174 = vrot.slane %v9820, 2
  %v12175 = vor.u32 %v12173, %v12174
  %v12176 = vsel %vm12122, %v12167, %v12175
  %v12191 = vshrl.u32 %v9844, 16
  %v12193 = vrot.slane %v12191, 1
  %v12194 = vrot.slane %v9847, 2
  %v12195 = vor.u32 %v12193, %v12194
  %v12196 = vshrl.u32 %v9845, 16
  %v12198 = vrot.slane %v12196, 1
  %v12199 = vrot.slane %v9851, 2
  %v12200 = vor.u32 %v12198, %v12199
  %vm12203 = vmand %vm3568, %vm12122
  %v12204 = vsel %vm12203, %v12171, %v12195
  %v12205 = vsel %vm12203, %v12175, %v12200
  %s12206 = scalar_lea.vmem %s3, 1536
  %v12207 = vld [vmem:[%s12206] sm:$0xff]
  %v12208 = vld [vmem:[%s12206 + $0x8] sm:$0xff]
  %v12209 = vld [vmem:[%s12206 + $0x10] sm:$0xff]
  %v12210 = vld [vmem:[%s12206 + $0x18] sm:$0xff]
  %v12211 = vld [vmem:[%s12206 + $0x20] sm:$0xff]
  %v12212 = vld [vmem:[%s12206 + $0x28] sm:$0xff]
  %v12213 = vld [vmem:[%s12206 + $0x30] sm:$0xff]
  %v12214 = vld [vmem:[%s12206 + $0x38] sm:$0xff]
  %v12215 = vld [vmem:[%s12206 + $0x40] sm:$0xff]
  %v12216 = vld [vmem:[%s12206 + $0x48] sm:$0xff]
  %v12217 = vld [vmem:[%s12206 + $0x50] sm:$0xff]
  %v12218 = vld [vmem:[%s12206 + $0x58] sm:$0xff]
  %v12219 = vld [vmem:[%s12206 + $0x60] sm:$0xff]
  %v12220 = vld [vmem:[%s12206 + $0x68] sm:$0xff]
  %v12221 = vld [vmem:[%s12206 + $0x70] sm:$0xff]
  %v12222 = vld [vmem:[%s12206 + $0x78] sm:$0xff]
  %v12223 = vld [vmem:[%s12206 + $0x80] sm:$0xff]
  %v12224 = vld [vmem:[%s12206 + $0x88] sm:$0xff]
  %v12225 = vld [vmem:[%s12206 + $0x90] sm:$0xff]
  %v12226 = vld [vmem:[%s12206 + $0x98] sm:$0xff]
  %v12227 = vld [vmem:[%s12206 + $0xa0] sm:$0xff]
  %v12228 = vld [vmem:[%s12206 + $0xa8] sm:$0xff]
  %v12229 = vld [vmem:[%s12206 + $0xb0] sm:$0xff]
  %v12230 = vld [vmem:[%s12206 + $0xb8] sm:$0xff]
  %v12231 = vld [vmem:[%s12206 + $0xc0] sm:$0xff]
  %v12232 = vld [vmem:[%s12206 + $0xc8] sm:$0xff]
  %v12233 = vld [vmem:[%s12206 + $0xd0] sm:$0xff]
  %v12234 = vld [vmem:[%s12206 + $0xd8] sm:$0xff]
  %v12235 = vld [vmem:[%s12206 + $0xe0] sm:$0xff]
  %v12236 = vld [vmem:[%s12206 + $0xe8] sm:$0xff]
  %v12237 = vld [vmem:[%s12206 + $0xf0] sm:$0xff]
  %v12238 = vld [vmem:[%s12206 + $0xf8] sm:$0xff]
  %v12239 = vld [vmem:[%s12206 + $0x100] sm:$0xff]
  %v12240 = vld [vmem:[%s12206 + $0x108] sm:$0xff]
  %v12241 = vld [vmem:[%s12206 + $0x110] sm:$0xff]
  %v12242 = vld [vmem:[%s12206 + $0x118] sm:$0xff]
  %v12243 = vld [vmem:[%s12206 + $0x120] sm:$0xff]
  %v12244 = vld [vmem:[%s12206 + $0x128] sm:$0xff]
  %v12245 = vld [vmem:[%s12206 + $0x130] sm:$0xff]
  %v12246 = vld [vmem:[%s12206 + $0x138] sm:$0xff]
  %v12247 = vld [vmem:[%s12206 + $0x140] sm:$0xff]
  %v12248 = vld [vmem:[%s12206 + $0x148] sm:$0xff]
  %v12249 = vld [vmem:[%s12206 + $0x150] sm:$0xff]
  %v12250 = vld [vmem:[%s12206 + $0x158] sm:$0xff]
  %v12251 = vld [vmem:[%s12206 + $0x160] sm:$0xff]
  %v12252 = vld [vmem:[%s12206 + $0x168] sm:$0xff]
  %v12253 = vld [vmem:[%s12206 + $0x170] sm:$0xff]
  %v12254 = vld [vmem:[%s12206 + $0x178] sm:$0xff]
  %v12255 = vld [vmem:[%s12206 + $0x180] sm:$0xff]
  %v12256 = vld [vmem:[%s12206 + $0x188] sm:$0xff]
  %v12257 = vld [vmem:[%s12206 + $0x190] sm:$0xff]
  %v12258 = vld [vmem:[%s12206 + $0x198] sm:$0xff]
  %v12259 = vld [vmem:[%s12206 + $0x1a0] sm:$0xff]
  %v12260 = vld [vmem:[%s12206 + $0x1a8] sm:$0xff]
  %v12261 = vld [vmem:[%s12206 + $0x1b0] sm:$0xff]
  %v12262 = vld [vmem:[%s12206 + $0x1b8] sm:$0xff]
  %v12263 = vld [vmem:[%s12206 + $0x1c0] sm:$0xff]
  %v12264 = vld [vmem:[%s12206 + $0x1c8] sm:$0xff]
  %v12265 = vld [vmem:[%s12206 + $0x1d0] sm:$0xff]
  %v12266 = vld [vmem:[%s12206 + $0x1d8] sm:$0xff]
  %v12267 = vld [vmem:[%s12206 + $0x1e0] sm:$0xff]
  %v12268 = vld [vmem:[%s12206 + $0x1e8] sm:$0xff]
  %v12269 = vld [vmem:[%s12206 + $0x1f0] sm:$0xff]
  %v12270 = vld [vmem:[%s12206 + $0x1f8] sm:$0xff]
  %v12335 = vunpack.c.l.b16 %v12207
  %v12336 = vunpack.c.h.b16 %v12207
  %v12337 = vunpack.c.l.b16 %v12208
  %v12338 = vunpack.c.h.b16 %v12208
  %v12339 = vunpack.c.l.b16 %v12209
  %v12340 = vunpack.c.h.b16 %v12209
  %v12341 = vunpack.c.l.b16 %v12210
  %v12342 = vunpack.c.h.b16 %v12210
  %v12343 = vunpack.c.l.b16 %v12211
  %v12344 = vunpack.c.h.b16 %v12211
  %v12345 = vunpack.c.l.b16 %v12212
  %v12346 = vunpack.c.h.b16 %v12212
  %v12347 = vunpack.c.l.b16 %v12213
  %v12348 = vunpack.c.h.b16 %v12213
  %v12349 = vunpack.c.l.b16 %v12214
  %v12350 = vunpack.c.h.b16 %v12214
  %v12351 = vunpack.c.l.b16 %v12215
  %v12352 = vunpack.c.h.b16 %v12215
  %v12353 = vunpack.c.l.b16 %v12216
  %v12354 = vunpack.c.h.b16 %v12216
  %v12355 = vunpack.c.l.b16 %v12217
  %v12356 = vunpack.c.h.b16 %v12217
  %v12357 = vunpack.c.l.b16 %v12218
  %v12358 = vunpack.c.h.b16 %v12218
  %v12359 = vunpack.c.l.b16 %v12219
  %v12360 = vunpack.c.h.b16 %v12219
  %v12361 = vunpack.c.l.b16 %v12220
  %v12362 = vunpack.c.h.b16 %v12220
  %v12363 = vunpack.c.l.b16 %v12221
  %v12364 = vunpack.c.h.b16 %v12221
  %v12365 = vunpack.c.l.b16 %v12222
  %v12366 = vunpack.c.h.b16 %v12222
  %v12367 = vunpack.c.l.b16 %v12223
  %v12368 = vunpack.c.h.b16 %v12223
  %v12369 = vunpack.c.l.b16 %v12224
  %v12370 = vunpack.c.h.b16 %v12224
  %v12371 = vunpack.c.l.b16 %v12225
  %v12372 = vunpack.c.h.b16 %v12225
  %v12373 = vunpack.c.l.b16 %v12226
  %v12374 = vunpack.c.h.b16 %v12226
  %v12375 = vunpack.c.l.b16 %v12227
  %v12376 = vunpack.c.h.b16 %v12227
  %v12377 = vunpack.c.l.b16 %v12228
  %v12378 = vunpack.c.h.b16 %v12228
  %v12379 = vunpack.c.l.b16 %v12229
  %v12380 = vunpack.c.h.b16 %v12229
  %v12381 = vunpack.c.l.b16 %v12230
  %v12382 = vunpack.c.h.b16 %v12230
  %v12383 = vunpack.c.l.b16 %v12231
  %v12384 = vunpack.c.h.b16 %v12231
  %v12385 = vunpack.c.l.b16 %v12232
  %v12386 = vunpack.c.h.b16 %v12232
  %v12387 = vunpack.c.l.b16 %v12233
  %v12388 = vunpack.c.h.b16 %v12233
  %v12389 = vunpack.c.l.b16 %v12234
  %v12390 = vunpack.c.h.b16 %v12234
  %v12391 = vunpack.c.l.b16 %v12235
  %v12392 = vunpack.c.h.b16 %v12235
  %v12393 = vunpack.c.l.b16 %v12236
  %v12394 = vunpack.c.h.b16 %v12236
  %v12395 = vunpack.c.l.b16 %v12237
  %v12396 = vunpack.c.h.b16 %v12237
  %v12397 = vunpack.c.l.b16 %v12238
  %v12398 = vunpack.c.h.b16 %v12238
  %v12399 = vunpack.c.l.b16 %v12239
  %v12400 = vunpack.c.h.b16 %v12239
  %v12401 = vunpack.c.l.b16 %v12240
  %v12402 = vunpack.c.h.b16 %v12240
  %v12403 = vunpack.c.l.b16 %v12241
  %v12404 = vunpack.c.h.b16 %v12241
  %v12405 = vunpack.c.l.b16 %v12242
  %v12406 = vunpack.c.h.b16 %v12242
  %v12407 = vunpack.c.l.b16 %v12243
  %v12408 = vunpack.c.h.b16 %v12243
  %v12409 = vunpack.c.l.b16 %v12244
  %v12410 = vunpack.c.h.b16 %v12244
  %v12411 = vunpack.c.l.b16 %v12245
  %v12412 = vunpack.c.h.b16 %v12245
  %v12413 = vunpack.c.l.b16 %v12246
  %v12414 = vunpack.c.h.b16 %v12246
  %v12415 = vunpack.c.l.b16 %v12247
  %v12416 = vunpack.c.h.b16 %v12247
  %v12417 = vunpack.c.l.b16 %v12248
  %v12418 = vunpack.c.h.b16 %v12248
  %v12419 = vunpack.c.l.b16 %v12249
  %v12420 = vunpack.c.h.b16 %v12249
  %v12421 = vunpack.c.l.b16 %v12250
  %v12422 = vunpack.c.h.b16 %v12250
  %v12423 = vunpack.c.l.b16 %v12251
  %v12424 = vunpack.c.h.b16 %v12251
  %v12425 = vunpack.c.l.b16 %v12252
  %v12426 = vunpack.c.h.b16 %v12252
  %v12427 = vunpack.c.l.b16 %v12253
  %v12428 = vunpack.c.h.b16 %v12253
  %v12429 = vunpack.c.l.b16 %v12254
  %v12430 = vunpack.c.h.b16 %v12254
  %v12431 = vunpack.c.l.b16 %v12255
  %v12432 = vunpack.c.h.b16 %v12255
  %v12433 = vunpack.c.l.b16 %v12256
  %v12434 = vunpack.c.h.b16 %v12256
  %v12435 = vunpack.c.l.b16 %v12257
  %v12436 = vunpack.c.h.b16 %v12257
  %v12437 = vunpack.c.l.b16 %v12258
  %v12438 = vunpack.c.h.b16 %v12258
  %v12439 = vunpack.c.l.b16 %v12259
  %v12440 = vunpack.c.h.b16 %v12259
  %v12441 = vunpack.c.l.b16 %v12260
  %v12442 = vunpack.c.h.b16 %v12260
  %v12443 = vunpack.c.l.b16 %v12261
  %v12444 = vunpack.c.h.b16 %v12261
  %v12445 = vunpack.c.l.b16 %v12262
  %v12446 = vunpack.c.h.b16 %v12262
  %v12447 = vunpack.c.l.b16 %v12263
  %v12448 = vunpack.c.h.b16 %v12263
  %v12449 = vunpack.c.l.b16 %v12264
  %v12450 = vunpack.c.h.b16 %v12264
  %v12451 = vunpack.c.l.b16 %v12265
  %v12452 = vunpack.c.h.b16 %v12265
  %v12453 = vunpack.c.l.b16 %v12266
  %v12454 = vunpack.c.h.b16 %v12266
  %v12455 = vunpack.c.l.b16 %v12267
  %v12456 = vunpack.c.h.b16 %v12267
  %v12457 = vunpack.c.l.b16 %v12268
  %v12458 = vunpack.c.h.b16 %v12268
  %v12459 = vunpack.c.l.b16 %v12269
  %v12460 = vunpack.c.h.b16 %v12269
  %v12461 = vunpack.c.l.b16 %v12270
  %v12462 = vunpack.c.h.b16 %v12270
  %v12463 = vpack.c.b16 %v12339, %v12335
  %v12464 = vpack.c.b16 %v12340, %v12336
  %v12465 = vpack.c.b16 %v12341, %v12337
  %v12466 = vpack.c.b16 %v12342, %v12338
  %v12467 = vpack.c.b16 %v12347, %v12343
  %v12468 = vpack.c.b16 %v12348, %v12344
  %v12469 = vpack.c.b16 %v12349, %v12345
  %v12470 = vpack.c.b16 %v12350, %v12346
  %v12471 = vpack.c.b16 %v12355, %v12351
  %v12472 = vpack.c.b16 %v12356, %v12352
  %v12473 = vpack.c.b16 %v12357, %v12353
  %v12474 = vpack.c.b16 %v12358, %v12354
  %v12475 = vpack.c.b16 %v12363, %v12359
  %v12476 = vpack.c.b16 %v12364, %v12360
  %v12477 = vpack.c.b16 %v12365, %v12361
  %v12478 = vpack.c.b16 %v12366, %v12362
  %v12479 = vpack.c.b16 %v12371, %v12367
  %v12480 = vpack.c.b16 %v12372, %v12368
  %v12481 = vpack.c.b16 %v12373, %v12369
  %v12482 = vpack.c.b16 %v12374, %v12370
  %v12483 = vpack.c.b16 %v12379, %v12375
  %v12484 = vpack.c.b16 %v12380, %v12376
  %v12485 = vpack.c.b16 %v12381, %v12377
  %v12486 = vpack.c.b16 %v12382, %v12378
  %v12487 = vpack.c.b16 %v12387, %v12383
  %v12488 = vpack.c.b16 %v12388, %v12384
  %v12489 = vpack.c.b16 %v12389, %v12385
  %v12490 = vpack.c.b16 %v12390, %v12386
  %v12491 = vpack.c.b16 %v12395, %v12391
  %v12492 = vpack.c.b16 %v12396, %v12392
  %v12493 = vpack.c.b16 %v12397, %v12393
  %v12494 = vpack.c.b16 %v12398, %v12394
  %v12495 = vpack.c.b16 %v12403, %v12399
  %v12496 = vpack.c.b16 %v12404, %v12400
  %v12497 = vpack.c.b16 %v12405, %v12401
  %v12498 = vpack.c.b16 %v12406, %v12402
  %v12499 = vpack.c.b16 %v12411, %v12407
  %v12500 = vpack.c.b16 %v12412, %v12408
  %v12501 = vpack.c.b16 %v12413, %v12409
  %v12502 = vpack.c.b16 %v12414, %v12410
  %v12503 = vpack.c.b16 %v12419, %v12415
  %v12504 = vpack.c.b16 %v12420, %v12416
  %v12505 = vpack.c.b16 %v12421, %v12417
  %v12506 = vpack.c.b16 %v12422, %v12418
  %v12507 = vpack.c.b16 %v12427, %v12423
  %v12508 = vpack.c.b16 %v12428, %v12424
  %v12509 = vpack.c.b16 %v12429, %v12425
  %v12510 = vpack.c.b16 %v12430, %v12426
  %v12511 = vpack.c.b16 %v12435, %v12431
  %v12512 = vpack.c.b16 %v12436, %v12432
  %v12513 = vpack.c.b16 %v12437, %v12433
  %v12514 = vpack.c.b16 %v12438, %v12434
  %v12515 = vpack.c.b16 %v12443, %v12439
  %v12516 = vpack.c.b16 %v12444, %v12440
  %v12517 = vpack.c.b16 %v12445, %v12441
  %v12518 = vpack.c.b16 %v12446, %v12442
  %v12519 = vpack.c.b16 %v12451, %v12447
  %v12520 = vpack.c.b16 %v12452, %v12448
  %v12521 = vpack.c.b16 %v12453, %v12449
  %v12522 = vpack.c.b16 %v12454, %v12450
  %v12523 = vpack.c.b16 %v12459, %v12455
  %v12524 = vpack.c.b16 %v12460, %v12456
  %v12525 = vpack.c.b16 %v12461, %v12457
  %v12526 = vpack.c.b16 %v12462, %v12458
  %12591 = vmatpush.bf16.msra.mxu0 %v12491
  %12592 = vmatpush.bf16.msra.mxu0 %v12487
  %12593 = vmatpush.bf16.msra.mxu0 %v12483
  %12594 = vmatpush.bf16.msra.mxu0 %v12479
  %12595 = vmatpush.bf16.msra.mxu0 %v12475
  %12596 = vmatpush.bf16.msra.mxu0 %v12471
  %12597 = vmatpush.bf16.msra.mxu0 %v12467
  %12598 = vmatpush.bf16.msra.mxu0 %v12463
  %12599 = vmatmul.bf16.gmra.mxu0 %v12129
  %v12600 = vpop.f32.mrf.mxu0
  %v12601 = vadd.f32 0.0, %v12600
  %v12602 = vpop.f32.mrf.mxu0
  %v12603 = vadd.f32 0.0, %v12602
  %12604 = vmatmul.bf16.gmra.mxu0 %v12140
  %v12605 = vpop.f32.mrf.mxu0
  %v12606 = vadd.f32 0.0, %v12605
  %v12607 = vpop.f32.mrf.mxu0
  %v12608 = vadd.f32 0.0, %v12607
  %12609 = vmatmul.bf16.gmra.mxu0 %v12148
  %v12610 = vpop.f32.mrf.mxu0
  %v12611 = vadd.f32 0.0, %v12610
  %v12612 = vpop.f32.mrf.mxu0
  %v12613 = vadd.f32 0.0, %v12612
  %12614 = vmatmul.bf16.gmra.mxu0 %v12156
  %v12615 = vpop.f32.mrf.mxu0
  %v12616 = vadd.f32 0.0, %v12615
  %v12617 = vpop.f32.mrf.mxu0
  %v12618 = vadd.f32 0.0, %v12617
  %12619 = vmatmul.bf16.gmra.mxu0 %v12164
  %v12620 = vpop.f32.mrf.mxu0
  %v12621 = vadd.f32 0.0, %v12620
  %v12622 = vpop.f32.mrf.mxu0
  %v12623 = vadd.f32 0.0, %v12622
  %12624 = vmatmul.bf16.gmra.mxu0 %v12172
  %v12625 = vpop.f32.mrf.mxu0
  %v12626 = vadd.f32 0.0, %v12625
  %v12627 = vpop.f32.mrf.mxu0
  %v12628 = vadd.f32 0.0, %v12627
  %12629 = vmatmul.bf16.gmra.mxu0 %v12204
  %v12630 = vpop.f32.mrf.mxu0
  %v12631 = vadd.f32 0.0, %v12630
  %v12632 = vpop.f32.mrf.mxu0
  %v12633 = vadd.f32 0.0, %v12632
  %12634 = vdwg.mxu0
  %12635 = vmatpush.bf16.msra.mxu0 %v12523
  %12636 = vmatpush.bf16.msra.mxu0 %v12519
  %12637 = vmatpush.bf16.msra.mxu0 %v12515
  %12638 = vmatpush.bf16.msra.mxu0 %v12511
  %12639 = vmatpush.bf16.msra.mxu0 %v12507
  %12640 = vmatpush.bf16.msra.mxu0 %v12503
  %12641 = vmatpush.bf16.msra.mxu0 %v12499
  %12642 = vmatpush.bf16.msra.mxu0 %v12495
  %12643 = vmatmul.bf16.gmra.mxu0 %v12136
  %v12644 = vpop.f32.mrf.mxu0
  %v12645 = vadd.f32 %v12601, %v12644
  %v12646 = vpop.f32.mrf.mxu0
  %v12647 = vadd.f32 %v12603, %v12646
  %12648 = vmatmul.bf16.gmra.mxu0 %v12144
  %v12649 = vpop.f32.mrf.mxu0
  %v12650 = vadd.f32 %v12606, %v12649
  %v12651 = vpop.f32.mrf.mxu0
  %v12652 = vadd.f32 %v12608, %v12651
  %12653 = vmatmul.bf16.gmra.mxu0 %v12152
  %v12654 = vpop.f32.mrf.mxu0
  %v12655 = vadd.f32 %v12611, %v12654
  %v12656 = vpop.f32.mrf.mxu0
  %v12657 = vadd.f32 %v12613, %v12656
  %12658 = vmatmul.bf16.gmra.mxu0 %v12160
  %v12659 = vpop.f32.mrf.mxu0
  %v12660 = vadd.f32 %v12616, %v12659
  %v12661 = vpop.f32.mrf.mxu0
  %v12662 = vadd.f32 %v12618, %v12661
  %12663 = vmatmul.bf16.gmra.mxu0 %v12168
  %v12664 = vpop.f32.mrf.mxu0
  %v12665 = vadd.f32 %v12621, %v12664
  %v12666 = vpop.f32.mrf.mxu0
  %v12667 = vadd.f32 %v12623, %v12666
  %12668 = vmatmul.bf16.gmra.mxu0 %v12176
  %v12669 = vpop.f32.mrf.mxu0
  %v12670 = vadd.f32 %v12626, %v12669
  %v12671 = vpop.f32.mrf.mxu0
  %v12672 = vadd.f32 %v12628, %v12671
  %12673 = vmatmul.bf16.gmra.mxu0 %v12205
  %v12674 = vpop.f32.mrf.mxu0
  %v12675 = vadd.f32 %v12631, %v12674
  %v12676 = vpop.f32.mrf.mxu0
  %v12677 = vadd.f32 %v12633, %v12676
  %12678 = vdwg.mxu0
  %12679 = vmatpush.bf16.msra.mxu0 %v12492
  %12680 = vmatpush.bf16.msra.mxu0 %v12488
  %12681 = vmatpush.bf16.msra.mxu0 %v12484
  %12682 = vmatpush.bf16.msra.mxu0 %v12480
  %12683 = vmatpush.bf16.msra.mxu0 %v12476
  %12684 = vmatpush.bf16.msra.mxu0 %v12472
  %12685 = vmatpush.bf16.msra.mxu0 %v12468
  %12686 = vmatpush.bf16.msra.mxu0 %v12464
  %12687 = vmatmul.bf16.gmra.mxu0 %v12129
  %v12688 = vpop.f32.mrf.mxu0
  %v12689 = vadd.f32 0.0, %v12688
  %v12690 = vpop.f32.mrf.mxu0
  %v12691 = vadd.f32 0.0, %v12690
  %12692 = vmatmul.bf16.gmra.mxu0 %v12140
  %v12693 = vpop.f32.mrf.mxu0
  %v12694 = vadd.f32 0.0, %v12693
  %v12695 = vpop.f32.mrf.mxu0
  %v12696 = vadd.f32 0.0, %v12695
  %12697 = vmatmul.bf16.gmra.mxu0 %v12148
  %v12698 = vpop.f32.mrf.mxu0
  %v12699 = vadd.f32 0.0, %v12698
  %v12700 = vpop.f32.mrf.mxu0
  %v12701 = vadd.f32 0.0, %v12700
  %12702 = vmatmul.bf16.gmra.mxu0 %v12156
  %v12703 = vpop.f32.mrf.mxu0
  %v12704 = vadd.f32 0.0, %v12703
  %v12705 = vpop.f32.mrf.mxu0
  %v12706 = vadd.f32 0.0, %v12705
  %12707 = vmatmul.bf16.gmra.mxu0 %v12164
  %v12708 = vpop.f32.mrf.mxu0
  %v12709 = vadd.f32 0.0, %v12708
  %v12710 = vpop.f32.mrf.mxu0
  %v12711 = vadd.f32 0.0, %v12710
  %12712 = vmatmul.bf16.gmra.mxu0 %v12172
  %v12713 = vpop.f32.mrf.mxu0
  %v12714 = vadd.f32 0.0, %v12713
  %v12715 = vpop.f32.mrf.mxu0
  %v12716 = vadd.f32 0.0, %v12715
  %12717 = vmatmul.bf16.gmra.mxu0 %v12204
  %v12718 = vpop.f32.mrf.mxu0
  %v12719 = vadd.f32 0.0, %v12718
  %v12720 = vpop.f32.mrf.mxu0
  %v12721 = vadd.f32 0.0, %v12720
  %12722 = vdwg.mxu0
  %12723 = vmatpush.bf16.msra.mxu0 %v12524
  %12724 = vmatpush.bf16.msra.mxu0 %v12520
  %12725 = vmatpush.bf16.msra.mxu0 %v12516
  %12726 = vmatpush.bf16.msra.mxu0 %v12512
  %12727 = vmatpush.bf16.msra.mxu0 %v12508
  %12728 = vmatpush.bf16.msra.mxu0 %v12504
  %12729 = vmatpush.bf16.msra.mxu0 %v12500
  %12730 = vmatpush.bf16.msra.mxu0 %v12496
  %12731 = vmatmul.bf16.gmra.mxu0 %v12136
  %v12732 = vpop.f32.mrf.mxu0
  %v12733 = vadd.f32 %v12689, %v12732
  %v12734 = vpop.f32.mrf.mxu0
  %v12735 = vadd.f32 %v12691, %v12734
  %12736 = vmatmul.bf16.gmra.mxu0 %v12144
  %v12737 = vpop.f32.mrf.mxu0
  %v12738 = vadd.f32 %v12694, %v12737
  %v12739 = vpop.f32.mrf.mxu0
  %v12740 = vadd.f32 %v12696, %v12739
  %12741 = vmatmul.bf16.gmra.mxu0 %v12152
  %v12742 = vpop.f32.mrf.mxu0
  %v12743 = vadd.f32 %v12699, %v12742
  %v12744 = vpop.f32.mrf.mxu0
  %v12745 = vadd.f32 %v12701, %v12744
  %12746 = vmatmul.bf16.gmra.mxu0 %v12160
  %v12747 = vpop.f32.mrf.mxu0
  %v12748 = vadd.f32 %v12704, %v12747
  %v12749 = vpop.f32.mrf.mxu0
  %v12750 = vadd.f32 %v12706, %v12749
  %12751 = vmatmul.bf16.gmra.mxu0 %v12168
  %v12752 = vpop.f32.mrf.mxu0
  %v12753 = vadd.f32 %v12709, %v12752
  %v12754 = vpop.f32.mrf.mxu0
  %v12755 = vadd.f32 %v12711, %v12754
  %12756 = vmatmul.bf16.gmra.mxu0 %v12176
  %v12757 = vpop.f32.mrf.mxu0
  %v12758 = vadd.f32 %v12714, %v12757
  %v12759 = vpop.f32.mrf.mxu0
  %v12760 = vadd.f32 %v12716, %v12759
  %12761 = vmatmul.bf16.gmra.mxu0 %v12205
  %v12762 = vpop.f32.mrf.mxu0
  %v12763 = vadd.f32 %v12719, %v12762
  %v12764 = vpop.f32.mrf.mxu0
  %v12765 = vadd.f32 %v12721, %v12764
  %12766 = vdwg.mxu0
  %12767 = vmatpush.bf16.msra.mxu0 %v12493
  %12768 = vmatpush.bf16.msra.mxu0 %v12489
  %12769 = vmatpush.bf16.msra.mxu0 %v12485
  %12770 = vmatpush.bf16.msra.mxu0 %v12481
  %12771 = vmatpush.bf16.msra.mxu0 %v12477
  %12772 = vmatpush.bf16.msra.mxu0 %v12473
  %12773 = vmatpush.bf16.msra.mxu0 %v12469
  %12774 = vmatpush.bf16.msra.mxu0 %v12465
  %12775 = vmatmul.bf16.gmra.mxu0 %v12129
  %v12776 = vpop.f32.mrf.mxu0
  %v12777 = vadd.f32 0.0, %v12776
  %v12778 = vpop.f32.mrf.mxu0
  %v12779 = vadd.f32 0.0, %v12778
  %12780 = vmatmul.bf16.gmra.mxu0 %v12140
  %v12781 = vpop.f32.mrf.mxu0
  %v12782 = vadd.f32 0.0, %v12781
  %v12783 = vpop.f32.mrf.mxu0
  %v12784 = vadd.f32 0.0, %v12783
  %12785 = vmatmul.bf16.gmra.mxu0 %v12148
  %v12786 = vpop.f32.mrf.mxu0
  %v12787 = vadd.f32 0.0, %v12786
  %v12788 = vpop.f32.mrf.mxu0
  %v12789 = vadd.f32 0.0, %v12788
  %12790 = vmatmul.bf16.gmra.mxu0 %v12156
  %v12791 = vpop.f32.mrf.mxu0
  %v12792 = vadd.f32 0.0, %v12791
  %v12793 = vpop.f32.mrf.mxu0
  %v12794 = vadd.f32 0.0, %v12793
  %12795 = vmatmul.bf16.gmra.mxu0 %v12164
  %v12796 = vpop.f32.mrf.mxu0
  %v12797 = vadd.f32 0.0, %v12796
  %v12798 = vpop.f32.mrf.mxu0
  %v12799 = vadd.f32 0.0, %v12798
  %12800 = vmatmul.bf16.gmra.mxu0 %v12172
  %v12801 = vpop.f32.mrf.mxu0
  %v12802 = vadd.f32 0.0, %v12801
  %v12803 = vpop.f32.mrf.mxu0
  %v12804 = vadd.f32 0.0, %v12803
  %12805 = vmatmul.bf16.gmra.mxu0 %v12204
  %v12806 = vpop.f32.mrf.mxu0
  %v12807 = vadd.f32 0.0, %v12806
  %v12808 = vpop.f32.mrf.mxu0
  %v12809 = vadd.f32 0.0, %v12808
  %12810 = vdwg.mxu0
  %12811 = vmatpush.bf16.msra.mxu0 %v12525
  %12812 = vmatpush.bf16.msra.mxu0 %v12521
  %12813 = vmatpush.bf16.msra.mxu0 %v12517
  %12814 = vmatpush.bf16.msra.mxu0 %v12513
  %12815 = vmatpush.bf16.msra.mxu0 %v12509
  %12816 = vmatpush.bf16.msra.mxu0 %v12505
  %12817 = vmatpush.bf16.msra.mxu0 %v12501
  %12818 = vmatpush.bf16.msra.mxu0 %v12497
  %12819 = vmatmul.bf16.gmra.mxu0 %v12136
  %v12820 = vpop.f32.mrf.mxu0
  %v12821 = vadd.f32 %v12777, %v12820
  %v12822 = vpop.f32.mrf.mxu0
  %v12823 = vadd.f32 %v12779, %v12822
  %12824 = vmatmul.bf16.gmra.mxu0 %v12144
  %v12825 = vpop.f32.mrf.mxu0
  %v12826 = vadd.f32 %v12782, %v12825
  %v12827 = vpop.f32.mrf.mxu0
  %v12828 = vadd.f32 %v12784, %v12827
  %12829 = vmatmul.bf16.gmra.mxu0 %v12152
  %v12830 = vpop.f32.mrf.mxu0
  %v12831 = vadd.f32 %v12787, %v12830
  %v12832 = vpop.f32.mrf.mxu0
  %v12833 = vadd.f32 %v12789, %v12832
  %12834 = vmatmul.bf16.gmra.mxu0 %v12160
  %v12835 = vpop.f32.mrf.mxu0
  %v12836 = vadd.f32 %v12792, %v12835
  %v12837 = vpop.f32.mrf.mxu0
  %v12838 = vadd.f32 %v12794, %v12837
  %12839 = vmatmul.bf16.gmra.mxu0 %v12168
  %v12840 = vpop.f32.mrf.mxu0
  %v12841 = vadd.f32 %v12797, %v12840
  %v12842 = vpop.f32.mrf.mxu0
  %v12843 = vadd.f32 %v12799, %v12842
  %12844 = vmatmul.bf16.gmra.mxu0 %v12176
  %v12845 = vpop.f32.mrf.mxu0
  %v12846 = vadd.f32 %v12802, %v12845
  %v12847 = vpop.f32.mrf.mxu0
  %v12848 = vadd.f32 %v12804, %v12847
  %12849 = vmatmul.bf16.gmra.mxu0 %v12205
  %v12850 = vpop.f32.mrf.mxu0
  %v12851 = vadd.f32 %v12807, %v12850
  %v12852 = vpop.f32.mrf.mxu0
  %v12853 = vadd.f32 %v12809, %v12852
  %12854 = vdwg.mxu0
  %12855 = vmatpush.bf16.msra.mxu0 %v12494
  %12856 = vmatpush.bf16.msra.mxu0 %v12490
  %12857 = vmatpush.bf16.msra.mxu0 %v12486
  %12858 = vmatpush.bf16.msra.mxu0 %v12482
  %12859 = vmatpush.bf16.msra.mxu0 %v12478
  %12860 = vmatpush.bf16.msra.mxu0 %v12474
  %12861 = vmatpush.bf16.msra.mxu0 %v12470
  %12862 = vmatpush.bf16.msra.mxu0 %v12466
  %12863 = vmatmul.bf16.gmra.mxu0 %v12129
  %v12864 = vpop.f32.mrf.mxu0
  %v12865 = vadd.f32 0.0, %v12864
  %v12866 = vpop.f32.mrf.mxu0
  %v12867 = vadd.f32 0.0, %v12866
  %12868 = vmatmul.bf16.gmra.mxu0 %v12140
  %v12869 = vpop.f32.mrf.mxu0
  %v12870 = vadd.f32 0.0, %v12869
  %v12871 = vpop.f32.mrf.mxu0
  %v12872 = vadd.f32 0.0, %v12871
  %12873 = vmatmul.bf16.gmra.mxu0 %v12148
  %v12874 = vpop.f32.mrf.mxu0
  %v12875 = vadd.f32 0.0, %v12874
  %v12876 = vpop.f32.mrf.mxu0
  %v12877 = vadd.f32 0.0, %v12876
  %12878 = vmatmul.bf16.gmra.mxu0 %v12156
  %v12879 = vpop.f32.mrf.mxu0
  %v12880 = vadd.f32 0.0, %v12879
  %v12881 = vpop.f32.mrf.mxu0
  %v12882 = vadd.f32 0.0, %v12881
  %12883 = vmatmul.bf16.gmra.mxu0 %v12164
  %v12884 = vpop.f32.mrf.mxu0
  %v12885 = vadd.f32 0.0, %v12884
  %v12886 = vpop.f32.mrf.mxu0
  %v12887 = vadd.f32 0.0, %v12886
  %12888 = vmatmul.bf16.gmra.mxu0 %v12172
  %v12889 = vpop.f32.mrf.mxu0
  %v12890 = vadd.f32 0.0, %v12889
  %v12891 = vpop.f32.mrf.mxu0
  %v12892 = vadd.f32 0.0, %v12891
  %12893 = vmatmul.bf16.gmra.mxu0 %v12204
  %v12894 = vpop.f32.mrf.mxu0
  %v12895 = vadd.f32 0.0, %v12894
  %v12896 = vpop.f32.mrf.mxu0
  %v12897 = vadd.f32 0.0, %v12896
  %12898 = vdwg.mxu0
  %12899 = vmatpush.bf16.msra.mxu0 %v12526
  %12900 = vmatpush.bf16.msra.mxu0 %v12522
  %12901 = vmatpush.bf16.msra.mxu0 %v12518
  %12902 = vmatpush.bf16.msra.mxu0 %v12514
  %12903 = vmatpush.bf16.msra.mxu0 %v12510
  %12904 = vmatpush.bf16.msra.mxu0 %v12506
  %12905 = vmatpush.bf16.msra.mxu0 %v12502
  %12906 = vmatpush.bf16.msra.mxu0 %v12498
  %12907 = vmatmul.bf16.gmra.mxu0 %v12136
  %v12908 = vpop.f32.mrf.mxu0
  %v12909 = vadd.f32 %v12865, %v12908
  %v12910 = vpop.f32.mrf.mxu0
  %v12911 = vadd.f32 %v12867, %v12910
  %12912 = vmatmul.bf16.gmra.mxu0 %v12144
  %v12913 = vpop.f32.mrf.mxu0
  %v12914 = vadd.f32 %v12870, %v12913
  %v12915 = vpop.f32.mrf.mxu0
  %v12916 = vadd.f32 %v12872, %v12915
  %12917 = vmatmul.bf16.gmra.mxu0 %v12152
  %v12918 = vpop.f32.mrf.mxu0
  %v12919 = vadd.f32 %v12875, %v12918
  %v12920 = vpop.f32.mrf.mxu0
  %v12921 = vadd.f32 %v12877, %v12920
  %12922 = vmatmul.bf16.gmra.mxu0 %v12160
  %v12923 = vpop.f32.mrf.mxu0
  %v12924 = vadd.f32 %v12880, %v12923
  %v12925 = vpop.f32.mrf.mxu0
  %v12926 = vadd.f32 %v12882, %v12925
  %12927 = vmatmul.bf16.gmra.mxu0 %v12168
  %v12928 = vpop.f32.mrf.mxu0
  %v12929 = vadd.f32 %v12885, %v12928
  %v12930 = vpop.f32.mrf.mxu0
  %v12931 = vadd.f32 %v12887, %v12930
  %12932 = vmatmul.bf16.gmra.mxu0 %v12176
  %v12933 = vpop.f32.mrf.mxu0
  %v12934 = vadd.f32 %v12890, %v12933
  %v12935 = vpop.f32.mrf.mxu0
  %v12936 = vadd.f32 %v12892, %v12935
  %12937 = vmatmul.bf16.gmra.mxu0 %v12205
  %v12938 = vpop.f32.mrf.mxu0
  %v12939 = vadd.f32 %v12895, %v12938
  %v12940 = vpop.f32.mrf.mxu0
  %v12941 = vadd.f32 %v12897, %v12940
  %12942 = vdwg.mxu0
  %v12943 = vadd.f32 %v12066, %v12645
  %v12944 = vadd.f32 %v12067, %v12733
  %v12945 = vadd.f32 %v12068, %v12821
  %v12946 = vadd.f32 %v12069, %v12909
  %v12947 = vadd.f32 %v12070, %v12647
  %v12948 = vadd.f32 %v12071, %v12735
  %v12949 = vadd.f32 %v12072, %v12823
  %v12950 = vadd.f32 %v12073, %v12911
  %v12951 = vadd.f32 %v12074, %v12650
  %v12952 = vadd.f32 %v12075, %v12738
  %v12953 = vadd.f32 %v12076, %v12826
  %v12954 = vadd.f32 %v12077, %v12914
  %v12955 = vadd.f32 %v12078, %v12652
  %v12956 = vadd.f32 %v12079, %v12740
  %v12957 = vadd.f32 %v12080, %v12828
  %v12958 = vadd.f32 %v12081, %v12916
  %v12959 = vadd.f32 %v12082, %v12655
  %v12960 = vadd.f32 %v12083, %v12743
  %v12961 = vadd.f32 %v12084, %v12831
  %v12962 = vadd.f32 %v12085, %v12919
  %v12963 = vadd.f32 %v12086, %v12657
  %v12964 = vadd.f32 %v12087, %v12745
  %v12965 = vadd.f32 %v12088, %v12833
  %v12966 = vadd.f32 %v12089, %v12921
  %v12967 = vadd.f32 %v12090, %v12660
  %v12968 = vadd.f32 %v12091, %v12748
  %v12969 = vadd.f32 %v12092, %v12836
  %v12970 = vadd.f32 %v12093, %v12924
  %v12971 = vadd.f32 %v12094, %v12662
  %v12972 = vadd.f32 %v12095, %v12750
  %v12973 = vadd.f32 %v12096, %v12838
  %v12974 = vadd.f32 %v12097, %v12926
  %v12975 = vadd.f32 %v12098, %v12665
  %v12976 = vadd.f32 %v12099, %v12753
  %v12977 = vadd.f32 %v12100, %v12841
  %v12978 = vadd.f32 %v12101, %v12929
  %v12979 = vadd.f32 %v12102, %v12667
  %v12980 = vadd.f32 %v12103, %v12755
  %v12981 = vadd.f32 %v12104, %v12843
  %v12982 = vadd.f32 %v12105, %v12931
  %v12983 = vadd.f32 %v12106, %v12670
  %v12984 = vadd.f32 %v12107, %v12758
  %v12985 = vadd.f32 %v12108, %v12846
  %v12986 = vadd.f32 %v12109, %v12934
  %v12987 = vadd.f32 %v12110, %v12672
  %v12988 = vadd.f32 %v12111, %v12760
  %v12989 = vadd.f32 %v12112, %v12848
  %v12990 = vadd.f32 %v12113, %v12936
  %v12991 = vadd.f32 %v12114, %v12675
  %v12992 = vadd.f32 %v12115, %v12763
  %v12993 = vadd.f32 %v12116, %v12851
  %v12994 = vadd.f32 %v12117, %v12939
  %v12995 = vadd.f32 %v12118, %v12677
  %v12996 = vadd.f32 %v12119, %v12765
  %v12997 = vadd.f32 %v12120, %v12853
  %v12998 = vadd.f32 %v12121, %v12941
  %v12999 = vld [vmem:[%s4] sm:$0xf]
  %v13001 = vperm.slane %v12999, 0
  %v13002 = vperm.slane %v12999, 1
  %v13003 = vperm.slane %v12999, 2
  %v13004 = vperm.slane %v12999, 3
  %v13009 = vadd.f32 %v12943, %v13001
  %v13010 = vadd.f32 %v12944, %v13002
  %v13011 = vadd.f32 %v12945, %v13003
  %v13012 = vadd.f32 %v12946, %v13004
  %v13013 = vadd.f32 %v12947, %v13001
  %v13014 = vadd.f32 %v12948, %v13002
  %v13015 = vadd.f32 %v12949, %v13003
  %v13016 = vadd.f32 %v12950, %v13004
  %v13017 = vadd.f32 %v12951, %v13001
  %v13018 = vadd.f32 %v12952, %v13002
  %v13019 = vadd.f32 %v12953, %v13003
  %v13020 = vadd.f32 %v12954, %v13004
  %v13021 = vadd.f32 %v12955, %v13001
  %v13022 = vadd.f32 %v12956, %v13002
  %v13023 = vadd.f32 %v12957, %v13003
  %v13024 = vadd.f32 %v12958, %v13004
  %v13025 = vadd.f32 %v12959, %v13001
  %v13026 = vadd.f32 %v12960, %v13002
  %v13027 = vadd.f32 %v12961, %v13003
  %v13028 = vadd.f32 %v12962, %v13004
  %v13029 = vadd.f32 %v12963, %v13001
  %v13030 = vadd.f32 %v12964, %v13002
  %v13031 = vadd.f32 %v12965, %v13003
  %v13032 = vadd.f32 %v12966, %v13004
  %v13033 = vadd.f32 %v12967, %v13001
  %v13034 = vadd.f32 %v12968, %v13002
  %v13035 = vadd.f32 %v12969, %v13003
  %v13036 = vadd.f32 %v12970, %v13004
  %v13037 = vadd.f32 %v12971, %v13001
  %v13038 = vadd.f32 %v12972, %v13002
  %v13039 = vadd.f32 %v12973, %v13003
  %v13040 = vadd.f32 %v12974, %v13004
  %v13041 = vadd.f32 %v12975, %v13001
  %v13042 = vadd.f32 %v12976, %v13002
  %v13043 = vadd.f32 %v12977, %v13003
  %v13044 = vadd.f32 %v12978, %v13004
  %v13045 = vadd.f32 %v12979, %v13001
  %v13046 = vadd.f32 %v12980, %v13002
  %v13047 = vadd.f32 %v12981, %v13003
  %v13048 = vadd.f32 %v12982, %v13004
  %v13049 = vadd.f32 %v12983, %v13001
  %v13050 = vadd.f32 %v12984, %v13002
  %v13051 = vadd.f32 %v12985, %v13003
  %v13052 = vadd.f32 %v12986, %v13004
  %v13053 = vadd.f32 %v12987, %v13001
  %v13054 = vadd.f32 %v12988, %v13002
  %v13055 = vadd.f32 %v12989, %v13003
  %v13056 = vadd.f32 %v12990, %v13004
  %v13057 = vadd.f32 %v12991, %v13001
  %v13058 = vadd.f32 %v12992, %v13002
  %v13059 = vadd.f32 %v12993, %v13003
  %v13060 = vadd.f32 %v12994, %v13004
  %v13061 = vadd.f32 %v12995, %v13001
  %v13062 = vadd.f32 %v12996, %v13002
  %v13063 = vadd.f32 %v12997, %v13003
  %v13064 = vadd.f32 %v12998, %v13004
  %v13065 = vmax.f32 %v13009, 0.0
  %v13066 = vmax.f32 %v13010, 0.0
  %v13067 = vmax.f32 %v13011, 0.0
  %v13068 = vmax.f32 %v13012, 0.0
  %v13069 = vmax.f32 %v13013, 0.0
  %v13070 = vmax.f32 %v13014, 0.0
  %v13071 = vmax.f32 %v13015, 0.0
  %v13072 = vmax.f32 %v13016, 0.0
  %v13073 = vmax.f32 %v13017, 0.0
  %v13074 = vmax.f32 %v13018, 0.0
  %v13075 = vmax.f32 %v13019, 0.0
  %v13076 = vmax.f32 %v13020, 0.0
  %v13077 = vmax.f32 %v13021, 0.0
  %v13078 = vmax.f32 %v13022, 0.0
  %v13079 = vmax.f32 %v13023, 0.0
  %v13080 = vmax.f32 %v13024, 0.0
  %v13081 = vmax.f32 %v13025, 0.0
  %v13082 = vmax.f32 %v13026, 0.0
  %v13083 = vmax.f32 %v13027, 0.0
  %v13084 = vmax.f32 %v13028, 0.0
  %v13085 = vmax.f32 %v13029, 0.0
  %v13086 = vmax.f32 %v13030, 0.0
  %v13087 = vmax.f32 %v13031, 0.0
  %v13088 = vmax.f32 %v13032, 0.0
  %v13089 = vmax.f32 %v13033, 0.0
  %v13090 = vmax.f32 %v13034, 0.0
  %v13091 = vmax.f32 %v13035, 0.0
  %v13092 = vmax.f32 %v13036, 0.0
  %v13093 = vmax.f32 %v13037, 0.0
  %v13094 = vmax.f32 %v13038, 0.0
  %v13095 = vmax.f32 %v13039, 0.0
  %v13096 = vmax.f32 %v13040, 0.0
  %v13097 = vmax.f32 %v13041, 0.0
  %v13098 = vmax.f32 %v13042, 0.0
  %v13099 = vmax.f32 %v13043, 0.0
  %v13100 = vmax.f32 %v13044, 0.0
  %v13101 = vmax.f32 %v13045, 0.0
  %v13102 = vmax.f32 %v13046, 0.0
  %v13103 = vmax.f32 %v13047, 0.0
  %v13104 = vmax.f32 %v13048, 0.0
  %v13105 = vmax.f32 %v13049, 0.0
  %v13106 = vmax.f32 %v13050, 0.0
  %v13107 = vmax.f32 %v13051, 0.0
  %v13108 = vmax.f32 %v13052, 0.0
  %v13109 = vmax.f32 %v13053, 0.0
  %v13110 = vmax.f32 %v13054, 0.0
  %v13111 = vmax.f32 %v13055, 0.0
  %v13112 = vmax.f32 %v13056, 0.0
  %v13113 = vmax.f32 %v13057, 0.0
  %v13114 = vmax.f32 %v13058, 0.0
  %v13115 = vmax.f32 %v13059, 0.0
  %v13116 = vmax.f32 %v13060, 0.0
  %v13117 = vmax.f32 %v13061, 0.0
  %v13118 = vmax.f32 %v13062, 0.0
  %v13119 = vmax.f32 %v13063, 0.0
  %v13120 = vmax.f32 %v13064, 0.0
  %v13121 = vpack.c.bf16 %v13069, %v13065
  %v13122 = vpack.c.bf16 %v13070, %v13066
  %v13123 = vpack.c.bf16 %v13071, %v13067
  %v13124 = vpack.c.bf16 %v13072, %v13068
  %v13125 = vpack.c.bf16 %v13077, %v13073
  %v13126 = vpack.c.bf16 %v13078, %v13074
  %v13127 = vpack.c.bf16 %v13079, %v13075
  %v13128 = vpack.c.bf16 %v13080, %v13076
  %v13129 = vpack.c.bf16 %v13085, %v13081
  %v13130 = vpack.c.bf16 %v13086, %v13082
  %v13131 = vpack.c.bf16 %v13087, %v13083
  %v13132 = vpack.c.bf16 %v13088, %v13084
  %v13133 = vpack.c.bf16 %v13093, %v13089
  %v13134 = vpack.c.bf16 %v13094, %v13090
  %v13135 = vpack.c.bf16 %v13095, %v13091
  %v13136 = vpack.c.bf16 %v13096, %v13092
  %v13137 = vpack.c.bf16 %v13101, %v13097
  %v13138 = vpack.c.bf16 %v13102, %v13098
  %v13139 = vpack.c.bf16 %v13103, %v13099
  %v13140 = vpack.c.bf16 %v13104, %v13100
  %v13141 = vpack.c.bf16 %v13109, %v13105
  %v13142 = vpack.c.bf16 %v13110, %v13106
  %v13143 = vpack.c.bf16 %v13111, %v13107
  %v13144 = vpack.c.bf16 %v13112, %v13108
  %v13145 = vpack.c.bf16 %v13117, %v13113
  %v13146 = vpack.c.bf16 %v13118, %v13114
  %v13147 = vpack.c.bf16 %v13119, %v13115
  %v13148 = vpack.c.bf16 %v13120, %v13116
  %v13149 = vld [vmem:[%s5] sm:$0xf]
  %v13150 = vld [vmem:[%s5 + $0x4] sm:$0xf]
  %v13151 = vld [vmem:[%s5 + $0x8] sm:$0xf]
  %v13152 = vld [vmem:[%s5 + $0xc] sm:$0xf]
  %v13153 = vld [vmem:[%s5 + $0x10] sm:$0xf]
  %v13154 = vld [vmem:[%s5 + $0x14] sm:$0xf]
  %v13155 = vld [vmem:[%s5 + $0x18] sm:$0xf]
  %v13156 = vld [vmem:[%s5 + $0x1c] sm:$0xf]
  %v13157 = vld [vmem:[%s5 + $0x20] sm:$0xf]
  %v13158 = vld [vmem:[%s5 + $0x24] sm:$0xf]
  %v13159 = vld [vmem:[%s5 + $0x28] sm:$0xf]
  %v13160 = vld [vmem:[%s5 + $0x2c] sm:$0xf]
  %v13161 = vld [vmem:[%s5 + $0x30] sm:$0xf]
  %v13162 = vld [vmem:[%s5 + $0x34] sm:$0xf]
  %v13163 = vld [vmem:[%s5 + $0x38] sm:$0xf]
  %v13164 = vld [vmem:[%s5 + $0x3c] sm:$0xf]
  %v13165 = vld [vmem:[%s5 + $0x40] sm:$0xf]
  %v13166 = vld [vmem:[%s5 + $0x44] sm:$0xf]
  %v13167 = vld [vmem:[%s5 + $0x48] sm:$0xf]
  %v13168 = vld [vmem:[%s5 + $0x4c] sm:$0xf]
  %v13169 = vld [vmem:[%s5 + $0x50] sm:$0xf]
  %v13170 = vld [vmem:[%s5 + $0x54] sm:$0xf]
  %v13171 = vld [vmem:[%s5 + $0x58] sm:$0xf]
  %v13172 = vld [vmem:[%s5 + $0x5c] sm:$0xf]
  %v13173 = vld [vmem:[%s5 + $0x60] sm:$0xf]
  %v13174 = vld [vmem:[%s5 + $0x64] sm:$0xf]
  %v13175 = vld [vmem:[%s5 + $0x68] sm:$0xf]
  %v13176 = vld [vmem:[%s5 + $0x6c] sm:$0xf]
  %v13177 = vld [vmem:[%s5 + $0x70] sm:$0xf]
  %v13178 = vld [vmem:[%s5 + $0x74] sm:$0xf]
  %v13179 = vld [vmem:[%s5 + $0x78] sm:$0xf]
  %v13180 = vld [vmem:[%s5 + $0x7c] sm:$0xf]
  %v13181 = vld [vmem:[%s5 + $0x80] sm:$0xf]
  %v13182 = vld [vmem:[%s5 + $0x84] sm:$0xf]
  %v13183 = vld [vmem:[%s5 + $0x88] sm:$0xf]
  %v13184 = vld [vmem:[%s5 + $0x8c] sm:$0xf]
  %v13185 = vld [vmem:[%s5 + $0x90] sm:$0xf]
  %v13186 = vld [vmem:[%s5 + $0x94] sm:$0xf]
  %v13187 = vld [vmem:[%s5 + $0x98] sm:$0xf]
  %v13188 = vld [vmem:[%s5 + $0x9c] sm:$0xf]
  %v13189 = vld [vmem:[%s5 + $0xa0] sm:$0xf]
  %v13190 = vld [vmem:[%s5 + $0xa4] sm:$0xf]
  %v13191 = vld [vmem:[%s5 + $0xa8] sm:$0xf]
  %v13192 = vld [vmem:[%s5 + $0xac] sm:$0xf]
  %v13193 = vld [vmem:[%s5 + $0xb0] sm:$0xf]
  %v13194 = vld [vmem:[%s5 + $0xb4] sm:$0xf]
  %v13195 = vld [vmem:[%s5 + $0xb8] sm:$0xf]
  %v13196 = vld [vmem:[%s5 + $0xbc] sm:$0xf]
  %v13197 = vld [vmem:[%s5 + $0xc0] sm:$0xf]
  %v13198 = vld [vmem:[%s5 + $0xc4] sm:$0xf]
  %v13199 = vld [vmem:[%s5 + $0xc8] sm:$0xf]
  %v13200 = vld [vmem:[%s5 + $0xcc] sm:$0xf]
  %v13201 = vld [vmem:[%s5 + $0xd0] sm:$0xf]
  %v13202 = vld [vmem:[%s5 + $0xd4] sm:$0xf]
  %v13203 = vld [vmem:[%s5 + $0xd8] sm:$0xf]
  %v13204 = vld [vmem:[%s5 + $0xdc] sm:$0xf]
  %v13205 = vld [vmem:[%s5 + $0xe0] sm:$0xf]
  %v13206 = vld [vmem:[%s5 + $0xe4] sm:$0xf]
  %v13207 = vld [vmem:[%s5 + $0xe8] sm:$0xf]
  %v13208 = vld [vmem:[%s5 + $0xec] sm:$0xf]
  %v13209 = vld [vmem:[%s5 + $0xf0] sm:$0xf]
  %v13210 = vld [vmem:[%s5 + $0xf4] sm:$0xf]
  %v13211 = vld [vmem:[%s5 + $0xf8] sm:$0x3]
  %v13275 = vunpack.c.l.b16 %v13149
  %v13276 = vunpack.c.l.b16 %v13150
  %v13277 = vunpack.c.l.b16 %v13151
  %v13278 = vunpack.c.l.b16 %v13152
  %v13279 = vunpack.c.l.b16 %v13153
  %v13280 = vunpack.c.l.b16 %v13154
  %v13281 = vunpack.c.l.b16 %v13155
  %v13282 = vunpack.c.l.b16 %v13156
  %v13283 = vunpack.c.l.b16 %v13157
  %v13284 = vunpack.c.l.b16 %v13158
  %v13285 = vunpack.c.l.b16 %v13159
  %v13286 = vunpack.c.l.b16 %v13160
  %v13287 = vunpack.c.l.b16 %v13161
  %v13288 = vunpack.c.l.b16 %v13162
  %v13289 = vunpack.c.l.b16 %v13163
  %v13290 = vunpack.c.l.b16 %v13164
  %v13291 = vunpack.c.l.b16 %v13165
  %v13292 = vunpack.c.l.b16 %v13166
  %v13293 = vunpack.c.l.b16 %v13167
  %v13294 = vunpack.c.l.b16 %v13168
  %v13295 = vunpack.c.l.b16 %v13169
  %v13296 = vunpack.c.l.b16 %v13170
  %v13297 = vunpack.c.l.b16 %v13171
  %v13298 = vunpack.c.l.b16 %v13172
  %v13299 = vunpack.c.l.b16 %v13173
  %v13300 = vunpack.c.l.b16 %v13174
  %v13301 = vunpack.c.l.b16 %v13175
  %v13302 = vunpack.c.l.b16 %v13176
  %v13303 = vunpack.c.l.b16 %v13177
  %v13304 = vunpack.c.l.b16 %v13178
  %v13305 = vunpack.c.l.b16 %v13179
  %v13306 = vunpack.c.l.b16 %v13180
  %v13307 = vunpack.c.l.b16 %v13181
  %v13308 = vunpack.c.l.b16 %v13182
  %v13309 = vunpack.c.l.b16 %v13183
  %v13310 = vunpack.c.l.b16 %v13184
  %v13311 = vunpack.c.l.b16 %v13185
  %v13312 = vunpack.c.l.b16 %v13186
  %v13313 = vunpack.c.l.b16 %v13187
  %v13314 = vunpack.c.l.b16 %v13188
  %v13315 = vunpack.c.l.b16 %v13189
  %v13316 = vunpack.c.l.b16 %v13190
  %v13317 = vunpack.c.l.b16 %v13191
  %v13318 = vunpack.c.l.b16 %v13192
  %v13319 = vunpack.c.l.b16 %v13193
  %v13320 = vunpack.c.l.b16 %v13194
  %v13321 = vunpack.c.l.b16 %v13195
  %v13322 = vunpack.c.l.b16 %v13196
  %v13323 = vunpack.c.l.b16 %v13197
  %v13324 = vunpack.c.l.b16 %v13198
  %v13325 = vunpack.c.l.b16 %v13199
  %v13326 = vunpack.c.l.b16 %v13200
  %v13327 = vunpack.c.l.b16 %v13201
  %v13328 = vunpack.c.l.b16 %v13202
  %v13329 = vunpack.c.l.b16 %v13203
  %v13330 = vunpack.c.l.b16 %v13204
  %v13331 = vunpack.c.l.b16 %v13205
  %v13332 = vunpack.c.l.b16 %v13206
  %v13333 = vunpack.c.l.b16 %v13207
  %v13334 = vunpack.c.l.b16 %v13208
  %v13335 = vunpack.c.l.b16 %v13209
  %v13336 = vunpack.c.l.b16 %v13210
  %v13337 = vunpack.c.l.b16 %v13211
  %v13338 = vpack.c.b16 %v13276, %v13275
  %v13339 = vpack.c.b16 %v13278, %v13277
  %v13340 = vpack.c.b16 %v13280, %v13279
  %v13341 = vpack.c.b16 %v13282, %v13281
  %v13342 = vpack.c.b16 %v13284, %v13283
  %v13343 = vpack.c.b16 %v13286, %v13285
  %v13344 = vpack.c.b16 %v13288, %v13287
  %v13345 = vpack.c.b16 %v13290, %v13289
  %v13346 = vpack.c.b16 %v13292, %v13291
  %v13347 = vpack.c.b16 %v13294, %v13293
  %v13348 = vpack.c.b16 %v13296, %v13295
  %v13349 = vpack.c.b16 %v13298, %v13297
  %v13350 = vpack.c.b16 %v13300, %v13299
  %v13351 = vpack.c.b16 %v13302, %v13301
  %v13352 = vpack.c.b16 %v13304, %v13303
  %v13353 = vpack.c.b16 %v13306, %v13305
  %v13354 = vpack.c.b16 %v13308, %v13307
  %v13355 = vpack.c.b16 %v13310, %v13309
  %v13356 = vpack.c.b16 %v13312, %v13311
  %v13357 = vpack.c.b16 %v13314, %v13313
  %v13358 = vpack.c.b16 %v13316, %v13315
  %v13359 = vpack.c.b16 %v13318, %v13317
  %v13360 = vpack.c.b16 %v13320, %v13319
  %v13361 = vpack.c.b16 %v13322, %v13321
  %v13362 = vpack.c.b16 %v13324, %v13323
  %v13363 = vpack.c.b16 %v13326, %v13325
  %v13364 = vpack.c.b16 %v13328, %v13327
  %v13365 = vpack.c.b16 %v13330, %v13329
  %v13366 = vpack.c.b16 %v13332, %v13331
  %v13367 = vpack.c.b16 %v13334, %v13333
  %v13368 = vpack.c.b16 %v13336, %v13335
  %v13369 = vpack.c.b16 %v13337, %v13337
  %vm13401 = vcmask 949248
  %v13403 = vsel %vm13401, %v13124, 0
  %v13406 = vsel %vm13401, %v13128, 0
  %v13409 = vsel %vm13401, %v13132, 0
  %v13412 = vsel %vm13401, %v13136, 0
  %v13415 = vsel %vm13401, %v13140, 0
  %v13418 = vsel %vm13401, %v13144, 0
  %v13421 = vsel %vm13401, %v13148, 0
  %vm13423 = vcmask 1041408
  %v13425 = vsel %vm13423, %v13369, 0
  %13427 = vmatpush.bf16.msra.mxu0 %v13345
  %13428 = vmatpush.bf16.msra.mxu0 %v13344
  %13429 = vmatpush.bf16.msra.mxu0 %v13343
  %13430 = vmatpush.bf16.msra.mxu0 %v13342
  %13431 = vmatpush.bf16.msra.mxu0 %v13341
  %13432 = vmatpush.bf16.msra.mxu0 %v13340
  %13433 = vmatpush.bf16.msra.mxu0 %v13339
  %13434 = vmatpush.bf16.msra.mxu0 %v13338
  %13435 = vmatmul.bf16.gmra.mxu0 %v13121
  %v13436 = vpop.f32.mrf.mxu0
  %v13437 = vadd.f32 0.0, %v13436
  %v13438 = vpop.f32.mrf.mxu0
  %v13439 = vadd.f32 0.0, %v13438
  %13440 = vmatmul.bf16.gmra.mxu0 %v13125
  %v13441 = vpop.f32.mrf.mxu0
  %v13442 = vadd.f32 0.0, %v13441
  %v13443 = vpop.f32.mrf.mxu0
  %v13444 = vadd.f32 0.0, %v13443
  %13445 = vmatmul.bf16.gmra.mxu0 %v13129
  %v13446 = vpop.f32.mrf.mxu0
  %v13447 = vadd.f32 0.0, %v13446
  %v13448 = vpop.f32.mrf.mxu0
  %v13449 = vadd.f32 0.0, %v13448
  %13450 = vmatmul.bf16.gmra.mxu0 %v13133
  %v13451 = vpop.f32.mrf.mxu0
  %v13452 = vadd.f32 0.0, %v13451
  %v13453 = vpop.f32.mrf.mxu0
  %v13454 = vadd.f32 0.0, %v13453
  %13455 = vmatmul.bf16.gmra.mxu0 %v13137
  %v13456 = vpop.f32.mrf.mxu0
  %v13457 = vadd.f32 0.0, %v13456
  %v13458 = vpop.f32.mrf.mxu0
  %v13459 = vadd.f32 0.0, %v13458
  %13460 = vmatmul.bf16.gmra.mxu0 %v13141
  %v13461 = vpop.f32.mrf.mxu0
  %v13462 = vadd.f32 0.0, %v13461
  %v13463 = vpop.f32.mrf.mxu0
  %v13464 = vadd.f32 0.0, %v13463
  %13465 = vmatmul.bf16.gmra.mxu0 %v13145
  %v13466 = vpop.f32.mrf.mxu0
  %v13467 = vadd.f32 0.0, %v13466
  %v13468 = vpop.f32.mrf.mxu0
  %v13469 = vadd.f32 0.0, %v13468
  %13470 = vdwg.mxu0
  %13471 = vmatpush.bf16.msra.mxu0 %v13353
  %13472 = vmatpush.bf16.msra.mxu0 %v13352
  %13473 = vmatpush.bf16.msra.mxu0 %v13351
  %13474 = vmatpush.bf16.msra.mxu0 %v13350
  %13475 = vmatpush.bf16.msra.mxu0 %v13349
  %13476 = vmatpush.bf16.msra.mxu0 %v13348
  %13477 = vmatpush.bf16.msra.mxu0 %v13347
  %13478 = vmatpush.bf16.msra.mxu0 %v13346
  %13479 = vmatmul.bf16.gmra.mxu0 %v13122
  %v13480 = vpop.f32.mrf.mxu0
  %v13481 = vadd.f32 %v13437, %v13480
  %v13482 = vpop.f32.mrf.mxu0
  %v13483 = vadd.f32 %v13439, %v13482
  %13484 = vmatmul.bf16.gmra.mxu0 %v13126
  %v13485 = vpop.f32.mrf.mxu0
  %v13486 = vadd.f32 %v13442, %v13485
  %v13487 = vpop.f32.mrf.mxu0
  %v13488 = vadd.f32 %v13444, %v13487
  %13489 = vmatmul.bf16.gmra.mxu0 %v13130
  %v13490 = vpop.f32.mrf.mxu0
  %v13491 = vadd.f32 %v13447, %v13490
  %v13492 = vpop.f32.mrf.mxu0
  %v13493 = vadd.f32 %v13449, %v13492
  %13494 = vmatmul.bf16.gmra.mxu0 %v13134
  %v13495 = vpop.f32.mrf.mxu0
  %v13496 = vadd.f32 %v13452, %v13495
  %v13497 = vpop.f32.mrf.mxu0
  %v13498 = vadd.f32 %v13454, %v13497
  %13499 = vmatmul.bf16.gmra.mxu0 %v13138
  %v13500 = vpop.f32.mrf.mxu0
  %v13501 = vadd.f32 %v13457, %v13500
  %v13502 = vpop.f32.mrf.mxu0
  %v13503 = vadd.f32 %v13459, %v13502
  %13504 = vmatmul.bf16.gmra.mxu0 %v13142
  %v13505 = vpop.f32.mrf.mxu0
  %v13506 = vadd.f32 %v13462, %v13505
  %v13507 = vpop.f32.mrf.mxu0
  %v13508 = vadd.f32 %v13464, %v13507
  %13509 = vmatmul.bf16.gmra.mxu0 %v13146
  %v13510 = vpop.f32.mrf.mxu0
  %v13511 = vadd.f32 %v13467, %v13510
  %v13512 = vpop.f32.mrf.mxu0
  %v13513 = vadd.f32 %v13469, %v13512
  %13514 = vdwg.mxu0
  %13515 = vmatpush.bf16.msra.mxu0 %v13361
  %13516 = vmatpush.bf16.msra.mxu0 %v13360
  %13517 = vmatpush.bf16.msra.mxu0 %v13359
  %13518 = vmatpush.bf16.msra.mxu0 %v13358
  %13519 = vmatpush.bf16.msra.mxu0 %v13357
  %13520 = vmatpush.bf16.msra.mxu0 %v13356
  %13521 = vmatpush.bf16.msra.mxu0 %v13355
  %13522 = vmatpush.bf16.msra.mxu0 %v13354
  %13523 = vmatmul.bf16.gmra.mxu0 %v13123
  %v13524 = vpop.f32.mrf.mxu0
  %v13525 = vadd.f32 %v13481, %v13524
  %v13526 = vpop.f32.mrf.mxu0
  %v13527 = vadd.f32 %v13483, %v13526
  %13528 = vmatmul.bf16.gmra.mxu0 %v13127
  %v13529 = vpop.f32.mrf.mxu0
  %v13530 = vadd.f32 %v13486, %v13529
  %v13531 = vpop.f32.mrf.mxu0
  %v13532 = vadd.f32 %v13488, %v13531
  %13533 = vmatmul.bf16.gmra.mxu0 %v13131
  %v13534 = vpop.f32.mrf.mxu0
  %v13535 = vadd.f32 %v13491, %v13534
  %v13536 = vpop.f32.mrf.mxu0
  %v13537 = vadd.f32 %v13493, %v13536
  %13538 = vmatmul.bf16.gmra.mxu0 %v13135
  %v13539 = vpop.f32.mrf.mxu0
  %v13540 = vadd.f32 %v13496, %v13539
  %v13541 = vpop.f32.mrf.mxu0
  %v13542 = vadd.f32 %v13498, %v13541
  %13543 = vmatmul.bf16.gmra.mxu0 %v13139
  %v13544 = vpop.f32.mrf.mxu0
  %v13545 = vadd.f32 %v13501, %v13544
  %v13546 = vpop.f32.mrf.mxu0
  %v13547 = vadd.f32 %v13503, %v13546
  %13548 = vmatmul.bf16.gmra.mxu0 %v13143
  %v13549 = vpop.f32.mrf.mxu0
  %v13550 = vadd.f32 %v13506, %v13549
  %v13551 = vpop.f32.mrf.mxu0
  %v13552 = vadd.f32 %v13508, %v13551
  %13553 = vmatmul.bf16.gmra.mxu0 %v13147
  %v13554 = vpop.f32.mrf.mxu0
  %v13555 = vadd.f32 %v13511, %v13554
  %v13556 = vpop.f32.mrf.mxu0
  %v13557 = vadd.f32 %v13513, %v13556
  %13558 = vdwg.mxu0
  %13559 = vmatpush.bf16.msra.mxu0 %v13425
  %13560 = vmatpush.bf16.msra.mxu0 %v13368
  %13561 = vmatpush.bf16.msra.mxu0 %v13367
  %13562 = vmatpush.bf16.msra.mxu0 %v13366
  %13563 = vmatpush.bf16.msra.mxu0 %v13365
  %13564 = vmatpush.bf16.msra.mxu0 %v13364
  %13565 = vmatpush.bf16.msra.mxu0 %v13363
  %13566 = vmatpush.bf16.msra.mxu0 %v13362
  %13567 = vmatmul.bf16.gmra.mxu0 %v13403
  %v13568 = vpop.f32.mrf.mxu0
  %v13569 = vadd.f32 %v13525, %v13568
  %v13570 = vpop.f32.mrf.mxu0
  %v13571 = vadd.f32 %v13527, %v13570
  %13572 = vmatmul.bf16.gmra.mxu0 %v13406
  %v13573 = vpop.f32.mrf.mxu0
  %v13574 = vadd.f32 %v13530, %v13573
  %v13575 = vpop.f32.mrf.mxu0
  %v13576 = vadd.f32 %v13532, %v13575
  %13577 = vmatmul.bf16.gmra.mxu0 %v13409
  %v13578 = vpop.f32.mrf.mxu0
  %v13579 = vadd.f32 %v13535, %v13578
  %v13580 = vpop.f32.mrf.mxu0
  %v13581 = vadd.f32 %v13537, %v13580
  %13582 = vmatmul.bf16.gmra.mxu0 %v13412
  %v13583 = vpop.f32.mrf.mxu0
  %v13584 = vadd.f32 %v13540, %v13583
  %v13585 = vpop.f32.mrf.mxu0
  %v13586 = vadd.f32 %v13542, %v13585
  %13587 = vmatmul.bf16.gmra.mxu0 %v13415
  %v13588 = vpop.f32.mrf.mxu0
  %v13589 = vadd.f32 %v13545, %v13588
  %v13590 = vpop.f32.mrf.mxu0
  %v13591 = vadd.f32 %v13547, %v13590
  %13592 = vmatmul.bf16.gmra.mxu0 %v13418
  %v13593 = vpop.f32.mrf.mxu0
  %v13594 = vadd.f32 %v13550, %v13593
  %v13595 = vpop.f32.mrf.mxu0
  %v13596 = vadd.f32 %v13552, %v13595
  %13597 = vmatmul.bf16.gmra.mxu0 %v13421
  %v13598 = vpop.f32.mrf.mxu0
  %v13599 = vadd.f32 %v13555, %v13598
  %v13600 = vpop.f32.mrf.mxu0
  %v13601 = vadd.f32 %v13557, %v13600
  %13602 = vdwg.mxu0
  %v13603 = vlaneseq
  %v13604 = vshrl.u32 %v13603, 7
  %v13605 = vadd.s32 %v13604, 8
  %v13606 = vlaneseq
  %v13607 = vand.u32 %v13606, 127
  %v13608 = vmul.u32 %v13604, 7
  %v13609 = vmul.u32 %v13605, 7
  %vm13610 = vcmp.eq.s32.totalorder %v13607, %v13608
  %vm13611 = vcmp.eq.s32.totalorder %v13607, %v13609
  %v13612 = vsel %vm13610, 1, 0
  %v13613 = vsel %vm13611, 1, 0
  %v13614 = vcvt.s32.f32 %v13612
  %v13615 = vcvt.s32.f32 %v13613
  %v13617 = vsel %vm924, %v13614, 0
  %v13620 = vsel %vm924, %v13615, 0
  %13622 = vmatpush.msra.mxu0 0.0
  %13623 = vmatpush.msra.mxu0 0.0
  %13624 = vmatpush.msra.mxu0 %v13601
  %13625 = vmatpush.msra.mxu0 %v13599
  %13626 = vmatpush.msra.mxu0 %v13596
  %13627 = vmatpush.msra.mxu0 %v13594
  %13628 = vmatpush.msra.mxu0 %v13591
  %13629 = vmatpush.msra.mxu0 %v13589
  %13630 = vmatpush.msra.mxu0 %v13586
  %13631 = vmatpush.msra.mxu0 %v13584
  %13632 = vmatpush.msra.mxu0 %v13581
  %13633 = vmatpush.msra.mxu0 %v13579
  %13634 = vmatpush.msra.mxu0 %v13576
  %13635 = vmatpush.msra.mxu0 %v13574
  %13636 = vmatpush.msra.mxu0 %v13571
  %13637 = vmatpush.msra.mxu0 %v13569
  %13638 = vmatmul.f32.gmra.mxu0 %v13617
  %v13639 = vpop.f32.mrf.mxu0
  %v13640 = vadd.f32 0.0, %v13639
  %13641 = vmatmul.f32.gmra.mxu0 %v13620
  %v13642 = vpop.f32.mrf.mxu0
  %v13643 = vadd.f32 0.0, %v13642
  %13644 = vdwg.mxu0
  %vm13645 = vcmask 80896
  %13646 = vst.msk [vmem:[%s6] sm:$0xff] %vm13645, %v13640
  %13647 = vst.msk [vmem:[%s6 + $0x8] sm:$0xff] %vm13645, %v13643
  // Predicated region
  $region26: #{lenet_manessi_forward.1} parent=0 // pred_check
    _
  $region27: #{lenet_manessi_forward.1} parent=0 // pred_check_branch
    %13649 = sbr.rel (0) target = $region29
  $region28: #{lenet_manessi_forward.1} parent=0 // pred_region
    _
  $region29: #{lenet_manessi_forward.1} parent=0 // pred_fallthru
    _
  // Predicated region
  $region30: #{lenet_manessi_forward.1} parent=0 // pred_check
    _
  $region31: #{lenet_manessi_forward.1} parent=0 // pred_check_branch
    %13651 = sbr.rel (0) target = $region33
  $region32: #{lenet_manessi_forward.1} parent=0 // pred_region
    _
  $region33: #{lenet_manessi_forward.1} parent=0 // pred_fallthru
    _

</llo_original>
